<compile_context>
chip_gen: v5e
topology: v5e:2x2
jax: 0.10.0
libtpu: 0.0.40
codegen_flags: <defaults>
</compile_context>

<pallas_src>
import jax
import jax.numpy as jnp
from jax import lax
from jax.experimental import pallas as pl
from jax.experimental.pallas import tpu as pltpu


def _ceil8(v):
    return ((v + 7) // 8) * 8


def _make_kernel(C, CP, CPV, A0, batch_block, eps, softmax_bf16):
    """Fused per-grid-step kernel over a block of `batch_block` batch elements."""
    hi = lax.Precision.HIGHEST
    score_prec = lax.Precision.DEFAULT if softmax_bf16 else hi

    def kernel(x_ref, wqkv_ref, bqkv_ref, misc_ref, o_ref):
        # x_ref   : (B, C, HW)            input block, HW on the lane axis
        # wqkv_ref: (2*CP + CPV, C)       fused q/k/v weights (gamma & scale folded,
        #                                 zero rows pad each block to 8-sublane tiles)
        # bqkv_ref: (2*CP + CPV, 1)       fused q/k/v biases (beta folded; row
        #                                 2*CP + C == 1.0 -> emits softmax row-sums)
        # misc_ref: (C, A0 + CPV + 1)     [ Agg | wo_pad | bo ]
        # o_ref   : (B, C, HW)
        agg = misc_ref[:, 0:C]                      # (C, C)  group-mean matrix, 1/(cpg*HW) folded
        wo = misc_ref[:, A0:A0 + CPV]               # (C, CPV) out-conv weights, zero cols past C
        bo = misc_ref[:, A0 + CPV:A0 + CPV + 1]     # (C, 1)
        wqkv = wqkv_ref[...]
        bqkv = bqkv_ref[...]

        for b in range(batch_block):                # static unroll: independent chains -> ILP
            x = x_ref[b].astype(jnp.float32)        # (C, HW)

            # ---- GroupNorm, whole-tile two-pass (no per-group slicing/concat) ----
            row_sum = jnp.sum(x, axis=1, keepdims=True)                    # (C, 1)
            mu = jnp.dot(agg, row_sum, precision=hi,
                         preferred_element_type=jnp.float32)               # (C, 1)
            xc = x - mu
            row_ss = jnp.sum(xc * xc, axis=1, keepdims=True)               # (C, 1)
            var = jnp.dot(agg, row_ss, precision=hi,
                          preferred_element_type=jnp.float32)              # (C, 1)
            xn = xc * lax.rsqrt(var + eps)                                 # (C, HW) affine folded away

            # ---- fused q/k/v projection: one MXU push ----------------------------
            qkv = jnp.dot(wqkv, xn, precision=hi,
                          preferred_element_type=jnp.float32) + bqkv       # (R, HW)
            q = qkv[0:CP]                    # (CP, HW)   rows >= C are exactly 0
            k = qkv[CP:2 * CP]               # (CP, HW)
            v = qkv[2 * CP:2 * CP + CPV]     # (CPV, HW)  row C is all-ones (row-sum trick)

            # ---- attention scores, TN dot form (no q.T materialization) ----------
            s = lax.dot_general(q, k, (((0,), (0,)), ((), ())),
                                precision=score_prec,
                                preferred_element_type=jnp.float32)        # (HW, HW)
            m = jnp.max(s, axis=-1, keepdims=True)                         # (HW, 1)
            if softmax_bf16:
                p = jnp.exp((s - m).astype(jnp.bfloat16))                  # bf16 EUP exp
                pv = lax.dot_general(v.astype(jnp.bfloat16), p,
                                     (((1,), (1,)), ((), ())),
                                     preferred_element_type=jnp.float32)   # (CPV, HW)
            else:
                p = jnp.exp(s - m)
                pv = lax.dot_general(v, p, (((1,), (1,)), ((), ())),
                                     precision=hi,
                                     preferred_element_type=jnp.float32)   # (CPV, HW)

            # Deferred softmax normalization: row C of pv is l_i = sum_j p[i, j],
            # already lane-dense as a (1, HW) row (no transpose / divides over HW^2).
            inv_l = pl.reciprocal(pv[C:C + 1, :], approx=softmax_bf16)     # (1, HW)

            # ---- out conv + deferred normalization + bias + residual -------------
            y = jnp.dot(wo, pv, precision=hi,
                        preferred_element_type=jnp.float32)                # (C, HW)
            o_ref[b] = (y * inv_l + bo + x).astype(o_ref.dtype)

    return kernel


def residual_attention_block(x, params, num_groups=2, eps=1e-5,
                             batch_block=None, softmax_bf16=False):
    """x: (N, C, H, W) f32 -> (N, C, H, W); matches vanilla_forward with norm='gn'."""
    N, C, H, W = x.shape
    assert C % num_groups == 0, "in_channels must be divisible by num_groups"
    HW = H * W
    cpg = C // num_groups
    f32 = jnp.float32

    # Batch block: amortize the ~0.35us per-grid-step overhead and expose ILP.
    if batch_block is None:
        batch_block = max(1, min(N, 8 // C if C < 8 else 1))
        while N % batch_block:
            batch_block -= 1
    assert N % batch_block == 0
    # TODO(synk): on v7x (2 TensorCores) prefer keeping >= 2 grid steps when N permits.

    scale = float(C) ** -0.5
    CP = _ceil8(C)            # q / k row blocks, 8-sublane aligned
    CPV = _ceil8(C + 1)       # v row block (+1 all-ones row for softmax row-sums)
    R = 2 * CP + CPV
    A0 = CP                   # lane offset of wo inside the packed misc array

    # ---- fold GroupNorm affine + attention scale into the qkv conv --------------
    wqkv = params["qkv_w"].reshape(3 * C, C).astype(f32)
    bqkv = params["qkv_b"].astype(f32)
    gamma = params["gn_w"].astype(f32)
    beta = params["gn_b"].astype(f32)

    def fold(wm, bm, s_):
        return s_ * (wm * gamma[None, :]), s_ * (wm @ beta + bm)

    wq_f, bq_f = fold(wqkv[0:C], bqkv[0:C], scale)          # scale folded into q only
    wk_f, bk_f = fold(wqkv[C:2 * C], bqkv[C:2 * C], 1.0)
    wv_f, bv_f = fold(wqkv[2 * C:], bqkv[2 * C:], 1.0)

    wqkv_pack = jnp.zeros((R, C), f32)
    wqkv_pack = (wqkv_pack.at[0:C].set(wq_f)
                          .at[CP:CP + C].set(wk_f)
                          .at[2 * CP:2 * CP + C].set(wv_f))
    bqkv_pack = jnp.zeros((R, 1), f32)
    bqkv_pack = (bqkv_pack.at[0:C, 0].set(bq_f)
                          .at[CP:CP + C, 0].set(bk_f)
                          .at[2 * CP:2 * CP + C, 0].set(bv_f)
                          .at[2 * CP + C, 0].set(1.0))       # all-ones v row -> row-sums l

    # ---- pack remaining tiny params into ONE array: [Agg | wo_pad | bo] ----------
    gids = jnp.arange(C) // cpg
    agg = (gids[:, None] == gids[None, :]).astype(f32) / float(cpg * HW)
    wo = params["out_w"].reshape(C, C).astype(f32)
    bo = params["out_b"].astype(f32)
    misc = jnp.zeros((C, A0 + CPV + 1), f32)
    misc = (misc.at[:, 0:C].set(agg)
                .at[:, A0:A0 + C].set(wo)
                .at[:, A0 + CPV].set(bo))

    x2 = x.reshape(N, C, HW)                      # HW on the lane axis (lane-dense stores)
    kernel = _make_kernel(C, CP, CPV, A0, batch_block, float(eps), softmax_bf16)
    const_map = lambda n: (0, 0)

    out2 = pl.pallas_call(
        kernel,
        out_shape=jax.ShapeDtypeStruct((N, C, HW), x.dtype),
        grid=(N // batch_block,),
        in_specs=[
            pl.BlockSpec((batch_block, C, HW), lambda n: (n, 0, 0)),   # x
            pl.BlockSpec((R, C), const_map),                           # fused qkv weights
            pl.BlockSpec((R, 1), const_map),                           # fused qkv biases
            pl.BlockSpec((C, A0 + CPV + 1), const_map),                # [Agg | wo | bo]
        ],
        out_specs=pl.BlockSpec((batch_block, C, HW), lambda n: (n, 0, 0)),
        compiler_params=pltpu.CompilerParams(
            dimension_semantics=("parallel",)),
    )(x2, wqkv_pack, bqkv_pack, misc)
    return out2.reshape(N, C, H, W)


def _ref_forward(x, params, num_groups, eps=1e-5):
    """Pure-JAX reference (same math as the PyTorch module's vanilla_forward)."""
    hi = lax.Precision.HIGHEST
    N, C, H, W = x.shape
    G = num_groups
    xg = x.reshape(N, G, (C // G) * H * W)
    mu = xg.mean(axis=2, keepdims=True)
    var = xg.var(axis=2, keepdims=True)
    xn = ((xg - mu) / jnp.sqrt(var + eps)).reshape(N, C, H, W)
    xn = xn * params["gn_w"][None, :, None, None] + params["gn_b"][None, :, None, None]

    wqkv = params["qkv_w"][:, :, 0, 0]
    qkv = jnp.einsum("oc,nchw->nohw", wqkv, xn, precision=hi) \
        + params["qkv_b"][None, :, None, None]
    q, k, v = jnp.split(qkv, 3, axis=1)
    q = q.reshape(N, C, H * W)
    k = k.reshape(N, C, H * W)
    v = v.reshape(N, C, H * W)

    s = jnp.einsum("nci,ncj->nij", q, k, precision=hi) * (C ** -0.5)
    attn = jax.nn.softmax(s, axis=-1)
    out = jnp.einsum("nij,ncj->nci", attn, v, precision=hi).reshape(N, C, H, W)

    wout = params["out_w"][:, :, 0, 0]
    y = jnp.einsum("oc,nchw->nohw", wout, out, precision=hi) \
        + params["out_b"][None, :, None, None]
    return y + x


if __name__ == "__main__":
    key = jax.random.PRNGKey(0)
    kx, k1, k2, k3, k4, k5, k6 = jax.random.split(key, 7)

    N, C, H, W = 2, 4, 16, 16
    G = 2   # module default num_groups=32 needs C % 32 == 0; use 2 for C=4
    x = jax.random.normal(kx, (N, C, H, W), jnp.float32)

    params = {
        "gn_w": 1.0 + 0.1 * jax.random.normal(k1, (C,), jnp.float32),
        "gn_b": 0.1 * jax.random.normal(k2, (C,), jnp.float32),
        "qkv_w": jax.random.normal(k3, (3 * C, C, 1, 1), jnp.float32) / C ** 0.5,
        "qkv_b": 0.1 * jax.random.normal(k4, (3 * C,), jnp.float32),
        "out_w": jax.random.normal(k5, (C, C, 1, 1), jnp.float32) / C ** 0.5,
        "out_b": 0.1 * jax.random.normal(k6, (C,), jnp.float32),
    }

    ref = _ref_forward(x, params, G)

    # f32 path (portable: v5e/v6e/v7x), tight tolerance.
    out = jax.block_until_ready(residual_attention_block(x, params, num_groups=G))
    assert out.shape == (N, C, H, W), out.shape
    err = float(jnp.max(jnp.abs(out - ref)))
    assert jnp.allclose(out, ref, atol=1e-3, rtol=1e-3), f"max abs err = {err}"

    # bf16 softmax/PV path for chips with bf16 EUP/VPU and bf16-native MXU
    # (v6e / v7x); skipped on v5e and older.
    kind = jax.devices()[0].device_kind.lower()
    if any(t in kind for t in ("v6", "v7", "7x")):
        out_bf16 = jax.block_until_ready(
            residual_attention_block(x, params, num_groups=G, softmax_bf16=True))
        err_bf = float(jnp.max(jnp.abs(out_bf16 - ref)))
        assert jnp.allclose(out_bf16, ref, atol=5e-2, rtol=5e-2), \
            f"bf16 max abs err = {err_bf}"

    print("KERNEL_OK")
</pallas_src>

<mosaic_0001>
module attributes {stable_mosaic.version = 11 : i64} {
  func.func @kernel(%arg0: i32, %arg1: memref<2x4x256xf32, #tpu.memory_space<vmem>>, %arg2: memref<24x4xf32, #tpu.memory_space<vmem>>, %arg3: memref<24x1xf32, #tpu.memory_space<vmem>>, %arg4: memref<4x17xf32, #tpu.memory_space<vmem>>, %arg5: memref<2x4x256xf32, #tpu.memory_space<vmem>>) attributes {dimension_semantics = [#tpu.dimension_semantics<parallel>], iteration_bounds = array<i64: 1>, scalar_prefetch = 0 : i64, scratch_operands = 0 : i64, tpu.core_type = #tpu.core_type<tc>, window_params = [{transform_indices = @transform_0, window_bounds = array<i64: 2, 4, 256>}, {pipeline_mode = #tpu.pipeline_mode<synchronous>, transform_indices = @transform_1, window_bounds = array<i64: 24, 4>}, {pipeline_mode = #tpu.pipeline_mode<synchronous>, transform_indices = @transform_2, window_bounds = array<i64: 24, 1>}, {pipeline_mode = #tpu.pipeline_mode<synchronous>, transform_indices = @transform_3, window_bounds = array<i64: 4, 17>}, {transform_indices = @transform_4, window_bounds = array<i64: 2, 4, 256>}]} {
    %c0 = arith.constant 0 : index
    %c0_0 = arith.constant 0 : index
    %0 = vector.load %arg4[%c0, %c0_0] : memref<4x17xf32, #tpu.memory_space<vmem>>, vector<4x4xf32>
    %c0_1 = arith.constant 0 : index
    %c8 = arith.constant 8 : index
    %1 = vector.load %arg4[%c0_1, %c8] : memref<4x17xf32, #tpu.memory_space<vmem>>, vector<4x8xf32>
    %c0_2 = arith.constant 0 : index
    %c16 = arith.constant 16 : index
    %2 = vector.load %arg4[%c0_2, %c16] : memref<4x17xf32, #tpu.memory_space<vmem>>, vector<4x1xf32>
    %c0_3 = arith.constant 0 : index
    %c0_4 = arith.constant 0 : index
    %3 = vector.load %arg2[%c0_3, %c0_4] : memref<24x4xf32, #tpu.memory_space<vmem>>, vector<24x4xf32>
    %c0_5 = arith.constant 0 : index
    %c0_6 = arith.constant 0 : index
    %4 = vector.load %arg3[%c0_5, %c0_6] : memref<24x1xf32, #tpu.memory_space<vmem>>, vector<24x1xf32>
    %c0_7 = arith.constant 0 : index
    %c0_8 = arith.constant 0 : index
    %c0_9 = arith.constant 0 : index
    %5 = vector.load %arg1[%c0_7, %c0_8, %c0_9] : memref<2x4x256xf32, #tpu.memory_space<vmem>>, vector<1x4x256xf32>
    %6 = vector.shape_cast %5 : vector<1x4x256xf32> to vector<4x256xf32>
    %cst = arith.constant dense<0.000000e+00> : vector<4xf32>
    %7 = vector.multi_reduction <add>, %6, %cst [1] : vector<4x256xf32> to vector<4xf32>
    %8 = vector.shape_cast %7 : vector<4xf32> to vector<4x1xf32>
    %cst_10 = arith.constant dense<0.000000e+00> : vector<4x1xf32>
    %9 = tpu.matmul %0, %8, %cst_10 {dimension_numbers = #tpu.dot_dimension_numbers<[1], [0], [0], [1], [0, 0, 1, 1], [], []>, precision = #tpu.contract_precision<fp32>} : vector<4x4xf32>, vector<4x1xf32>, vector<4x1xf32> -> vector<4x1xf32>
    %10 = vector.broadcast %9 : vector<4x1xf32> to vector<4x256xf32>
    %11 = arith.subf %6, %10 : vector<4x256xf32>
    %12 = arith.mulf %11, %11 : vector<4x256xf32>
    %cst_11 = arith.constant dense<0.000000e+00> : vector<4xf32>
    %13 = vector.multi_reduction <add>, %12, %cst_11 [1] : vector<4x256xf32> to vector<4xf32>
    %14 = vector.shape_cast %13 : vector<4xf32> to vector<4x1xf32>
    %cst_12 = arith.constant dense<0.000000e+00> : vector<4x1xf32>
    %15 = tpu.matmul %0, %14, %cst_12 {dimension_numbers = #tpu.dot_dimension_numbers<[1], [0], [0], [1], [0, 0, 1, 1], [], []>, precision = #tpu.contract_precision<fp32>} : vector<4x4xf32>, vector<4x1xf32>, vector<4x1xf32> -> vector<4x1xf32>
    %cst_13 = arith.constant 9.99999974E-6 : f32
    %16 = vector.broadcast %cst_13 : f32 to vector<4x1xf32>
    %17 = arith.addf %15, %16 : vector<4x1xf32>
    %18 = math.rsqrt %17 : vector<4x1xf32>
    %19 = vector.broadcast %18 : vector<4x1xf32> to vector<4x256xf32>
    %20 = arith.mulf %11, %19 : vector<4x256xf32>
    %cst_14 = arith.constant dense<0.000000e+00> : vector<24x256xf32>
    %21 = tpu.matmul %3, %20, %cst_14 {dimension_numbers = #tpu.dot_dimension_numbers<[1], [0], [0], [1], [0, 0, 1, 1], [], []>, precision = #tpu.contract_precision<fp32>} : vector<24x4xf32>, vector<4x256xf32>, vector<24x256xf32> -> vector<24x256xf32>
    %22 = vector.broadcast %4 : vector<24x1xf32> to vector<24x256xf32>
    %23 = arith.addf %21, %22 : vector<24x256xf32>
    %24 = vector.extract_strided_slice %23 {offsets = [0, 0], sizes = [8, 256], strides = [1, 1]} : vector<24x256xf32> to vector<8x256xf32>
    %25 = vector.extract_strided_slice %23 {offsets = [8, 0], sizes = [8, 256], strides = [1, 1]} : vector<24x256xf32> to vector<8x256xf32>
    %26 = vector.extract_strided_slice %23 {offsets = [16, 0], sizes = [8, 256], strides = [1, 1]} : vector<24x256xf32> to vector<8x256xf32>
    %cst_15 = arith.constant dense<0.000000e+00> : vector<256x256xf32>
    %27 = tpu.matmul %24, %25, %cst_15 {dimension_numbers = #tpu.dot_dimension_numbers<[0], [0], [1], [1], [0, 1, 1, 1], [], []>, precision = #tpu.contract_precision<fp32>} : vector<8x256xf32>, vector<8x256xf32>, vector<256x256xf32> -> vector<256x256xf32>
    %cst_16 = arith.constant dense<0xFF800000> : vector<256xf32>
    %28 = vector.multi_reduction <maximumf>, %27, %cst_16 [1] : vector<256x256xf32> to vector<256xf32>
    %29 = vector.shape_cast %28 : vector<256xf32> to vector<256x1xf32>
    %30 = vector.broadcast %29 : vector<256x1xf32> to vector<256x256xf32>
    %31 = arith.subf %27, %30 : vector<256x256xf32>
    %32 = math.exp %31 : vector<256x256xf32>
    %cst_17 = arith.constant dense<0.000000e+00> : vector<8x256xf32>
    %33 = tpu.matmul %26, %32, %cst_17 {dimension_numbers = #tpu.dot_dimension_numbers<[1], [1], [0], [0], [0, 0, 1, 0], [], []>, precision = #tpu.contract_precision<fp32>} : vector<8x256xf32>, vector<256x256xf32>, vector<8x256xf32> -> vector<8x256xf32>
    %34 = vector.extract_strided_slice %33 {offsets = [4, 0], sizes = [1, 256], strides = [1, 1]} : vector<8x256xf32> to vector<1x256xf32>
    %35 = tpu.reciprocal %34 : vector<1x256xf32> -> vector<1x256xf32>
    %cst_18 = arith.constant dense<0.000000e+00> : vector<4x256xf32>
    %36 = tpu.matmul %1, %33, %cst_18 {dimension_numbers = #tpu.dot_dimension_numbers<[1], [0], [0], [1], [0, 0, 1, 1], [], []>, precision = #tpu.contract_precision<fp32>} : vector<4x8xf32>, vector<8x256xf32>, vector<4x256xf32> -> vector<4x256xf32>
    %37 = vector.broadcast %35 : vector<1x256xf32> to vector<4x256xf32>
    %38 = arith.mulf %36, %37 : vector<4x256xf32>
    %39 = vector.broadcast %2 : vector<4x1xf32> to vector<4x256xf32>
    %40 = arith.addf %38, %39 : vector<4x256xf32>
    %41 = arith.addf %40, %6 : vector<4x256xf32>
    %c0_19 = arith.constant 0 : index
    %c0_20 = arith.constant 0 : index
    %c0_21 = arith.constant 0 : index
    %42 = vector.load %arg5[%c0_19, %c0_20, %c0_21] : memref<2x4x256xf32, #tpu.memory_space<vmem>>, vector<1x4x256xf32>
    %43 = vector.shape_cast %42 : vector<1x4x256xf32> to vector<4x256xf32>
    %44 = vector.shape_cast %41 : vector<4x256xf32> to vector<1x4x256xf32>
    tpu.vector_store %arg5[%c0_19, %c0_20, %c0_21], %44 {strides = array<i32>} : memref<2x4x256xf32, #tpu.memory_space<vmem>>, vector<1x4x256xf32>,
    %c1 = arith.constant 1 : index
    %c0_22 = arith.constant 0 : index
    %c0_23 = arith.constant 0 : index
    %45 = vector.load %arg1[%c1, %c0_22, %c0_23] : memref<2x4x256xf32, #tpu.memory_space<vmem>>, vector<1x4x256xf32>
    %46 = vector.shape_cast %45 : vector<1x4x256xf32> to vector<4x256xf32>
    %cst_24 = arith.constant dense<0.000000e+00> : vector<4xf32>
    %47 = vector.multi_reduction <add>, %46, %cst_24 [1] : vector<4x256xf32> to vector<4xf32>
    %48 = vector.shape_cast %47 : vector<4xf32> to vector<4x1xf32>
    %cst_25 = arith.constant dense<0.000000e+00> : vector<4x1xf32>
    %49 = tpu.matmul %0, %48, %cst_25 {dimension_numbers = #tpu.dot_dimension_numbers<[1], [0], [0], [1], [0, 0, 1, 1], [], []>, precision = #tpu.contract_precision<fp32>} : vector<4x4xf32>, vector<4x1xf32>, vector<4x1xf32> -> vector<4x1xf32>
    %50 = vector.broadcast %49 : vector<4x1xf32> to vector<4x256xf32>
    %51 = arith.subf %46, %50 : vector<4x256xf32>
    %52 = arith.mulf %51, %51 : vector<4x256xf32>
    %cst_26 = arith.constant dense<0.000000e+00> : vector<4xf32>
    %53 = vector.multi_reduction <add>, %52, %cst_26 [1] : vector<4x256xf32> to vector<4xf32>
    %54 = vector.shape_cast %53 : vector<4xf32> to vector<4x1xf32>
    %cst_27 = arith.constant dense<0.000000e+00> : vector<4x1xf32>
    %55 = tpu.matmul %0, %54, %cst_27 {dimension_numbers = #tpu.dot_dimension_numbers<[1], [0], [0], [1], [0, 0, 1, 1], [], []>, precision = #tpu.contract_precision<fp32>} : vector<4x4xf32>, vector<4x1xf32>, vector<4x1xf32> -> vector<4x1xf32>
    %cst_28 = arith.constant 9.99999974E-6 : f32
    %56 = vector.broadcast %cst_28 : f32 to vector<4x1xf32>
    %57 = arith.addf %55, %56 : vector<4x1xf32>
    %58 = math.rsqrt %57 : vector<4x1xf32>
    %59 = vector.broadcast %58 : vector<4x1xf32> to vector<4x256xf32>
    %60 = arith.mulf %51, %59 : vector<4x256xf32>
    %cst_29 = arith.constant dense<0.000000e+00> : vector<24x256xf32>
    %61 = tpu.matmul %3, %60, %cst_29 {dimension_numbers = #tpu.dot_dimension_numbers<[1], [0], [0], [1], [0, 0, 1, 1], [], []>, precision = #tpu.contract_precision<fp32>} : vector<24x4xf32>, vector<4x256xf32>, vector<24x256xf32> -> vector<24x256xf32>
    %62 = vector.broadcast %4 : vector<24x1xf32> to vector<24x256xf32>
    %63 = arith.addf %61, %62 : vector<24x256xf32>
    %64 = vector.extract_strided_slice %63 {offsets = [0, 0], sizes = [8, 256], strides = [1, 1]} : vector<24x256xf32> to vector<8x256xf32>
    %65 = vector.extract_strided_slice %63 {offsets = [8, 0], sizes = [8, 256], strides = [1, 1]} : vector<24x256xf32> to vector<8x256xf32>
    %66 = vector.extract_strided_slice %63 {offsets = [16, 0], sizes = [8, 256], strides = [1, 1]} : vector<24x256xf32> to vector<8x256xf32>
    %cst_30 = arith.constant dense<0.000000e+00> : vector<256x256xf32>
    %67 = tpu.matmul %64, %65, %cst_30 {dimension_numbers = #tpu.dot_dimension_numbers<[0], [0], [1], [1], [0, 1, 1, 1], [], []>, precision = #tpu.contract_precision<fp32>} : vector<8x256xf32>, vector<8x256xf32>, vector<256x256xf32> -> vector<256x256xf32>
    %cst_31 = arith.constant dense<0xFF800000> : vector<256xf32>
    %68 = vector.multi_reduction <maximumf>, %67, %cst_31 [1] : vector<256x256xf32> to vector<256xf32>
    %69 = vector.shape_cast %68 : vector<256xf32> to vector<256x1xf32>
    %70 = vector.broadcast %69 : vector<256x1xf32> to vector<256x256xf32>
    %71 = arith.subf %67, %70 : vector<256x256xf32>
    %72 = math.exp %71 : vector<256x256xf32>
    %cst_32 = arith.constant dense<0.000000e+00> : vector<8x256xf32>
    %73 = tpu.matmul %66, %72, %cst_32 {dimension_numbers = #tpu.dot_dimension_numbers<[1], [1], [0], [0], [0, 0, 1, 0], [], []>, precision = #tpu.contract_precision<fp32>} : vector<8x256xf32>, vector<256x256xf32>, vector<8x256xf32> -> vector<8x256xf32>
    %74 = vector.extract_strided_slice %73 {offsets = [4, 0], sizes = [1, 256], strides = [1, 1]} : vector<8x256xf32> to vector<1x256xf32>
    %75 = tpu.reciprocal %74 : vector<1x256xf32> -> vector<1x256xf32>
    %cst_33 = arith.constant dense<0.000000e+00> : vector<4x256xf32>
    %76 = tpu.matmul %1, %73, %cst_33 {dimension_numbers = #tpu.dot_dimension_numbers<[1], [0], [0], [1], [0, 0, 1, 1], [], []>, precision = #tpu.contract_precision<fp32>} : vector<4x8xf32>, vector<8x256xf32>, vector<4x256xf32> -> vector<4x256xf32>
    %77 = vector.broadcast %75 : vector<1x256xf32> to vector<4x256xf32>
    %78 = arith.mulf %76, %77 : vector<4x256xf32>
    %79 = vector.broadcast %2 : vector<4x1xf32> to vector<4x256xf32>
    %80 = arith.addf %78, %79 : vector<4x256xf32>
    %81 = arith.addf %80, %46 : vector<4x256xf32>
    %c1_34 = arith.constant 1 : index
    %c0_35 = arith.constant 0 : index
    %c0_36 = arith.constant 0 : index
    %82 = vector.load %arg5[%c1_34, %c0_35, %c0_36] : memref<2x4x256xf32, #tpu.memory_space<vmem>>, vector<1x4x256xf32>
    %83 = vector.shape_cast %82 : vector<1x4x256xf32> to vector<4x256xf32>
    %84 = vector.shape_cast %81 : vector<4x256xf32> to vector<1x4x256xf32>
    tpu.vector_store %arg5[%c1_34, %c0_35, %c0_36], %84 {strides = array<i32>} : memref<2x4x256xf32, #tpu.memory_space<vmem>>, vector<1x4x256xf32>,
    return
  }
  func.func @transform_0(%arg0: i32) -> (i32, i32, i32) {
    %c0_i32 = arith.constant 0 : i32
    %c0_i32_0 = arith.constant 0 : i32
    %c0_i32_1 = arith.constant 0 : i32
    return %arg0, %c0_i32, %c0_i32_0 : i32, i32, i32
  }
  func.func @transform_1(%arg0: i32) -> (i32, i32) {
    %c0_i32 = arith.constant 0 : i32
    %c0_i32_0 = arith.constant 0 : i32
    %c0_i32_1 = arith.constant 0 : i32
    return %c0_i32, %c0_i32_0 : i32, i32
  }
  func.func @transform_2(%arg0: i32) -> (i32, i32) {
    %c0_i32 = arith.constant 0 : i32
    %c0_i32_0 = arith.constant 0 : i32
    %c0_i32_1 = arith.constant 0 : i32
    return %c0_i32, %c0_i32_0 : i32, i32
  }
  func.func @transform_3(%arg0: i32) -> (i32, i32) {
    %c0_i32 = arith.constant 0 : i32
    %c0_i32_0 = arith.constant 0 : i32
    %c0_i32_1 = arith.constant 0 : i32
    return %c0_i32, %c0_i32_0 : i32, i32
  }
  func.func @transform_4(%arg0: i32) -> (i32, i32, i32) {
    %c0_i32 = arith.constant 0 : i32
    %c0_i32_0 = arith.constant 0 : i32
    %c0_i32_1 = arith.constant 0 : i32
    return %arg0, %c0_i32, %c0_i32_0 : i32, i32, i32
  }
}

</mosaic_0001>

<llo_original>
// kernel: tpu_custom_call.1
$region0: #{tpu_custom_call.1}
  #allocation0 [shape = 'u32[]', space=smem, size = 0x4, offset = 0x4, fixed_abs, tag = 'smem constant byte address 0x4 - core index']
  #allocation1 [shape = 'u32[72,128]{1,0:T(1,128)}', space=vmem, size = 0x9000, scoped, tag = 'internal scratch']
  %s0 = inlined_call_operand.vmem [shape: f32[2,4,256], index: 0, kind: input, shape index: {}]
  %s1 = inlined_call_operand.vmem [shape: f32[24,4], index: 1, kind: input, shape index: {}]
  %s2 = inlined_call_operand.vmem [shape: f32[24,1], index: 2, kind: input, shape index: {}]
  %s3 = inlined_call_operand.vmem [shape: f32[4,17], index: 3, kind: input, shape index: {}]
  %s4 = inlined_call_operand.hbm [shape: f32[2,4,256], index: 4, kind: output, shape index: {}]
  %s5 = sld [smem:[#allocation0]]
  $region26: #{tpu_custom_call.1} parent=0
    _
  %s7 = ssub.s32 1, %s5
  %s8 = scalar_select 0, %s7, %s5
  $region1: #{tpu_custom_call.1} parent=0
    #allocation2 [shape = 'u8[8192]{0}', space=vmem, size = 0x2000, scoped, tag = 'output window, operand 0, single buffered']
    #allocation3 [shape = 's32[1]{0}', space=sflag, size = 0x4, scoped, tag = 'scoped memory for tpu_custom_call.1']
    %9 = vsyncpa [#allocation3], 0
    // Predicated region
    $region2: #{tpu_custom_call.1} parent=1 // pred_check
      _
    $region3: #{tpu_custom_call.1} parent=1 // pred_check_branch
      %11 = sbr.rel (0) target = $region5
    $region4: #{tpu_custom_call.1} parent=1 // pred_region
      _
    $region5: #{tpu_custom_call.1} parent=1 // pred_fallthru
      _
    // Predicated region
    $region6: #{tpu_custom_call.1} parent=1 // pred_check
      _
    $region7: #{tpu_custom_call.1} parent=1 // pred_check_branch
      %13 = sbr.rel (0) target = $region9
    $region8: #{tpu_custom_call.1} parent=1 // pred_region
      _
    $region9: #{tpu_custom_call.1} parent=1 // pred_fallthru
      _
    // Predicated region
    $region10: #{tpu_custom_call.1} parent=1 // pred_check
      _
    $region11: #{tpu_custom_call.1} parent=1 // pred_check_branch
      %15 = sbr.rel (0) target = $region13
    $region12: #{tpu_custom_call.1} parent=1 // pred_region
      _
    $region13: #{tpu_custom_call.1} parent=1 // pred_fallthru
      _
    // Predicated region
    $region14: #{tpu_custom_call.1} parent=1 // pred_check
      _
    $region15: #{tpu_custom_call.1} parent=1 // pred_check_branch
      %17 = sbr.rel (0) target = $region17
    $region16: #{tpu_custom_call.1} parent=1 // pred_region
      _
    $region17: #{tpu_custom_call.1} parent=1 // pred_fallthru
      _
    %v18 = vld [vmem:[%s3] sm:$0xf]
    %v19 = vld [vmem:[%s1] sm:$0xff]
    %v20 = vld [vmem:[%s1 + $0x8] sm:$0xff]
    %v21 = vld [vmem:[%s1 + $0x10] sm:$0xff]
    %v22 = vld [vmem:[%s2] sm:$0xff]
    %v23 = vld [vmem:[%s2 + $0x8] sm:$0xff]
    %v24 = vld [vmem:[%s2 + $0x10] sm:$0xff]
    %v25 = vld [vmem:[%s0] sm:$0xff]
    %27 = vst [vmem:[#allocation1] ss:$2 sm:$0xff] %v25
    %v28 = vld.sshfl [vmem:[#allocation1] sm:$0xff pattern:$0x75316420]
    %v29 = vld.sshfl [vmem:[#allocation1 + $0x8] sm:$0xff pattern:$0x75316420]
    %vm32 = vcmask 1043456
    %v33 = vsel %vm32, %v28, 0.0
    %v34 = vsel %vm32, %v29, 0.0
    %v35 = vadd.f32 %v33, %v34
    %36 = vadd.xlane.f32.xlu0 %v35
    %v37 = vpop.xlane.xlu0 %36
    %vm38 = vcmask 31744
    %v40 = vsel %vm38, %v18, 0
    %v43 = vsel %vm32, %v37, 0
    %45 = vmatpush.msra.mxu0 0.0
    %46 = vmatpush.msra.mxu0 0.0
    %47 = vmatpush.msra.mxu0 0.0
    %48 = vmatpush.msra.mxu0 0.0
    %49 = vmatpush.msra.mxu0 0.0
    %50 = vmatpush.msra.mxu0 0.0
    %51 = vmatpush.msra.mxu0 0.0
    %52 = vmatpush.msra.mxu0 0.0
    %53 = vmatpush.msra.mxu0 0.0
    %54 = vmatpush.msra.mxu0 0.0
    %55 = vmatpush.msra.mxu0 0.0
    %56 = vmatpush.msra.mxu0 0.0
    %57 = vmatpush.msra.mxu0 0.0
    %58 = vmatpush.msra.mxu0 0.0
    %59 = vmatpush.msra.mxu0 0.0
    %v60 = vand.u32 %v43, 4294901760
    %61 = vmatpush.msra.mxu0 %v60
    %v62 = vand.u32 %v40, 4294901760
    %v63 = vsub.f32 %v40, %v62
    %v64 = vand.u32 %v63, 4294901760
    %v65 = vsub.f32 %v63, %v64
    %v66 = vand.u32 %v65, 4294901760
    %67 = vmatmul.f32.gmra.mxu0 %v66
    %v68 = vpop.f32.mrf.mxu0
    %v69 = vadd.f32 0.0, %v68
    %70 = vdwg.mxu0
    %71 = vmatpush.msra.mxu0 0.0
    %72 = vmatpush.msra.mxu0 0.0
    %73 = vmatpush.msra.mxu0 0.0
    %74 = vmatpush.msra.mxu0 0.0
    %75 = vmatpush.msra.mxu0 0.0
    %76 = vmatpush.msra.mxu0 0.0
    %77 = vmatpush.msra.mxu0 0.0
    %78 = vmatpush.msra.mxu0 0.0
    %79 = vmatpush.msra.mxu0 0.0
    %80 = vmatpush.msra.mxu0 0.0
    %81 = vmatpush.msra.mxu0 0.0
    %82 = vmatpush.msra.mxu0 0.0
    %83 = vmatpush.msra.mxu0 0.0
    %84 = vmatpush.msra.mxu0 0.0
    %85 = vmatpush.msra.mxu0 0.0
    %v86 = vand.u32 %v43, 4294901760
    %v87 = vsub.f32 %v43, %v86
    %v88 = vand.u32 %v87, 4294901760
    %v89 = vsub.f32 %v87, %v88
    %v90 = vand.u32 %v89, 4294901760
    %91 = vmatpush.msra.mxu0 %v90
    %v92 = vand.u32 %v40, 4294901760
    %93 = vmatmul.f32.gmra.mxu0 %v92
    %v94 = vpop.f32.mrf.mxu0
    %v95 = vadd.f32 %v69, %v94
    %96 = vdwg.mxu0
    %97 = vmatpush.msra.mxu0 0.0
    %98 = vmatpush.msra.mxu0 0.0
    %99 = vmatpush.msra.mxu0 0.0
    %100 = vmatpush.msra.mxu0 0.0
    %101 = vmatpush.msra.mxu0 0.0
    %102 = vmatpush.msra.mxu0 0.0
    %103 = vmatpush.msra.mxu0 0.0
    %104 = vmatpush.msra.mxu0 0.0
    %105 = vmatpush.msra.mxu0 0.0
    %106 = vmatpush.msra.mxu0 0.0
    %107 = vmatpush.msra.mxu0 0.0
    %108 = vmatpush.msra.mxu0 0.0
    %109 = vmatpush.msra.mxu0 0.0
    %110 = vmatpush.msra.mxu0 0.0
    %111 = vmatpush.msra.mxu0 0.0
    %v112 = vand.u32 %v43, 4294901760
    %v113 = vsub.f32 %v43, %v112
    %114 = vmatpush.msra.mxu0 %v113
    %v115 = vand.u32 %v40, 4294901760
    %v116 = vsub.f32 %v40, %v115
    %117 = vmatmul.f32.gmra.mxu0 %v116
    %v118 = vpop.f32.mrf.mxu0
    %v119 = vadd.f32 %v95, %v118
    %120 = vdwg.mxu0
    %121 = vmatpush.msra.mxu0 0.0
    %122 = vmatpush.msra.mxu0 0.0
    %123 = vmatpush.msra.mxu0 0.0
    %124 = vmatpush.msra.mxu0 0.0
    %125 = vmatpush.msra.mxu0 0.0
    %126 = vmatpush.msra.mxu0 0.0
    %127 = vmatpush.msra.mxu0 0.0
    %128 = vmatpush.msra.mxu0 0.0
    %129 = vmatpush.msra.mxu0 0.0
    %130 = vmatpush.msra.mxu0 0.0
    %131 = vmatpush.msra.mxu0 0.0
    %132 = vmatpush.msra.mxu0 0.0
    %133 = vmatpush.msra.mxu0 0.0
    %134 = vmatpush.msra.mxu0 0.0
    %135 = vmatpush.msra.mxu0 0.0
    %v136 = vand.u32 %v43, 4294901760
    %137 = vmatpush.msra.mxu0 %v136
    %v138 = vand.u32 %v40, 4294901760
    %v139 = vsub.f32 %v40, %v138
    %v140 = vand.u32 %v139, 4294901760
    %141 = vmatmul.f32.gmra.mxu0 %v140
    %v142 = vpop.f32.mrf.mxu0
    %v143 = vadd.f32 %v119, %v142
    %144 = vdwg.mxu0
    %145 = vmatpush.msra.mxu0 0.0
    %146 = vmatpush.msra.mxu0 0.0
    %147 = vmatpush.msra.mxu0 0.0
    %148 = vmatpush.msra.mxu0 0.0
    %149 = vmatpush.msra.mxu0 0.0
    %150 = vmatpush.msra.mxu0 0.0
    %151 = vmatpush.msra.mxu0 0.0
    %152 = vmatpush.msra.mxu0 0.0
    %153 = vmatpush.msra.mxu0 0.0
    %154 = vmatpush.msra.mxu0 0.0
    %155 = vmatpush.msra.mxu0 0.0
    %156 = vmatpush.msra.mxu0 0.0
    %157 = vmatpush.msra.mxu0 0.0
    %158 = vmatpush.msra.mxu0 0.0
    %159 = vmatpush.msra.mxu0 0.0
    %v160 = vand.u32 %v43, 4294901760
    %v161 = vsub.f32 %v43, %v160
    %v162 = vand.u32 %v161, 4294901760
    %163 = vmatpush.msra.mxu0 %v162
    %v164 = vand.u32 %v40, 4294901760
    %165 = vmatmul.f32.gmra.mxu0 %v164
    %v166 = vpop.f32.mrf.mxu0
    %v167 = vadd.f32 %v143, %v166
    %168 = vdwg.mxu0
    %169 = vmatpush.msra.mxu0 0.0
    %170 = vmatpush.msra.mxu0 0.0
    %171 = vmatpush.msra.mxu0 0.0
    %172 = vmatpush.msra.mxu0 0.0
    %173 = vmatpush.msra.mxu0 0.0
    %174 = vmatpush.msra.mxu0 0.0
    %175 = vmatpush.msra.mxu0 0.0
    %176 = vmatpush.msra.mxu0 0.0
    %177 = vmatpush.msra.mxu0 0.0
    %178 = vmatpush.msra.mxu0 0.0
    %179 = vmatpush.msra.mxu0 0.0
    %180 = vmatpush.msra.mxu0 0.0
    %181 = vmatpush.msra.mxu0 0.0
    %182 = vmatpush.msra.mxu0 0.0
    %183 = vmatpush.msra.mxu0 0.0
    %v184 = vand.u32 %v43, 4294901760
    %185 = vmatpush.msra.mxu0 %v184
    %v186 = vand.u32 %v40, 4294901760
    %187 = vmatmul.f32.gmra.mxu0 %v186
    %v188 = vpop.f32.mrf.mxu0
    %v189 = vadd.f32 %v167, %v188
    %190 = vdwg.mxu0
    %192 = vset.pattern.permute.xlu0 0
    %193 = vperm.xlu0 %192, %v189
    %v194 = vpop.permute.xlu0 %193
    %v196 = vunpack.c.l.s4 839922192
    %v197 = vunpack.c.0.s8 %v196
    %v198 = vperm.slane %v194, %v197
    %v200 = vsub.f32 %v25, %v198
    %v201 = vmul.f32 %v200, %v200
    %203 = vst [vmem:[#allocation1] ss:$2 sm:$0xff] %v201
    %v204 = vld.sshfl [vmem:[#allocation1] sm:$0xff pattern:$0x75316420]
    %v205 = vld.sshfl [vmem:[#allocation1 + $0x8] sm:$0xff pattern:$0x75316420]
    %v208 = vsel %vm32, %v204, 0.0
    %v209 = vsel %vm32, %v205, 0.0
    %v210 = vadd.f32 %v208, %v209
    %211 = vadd.xlane.f32.xlu0 %v210
    %v212 = vpop.xlane.xlu0 %211
    %v214 = vsel %vm32, %v212, 0
    %216 = vmatpush.msra.mxu0 0.0
    %217 = vmatpush.msra.mxu0 0.0
    %218 = vmatpush.msra.mxu0 0.0
    %219 = vmatpush.msra.mxu0 0.0
    %220 = vmatpush.msra.mxu0 0.0
    %221 = vmatpush.msra.mxu0 0.0
    %222 = vmatpush.msra.mxu0 0.0
    %223 = vmatpush.msra.mxu0 0.0
    %224 = vmatpush.msra.mxu0 0.0
    %225 = vmatpush.msra.mxu0 0.0
    %226 = vmatpush.msra.mxu0 0.0
    %227 = vmatpush.msra.mxu0 0.0
    %228 = vmatpush.msra.mxu0 0.0
    %229 = vmatpush.msra.mxu0 0.0
    %230 = vmatpush.msra.mxu0 0.0
    %v231 = vand.u32 %v214, 4294901760
    %232 = vmatpush.msra.mxu0 %v231
    %v233 = vand.u32 %v40, 4294901760
    %v234 = vsub.f32 %v40, %v233
    %v235 = vand.u32 %v234, 4294901760
    %v236 = vsub.f32 %v234, %v235
    %v237 = vand.u32 %v236, 4294901760
    %238 = vmatmul.f32.gmra.mxu0 %v237
    %v239 = vpop.f32.mrf.mxu0
    %v240 = vadd.f32 1e-05, %v239
    %241 = vdwg.mxu0
    %242 = vmatpush.msra.mxu0 0.0
    %243 = vmatpush.msra.mxu0 0.0
    %244 = vmatpush.msra.mxu0 0.0
    %245 = vmatpush.msra.mxu0 0.0
    %246 = vmatpush.msra.mxu0 0.0
    %247 = vmatpush.msra.mxu0 0.0
    %248 = vmatpush.msra.mxu0 0.0
    %249 = vmatpush.msra.mxu0 0.0
    %250 = vmatpush.msra.mxu0 0.0
    %251 = vmatpush.msra.mxu0 0.0
    %252 = vmatpush.msra.mxu0 0.0
    %253 = vmatpush.msra.mxu0 0.0
    %254 = vmatpush.msra.mxu0 0.0
    %255 = vmatpush.msra.mxu0 0.0
    %256 = vmatpush.msra.mxu0 0.0
    %v257 = vand.u32 %v214, 4294901760
    %v258 = vsub.f32 %v214, %v257
    %v259 = vand.u32 %v258, 4294901760
    %v260 = vsub.f32 %v258, %v259
    %v261 = vand.u32 %v260, 4294901760
    %262 = vmatpush.msra.mxu0 %v261
    %v263 = vand.u32 %v40, 4294901760
    %264 = vmatmul.f32.gmra.mxu0 %v263
    %v265 = vpop.f32.mrf.mxu0
    %v266 = vadd.f32 %v240, %v265
    %267 = vdwg.mxu0
    %268 = vmatpush.msra.mxu0 0.0
    %269 = vmatpush.msra.mxu0 0.0
    %270 = vmatpush.msra.mxu0 0.0
    %271 = vmatpush.msra.mxu0 0.0
    %272 = vmatpush.msra.mxu0 0.0
    %273 = vmatpush.msra.mxu0 0.0
    %274 = vmatpush.msra.mxu0 0.0
    %275 = vmatpush.msra.mxu0 0.0
    %276 = vmatpush.msra.mxu0 0.0
    %277 = vmatpush.msra.mxu0 0.0
    %278 = vmatpush.msra.mxu0 0.0
    %279 = vmatpush.msra.mxu0 0.0
    %280 = vmatpush.msra.mxu0 0.0
    %281 = vmatpush.msra.mxu0 0.0
    %282 = vmatpush.msra.mxu0 0.0
    %v283 = vand.u32 %v214, 4294901760
    %v284 = vsub.f32 %v214, %v283
    %285 = vmatpush.msra.mxu0 %v284
    %v286 = vand.u32 %v40, 4294901760
    %v287 = vsub.f32 %v40, %v286
    %288 = vmatmul.f32.gmra.mxu0 %v287
    %v289 = vpop.f32.mrf.mxu0
    %v290 = vadd.f32 %v266, %v289
    %291 = vdwg.mxu0
    %292 = vmatpush.msra.mxu0 0.0
    %293 = vmatpush.msra.mxu0 0.0
    %294 = vmatpush.msra.mxu0 0.0
    %295 = vmatpush.msra.mxu0 0.0
    %296 = vmatpush.msra.mxu0 0.0
    %297 = vmatpush.msra.mxu0 0.0
    %298 = vmatpush.msra.mxu0 0.0
    %299 = vmatpush.msra.mxu0 0.0
    %300 = vmatpush.msra.mxu0 0.0
    %301 = vmatpush.msra.mxu0 0.0
    %302 = vmatpush.msra.mxu0 0.0
    %303 = vmatpush.msra.mxu0 0.0
    %304 = vmatpush.msra.mxu0 0.0
    %305 = vmatpush.msra.mxu0 0.0
    %306 = vmatpush.msra.mxu0 0.0
    %v307 = vand.u32 %v214, 4294901760
    %308 = vmatpush.msra.mxu0 %v307
    %v309 = vand.u32 %v40, 4294901760
    %v310 = vsub.f32 %v40, %v309
    %v311 = vand.u32 %v310, 4294901760
    %312 = vmatmul.f32.gmra.mxu0 %v311
    %v313 = vpop.f32.mrf.mxu0
    %v314 = vadd.f32 %v290, %v313
    %315 = vdwg.mxu0
    %316 = vmatpush.msra.mxu0 0.0
    %317 = vmatpush.msra.mxu0 0.0
    %318 = vmatpush.msra.mxu0 0.0
    %319 = vmatpush.msra.mxu0 0.0
    %320 = vmatpush.msra.mxu0 0.0
    %321 = vmatpush.msra.mxu0 0.0
    %322 = vmatpush.msra.mxu0 0.0
    %323 = vmatpush.msra.mxu0 0.0
    %324 = vmatpush.msra.mxu0 0.0
    %325 = vmatpush.msra.mxu0 0.0
    %326 = vmatpush.msra.mxu0 0.0
    %327 = vmatpush.msra.mxu0 0.0
    %328 = vmatpush.msra.mxu0 0.0
    %329 = vmatpush.msra.mxu0 0.0
    %330 = vmatpush.msra.mxu0 0.0
    %v331 = vand.u32 %v214, 4294901760
    %v332 = vsub.f32 %v214, %v331
    %v333 = vand.u32 %v332, 4294901760
    %334 = vmatpush.msra.mxu0 %v333
    %v335 = vand.u32 %v40, 4294901760
    %336 = vmatmul.f32.gmra.mxu0 %v335
    %v337 = vpop.f32.mrf.mxu0
    %v338 = vadd.f32 %v314, %v337
    %339 = vdwg.mxu0
    %340 = vmatpush.msra.mxu0 0.0
    %341 = vmatpush.msra.mxu0 0.0
    %342 = vmatpush.msra.mxu0 0.0
    %343 = vmatpush.msra.mxu0 0.0
    %344 = vmatpush.msra.mxu0 0.0
    %345 = vmatpush.msra.mxu0 0.0
    %346 = vmatpush.msra.mxu0 0.0
    %347 = vmatpush.msra.mxu0 0.0
    %348 = vmatpush.msra.mxu0 0.0
    %349 = vmatpush.msra.mxu0 0.0
    %350 = vmatpush.msra.mxu0 0.0
    %351 = vmatpush.msra.mxu0 0.0
    %352 = vmatpush.msra.mxu0 0.0
    %353 = vmatpush.msra.mxu0 0.0
    %354 = vmatpush.msra.mxu0 0.0
    %v355 = vand.u32 %v214, 4294901760
    %356 = vmatpush.msra.mxu0 %v355
    %v357 = vand.u32 %v40, 4294901760
    %358 = vmatmul.f32.gmra.mxu0 %v357
    %v359 = vpop.f32.mrf.mxu0
    %v360 = vadd.f32 %v338, %v359
    %361 = vdwg.mxu0
    %v362 = vrsqrt.pop %v360
    %v363 = vmul.f32 %v362, %v360
    %v364 = vmul.f32 %v363, %v362
    %v365 = vmul.f32 0.5, %v364
    %v366 = vsub.f32 1.5, %v365
    %v367 = vmul.f32 %v362, %v366
    %vm368 = vweird.f32 %v360
    %vm369 = vweird.f32 %v362
    %vm370 = vmor %vm368, %vm369
    %v371 = vsel %vm370, %v362, %v367
    %373 = vset.pattern.permute.xlu0 0
    %374 = vperm.xlu0 %373, %v371
    %v375 = vpop.permute.xlu0 %374
    %v377 = vunpack.c.l.s4 839922192
    %v378 = vunpack.c.0.s8 %v377
    %v379 = vperm.slane %v375, %v378
    %v381 = vmul.f32 %v200, %v379
    %383 = vset.pattern.permute.xlu0 0
    %384 = vperm.xlu0 %383, %v22
    %v385 = vpop.permute.xlu0 %384
    %388 = vset.pattern.permute.xlu0 0
    %389 = vperm.xlu0 %388, %v23
    %v390 = vpop.permute.xlu0 %389
    %393 = vset.pattern.permute.xlu0 0
    %394 = vperm.xlu0 %393, %v24
    %v395 = vpop.permute.xlu0 %394
    %398 = vst [vmem:[#allocation1] ss:$2 sm:$0xff] %v381
    %v399 = vld.sshfl [vmem:[#allocation1] sm:$0xff pattern:$0x75316420]
    %v400 = vld.sshfl [vmem:[#allocation1 + $0x8] sm:$0xff pattern:$0x75316420]
    %v402 = vsel %vm38, %v19, 0
    %v405 = vsel %vm38, %v20, 0
    %v408 = vsel %vm38, %v21, 0
    %v410 = vsel %vm32, %v399, 0
    %v412 = vsel %vm32, %v400, 0
    %414 = vmatpush.msra.mxu0 0.0
    %415 = vmatpush.msra.mxu0 0.0
    %416 = vmatpush.msra.mxu0 0.0
    %417 = vmatpush.msra.mxu0 0.0
    %418 = vmatpush.msra.mxu0 0.0
    %419 = vmatpush.msra.mxu0 0.0
    %420 = vmatpush.msra.mxu0 0.0
    %421 = vmatpush.msra.mxu0 0.0
    %422 = vmatpush.msra.mxu0 0.0
    %423 = vmatpush.msra.mxu0 0.0
    %424 = vmatpush.msra.mxu0 0.0
    %425 = vmatpush.msra.mxu0 0.0
    %426 = vmatpush.msra.mxu0 0.0
    %427 = vmatpush.msra.mxu0 0.0
    %428 = vmatpush.msra.mxu0 0.0
    %v429 = vand.u32 %v410, 4294901760
    %430 = vmatpush.msra.mxu0 %v429
    %v431 = vand.u32 %v402, 4294901760
    %v432 = vsub.f32 %v402, %v431
    %v433 = vand.u32 %v432, 4294901760
    %v434 = vsub.f32 %v432, %v433
    %v435 = vand.u32 %v434, 4294901760
    %436 = vmatmul.f32.gmra.mxu0 %v435
    %v437 = vpop.f32.mrf.mxu0
    %v438 = vadd.f32 %v385, %v437
    %v439 = vand.u32 %v405, 4294901760
    %v440 = vsub.f32 %v405, %v439
    %v441 = vand.u32 %v440, 4294901760
    %v442 = vsub.f32 %v440, %v441
    %v443 = vand.u32 %v442, 4294901760
    %444 = vmatmul.f32.gmra.mxu0 %v443
    %v445 = vpop.f32.mrf.mxu0
    %v446 = vadd.f32 %v390, %v445
    %v447 = vand.u32 %v408, 4294901760
    %v448 = vsub.f32 %v408, %v447
    %v449 = vand.u32 %v448, 4294901760
    %v450 = vsub.f32 %v448, %v449
    %v451 = vand.u32 %v450, 4294901760
    %452 = vmatmul.f32.gmra.mxu0 %v451
    %v453 = vpop.f32.mrf.mxu0
    %v454 = vadd.f32 %v395, %v453
    %455 = vdwg.mxu0
    %456 = vmatpush.msra.mxu0 0.0
    %457 = vmatpush.msra.mxu0 0.0
    %458 = vmatpush.msra.mxu0 0.0
    %459 = vmatpush.msra.mxu0 0.0
    %460 = vmatpush.msra.mxu0 0.0
    %461 = vmatpush.msra.mxu0 0.0
    %462 = vmatpush.msra.mxu0 0.0
    %463 = vmatpush.msra.mxu0 0.0
    %464 = vmatpush.msra.mxu0 0.0
    %465 = vmatpush.msra.mxu0 0.0
    %466 = vmatpush.msra.mxu0 0.0
    %467 = vmatpush.msra.mxu0 0.0
    %468 = vmatpush.msra.mxu0 0.0
    %469 = vmatpush.msra.mxu0 0.0
    %470 = vmatpush.msra.mxu0 0.0
    %v471 = vand.u32 %v410, 4294901760
    %v472 = vsub.f32 %v410, %v471
    %v473 = vand.u32 %v472, 4294901760
    %v474 = vsub.f32 %v472, %v473
    %v475 = vand.u32 %v474, 4294901760
    %476 = vmatpush.msra.mxu0 %v475
    %v477 = vand.u32 %v402, 4294901760
    %478 = vmatmul.f32.gmra.mxu0 %v477
    %v479 = vpop.f32.mrf.mxu0
    %v480 = vadd.f32 %v438, %v479
    %v481 = vand.u32 %v405, 4294901760
    %482 = vmatmul.f32.gmra.mxu0 %v481
    %v483 = vpop.f32.mrf.mxu0
    %v484 = vadd.f32 %v446, %v483
    %v485 = vand.u32 %v408, 4294901760
    %486 = vmatmul.f32.gmra.mxu0 %v485
    %v487 = vpop.f32.mrf.mxu0
    %v488 = vadd.f32 %v454, %v487
    %489 = vdwg.mxu0
    %490 = vmatpush.msra.mxu0 0.0
    %491 = vmatpush.msra.mxu0 0.0
    %492 = vmatpush.msra.mxu0 0.0
    %493 = vmatpush.msra.mxu0 0.0
    %494 = vmatpush.msra.mxu0 0.0
    %495 = vmatpush.msra.mxu0 0.0
    %496 = vmatpush.msra.mxu0 0.0
    %497 = vmatpush.msra.mxu0 0.0
    %498 = vmatpush.msra.mxu0 0.0
    %499 = vmatpush.msra.mxu0 0.0
    %500 = vmatpush.msra.mxu0 0.0
    %501 = vmatpush.msra.mxu0 0.0
    %502 = vmatpush.msra.mxu0 0.0
    %503 = vmatpush.msra.mxu0 0.0
    %504 = vmatpush.msra.mxu0 0.0
    %v505 = vand.u32 %v410, 4294901760
    %v506 = vsub.f32 %v410, %v505
    %507 = vmatpush.msra.mxu0 %v506
    %v508 = vand.u32 %v402, 4294901760
    %v509 = vsub.f32 %v402, %v508
    %510 = vmatmul.f32.gmra.mxu0 %v509
    %v511 = vpop.f32.mrf.mxu0
    %v512 = vadd.f32 %v480, %v511
    %v513 = vand.u32 %v405, 4294901760
    %v514 = vsub.f32 %v405, %v513
    %515 = vmatmul.f32.gmra.mxu0 %v514
    %v516 = vpop.f32.mrf.mxu0
    %v517 = vadd.f32 %v484, %v516
    %v518 = vand.u32 %v408, 4294901760
    %v519 = vsub.f32 %v408, %v518
    %520 = vmatmul.f32.gmra.mxu0 %v519
    %v521 = vpop.f32.mrf.mxu0
    %v522 = vadd.f32 %v488, %v521
    %523 = vdwg.mxu0
    %524 = vmatpush.msra.mxu0 0.0
    %525 = vmatpush.msra.mxu0 0.0
    %526 = vmatpush.msra.mxu0 0.0
    %527 = vmatpush.msra.mxu0 0.0
    %528 = vmatpush.msra.mxu0 0.0
    %529 = vmatpush.msra.mxu0 0.0
    %530 = vmatpush.msra.mxu0 0.0
    %531 = vmatpush.msra.mxu0 0.0
    %532 = vmatpush.msra.mxu0 0.0
    %533 = vmatpush.msra.mxu0 0.0
    %534 = vmatpush.msra.mxu0 0.0
    %535 = vmatpush.msra.mxu0 0.0
    %536 = vmatpush.msra.mxu0 0.0
    %537 = vmatpush.msra.mxu0 0.0
    %538 = vmatpush.msra.mxu0 0.0
    %v539 = vand.u32 %v410, 4294901760
    %540 = vmatpush.msra.mxu0 %v539
    %v541 = vand.u32 %v402, 4294901760
    %v542 = vsub.f32 %v402, %v541
    %v543 = vand.u32 %v542, 4294901760
    %544 = vmatmul.f32.gmra.mxu0 %v543
    %v545 = vpop.f32.mrf.mxu0
    %v546 = vadd.f32 %v512, %v545
    %v547 = vand.u32 %v405, 4294901760
    %v548 = vsub.f32 %v405, %v547
    %v549 = vand.u32 %v548, 4294901760
    %550 = vmatmul.f32.gmra.mxu0 %v549
    %v551 = vpop.f32.mrf.mxu0
    %v552 = vadd.f32 %v517, %v551
    %v553 = vand.u32 %v408, 4294901760
    %v554 = vsub.f32 %v408, %v553
    %v555 = vand.u32 %v554, 4294901760
    %556 = vmatmul.f32.gmra.mxu0 %v555
    %v557 = vpop.f32.mrf.mxu0
    %v558 = vadd.f32 %v522, %v557
    %559 = vdwg.mxu0
    %560 = vmatpush.msra.mxu0 0.0
    %561 = vmatpush.msra.mxu0 0.0
    %562 = vmatpush.msra.mxu0 0.0
    %563 = vmatpush.msra.mxu0 0.0
    %564 = vmatpush.msra.mxu0 0.0
    %565 = vmatpush.msra.mxu0 0.0
    %566 = vmatpush.msra.mxu0 0.0
    %567 = vmatpush.msra.mxu0 0.0
    %568 = vmatpush.msra.mxu0 0.0
    %569 = vmatpush.msra.mxu0 0.0
    %570 = vmatpush.msra.mxu0 0.0
    %571 = vmatpush.msra.mxu0 0.0
    %572 = vmatpush.msra.mxu0 0.0
    %573 = vmatpush.msra.mxu0 0.0
    %574 = vmatpush.msra.mxu0 0.0
    %v575 = vand.u32 %v410, 4294901760
    %v576 = vsub.f32 %v410, %v575
    %v577 = vand.u32 %v576, 4294901760
    %578 = vmatpush.msra.mxu0 %v577
    %v579 = vand.u32 %v402, 4294901760
    %580 = vmatmul.f32.gmra.mxu0 %v579
    %v581 = vpop.f32.mrf.mxu0
    %v582 = vadd.f32 %v546, %v581
    %v583 = vand.u32 %v405, 4294901760
    %584 = vmatmul.f32.gmra.mxu0 %v583
    %v585 = vpop.f32.mrf.mxu0
    %v586 = vadd.f32 %v552, %v585
    %v587 = vand.u32 %v408, 4294901760
    %588 = vmatmul.f32.gmra.mxu0 %v587
    %v589 = vpop.f32.mrf.mxu0
    %v590 = vadd.f32 %v558, %v589
    %591 = vdwg.mxu0
    %592 = vmatpush.msra.mxu0 0.0
    %593 = vmatpush.msra.mxu0 0.0
    %594 = vmatpush.msra.mxu0 0.0
    %595 = vmatpush.msra.mxu0 0.0
    %596 = vmatpush.msra.mxu0 0.0
    %597 = vmatpush.msra.mxu0 0.0
    %598 = vmatpush.msra.mxu0 0.0
    %599 = vmatpush.msra.mxu0 0.0
    %600 = vmatpush.msra.mxu0 0.0
    %601 = vmatpush.msra.mxu0 0.0
    %602 = vmatpush.msra.mxu0 0.0
    %603 = vmatpush.msra.mxu0 0.0
    %604 = vmatpush.msra.mxu0 0.0
    %605 = vmatpush.msra.mxu0 0.0
    %606 = vmatpush.msra.mxu0 0.0
    %v607 = vand.u32 %v410, 4294901760
    %608 = vmatpush.msra.mxu0 %v607
    %v609 = vand.u32 %v402, 4294901760
    %610 = vmatmul.f32.gmra.mxu0 %v609
    %v611 = vpop.f32.mrf.mxu0
    %v612 = vadd.f32 %v582, %v611
    %v613 = vand.u32 %v405, 4294901760
    %614 = vmatmul.f32.gmra.mxu0 %v613
    %v615 = vpop.f32.mrf.mxu0
    %v616 = vadd.f32 %v586, %v615
    %v617 = vand.u32 %v408, 4294901760
    %618 = vmatmul.f32.gmra.mxu0 %v617
    %v619 = vpop.f32.mrf.mxu0
    %v620 = vadd.f32 %v590, %v619
    %621 = vdwg.mxu0
    %622 = vmatpush.msra.mxu0 0.0
    %623 = vmatpush.msra.mxu0 0.0
    %624 = vmatpush.msra.mxu0 0.0
    %625 = vmatpush.msra.mxu0 0.0
    %626 = vmatpush.msra.mxu0 0.0
    %627 = vmatpush.msra.mxu0 0.0
    %628 = vmatpush.msra.mxu0 0.0
    %629 = vmatpush.msra.mxu0 0.0
    %630 = vmatpush.msra.mxu0 0.0
    %631 = vmatpush.msra.mxu0 0.0
    %632 = vmatpush.msra.mxu0 0.0
    %633 = vmatpush.msra.mxu0 0.0
    %634 = vmatpush.msra.mxu0 0.0
    %635 = vmatpush.msra.mxu0 0.0
    %636 = vmatpush.msra.mxu0 0.0
    %v637 = vand.u32 %v412, 4294901760
    %638 = vmatpush.msra.mxu0 %v637
    %v639 = vand.u32 %v402, 4294901760
    %v640 = vsub.f32 %v402, %v639
    %v641 = vand.u32 %v640, 4294901760
    %v642 = vsub.f32 %v640, %v641
    %v643 = vand.u32 %v642, 4294901760
    %644 = vmatmul.f32.gmra.mxu0 %v643
    %v645 = vpop.f32.mrf.mxu0
    %v646 = vadd.f32 %v385, %v645
    %v647 = vand.u32 %v405, 4294901760
    %v648 = vsub.f32 %v405, %v647
    %v649 = vand.u32 %v648, 4294901760
    %v650 = vsub.f32 %v648, %v649
    %v651 = vand.u32 %v650, 4294901760
    %652 = vmatmul.f32.gmra.mxu0 %v651
    %v653 = vpop.f32.mrf.mxu0
    %v654 = vadd.f32 %v390, %v653
    %v655 = vand.u32 %v408, 4294901760
    %v656 = vsub.f32 %v408, %v655
    %v657 = vand.u32 %v656, 4294901760
    %v658 = vsub.f32 %v656, %v657
    %v659 = vand.u32 %v658, 4294901760
    %660 = vmatmul.f32.gmra.mxu0 %v659
    %v661 = vpop.f32.mrf.mxu0
    %v662 = vadd.f32 %v395, %v661
    %663 = vdwg.mxu0
    %664 = vmatpush.msra.mxu0 0.0
    %665 = vmatpush.msra.mxu0 0.0
    %666 = vmatpush.msra.mxu0 0.0
    %667 = vmatpush.msra.mxu0 0.0
    %668 = vmatpush.msra.mxu0 0.0
    %669 = vmatpush.msra.mxu0 0.0
    %670 = vmatpush.msra.mxu0 0.0
    %671 = vmatpush.msra.mxu0 0.0
    %672 = vmatpush.msra.mxu0 0.0
    %673 = vmatpush.msra.mxu0 0.0
    %674 = vmatpush.msra.mxu0 0.0
    %675 = vmatpush.msra.mxu0 0.0
    %676 = vmatpush.msra.mxu0 0.0
    %677 = vmatpush.msra.mxu0 0.0
    %678 = vmatpush.msra.mxu0 0.0
    %v679 = vand.u32 %v412, 4294901760
    %v680 = vsub.f32 %v412, %v679
    %v681 = vand.u32 %v680, 4294901760
    %v682 = vsub.f32 %v680, %v681
    %v683 = vand.u32 %v682, 4294901760
    %684 = vmatpush.msra.mxu0 %v683
    %v685 = vand.u32 %v402, 4294901760
    %686 = vmatmul.f32.gmra.mxu0 %v685
    %v687 = vpop.f32.mrf.mxu0
    %v688 = vadd.f32 %v646, %v687
    %v689 = vand.u32 %v405, 4294901760
    %690 = vmatmul.f32.gmra.mxu0 %v689
    %v691 = vpop.f32.mrf.mxu0
    %v692 = vadd.f32 %v654, %v691
    %v693 = vand.u32 %v408, 4294901760
    %694 = vmatmul.f32.gmra.mxu0 %v693
    %v695 = vpop.f32.mrf.mxu0
    %v696 = vadd.f32 %v662, %v695
    %697 = vdwg.mxu0
    %698 = vmatpush.msra.mxu0 0.0
    %699 = vmatpush.msra.mxu0 0.0
    %700 = vmatpush.msra.mxu0 0.0
    %701 = vmatpush.msra.mxu0 0.0
    %702 = vmatpush.msra.mxu0 0.0
    %703 = vmatpush.msra.mxu0 0.0
    %704 = vmatpush.msra.mxu0 0.0
    %705 = vmatpush.msra.mxu0 0.0
    %706 = vmatpush.msra.mxu0 0.0
    %707 = vmatpush.msra.mxu0 0.0
    %708 = vmatpush.msra.mxu0 0.0
    %709 = vmatpush.msra.mxu0 0.0
    %710 = vmatpush.msra.mxu0 0.0
    %711 = vmatpush.msra.mxu0 0.0
    %712 = vmatpush.msra.mxu0 0.0
    %v713 = vand.u32 %v412, 4294901760
    %v714 = vsub.f32 %v412, %v713
    %715 = vmatpush.msra.mxu0 %v714
    %v716 = vand.u32 %v402, 4294901760
    %v717 = vsub.f32 %v402, %v716
    %718 = vmatmul.f32.gmra.mxu0 %v717
    %v719 = vpop.f32.mrf.mxu0
    %v720 = vadd.f32 %v688, %v719
    %v721 = vand.u32 %v405, 4294901760
    %v722 = vsub.f32 %v405, %v721
    %723 = vmatmul.f32.gmra.mxu0 %v722
    %v724 = vpop.f32.mrf.mxu0
    %v725 = vadd.f32 %v692, %v724
    %v726 = vand.u32 %v408, 4294901760
    %v727 = vsub.f32 %v408, %v726
    %728 = vmatmul.f32.gmra.mxu0 %v727
    %v729 = vpop.f32.mrf.mxu0
    %v730 = vadd.f32 %v696, %v729
    %731 = vdwg.mxu0
    %732 = vmatpush.msra.mxu0 0.0
    %733 = vmatpush.msra.mxu0 0.0
    %734 = vmatpush.msra.mxu0 0.0
    %735 = vmatpush.msra.mxu0 0.0
    %736 = vmatpush.msra.mxu0 0.0
    %737 = vmatpush.msra.mxu0 0.0
    %738 = vmatpush.msra.mxu0 0.0
    %739 = vmatpush.msra.mxu0 0.0
    %740 = vmatpush.msra.mxu0 0.0
    %741 = vmatpush.msra.mxu0 0.0
    %742 = vmatpush.msra.mxu0 0.0
    %743 = vmatpush.msra.mxu0 0.0
    %744 = vmatpush.msra.mxu0 0.0
    %745 = vmatpush.msra.mxu0 0.0
    %746 = vmatpush.msra.mxu0 0.0
    %v747 = vand.u32 %v412, 4294901760
    %748 = vmatpush.msra.mxu0 %v747
    %v749 = vand.u32 %v402, 4294901760
    %v750 = vsub.f32 %v402, %v749
    %v751 = vand.u32 %v750, 4294901760
    %752 = vmatmul.f32.gmra.mxu0 %v751
    %v753 = vpop.f32.mrf.mxu0
    %v754 = vadd.f32 %v720, %v753
    %v755 = vand.u32 %v405, 4294901760
    %v756 = vsub.f32 %v405, %v755
    %v757 = vand.u32 %v756, 4294901760
    %758 = vmatmul.f32.gmra.mxu0 %v757
    %v759 = vpop.f32.mrf.mxu0
    %v760 = vadd.f32 %v725, %v759
    %v761 = vand.u32 %v408, 4294901760
    %v762 = vsub.f32 %v408, %v761
    %v763 = vand.u32 %v762, 4294901760
    %764 = vmatmul.f32.gmra.mxu0 %v763
    %v765 = vpop.f32.mrf.mxu0
    %v766 = vadd.f32 %v730, %v765
    %767 = vdwg.mxu0
    %768 = vmatpush.msra.mxu0 0.0
    %769 = vmatpush.msra.mxu0 0.0
    %770 = vmatpush.msra.mxu0 0.0
    %771 = vmatpush.msra.mxu0 0.0
    %772 = vmatpush.msra.mxu0 0.0
    %773 = vmatpush.msra.mxu0 0.0
    %774 = vmatpush.msra.mxu0 0.0
    %775 = vmatpush.msra.mxu0 0.0
    %776 = vmatpush.msra.mxu0 0.0
    %777 = vmatpush.msra.mxu0 0.0
    %778 = vmatpush.msra.mxu0 0.0
    %779 = vmatpush.msra.mxu0 0.0
    %780 = vmatpush.msra.mxu0 0.0
    %781 = vmatpush.msra.mxu0 0.0
    %782 = vmatpush.msra.mxu0 0.0
    %v783 = vand.u32 %v412, 4294901760
    %v784 = vsub.f32 %v412, %v783
    %v785 = vand.u32 %v784, 4294901760
    %786 = vmatpush.msra.mxu0 %v785
    %v787 = vand.u32 %v402, 4294901760
    %788 = vmatmul.f32.gmra.mxu0 %v787
    %v789 = vpop.f32.mrf.mxu0
    %v790 = vadd.f32 %v754, %v789
    %v791 = vand.u32 %v405, 4294901760
    %792 = vmatmul.f32.gmra.mxu0 %v791
    %v793 = vpop.f32.mrf.mxu0
    %v794 = vadd.f32 %v760, %v793
    %v795 = vand.u32 %v408, 4294901760
    %796 = vmatmul.f32.gmra.mxu0 %v795
    %v797 = vpop.f32.mrf.mxu0
    %v798 = vadd.f32 %v766, %v797
    %799 = vdwg.mxu0
    %800 = vmatpush.msra.mxu0 0.0
    %801 = vmatpush.msra.mxu0 0.0
    %802 = vmatpush.msra.mxu0 0.0
    %803 = vmatpush.msra.mxu0 0.0
    %804 = vmatpush.msra.mxu0 0.0
    %805 = vmatpush.msra.mxu0 0.0
    %806 = vmatpush.msra.mxu0 0.0
    %807 = vmatpush.msra.mxu0 0.0
    %808 = vmatpush.msra.mxu0 0.0
    %809 = vmatpush.msra.mxu0 0.0
    %810 = vmatpush.msra.mxu0 0.0
    %811 = vmatpush.msra.mxu0 0.0
    %812 = vmatpush.msra.mxu0 0.0
    %813 = vmatpush.msra.mxu0 0.0
    %814 = vmatpush.msra.mxu0 0.0
    %v815 = vand.u32 %v412, 4294901760
    %816 = vmatpush.msra.mxu0 %v815
    %v817 = vand.u32 %v402, 4294901760
    %818 = vmatmul.f32.gmra.mxu0 %v817
    %v819 = vpop.f32.mrf.mxu0
    %v820 = vadd.f32 %v790, %v819
    %v821 = vand.u32 %v405, 4294901760
    %822 = vmatmul.f32.gmra.mxu0 %v821
    %v823 = vpop.f32.mrf.mxu0
    %v824 = vadd.f32 %v794, %v823
    %v825 = vand.u32 %v408, 4294901760
    %826 = vmatmul.f32.gmra.mxu0 %v825
    %v827 = vpop.f32.mrf.mxu0
    %v828 = vadd.f32 %v798, %v827
    %829 = vdwg.mxu0
    %830 = vxpose.xlu0.b32.start [1/16] %v612, 128
    %831 = vxpose.xlu0.b32.cont [2/16] 0.0, 128
    %832 = vxpose.xlu0.b32.cont [3/16] 0.0, 128
    %833 = vxpose.xlu0.b32.cont [4/16] 0.0, 128
    %834 = vxpose.xlu0.b32.cont [5/16] 0.0, 128
    %835 = vxpose.xlu0.b32.cont [6/16] 0.0, 128
    %836 = vxpose.xlu0.b32.cont [7/16] 0.0, 128
    %837 = vxpose.xlu0.b32.cont [8/16] 0.0, 128
    %838 = vxpose.xlu0.b32.cont [9/16] 0.0, 128
    %839 = vxpose.xlu0.b32.cont [10/16] 0.0, 128
    %840 = vxpose.xlu0.b32.cont [11/16] 0.0, 128
    %841 = vxpose.xlu0.b32.cont [12/16] 0.0, 128
    %842 = vxpose.xlu0.b32.cont [13/16] 0.0, 128
    %843 = vxpose.xlu0.b32.cont [14/16] 0.0, 128
    %844 = vxpose.xlu0.b32.cont [15/16] 0.0, 128
    %845 = vxpose.xlu0.b32.end [16/16] 0.0, 128
    %v846 = vpop.trf.xlu0
    %v847 = vpop.trf.xlu0
    %v848 = vpop.trf.xlu0
    %v849 = vpop.trf.xlu0
    %v850 = vpop.trf.xlu0
    %v851 = vpop.trf.xlu0
    %v852 = vpop.trf.xlu0
    %v853 = vpop.trf.xlu0
    %v854 = vpop.trf.xlu0
    %v855 = vpop.trf.xlu0
    %v856 = vpop.trf.xlu0
    %v857 = vpop.trf.xlu0
    %v858 = vpop.trf.xlu0
    %v859 = vpop.trf.xlu0
    %v860 = vpop.trf.xlu0
    %v861 = vpop.trf.xlu0
    %862 = vxpose.xlu0.b32.start [1/16] %v820, 128
    %863 = vxpose.xlu0.b32.cont [2/16] 0.0, 128
    %864 = vxpose.xlu0.b32.cont [3/16] 0.0, 128
    %865 = vxpose.xlu0.b32.cont [4/16] 0.0, 128
    %866 = vxpose.xlu0.b32.cont [5/16] 0.0, 128
    %867 = vxpose.xlu0.b32.cont [6/16] 0.0, 128
    %868 = vxpose.xlu0.b32.cont [7/16] 0.0, 128
    %869 = vxpose.xlu0.b32.cont [8/16] 0.0, 128
    %870 = vxpose.xlu0.b32.cont [9/16] 0.0, 128
    %871 = vxpose.xlu0.b32.cont [10/16] 0.0, 128
    %872 = vxpose.xlu0.b32.cont [11/16] 0.0, 128
    %873 = vxpose.xlu0.b32.cont [12/16] 0.0, 128
    %874 = vxpose.xlu0.b32.cont [13/16] 0.0, 128
    %875 = vxpose.xlu0.b32.cont [14/16] 0.0, 128
    %876 = vxpose.xlu0.b32.cont [15/16] 0.0, 128
    %877 = vxpose.xlu0.b32.end [16/16] 0.0, 128
    %v878 = vpop.trf.xlu0
    %v879 = vpop.trf.xlu0
    %v880 = vpop.trf.xlu0
    %v881 = vpop.trf.xlu0
    %v882 = vpop.trf.xlu0
    %v883 = vpop.trf.xlu0
    %v884 = vpop.trf.xlu0
    %v885 = vpop.trf.xlu0
    %v886 = vpop.trf.xlu0
    %v887 = vpop.trf.xlu0
    %v888 = vpop.trf.xlu0
    %v889 = vpop.trf.xlu0
    %v890 = vpop.trf.xlu0
    %v891 = vpop.trf.xlu0
    %v892 = vpop.trf.xlu0
    %v893 = vpop.trf.xlu0
    %vm894 = vcmask 64512
    %v896 = vsel %vm894, %v846, 0
    %v899 = vsel %vm894, %v847, 0
    %v902 = vsel %vm894, %v848, 0
    %v905 = vsel %vm894, %v849, 0
    %v908 = vsel %vm894, %v850, 0
    %v911 = vsel %vm894, %v851, 0
    %v914 = vsel %vm894, %v852, 0
    %v917 = vsel %vm894, %v853, 0
    %v920 = vsel %vm894, %v854, 0
    %v923 = vsel %vm894, %v855, 0
    %v926 = vsel %vm894, %v856, 0
    %v929 = vsel %vm894, %v857, 0
    %v932 = vsel %vm894, %v858, 0
    %v935 = vsel %vm894, %v859, 0
    %v938 = vsel %vm894, %v860, 0
    %v941 = vsel %vm894, %v861, 0
    %v944 = vsel %vm894, %v878, 0
    %v947 = vsel %vm894, %v879, 0
    %v950 = vsel %vm894, %v880, 0
    %v953 = vsel %vm894, %v881, 0
    %v956 = vsel %vm894, %v882, 0
    %v959 = vsel %vm894, %v883, 0
    %v962 = vsel %vm894, %v884, 0
    %v965 = vsel %vm894, %v885, 0
    %v968 = vsel %vm894, %v886, 0
    %v971 = vsel %vm894, %v887, 0
    %v974 = vsel %vm894, %v888, 0
    %v977 = vsel %vm894, %v889, 0
    %v980 = vsel %vm894, %v890, 0
    %v983 = vsel %vm894, %v891, 0
    %v986 = vsel %vm894, %v892, 0
    %v989 = vsel %vm894, %v893, 0
    %991 = vmatpush.msra.mxu0 0.0
    %992 = vmatpush.msra.mxu0 0.0
    %993 = vmatpush.msra.mxu0 0.0
    %994 = vmatpush.msra.mxu0 0.0
    %995 = vmatpush.msra.mxu0 0.0
    %996 = vmatpush.msra.mxu0 0.0
    %997 = vmatpush.msra.mxu0 0.0
    %998 = vmatpush.msra.mxu0 0.0
    %999 = vmatpush.msra.mxu0 0.0
    %1000 = vmatpush.msra.mxu0 0.0
    %1001 = vmatpush.msra.mxu0 0.0
    %1002 = vmatpush.msra.mxu0 0.0
    %1003 = vmatpush.msra.mxu0 0.0
    %1004 = vmatpush.msra.mxu0 0.0
    %1005 = vmatpush.msra.mxu0 0.0
    %v1006 = vand.u32 %v616, 4294901760
    %1007 = vmatpush.msra.mxu0 %v1006
    %v1008 = vand.u32 %v896, 4294901760
    %v1009 = vsub.f32 %v896, %v1008
    %v1010 = vand.u32 %v1009, 4294901760
    %v1011 = vsub.f32 %v1009, %v1010
    %v1012 = vand.u32 %v1011, 4294901760
    %1013 = vmatmul.f32.gmra.mxu0 %v1012
    %v1014 = vpop.f32.mrf.mxu0
    %v1015 = vadd.f32 0.0, %v1014
    %v1016 = vand.u32 %v899, 4294901760
    %v1017 = vsub.f32 %v899, %v1016
    %v1018 = vand.u32 %v1017, 4294901760
    %v1019 = vsub.f32 %v1017, %v1018
    %v1020 = vand.u32 %v1019, 4294901760
    %1021 = vmatmul.f32.gmra.mxu0 %v1020
    %v1022 = vpop.f32.mrf.mxu0
    %v1023 = vadd.f32 0.0, %v1022
    %v1024 = vand.u32 %v902, 4294901760
    %v1025 = vsub.f32 %v902, %v1024
    %v1026 = vand.u32 %v1025, 4294901760
    %v1027 = vsub.f32 %v1025, %v1026
    %v1028 = vand.u32 %v1027, 4294901760
    %1029 = vmatmul.f32.gmra.mxu0 %v1028
    %v1030 = vpop.f32.mrf.mxu0
    %v1031 = vadd.f32 0.0, %v1030
    %v1032 = vand.u32 %v905, 4294901760
    %v1033 = vsub.f32 %v905, %v1032
    %v1034 = vand.u32 %v1033, 4294901760
    %v1035 = vsub.f32 %v1033, %v1034
    %v1036 = vand.u32 %v1035, 4294901760
    %1037 = vmatmul.f32.gmra.mxu0 %v1036
    %v1038 = vpop.f32.mrf.mxu0
    %v1039 = vadd.f32 0.0, %v1038
    %v1040 = vand.u32 %v908, 4294901760
    %v1041 = vsub.f32 %v908, %v1040
    %v1042 = vand.u32 %v1041, 4294901760
    %v1043 = vsub.f32 %v1041, %v1042
    %v1044 = vand.u32 %v1043, 4294901760
    %1045 = vmatmul.f32.gmra.mxu0 %v1044
    %v1046 = vpop.f32.mrf.mxu0
    %v1047 = vadd.f32 0.0, %v1046
    %v1048 = vand.u32 %v911, 4294901760
    %v1049 = vsub.f32 %v911, %v1048
    %v1050 = vand.u32 %v1049, 4294901760
    %v1051 = vsub.f32 %v1049, %v1050
    %v1052 = vand.u32 %v1051, 4294901760
    %1053 = vmatmul.f32.gmra.mxu0 %v1052
    %v1054 = vpop.f32.mrf.mxu0
    %v1055 = vadd.f32 0.0, %v1054
    %v1056 = vand.u32 %v914, 4294901760
    %v1057 = vsub.f32 %v914, %v1056
    %v1058 = vand.u32 %v1057, 4294901760
    %v1059 = vsub.f32 %v1057, %v1058
    %v1060 = vand.u32 %v1059, 4294901760
    %1061 = vmatmul.f32.gmra.mxu0 %v1060
    %v1062 = vpop.f32.mrf.mxu0
    %v1063 = vadd.f32 0.0, %v1062
    %v1064 = vand.u32 %v917, 4294901760
    %v1065 = vsub.f32 %v917, %v1064
    %v1066 = vand.u32 %v1065, 4294901760
    %v1067 = vsub.f32 %v1065, %v1066
    %v1068 = vand.u32 %v1067, 4294901760
    %1069 = vmatmul.f32.gmra.mxu0 %v1068
    %v1070 = vpop.f32.mrf.mxu0
    %v1071 = vadd.f32 0.0, %v1070
    %v1072 = vand.u32 %v920, 4294901760
    %v1073 = vsub.f32 %v920, %v1072
    %v1074 = vand.u32 %v1073, 4294901760
    %v1075 = vsub.f32 %v1073, %v1074
    %v1076 = vand.u32 %v1075, 4294901760
    %1077 = vmatmul.f32.gmra.mxu0 %v1076
    %v1078 = vpop.f32.mrf.mxu0
    %v1079 = vadd.f32 0.0, %v1078
    %v1080 = vand.u32 %v923, 4294901760
    %v1081 = vsub.f32 %v923, %v1080
    %v1082 = vand.u32 %v1081, 4294901760
    %v1083 = vsub.f32 %v1081, %v1082
    %v1084 = vand.u32 %v1083, 4294901760
    %1085 = vmatmul.f32.gmra.mxu0 %v1084
    %v1086 = vpop.f32.mrf.mxu0
    %v1087 = vadd.f32 0.0, %v1086
    %v1088 = vand.u32 %v926, 4294901760
    %v1089 = vsub.f32 %v926, %v1088
    %v1090 = vand.u32 %v1089, 4294901760
    %v1091 = vsub.f32 %v1089, %v1090
    %v1092 = vand.u32 %v1091, 4294901760
    %1093 = vmatmul.f32.gmra.mxu0 %v1092
    %v1094 = vpop.f32.mrf.mxu0
    %v1095 = vadd.f32 0.0, %v1094
    %v1096 = vand.u32 %v929, 4294901760
    %v1097 = vsub.f32 %v929, %v1096
    %v1098 = vand.u32 %v1097, 4294901760
    %v1099 = vsub.f32 %v1097, %v1098
    %v1100 = vand.u32 %v1099, 4294901760
    %1101 = vmatmul.f32.gmra.mxu0 %v1100
    %v1102 = vpop.f32.mrf.mxu0
    %v1103 = vadd.f32 0.0, %v1102
    %v1104 = vand.u32 %v932, 4294901760
    %v1105 = vsub.f32 %v932, %v1104
    %v1106 = vand.u32 %v1105, 4294901760
    %v1107 = vsub.f32 %v1105, %v1106
    %v1108 = vand.u32 %v1107, 4294901760
    %1109 = vmatmul.f32.gmra.mxu0 %v1108
    %v1110 = vpop.f32.mrf.mxu0
    %v1111 = vadd.f32 0.0, %v1110
    %v1112 = vand.u32 %v935, 4294901760
    %v1113 = vsub.f32 %v935, %v1112
    %v1114 = vand.u32 %v1113, 4294901760
    %v1115 = vsub.f32 %v1113, %v1114
    %v1116 = vand.u32 %v1115, 4294901760
    %1117 = vmatmul.f32.gmra.mxu0 %v1116
    %v1118 = vpop.f32.mrf.mxu0
    %v1119 = vadd.f32 0.0, %v1118
    %v1120 = vand.u32 %v938, 4294901760
    %v1121 = vsub.f32 %v938, %v1120
    %v1122 = vand.u32 %v1121, 4294901760
    %v1123 = vsub.f32 %v1121, %v1122
    %v1124 = vand.u32 %v1123, 4294901760
    %1125 = vmatmul.f32.gmra.mxu0 %v1124
    %v1126 = vpop.f32.mrf.mxu0
    %v1127 = vadd.f32 0.0, %v1126
    %v1128 = vand.u32 %v941, 4294901760
    %v1129 = vsub.f32 %v941, %v1128
    %v1130 = vand.u32 %v1129, 4294901760
    %v1131 = vsub.f32 %v1129, %v1130
    %v1132 = vand.u32 %v1131, 4294901760
    %1133 = vmatmul.f32.gmra.mxu0 %v1132
    %v1134 = vpop.f32.mrf.mxu0
    %v1135 = vadd.f32 0.0, %v1134
    %v1136 = vand.u32 %v944, 4294901760
    %v1137 = vsub.f32 %v944, %v1136
    %v1138 = vand.u32 %v1137, 4294901760
    %v1139 = vsub.f32 %v1137, %v1138
    %v1140 = vand.u32 %v1139, 4294901760
    %1141 = vmatmul.f32.gmra.mxu0 %v1140
    %v1142 = vpop.f32.mrf.mxu0
    %v1143 = vadd.f32 0.0, %v1142
    %v1144 = vand.u32 %v947, 4294901760
    %v1145 = vsub.f32 %v947, %v1144
    %v1146 = vand.u32 %v1145, 4294901760
    %v1147 = vsub.f32 %v1145, %v1146
    %v1148 = vand.u32 %v1147, 4294901760
    %1149 = vmatmul.f32.gmra.mxu0 %v1148
    %v1150 = vpop.f32.mrf.mxu0
    %v1151 = vadd.f32 0.0, %v1150
    %v1152 = vand.u32 %v950, 4294901760
    %v1153 = vsub.f32 %v950, %v1152
    %v1154 = vand.u32 %v1153, 4294901760
    %v1155 = vsub.f32 %v1153, %v1154
    %v1156 = vand.u32 %v1155, 4294901760
    %1157 = vmatmul.f32.gmra.mxu0 %v1156
    %v1158 = vpop.f32.mrf.mxu0
    %v1159 = vadd.f32 0.0, %v1158
    %v1160 = vand.u32 %v953, 4294901760
    %v1161 = vsub.f32 %v953, %v1160
    %v1162 = vand.u32 %v1161, 4294901760
    %v1163 = vsub.f32 %v1161, %v1162
    %v1164 = vand.u32 %v1163, 4294901760
    %1165 = vmatmul.f32.gmra.mxu0 %v1164
    %v1166 = vpop.f32.mrf.mxu0
    %v1167 = vadd.f32 0.0, %v1166
    %v1168 = vand.u32 %v956, 4294901760
    %v1169 = vsub.f32 %v956, %v1168
    %v1170 = vand.u32 %v1169, 4294901760
    %v1171 = vsub.f32 %v1169, %v1170
    %v1172 = vand.u32 %v1171, 4294901760
    %1173 = vmatmul.f32.gmra.mxu0 %v1172
    %v1174 = vpop.f32.mrf.mxu0
    %v1175 = vadd.f32 0.0, %v1174
    %v1176 = vand.u32 %v959, 4294901760
    %v1177 = vsub.f32 %v959, %v1176
    %v1178 = vand.u32 %v1177, 4294901760
    %v1179 = vsub.f32 %v1177, %v1178
    %v1180 = vand.u32 %v1179, 4294901760
    %1181 = vmatmul.f32.gmra.mxu0 %v1180
    %v1182 = vpop.f32.mrf.mxu0
    %v1183 = vadd.f32 0.0, %v1182
    %v1184 = vand.u32 %v962, 4294901760
    %v1185 = vsub.f32 %v962, %v1184
    %v1186 = vand.u32 %v1185, 4294901760
    %v1187 = vsub.f32 %v1185, %v1186
    %v1188 = vand.u32 %v1187, 4294901760
    %1189 = vmatmul.f32.gmra.mxu0 %v1188
    %v1190 = vpop.f32.mrf.mxu0
    %v1191 = vadd.f32 0.0, %v1190
    %v1192 = vand.u32 %v965, 4294901760
    %v1193 = vsub.f32 %v965, %v1192
    %v1194 = vand.u32 %v1193, 4294901760
    %v1195 = vsub.f32 %v1193, %v1194
    %v1196 = vand.u32 %v1195, 4294901760
    %1197 = vmatmul.f32.gmra.mxu0 %v1196
    %v1198 = vpop.f32.mrf.mxu0
    %v1199 = vadd.f32 0.0, %v1198
    %v1200 = vand.u32 %v968, 4294901760
    %v1201 = vsub.f32 %v968, %v1200
    %v1202 = vand.u32 %v1201, 4294901760
    %v1203 = vsub.f32 %v1201, %v1202
    %v1204 = vand.u32 %v1203, 4294901760
    %1205 = vmatmul.f32.gmra.mxu0 %v1204
    %v1206 = vpop.f32.mrf.mxu0
    %v1207 = vadd.f32 0.0, %v1206
    %v1208 = vand.u32 %v971, 4294901760
    %v1209 = vsub.f32 %v971, %v1208
    %v1210 = vand.u32 %v1209, 4294901760
    %v1211 = vsub.f32 %v1209, %v1210
    %v1212 = vand.u32 %v1211, 4294901760
    %1213 = vmatmul.f32.gmra.mxu0 %v1212
    %v1214 = vpop.f32.mrf.mxu0
    %v1215 = vadd.f32 0.0, %v1214
    %v1216 = vand.u32 %v974, 4294901760
    %v1217 = vsub.f32 %v974, %v1216
    %v1218 = vand.u32 %v1217, 4294901760
    %v1219 = vsub.f32 %v1217, %v1218
    %v1220 = vand.u32 %v1219, 4294901760
    %1221 = vmatmul.f32.gmra.mxu0 %v1220
    %v1222 = vpop.f32.mrf.mxu0
    %v1223 = vadd.f32 0.0, %v1222
    %v1224 = vand.u32 %v977, 4294901760
    %v1225 = vsub.f32 %v977, %v1224
    %v1226 = vand.u32 %v1225, 4294901760
    %v1227 = vsub.f32 %v1225, %v1226
    %v1228 = vand.u32 %v1227, 4294901760
    %1229 = vmatmul.f32.gmra.mxu0 %v1228
    %v1230 = vpop.f32.mrf.mxu0
    %v1231 = vadd.f32 0.0, %v1230
    %v1232 = vand.u32 %v980, 4294901760
    %v1233 = vsub.f32 %v980, %v1232
    %v1234 = vand.u32 %v1233, 4294901760
    %v1235 = vsub.f32 %v1233, %v1234
    %v1236 = vand.u32 %v1235, 4294901760
    %1237 = vmatmul.f32.gmra.mxu0 %v1236
    %v1238 = vpop.f32.mrf.mxu0
    %v1239 = vadd.f32 0.0, %v1238
    %v1240 = vand.u32 %v983, 4294901760
    %v1241 = vsub.f32 %v983, %v1240
    %v1242 = vand.u32 %v1241, 4294901760
    %v1243 = vsub.f32 %v1241, %v1242
    %v1244 = vand.u32 %v1243, 4294901760
    %1245 = vmatmul.f32.gmra.mxu0 %v1244
    %v1246 = vpop.f32.mrf.mxu0
    %v1247 = vadd.f32 0.0, %v1246
    %v1248 = vand.u32 %v986, 4294901760
    %v1249 = vsub.f32 %v986, %v1248
    %v1250 = vand.u32 %v1249, 4294901760
    %v1251 = vsub.f32 %v1249, %v1250
    %v1252 = vand.u32 %v1251, 4294901760
    %1253 = vmatmul.f32.gmra.mxu0 %v1252
    %v1254 = vpop.f32.mrf.mxu0
    %v1255 = vadd.f32 0.0, %v1254
    %v1256 = vand.u32 %v989, 4294901760
    %v1257 = vsub.f32 %v989, %v1256
    %v1258 = vand.u32 %v1257, 4294901760
    %v1259 = vsub.f32 %v1257, %v1258
    %v1260 = vand.u32 %v1259, 4294901760
    %1261 = vmatmul.f32.gmra.mxu0 %v1260
    %v1262 = vpop.f32.mrf.mxu0
    %v1263 = vadd.f32 0.0, %v1262
    %1264 = vdwg.mxu0
    %1265 = vmatpush.msra.mxu0 0.0
    %1266 = vmatpush.msra.mxu0 0.0
    %1267 = vmatpush.msra.mxu0 0.0
    %1268 = vmatpush.msra.mxu0 0.0
    %1269 = vmatpush.msra.mxu0 0.0
    %1270 = vmatpush.msra.mxu0 0.0
    %1271 = vmatpush.msra.mxu0 0.0
    %1272 = vmatpush.msra.mxu0 0.0
    %1273 = vmatpush.msra.mxu0 0.0
    %1274 = vmatpush.msra.mxu0 0.0
    %1275 = vmatpush.msra.mxu0 0.0
    %1276 = vmatpush.msra.mxu0 0.0
    %1277 = vmatpush.msra.mxu0 0.0
    %1278 = vmatpush.msra.mxu0 0.0
    %1279 = vmatpush.msra.mxu0 0.0
    %v1280 = vand.u32 %v616, 4294901760
    %v1281 = vsub.f32 %v616, %v1280
    %v1282 = vand.u32 %v1281, 4294901760
    %v1283 = vsub.f32 %v1281, %v1282
    %v1284 = vand.u32 %v1283, 4294901760
    %1285 = vmatpush.msra.mxu0 %v1284
    %v1286 = vand.u32 %v896, 4294901760
    %1287 = vmatmul.f32.gmra.mxu0 %v1286
    %v1288 = vpop.f32.mrf.mxu0
    %v1289 = vadd.f32 %v1015, %v1288
    %v1290 = vand.u32 %v899, 4294901760
    %1291 = vmatmul.f32.gmra.mxu0 %v1290
    %v1292 = vpop.f32.mrf.mxu0
    %v1293 = vadd.f32 %v1023, %v1292
    %v1294 = vand.u32 %v902, 4294901760
    %1295 = vmatmul.f32.gmra.mxu0 %v1294
    %v1296 = vpop.f32.mrf.mxu0
    %v1297 = vadd.f32 %v1031, %v1296
    %v1298 = vand.u32 %v905, 4294901760
    %1299 = vmatmul.f32.gmra.mxu0 %v1298
    %v1300 = vpop.f32.mrf.mxu0
    %v1301 = vadd.f32 %v1039, %v1300
    %v1302 = vand.u32 %v908, 4294901760
    %1303 = vmatmul.f32.gmra.mxu0 %v1302
    %v1304 = vpop.f32.mrf.mxu0
    %v1305 = vadd.f32 %v1047, %v1304
    %v1306 = vand.u32 %v911, 4294901760
    %1307 = vmatmul.f32.gmra.mxu0 %v1306
    %v1308 = vpop.f32.mrf.mxu0
    %v1309 = vadd.f32 %v1055, %v1308
    %v1310 = vand.u32 %v914, 4294901760
    %1311 = vmatmul.f32.gmra.mxu0 %v1310
    %v1312 = vpop.f32.mrf.mxu0
    %v1313 = vadd.f32 %v1063, %v1312
    %v1314 = vand.u32 %v917, 4294901760
    %1315 = vmatmul.f32.gmra.mxu0 %v1314
    %v1316 = vpop.f32.mrf.mxu0
    %v1317 = vadd.f32 %v1071, %v1316
    %v1318 = vand.u32 %v920, 4294901760
    %1319 = vmatmul.f32.gmra.mxu0 %v1318
    %v1320 = vpop.f32.mrf.mxu0
    %v1321 = vadd.f32 %v1079, %v1320
    %v1322 = vand.u32 %v923, 4294901760
    %1323 = vmatmul.f32.gmra.mxu0 %v1322
    %v1324 = vpop.f32.mrf.mxu0
    %v1325 = vadd.f32 %v1087, %v1324
    %v1326 = vand.u32 %v926, 4294901760
    %1327 = vmatmul.f32.gmra.mxu0 %v1326
    %v1328 = vpop.f32.mrf.mxu0
    %v1329 = vadd.f32 %v1095, %v1328
    %v1330 = vand.u32 %v929, 4294901760
    %1331 = vmatmul.f32.gmra.mxu0 %v1330
    %v1332 = vpop.f32.mrf.mxu0
    %v1333 = vadd.f32 %v1103, %v1332
    %v1334 = vand.u32 %v932, 4294901760
    %1335 = vmatmul.f32.gmra.mxu0 %v1334
    %v1336 = vpop.f32.mrf.mxu0
    %v1337 = vadd.f32 %v1111, %v1336
    %v1338 = vand.u32 %v935, 4294901760
    %1339 = vmatmul.f32.gmra.mxu0 %v1338
    %v1340 = vpop.f32.mrf.mxu0
    %v1341 = vadd.f32 %v1119, %v1340
    %v1342 = vand.u32 %v938, 4294901760
    %1343 = vmatmul.f32.gmra.mxu0 %v1342
    %v1344 = vpop.f32.mrf.mxu0
    %v1345 = vadd.f32 %v1127, %v1344
    %v1346 = vand.u32 %v941, 4294901760
    %1347 = vmatmul.f32.gmra.mxu0 %v1346
    %v1348 = vpop.f32.mrf.mxu0
    %v1349 = vadd.f32 %v1135, %v1348
    %v1350 = vand.u32 %v944, 4294901760
    %1351 = vmatmul.f32.gmra.mxu0 %v1350
    %v1352 = vpop.f32.mrf.mxu0
    %v1353 = vadd.f32 %v1143, %v1352
    %v1354 = vand.u32 %v947, 4294901760
    %1355 = vmatmul.f32.gmra.mxu0 %v1354
    %v1356 = vpop.f32.mrf.mxu0
    %v1357 = vadd.f32 %v1151, %v1356
    %v1358 = vand.u32 %v950, 4294901760
    %1359 = vmatmul.f32.gmra.mxu0 %v1358
    %v1360 = vpop.f32.mrf.mxu0
    %v1361 = vadd.f32 %v1159, %v1360
    %v1362 = vand.u32 %v953, 4294901760
    %1363 = vmatmul.f32.gmra.mxu0 %v1362
    %v1364 = vpop.f32.mrf.mxu0
    %v1365 = vadd.f32 %v1167, %v1364
    %v1366 = vand.u32 %v956, 4294901760
    %1367 = vmatmul.f32.gmra.mxu0 %v1366
    %v1368 = vpop.f32.mrf.mxu0
    %v1369 = vadd.f32 %v1175, %v1368
    %v1370 = vand.u32 %v959, 4294901760
    %1371 = vmatmul.f32.gmra.mxu0 %v1370
    %v1372 = vpop.f32.mrf.mxu0
    %v1373 = vadd.f32 %v1183, %v1372
    %v1374 = vand.u32 %v962, 4294901760
    %1375 = vmatmul.f32.gmra.mxu0 %v1374
    %v1376 = vpop.f32.mrf.mxu0
    %v1377 = vadd.f32 %v1191, %v1376
    %v1378 = vand.u32 %v965, 4294901760
    %1379 = vmatmul.f32.gmra.mxu0 %v1378
    %v1380 = vpop.f32.mrf.mxu0
    %v1381 = vadd.f32 %v1199, %v1380
    %v1382 = vand.u32 %v968, 4294901760
    %1383 = vmatmul.f32.gmra.mxu0 %v1382
    %v1384 = vpop.f32.mrf.mxu0
    %v1385 = vadd.f32 %v1207, %v1384
    %v1386 = vand.u32 %v971, 4294901760
    %1387 = vmatmul.f32.gmra.mxu0 %v1386
    %v1388 = vpop.f32.mrf.mxu0
    %v1389 = vadd.f32 %v1215, %v1388
    %v1390 = vand.u32 %v974, 4294901760
    %1391 = vmatmul.f32.gmra.mxu0 %v1390
    %v1392 = vpop.f32.mrf.mxu0
    %v1393 = vadd.f32 %v1223, %v1392
    %v1394 = vand.u32 %v977, 4294901760
    %1395 = vmatmul.f32.gmra.mxu0 %v1394
    %v1396 = vpop.f32.mrf.mxu0
    %v1397 = vadd.f32 %v1231, %v1396
    %v1398 = vand.u32 %v980, 4294901760
    %1399 = vmatmul.f32.gmra.mxu0 %v1398
    %v1400 = vpop.f32.mrf.mxu0
    %v1401 = vadd.f32 %v1239, %v1400
    %v1402 = vand.u32 %v983, 4294901760
    %1403 = vmatmul.f32.gmra.mxu0 %v1402
    %v1404 = vpop.f32.mrf.mxu0
    %v1405 = vadd.f32 %v1247, %v1404
    %v1406 = vand.u32 %v986, 4294901760
    %1407 = vmatmul.f32.gmra.mxu0 %v1406
    %v1408 = vpop.f32.mrf.mxu0
    %v1409 = vadd.f32 %v1255, %v1408
    %v1410 = vand.u32 %v989, 4294901760
    %1411 = vmatmul.f32.gmra.mxu0 %v1410
    %v1412 = vpop.f32.mrf.mxu0
    %v1413 = vadd.f32 %v1263, %v1412
    %1414 = vdwg.mxu0
    %1415 = vmatpush.msra.mxu0 0.0
    %1416 = vmatpush.msra.mxu0 0.0
    %1417 = vmatpush.msra.mxu0 0.0
    %1418 = vmatpush.msra.mxu0 0.0
    %1419 = vmatpush.msra.mxu0 0.0
    %1420 = vmatpush.msra.mxu0 0.0
    %1421 = vmatpush.msra.mxu0 0.0
    %1422 = vmatpush.msra.mxu0 0.0
    %1423 = vmatpush.msra.mxu0 0.0
    %1424 = vmatpush.msra.mxu0 0.0
    %1425 = vmatpush.msra.mxu0 0.0
    %1426 = vmatpush.msra.mxu0 0.0
    %1427 = vmatpush.msra.mxu0 0.0
    %1428 = vmatpush.msra.mxu0 0.0
    %1429 = vmatpush.msra.mxu0 0.0
    %v1430 = vand.u32 %v616, 4294901760
    %v1431 = vsub.f32 %v616, %v1430
    %1432 = vmatpush.msra.mxu0 %v1431
    %v1433 = vand.u32 %v896, 4294901760
    %v1434 = vsub.f32 %v896, %v1433
    %1435 = vmatmul.f32.gmra.mxu0 %v1434
    %v1436 = vpop.f32.mrf.mxu0
    %v1437 = vadd.f32 %v1289, %v1436
    %v1438 = vand.u32 %v899, 4294901760
    %v1439 = vsub.f32 %v899, %v1438
    %1440 = vmatmul.f32.gmra.mxu0 %v1439
    %v1441 = vpop.f32.mrf.mxu0
    %v1442 = vadd.f32 %v1293, %v1441
    %v1443 = vand.u32 %v902, 4294901760
    %v1444 = vsub.f32 %v902, %v1443
    %1445 = vmatmul.f32.gmra.mxu0 %v1444
    %v1446 = vpop.f32.mrf.mxu0
    %v1447 = vadd.f32 %v1297, %v1446
    %v1448 = vand.u32 %v905, 4294901760
    %v1449 = vsub.f32 %v905, %v1448
    %1450 = vmatmul.f32.gmra.mxu0 %v1449
    %v1451 = vpop.f32.mrf.mxu0
    %v1452 = vadd.f32 %v1301, %v1451
    %v1453 = vand.u32 %v908, 4294901760
    %v1454 = vsub.f32 %v908, %v1453
    %1455 = vmatmul.f32.gmra.mxu0 %v1454
    %v1456 = vpop.f32.mrf.mxu0
    %v1457 = vadd.f32 %v1305, %v1456
    %v1458 = vand.u32 %v911, 4294901760
    %v1459 = vsub.f32 %v911, %v1458
    %1460 = vmatmul.f32.gmra.mxu0 %v1459
    %v1461 = vpop.f32.mrf.mxu0
    %v1462 = vadd.f32 %v1309, %v1461
    %v1463 = vand.u32 %v914, 4294901760
    %v1464 = vsub.f32 %v914, %v1463
    %1465 = vmatmul.f32.gmra.mxu0 %v1464
    %v1466 = vpop.f32.mrf.mxu0
    %v1467 = vadd.f32 %v1313, %v1466
    %v1468 = vand.u32 %v917, 4294901760
    %v1469 = vsub.f32 %v917, %v1468
    %1470 = vmatmul.f32.gmra.mxu0 %v1469
    %v1471 = vpop.f32.mrf.mxu0
    %v1472 = vadd.f32 %v1317, %v1471
    %v1473 = vand.u32 %v920, 4294901760
    %v1474 = vsub.f32 %v920, %v1473
    %1475 = vmatmul.f32.gmra.mxu0 %v1474
    %v1476 = vpop.f32.mrf.mxu0
    %v1477 = vadd.f32 %v1321, %v1476
    %v1478 = vand.u32 %v923, 4294901760
    %v1479 = vsub.f32 %v923, %v1478
    %1480 = vmatmul.f32.gmra.mxu0 %v1479
    %v1481 = vpop.f32.mrf.mxu0
    %v1482 = vadd.f32 %v1325, %v1481
    %v1483 = vand.u32 %v926, 4294901760
    %v1484 = vsub.f32 %v926, %v1483
    %1485 = vmatmul.f32.gmra.mxu0 %v1484
    %v1486 = vpop.f32.mrf.mxu0
    %v1487 = vadd.f32 %v1329, %v1486
    %v1488 = vand.u32 %v929, 4294901760
    %v1489 = vsub.f32 %v929, %v1488
    %1490 = vmatmul.f32.gmra.mxu0 %v1489
    %v1491 = vpop.f32.mrf.mxu0
    %v1492 = vadd.f32 %v1333, %v1491
    %v1493 = vand.u32 %v932, 4294901760
    %v1494 = vsub.f32 %v932, %v1493
    %1495 = vmatmul.f32.gmra.mxu0 %v1494
    %v1496 = vpop.f32.mrf.mxu0
    %v1497 = vadd.f32 %v1337, %v1496
    %v1498 = vand.u32 %v935, 4294901760
    %v1499 = vsub.f32 %v935, %v1498
    %1500 = vmatmul.f32.gmra.mxu0 %v1499
    %v1501 = vpop.f32.mrf.mxu0
    %v1502 = vadd.f32 %v1341, %v1501
    %v1503 = vand.u32 %v938, 4294901760
    %v1504 = vsub.f32 %v938, %v1503
    %1505 = vmatmul.f32.gmra.mxu0 %v1504
    %v1506 = vpop.f32.mrf.mxu0
    %v1507 = vadd.f32 %v1345, %v1506
    %v1508 = vand.u32 %v941, 4294901760
    %v1509 = vsub.f32 %v941, %v1508
    %1510 = vmatmul.f32.gmra.mxu0 %v1509
    %v1511 = vpop.f32.mrf.mxu0
    %v1512 = vadd.f32 %v1349, %v1511
    %v1513 = vand.u32 %v944, 4294901760
    %v1514 = vsub.f32 %v944, %v1513
    %1515 = vmatmul.f32.gmra.mxu0 %v1514
    %v1516 = vpop.f32.mrf.mxu0
    %v1517 = vadd.f32 %v1353, %v1516
    %v1518 = vand.u32 %v947, 4294901760
    %v1519 = vsub.f32 %v947, %v1518
    %1520 = vmatmul.f32.gmra.mxu0 %v1519
    %v1521 = vpop.f32.mrf.mxu0
    %v1522 = vadd.f32 %v1357, %v1521
    %v1523 = vand.u32 %v950, 4294901760
    %v1524 = vsub.f32 %v950, %v1523
    %1525 = vmatmul.f32.gmra.mxu0 %v1524
    %v1526 = vpop.f32.mrf.mxu0
    %v1527 = vadd.f32 %v1361, %v1526
    %v1528 = vand.u32 %v953, 4294901760
    %v1529 = vsub.f32 %v953, %v1528
    %1530 = vmatmul.f32.gmra.mxu0 %v1529
    %v1531 = vpop.f32.mrf.mxu0
    %v1532 = vadd.f32 %v1365, %v1531
    %v1533 = vand.u32 %v956, 4294901760
    %v1534 = vsub.f32 %v956, %v1533
    %1535 = vmatmul.f32.gmra.mxu0 %v1534
    %v1536 = vpop.f32.mrf.mxu0
    %v1537 = vadd.f32 %v1369, %v1536
    %v1538 = vand.u32 %v959, 4294901760
    %v1539 = vsub.f32 %v959, %v1538
    %1540 = vmatmul.f32.gmra.mxu0 %v1539
    %v1541 = vpop.f32.mrf.mxu0
    %v1542 = vadd.f32 %v1373, %v1541
    %v1543 = vand.u32 %v962, 4294901760
    %v1544 = vsub.f32 %v962, %v1543
    %1545 = vmatmul.f32.gmra.mxu0 %v1544
    %v1546 = vpop.f32.mrf.mxu0
    %v1547 = vadd.f32 %v1377, %v1546
    %v1548 = vand.u32 %v965, 4294901760
    %v1549 = vsub.f32 %v965, %v1548
    %1550 = vmatmul.f32.gmra.mxu0 %v1549
    %v1551 = vpop.f32.mrf.mxu0
    %v1552 = vadd.f32 %v1381, %v1551
    %v1553 = vand.u32 %v968, 4294901760
    %v1554 = vsub.f32 %v968, %v1553
    %1555 = vmatmul.f32.gmra.mxu0 %v1554
    %v1556 = vpop.f32.mrf.mxu0
    %v1557 = vadd.f32 %v1385, %v1556
    %v1558 = vand.u32 %v971, 4294901760
    %v1559 = vsub.f32 %v971, %v1558
    %1560 = vmatmul.f32.gmra.mxu0 %v1559
    %v1561 = vpop.f32.mrf.mxu0
    %v1562 = vadd.f32 %v1389, %v1561
    %v1563 = vand.u32 %v974, 4294901760
    %v1564 = vsub.f32 %v974, %v1563
    %1565 = vmatmul.f32.gmra.mxu0 %v1564
    %v1566 = vpop.f32.mrf.mxu0
    %v1567 = vadd.f32 %v1393, %v1566
    %v1568 = vand.u32 %v977, 4294901760
    %v1569 = vsub.f32 %v977, %v1568
    %1570 = vmatmul.f32.gmra.mxu0 %v1569
    %v1571 = vpop.f32.mrf.mxu0
    %v1572 = vadd.f32 %v1397, %v1571
    %v1573 = vand.u32 %v980, 4294901760
    %v1574 = vsub.f32 %v980, %v1573
    %1575 = vmatmul.f32.gmra.mxu0 %v1574
    %v1576 = vpop.f32.mrf.mxu0
    %v1577 = vadd.f32 %v1401, %v1576
    %v1578 = vand.u32 %v983, 4294901760
    %v1579 = vsub.f32 %v983, %v1578
    %1580 = vmatmul.f32.gmra.mxu0 %v1579
    %v1581 = vpop.f32.mrf.mxu0
    %v1582 = vadd.f32 %v1405, %v1581
    %v1583 = vand.u32 %v986, 4294901760
    %v1584 = vsub.f32 %v986, %v1583
    %1585 = vmatmul.f32.gmra.mxu0 %v1584
    %v1586 = vpop.f32.mrf.mxu0
    %v1587 = vadd.f32 %v1409, %v1586
    %v1588 = vand.u32 %v989, 4294901760
    %v1589 = vsub.f32 %v989, %v1588
    %1590 = vmatmul.f32.gmra.mxu0 %v1589
    %v1591 = vpop.f32.mrf.mxu0
    %v1592 = vadd.f32 %v1413, %v1591
    %1593 = vdwg.mxu0
    %1594 = vmatpush.msra.mxu0 0.0
    %1595 = vmatpush.msra.mxu0 0.0
    %1596 = vmatpush.msra.mxu0 0.0
    %1597 = vmatpush.msra.mxu0 0.0
    %1598 = vmatpush.msra.mxu0 0.0
    %1599 = vmatpush.msra.mxu0 0.0
    %1600 = vmatpush.msra.mxu0 0.0
    %1601 = vmatpush.msra.mxu0 0.0
    %1602 = vmatpush.msra.mxu0 0.0
    %1603 = vmatpush.msra.mxu0 0.0
    %1604 = vmatpush.msra.mxu0 0.0
    %1605 = vmatpush.msra.mxu0 0.0
    %1606 = vmatpush.msra.mxu0 0.0
    %1607 = vmatpush.msra.mxu0 0.0
    %1608 = vmatpush.msra.mxu0 0.0
    %v1609 = vand.u32 %v616, 4294901760
    %1610 = vmatpush.msra.mxu0 %v1609
    %v1611 = vand.u32 %v896, 4294901760
    %v1612 = vsub.f32 %v896, %v1611
    %v1613 = vand.u32 %v1612, 4294901760
    %1614 = vmatmul.f32.gmra.mxu0 %v1613
    %v1615 = vpop.f32.mrf.mxu0
    %v1616 = vadd.f32 %v1437, %v1615
    %v1617 = vand.u32 %v899, 4294901760
    %v1618 = vsub.f32 %v899, %v1617
    %v1619 = vand.u32 %v1618, 4294901760
    %1620 = vmatmul.f32.gmra.mxu0 %v1619
    %v1621 = vpop.f32.mrf.mxu0
    %v1622 = vadd.f32 %v1442, %v1621
    %v1623 = vand.u32 %v902, 4294901760
    %v1624 = vsub.f32 %v902, %v1623
    %v1625 = vand.u32 %v1624, 4294901760
    %1626 = vmatmul.f32.gmra.mxu0 %v1625
    %v1627 = vpop.f32.mrf.mxu0
    %v1628 = vadd.f32 %v1447, %v1627
    %v1629 = vand.u32 %v905, 4294901760
    %v1630 = vsub.f32 %v905, %v1629
    %v1631 = vand.u32 %v1630, 4294901760
    %1632 = vmatmul.f32.gmra.mxu0 %v1631
    %v1633 = vpop.f32.mrf.mxu0
    %v1634 = vadd.f32 %v1452, %v1633
    %v1635 = vand.u32 %v908, 4294901760
    %v1636 = vsub.f32 %v908, %v1635
    %v1637 = vand.u32 %v1636, 4294901760
    %1638 = vmatmul.f32.gmra.mxu0 %v1637
    %v1639 = vpop.f32.mrf.mxu0
    %v1640 = vadd.f32 %v1457, %v1639
    %v1641 = vand.u32 %v911, 4294901760
    %v1642 = vsub.f32 %v911, %v1641
    %v1643 = vand.u32 %v1642, 4294901760
    %1644 = vmatmul.f32.gmra.mxu0 %v1643
    %v1645 = vpop.f32.mrf.mxu0
    %v1646 = vadd.f32 %v1462, %v1645
    %v1647 = vand.u32 %v914, 4294901760
    %v1648 = vsub.f32 %v914, %v1647
    %v1649 = vand.u32 %v1648, 4294901760
    %1650 = vmatmul.f32.gmra.mxu0 %v1649
    %v1651 = vpop.f32.mrf.mxu0
    %v1652 = vadd.f32 %v1467, %v1651
    %v1653 = vand.u32 %v917, 4294901760
    %v1654 = vsub.f32 %v917, %v1653
    %v1655 = vand.u32 %v1654, 4294901760
    %1656 = vmatmul.f32.gmra.mxu0 %v1655
    %v1657 = vpop.f32.mrf.mxu0
    %v1658 = vadd.f32 %v1472, %v1657
    %v1659 = vand.u32 %v920, 4294901760
    %v1660 = vsub.f32 %v920, %v1659
    %v1661 = vand.u32 %v1660, 4294901760
    %1662 = vmatmul.f32.gmra.mxu0 %v1661
    %v1663 = vpop.f32.mrf.mxu0
    %v1664 = vadd.f32 %v1477, %v1663
    %v1665 = vand.u32 %v923, 4294901760
    %v1666 = vsub.f32 %v923, %v1665
    %v1667 = vand.u32 %v1666, 4294901760
    %1668 = vmatmul.f32.gmra.mxu0 %v1667
    %v1669 = vpop.f32.mrf.mxu0
    %v1670 = vadd.f32 %v1482, %v1669
    %v1671 = vand.u32 %v926, 4294901760
    %v1672 = vsub.f32 %v926, %v1671
    %v1673 = vand.u32 %v1672, 4294901760
    %1674 = vmatmul.f32.gmra.mxu0 %v1673
    %v1675 = vpop.f32.mrf.mxu0
    %v1676 = vadd.f32 %v1487, %v1675
    %v1677 = vand.u32 %v929, 4294901760
    %v1678 = vsub.f32 %v929, %v1677
    %v1679 = vand.u32 %v1678, 4294901760
    %1680 = vmatmul.f32.gmra.mxu0 %v1679
    %v1681 = vpop.f32.mrf.mxu0
    %v1682 = vadd.f32 %v1492, %v1681
    %v1683 = vand.u32 %v932, 4294901760
    %v1684 = vsub.f32 %v932, %v1683
    %v1685 = vand.u32 %v1684, 4294901760
    %1686 = vmatmul.f32.gmra.mxu0 %v1685
    %v1687 = vpop.f32.mrf.mxu0
    %v1688 = vadd.f32 %v1497, %v1687
    %v1689 = vand.u32 %v935, 4294901760
    %v1690 = vsub.f32 %v935, %v1689
    %v1691 = vand.u32 %v1690, 4294901760
    %1692 = vmatmul.f32.gmra.mxu0 %v1691
    %v1693 = vpop.f32.mrf.mxu0
    %v1694 = vadd.f32 %v1502, %v1693
    %v1695 = vand.u32 %v938, 4294901760
    %v1696 = vsub.f32 %v938, %v1695
    %v1697 = vand.u32 %v1696, 4294901760
    %1698 = vmatmul.f32.gmra.mxu0 %v1697
    %v1699 = vpop.f32.mrf.mxu0
    %v1700 = vadd.f32 %v1507, %v1699
    %v1701 = vand.u32 %v941, 4294901760
    %v1702 = vsub.f32 %v941, %v1701
    %v1703 = vand.u32 %v1702, 4294901760
    %1704 = vmatmul.f32.gmra.mxu0 %v1703
    %v1705 = vpop.f32.mrf.mxu0
    %v1706 = vadd.f32 %v1512, %v1705
    %v1707 = vand.u32 %v944, 4294901760
    %v1708 = vsub.f32 %v944, %v1707
    %v1709 = vand.u32 %v1708, 4294901760
    %1710 = vmatmul.f32.gmra.mxu0 %v1709
    %v1711 = vpop.f32.mrf.mxu0
    %v1712 = vadd.f32 %v1517, %v1711
    %v1713 = vand.u32 %v947, 4294901760
    %v1714 = vsub.f32 %v947, %v1713
    %v1715 = vand.u32 %v1714, 4294901760
    %1716 = vmatmul.f32.gmra.mxu0 %v1715
    %v1717 = vpop.f32.mrf.mxu0
    %v1718 = vadd.f32 %v1522, %v1717
    %v1719 = vand.u32 %v950, 4294901760
    %v1720 = vsub.f32 %v950, %v1719
    %v1721 = vand.u32 %v1720, 4294901760
    %1722 = vmatmul.f32.gmra.mxu0 %v1721
    %v1723 = vpop.f32.mrf.mxu0
    %v1724 = vadd.f32 %v1527, %v1723
    %v1725 = vand.u32 %v953, 4294901760
    %v1726 = vsub.f32 %v953, %v1725
    %v1727 = vand.u32 %v1726, 4294901760
    %1728 = vmatmul.f32.gmra.mxu0 %v1727
    %v1729 = vpop.f32.mrf.mxu0
    %v1730 = vadd.f32 %v1532, %v1729
    %v1731 = vand.u32 %v956, 4294901760
    %v1732 = vsub.f32 %v956, %v1731
    %v1733 = vand.u32 %v1732, 4294901760
    %1734 = vmatmul.f32.gmra.mxu0 %v1733
    %v1735 = vpop.f32.mrf.mxu0
    %v1736 = vadd.f32 %v1537, %v1735
    %v1737 = vand.u32 %v959, 4294901760
    %v1738 = vsub.f32 %v959, %v1737
    %v1739 = vand.u32 %v1738, 4294901760
    %1740 = vmatmul.f32.gmra.mxu0 %v1739
    %v1741 = vpop.f32.mrf.mxu0
    %v1742 = vadd.f32 %v1542, %v1741
    %v1743 = vand.u32 %v962, 4294901760
    %v1744 = vsub.f32 %v962, %v1743
    %v1745 = vand.u32 %v1744, 4294901760
    %1746 = vmatmul.f32.gmra.mxu0 %v1745
    %v1747 = vpop.f32.mrf.mxu0
    %v1748 = vadd.f32 %v1547, %v1747
    %v1749 = vand.u32 %v965, 4294901760
    %v1750 = vsub.f32 %v965, %v1749
    %v1751 = vand.u32 %v1750, 4294901760
    %1752 = vmatmul.f32.gmra.mxu0 %v1751
    %v1753 = vpop.f32.mrf.mxu0
    %v1754 = vadd.f32 %v1552, %v1753
    %v1755 = vand.u32 %v968, 4294901760
    %v1756 = vsub.f32 %v968, %v1755
    %v1757 = vand.u32 %v1756, 4294901760
    %1758 = vmatmul.f32.gmra.mxu0 %v1757
    %v1759 = vpop.f32.mrf.mxu0
    %v1760 = vadd.f32 %v1557, %v1759
    %v1761 = vand.u32 %v971, 4294901760
    %v1762 = vsub.f32 %v971, %v1761
    %v1763 = vand.u32 %v1762, 4294901760
    %1764 = vmatmul.f32.gmra.mxu0 %v1763
    %v1765 = vpop.f32.mrf.mxu0
    %v1766 = vadd.f32 %v1562, %v1765
    %v1767 = vand.u32 %v974, 4294901760
    %v1768 = vsub.f32 %v974, %v1767
    %v1769 = vand.u32 %v1768, 4294901760
    %1770 = vmatmul.f32.gmra.mxu0 %v1769
    %v1771 = vpop.f32.mrf.mxu0
    %v1772 = vadd.f32 %v1567, %v1771
    %v1773 = vand.u32 %v977, 4294901760
    %v1774 = vsub.f32 %v977, %v1773
    %v1775 = vand.u32 %v1774, 4294901760
    %1776 = vmatmul.f32.gmra.mxu0 %v1775
    %v1777 = vpop.f32.mrf.mxu0
    %v1778 = vadd.f32 %v1572, %v1777
    %v1779 = vand.u32 %v980, 4294901760
    %v1780 = vsub.f32 %v980, %v1779
    %v1781 = vand.u32 %v1780, 4294901760
    %1782 = vmatmul.f32.gmra.mxu0 %v1781
    %v1783 = vpop.f32.mrf.mxu0
    %v1784 = vadd.f32 %v1577, %v1783
    %v1785 = vand.u32 %v983, 4294901760
    %v1786 = vsub.f32 %v983, %v1785
    %v1787 = vand.u32 %v1786, 4294901760
    %1788 = vmatmul.f32.gmra.mxu0 %v1787
    %v1789 = vpop.f32.mrf.mxu0
    %v1790 = vadd.f32 %v1582, %v1789
    %v1791 = vand.u32 %v986, 4294901760
    %v1792 = vsub.f32 %v986, %v1791
    %v1793 = vand.u32 %v1792, 4294901760
    %1794 = vmatmul.f32.gmra.mxu0 %v1793
    %v1795 = vpop.f32.mrf.mxu0
    %v1796 = vadd.f32 %v1587, %v1795
    %v1797 = vand.u32 %v989, 4294901760
    %v1798 = vsub.f32 %v989, %v1797
    %v1799 = vand.u32 %v1798, 4294901760
    %1800 = vmatmul.f32.gmra.mxu0 %v1799
    %v1801 = vpop.f32.mrf.mxu0
    %v1802 = vadd.f32 %v1592, %v1801
    %1803 = vdwg.mxu0
    %1804 = vmatpush.msra.mxu0 0.0
    %1805 = vmatpush.msra.mxu0 0.0
    %1806 = vmatpush.msra.mxu0 0.0
    %1807 = vmatpush.msra.mxu0 0.0
    %1808 = vmatpush.msra.mxu0 0.0
    %1809 = vmatpush.msra.mxu0 0.0
    %1810 = vmatpush.msra.mxu0 0.0
    %1811 = vmatpush.msra.mxu0 0.0
    %1812 = vmatpush.msra.mxu0 0.0
    %1813 = vmatpush.msra.mxu0 0.0
    %1814 = vmatpush.msra.mxu0 0.0
    %1815 = vmatpush.msra.mxu0 0.0
    %1816 = vmatpush.msra.mxu0 0.0
    %1817 = vmatpush.msra.mxu0 0.0
    %1818 = vmatpush.msra.mxu0 0.0
    %v1819 = vand.u32 %v616, 4294901760
    %v1820 = vsub.f32 %v616, %v1819
    %v1821 = vand.u32 %v1820, 4294901760
    %1822 = vmatpush.msra.mxu0 %v1821
    %v1823 = vand.u32 %v896, 4294901760
    %1824 = vmatmul.f32.gmra.mxu0 %v1823
    %v1825 = vpop.f32.mrf.mxu0
    %v1826 = vadd.f32 %v1616, %v1825
    %v1827 = vand.u32 %v899, 4294901760
    %1828 = vmatmul.f32.gmra.mxu0 %v1827
    %v1829 = vpop.f32.mrf.mxu0
    %v1830 = vadd.f32 %v1622, %v1829
    %v1831 = vand.u32 %v902, 4294901760
    %1832 = vmatmul.f32.gmra.mxu0 %v1831
    %v1833 = vpop.f32.mrf.mxu0
    %v1834 = vadd.f32 %v1628, %v1833
    %v1835 = vand.u32 %v905, 4294901760
    %1836 = vmatmul.f32.gmra.mxu0 %v1835
    %v1837 = vpop.f32.mrf.mxu0
    %v1838 = vadd.f32 %v1634, %v1837
    %v1839 = vand.u32 %v908, 4294901760
    %1840 = vmatmul.f32.gmra.mxu0 %v1839
    %v1841 = vpop.f32.mrf.mxu0
    %v1842 = vadd.f32 %v1640, %v1841
    %v1843 = vand.u32 %v911, 4294901760
    %1844 = vmatmul.f32.gmra.mxu0 %v1843
    %v1845 = vpop.f32.mrf.mxu0
    %v1846 = vadd.f32 %v1646, %v1845
    %v1847 = vand.u32 %v914, 4294901760
    %1848 = vmatmul.f32.gmra.mxu0 %v1847
    %v1849 = vpop.f32.mrf.mxu0
    %v1850 = vadd.f32 %v1652, %v1849
    %v1851 = vand.u32 %v917, 4294901760
    %1852 = vmatmul.f32.gmra.mxu0 %v1851
    %v1853 = vpop.f32.mrf.mxu0
    %v1854 = vadd.f32 %v1658, %v1853
    %v1855 = vand.u32 %v920, 4294901760
    %1856 = vmatmul.f32.gmra.mxu0 %v1855
    %v1857 = vpop.f32.mrf.mxu0
    %v1858 = vadd.f32 %v1664, %v1857
    %v1859 = vand.u32 %v923, 4294901760
    %1860 = vmatmul.f32.gmra.mxu0 %v1859
    %v1861 = vpop.f32.mrf.mxu0
    %v1862 = vadd.f32 %v1670, %v1861
    %v1863 = vand.u32 %v926, 4294901760
    %1864 = vmatmul.f32.gmra.mxu0 %v1863
    %v1865 = vpop.f32.mrf.mxu0
    %v1866 = vadd.f32 %v1676, %v1865
    %v1867 = vand.u32 %v929, 4294901760
    %1868 = vmatmul.f32.gmra.mxu0 %v1867
    %v1869 = vpop.f32.mrf.mxu0
    %v1870 = vadd.f32 %v1682, %v1869
    %v1871 = vand.u32 %v932, 4294901760
    %1872 = vmatmul.f32.gmra.mxu0 %v1871
    %v1873 = vpop.f32.mrf.mxu0
    %v1874 = vadd.f32 %v1688, %v1873
    %v1875 = vand.u32 %v935, 4294901760
    %1876 = vmatmul.f32.gmra.mxu0 %v1875
    %v1877 = vpop.f32.mrf.mxu0
    %v1878 = vadd.f32 %v1694, %v1877
    %v1879 = vand.u32 %v938, 4294901760
    %1880 = vmatmul.f32.gmra.mxu0 %v1879
    %v1881 = vpop.f32.mrf.mxu0
    %v1882 = vadd.f32 %v1700, %v1881
    %v1883 = vand.u32 %v941, 4294901760
    %1884 = vmatmul.f32.gmra.mxu0 %v1883
    %v1885 = vpop.f32.mrf.mxu0
    %v1886 = vadd.f32 %v1706, %v1885
    %v1887 = vand.u32 %v944, 4294901760
    %1888 = vmatmul.f32.gmra.mxu0 %v1887
    %v1889 = vpop.f32.mrf.mxu0
    %v1890 = vadd.f32 %v1712, %v1889
    %v1891 = vand.u32 %v947, 4294901760
    %1892 = vmatmul.f32.gmra.mxu0 %v1891
    %v1893 = vpop.f32.mrf.mxu0
    %v1894 = vadd.f32 %v1718, %v1893
    %v1895 = vand.u32 %v950, 4294901760
    %1896 = vmatmul.f32.gmra.mxu0 %v1895
    %v1897 = vpop.f32.mrf.mxu0
    %v1898 = vadd.f32 %v1724, %v1897
    %v1899 = vand.u32 %v953, 4294901760
    %1900 = vmatmul.f32.gmra.mxu0 %v1899
    %v1901 = vpop.f32.mrf.mxu0
    %v1902 = vadd.f32 %v1730, %v1901
    %v1903 = vand.u32 %v956, 4294901760
    %1904 = vmatmul.f32.gmra.mxu0 %v1903
    %v1905 = vpop.f32.mrf.mxu0
    %v1906 = vadd.f32 %v1736, %v1905
    %v1907 = vand.u32 %v959, 4294901760
    %1908 = vmatmul.f32.gmra.mxu0 %v1907
    %v1909 = vpop.f32.mrf.mxu0
    %v1910 = vadd.f32 %v1742, %v1909
    %v1911 = vand.u32 %v962, 4294901760
    %1912 = vmatmul.f32.gmra.mxu0 %v1911
    %v1913 = vpop.f32.mrf.mxu0
    %v1914 = vadd.f32 %v1748, %v1913
    %v1915 = vand.u32 %v965, 4294901760
    %1916 = vmatmul.f32.gmra.mxu0 %v1915
    %v1917 = vpop.f32.mrf.mxu0
    %v1918 = vadd.f32 %v1754, %v1917
    %v1919 = vand.u32 %v968, 4294901760
    %1920 = vmatmul.f32.gmra.mxu0 %v1919
    %v1921 = vpop.f32.mrf.mxu0
    %v1922 = vadd.f32 %v1760, %v1921
    %v1923 = vand.u32 %v971, 4294901760
    %1924 = vmatmul.f32.gmra.mxu0 %v1923
    %v1925 = vpop.f32.mrf.mxu0
    %v1926 = vadd.f32 %v1766, %v1925
    %v1927 = vand.u32 %v974, 4294901760
    %1928 = vmatmul.f32.gmra.mxu0 %v1927
    %v1929 = vpop.f32.mrf.mxu0
    %v1930 = vadd.f32 %v1772, %v1929
    %v1931 = vand.u32 %v977, 4294901760
    %1932 = vmatmul.f32.gmra.mxu0 %v1931
    %v1933 = vpop.f32.mrf.mxu0
    %v1934 = vadd.f32 %v1778, %v1933
    %v1935 = vand.u32 %v980, 4294901760
    %1936 = vmatmul.f32.gmra.mxu0 %v1935
    %v1937 = vpop.f32.mrf.mxu0
    %v1938 = vadd.f32 %v1784, %v1937
    %v1939 = vand.u32 %v983, 4294901760
    %1940 = vmatmul.f32.gmra.mxu0 %v1939
    %v1941 = vpop.f32.mrf.mxu0
    %v1942 = vadd.f32 %v1790, %v1941
    %v1943 = vand.u32 %v986, 4294901760
    %1944 = vmatmul.f32.gmra.mxu0 %v1943
    %v1945 = vpop.f32.mrf.mxu0
    %v1946 = vadd.f32 %v1796, %v1945
    %v1947 = vand.u32 %v989, 4294901760
    %1948 = vmatmul.f32.gmra.mxu0 %v1947
    %v1949 = vpop.f32.mrf.mxu0
    %v1950 = vadd.f32 %v1802, %v1949
    %1951 = vdwg.mxu0
    %1952 = vmatpush.msra.mxu0 0.0
    %1953 = vmatpush.msra.mxu0 0.0
    %1954 = vmatpush.msra.mxu0 0.0
    %1955 = vmatpush.msra.mxu0 0.0
    %1956 = vmatpush.msra.mxu0 0.0
    %1957 = vmatpush.msra.mxu0 0.0
    %1958 = vmatpush.msra.mxu0 0.0
    %1959 = vmatpush.msra.mxu0 0.0
    %1960 = vmatpush.msra.mxu0 0.0
    %1961 = vmatpush.msra.mxu0 0.0
    %1962 = vmatpush.msra.mxu0 0.0
    %1963 = vmatpush.msra.mxu0 0.0
    %1964 = vmatpush.msra.mxu0 0.0
    %1965 = vmatpush.msra.mxu0 0.0
    %1966 = vmatpush.msra.mxu0 0.0
    %v1967 = vand.u32 %v616, 4294901760
    %1968 = vmatpush.msra.mxu0 %v1967
    %v1969 = vand.u32 %v896, 4294901760
    %1970 = vmatmul.f32.gmra.mxu0 %v1969
    %v1971 = vpop.f32.mrf.mxu0
    %v1972 = vadd.f32 %v1826, %v1971
    %v1973 = vand.u32 %v899, 4294901760
    %1974 = vmatmul.f32.gmra.mxu0 %v1973
    %v1975 = vpop.f32.mrf.mxu0
    %v1976 = vadd.f32 %v1830, %v1975
    %v1977 = vand.u32 %v902, 4294901760
    %1978 = vmatmul.f32.gmra.mxu0 %v1977
    %v1979 = vpop.f32.mrf.mxu0
    %v1980 = vadd.f32 %v1834, %v1979
    %v1981 = vand.u32 %v905, 4294901760
    %1982 = vmatmul.f32.gmra.mxu0 %v1981
    %v1983 = vpop.f32.mrf.mxu0
    %v1984 = vadd.f32 %v1838, %v1983
    %v1985 = vand.u32 %v908, 4294901760
    %1986 = vmatmul.f32.gmra.mxu0 %v1985
    %v1987 = vpop.f32.mrf.mxu0
    %v1988 = vadd.f32 %v1842, %v1987
    %v1989 = vand.u32 %v911, 4294901760
    %1990 = vmatmul.f32.gmra.mxu0 %v1989
    %v1991 = vpop.f32.mrf.mxu0
    %v1992 = vadd.f32 %v1846, %v1991
    %v1993 = vand.u32 %v914, 4294901760
    %1994 = vmatmul.f32.gmra.mxu0 %v1993
    %v1995 = vpop.f32.mrf.mxu0
    %v1996 = vadd.f32 %v1850, %v1995
    %v1997 = vand.u32 %v917, 4294901760
    %1998 = vmatmul.f32.gmra.mxu0 %v1997
    %v1999 = vpop.f32.mrf.mxu0
    %v2000 = vadd.f32 %v1854, %v1999
    %v2001 = vand.u32 %v920, 4294901760
    %2002 = vmatmul.f32.gmra.mxu0 %v2001
    %v2003 = vpop.f32.mrf.mxu0
    %v2004 = vadd.f32 %v1858, %v2003
    %v2005 = vand.u32 %v923, 4294901760
    %2006 = vmatmul.f32.gmra.mxu0 %v2005
    %v2007 = vpop.f32.mrf.mxu0
    %v2008 = vadd.f32 %v1862, %v2007
    %v2009 = vand.u32 %v926, 4294901760
    %2010 = vmatmul.f32.gmra.mxu0 %v2009
    %v2011 = vpop.f32.mrf.mxu0
    %v2012 = vadd.f32 %v1866, %v2011
    %v2013 = vand.u32 %v929, 4294901760
    %2014 = vmatmul.f32.gmra.mxu0 %v2013
    %v2015 = vpop.f32.mrf.mxu0
    %v2016 = vadd.f32 %v1870, %v2015
    %v2017 = vand.u32 %v932, 4294901760
    %2018 = vmatmul.f32.gmra.mxu0 %v2017
    %v2019 = vpop.f32.mrf.mxu0
    %v2020 = vadd.f32 %v1874, %v2019
    %v2021 = vand.u32 %v935, 4294901760
    %2022 = vmatmul.f32.gmra.mxu0 %v2021
    %v2023 = vpop.f32.mrf.mxu0
    %v2024 = vadd.f32 %v1878, %v2023
    %v2025 = vand.u32 %v938, 4294901760
    %2026 = vmatmul.f32.gmra.mxu0 %v2025
    %v2027 = vpop.f32.mrf.mxu0
    %v2028 = vadd.f32 %v1882, %v2027
    %v2029 = vand.u32 %v941, 4294901760
    %2030 = vmatmul.f32.gmra.mxu0 %v2029
    %v2031 = vpop.f32.mrf.mxu0
    %v2032 = vadd.f32 %v1886, %v2031
    %v2033 = vand.u32 %v944, 4294901760
    %2034 = vmatmul.f32.gmra.mxu0 %v2033
    %v2035 = vpop.f32.mrf.mxu0
    %v2036 = vadd.f32 %v1890, %v2035
    %v2037 = vand.u32 %v947, 4294901760
    %2038 = vmatmul.f32.gmra.mxu0 %v2037
    %v2039 = vpop.f32.mrf.mxu0
    %v2040 = vadd.f32 %v1894, %v2039
    %v2041 = vand.u32 %v950, 4294901760
    %2042 = vmatmul.f32.gmra.mxu0 %v2041
    %v2043 = vpop.f32.mrf.mxu0
    %v2044 = vadd.f32 %v1898, %v2043
    %v2045 = vand.u32 %v953, 4294901760
    %2046 = vmatmul.f32.gmra.mxu0 %v2045
    %v2047 = vpop.f32.mrf.mxu0
    %v2048 = vadd.f32 %v1902, %v2047
    %v2049 = vand.u32 %v956, 4294901760
    %2050 = vmatmul.f32.gmra.mxu0 %v2049
    %v2051 = vpop.f32.mrf.mxu0
    %v2052 = vadd.f32 %v1906, %v2051
    %v2053 = vand.u32 %v959, 4294901760
    %2054 = vmatmul.f32.gmra.mxu0 %v2053
    %v2055 = vpop.f32.mrf.mxu0
    %v2056 = vadd.f32 %v1910, %v2055
    %v2057 = vand.u32 %v962, 4294901760
    %2058 = vmatmul.f32.gmra.mxu0 %v2057
    %v2059 = vpop.f32.mrf.mxu0
    %v2060 = vadd.f32 %v1914, %v2059
    %v2061 = vand.u32 %v965, 4294901760
    %2062 = vmatmul.f32.gmra.mxu0 %v2061
    %v2063 = vpop.f32.mrf.mxu0
    %v2064 = vadd.f32 %v1918, %v2063
    %v2065 = vand.u32 %v968, 4294901760
    %2066 = vmatmul.f32.gmra.mxu0 %v2065
    %v2067 = vpop.f32.mrf.mxu0
    %v2068 = vadd.f32 %v1922, %v2067
    %v2069 = vand.u32 %v971, 4294901760
    %2070 = vmatmul.f32.gmra.mxu0 %v2069
    %v2071 = vpop.f32.mrf.mxu0
    %v2072 = vadd.f32 %v1926, %v2071
    %v2073 = vand.u32 %v974, 4294901760
    %2074 = vmatmul.f32.gmra.mxu0 %v2073
    %v2075 = vpop.f32.mrf.mxu0
    %v2076 = vadd.f32 %v1930, %v2075
    %v2077 = vand.u32 %v977, 4294901760
    %2078 = vmatmul.f32.gmra.mxu0 %v2077
    %v2079 = vpop.f32.mrf.mxu0
    %v2080 = vadd.f32 %v1934, %v2079
    %v2081 = vand.u32 %v980, 4294901760
    %2082 = vmatmul.f32.gmra.mxu0 %v2081
    %v2083 = vpop.f32.mrf.mxu0
    %v2084 = vadd.f32 %v1938, %v2083
    %v2085 = vand.u32 %v983, 4294901760
    %2086 = vmatmul.f32.gmra.mxu0 %v2085
    %v2087 = vpop.f32.mrf.mxu0
    %v2088 = vadd.f32 %v1942, %v2087
    %v2089 = vand.u32 %v986, 4294901760
    %2090 = vmatmul.f32.gmra.mxu0 %v2089
    %v2091 = vpop.f32.mrf.mxu0
    %v2092 = vadd.f32 %v1946, %v2091
    %v2093 = vand.u32 %v989, 4294901760
    %2094 = vmatmul.f32.gmra.mxu0 %v2093
    %v2095 = vpop.f32.mrf.mxu0
    %v2096 = vadd.f32 %v1950, %v2095
    %2097 = vdwg.mxu0
    %2098 = vmatpush.msra.mxu0 0.0
    %2099 = vmatpush.msra.mxu0 0.0
    %2100 = vmatpush.msra.mxu0 0.0
    %2101 = vmatpush.msra.mxu0 0.0
    %2102 = vmatpush.msra.mxu0 0.0
    %2103 = vmatpush.msra.mxu0 0.0
    %2104 = vmatpush.msra.mxu0 0.0
    %2105 = vmatpush.msra.mxu0 0.0
    %2106 = vmatpush.msra.mxu0 0.0
    %2107 = vmatpush.msra.mxu0 0.0
    %2108 = vmatpush.msra.mxu0 0.0
    %2109 = vmatpush.msra.mxu0 0.0
    %2110 = vmatpush.msra.mxu0 0.0
    %2111 = vmatpush.msra.mxu0 0.0
    %2112 = vmatpush.msra.mxu0 0.0
    %v2113 = vand.u32 %v824, 4294901760
    %2114 = vmatpush.msra.mxu0 %v2113
    %v2115 = vand.u32 %v896, 4294901760
    %v2116 = vsub.f32 %v896, %v2115
    %v2117 = vand.u32 %v2116, 4294901760
    %v2118 = vsub.f32 %v2116, %v2117
    %v2119 = vand.u32 %v2118, 4294901760
    %2120 = vmatmul.f32.gmra.mxu0 %v2119
    %v2121 = vpop.f32.mrf.mxu0
    %v2122 = vadd.f32 0.0, %v2121
    %v2123 = vand.u32 %v899, 4294901760
    %v2124 = vsub.f32 %v899, %v2123
    %v2125 = vand.u32 %v2124, 4294901760
    %v2126 = vsub.f32 %v2124, %v2125
    %v2127 = vand.u32 %v2126, 4294901760
    %2128 = vmatmul.f32.gmra.mxu0 %v2127
    %v2129 = vpop.f32.mrf.mxu0
    %v2130 = vadd.f32 0.0, %v2129
    %v2131 = vand.u32 %v902, 4294901760
    %v2132 = vsub.f32 %v902, %v2131
    %v2133 = vand.u32 %v2132, 4294901760
    %v2134 = vsub.f32 %v2132, %v2133
    %v2135 = vand.u32 %v2134, 4294901760
    %2136 = vmatmul.f32.gmra.mxu0 %v2135
    %v2137 = vpop.f32.mrf.mxu0
    %v2138 = vadd.f32 0.0, %v2137
    %v2139 = vand.u32 %v905, 4294901760
    %v2140 = vsub.f32 %v905, %v2139
    %v2141 = vand.u32 %v2140, 4294901760
    %v2142 = vsub.f32 %v2140, %v2141
    %v2143 = vand.u32 %v2142, 4294901760
    %2144 = vmatmul.f32.gmra.mxu0 %v2143
    %v2145 = vpop.f32.mrf.mxu0
    %v2146 = vadd.f32 0.0, %v2145
    %v2147 = vand.u32 %v908, 4294901760
    %v2148 = vsub.f32 %v908, %v2147
    %v2149 = vand.u32 %v2148, 4294901760
    %v2150 = vsub.f32 %v2148, %v2149
    %v2151 = vand.u32 %v2150, 4294901760
    %2152 = vmatmul.f32.gmra.mxu0 %v2151
    %v2153 = vpop.f32.mrf.mxu0
    %v2154 = vadd.f32 0.0, %v2153
    %v2155 = vand.u32 %v911, 4294901760
    %v2156 = vsub.f32 %v911, %v2155
    %v2157 = vand.u32 %v2156, 4294901760
    %v2158 = vsub.f32 %v2156, %v2157
    %v2159 = vand.u32 %v2158, 4294901760
    %2160 = vmatmul.f32.gmra.mxu0 %v2159
    %v2161 = vpop.f32.mrf.mxu0
    %v2162 = vadd.f32 0.0, %v2161
    %v2163 = vand.u32 %v914, 4294901760
    %v2164 = vsub.f32 %v914, %v2163
    %v2165 = vand.u32 %v2164, 4294901760
    %v2166 = vsub.f32 %v2164, %v2165
    %v2167 = vand.u32 %v2166, 4294901760
    %2168 = vmatmul.f32.gmra.mxu0 %v2167
    %v2169 = vpop.f32.mrf.mxu0
    %v2170 = vadd.f32 0.0, %v2169
    %v2171 = vand.u32 %v917, 4294901760
    %v2172 = vsub.f32 %v917, %v2171
    %v2173 = vand.u32 %v2172, 4294901760
    %v2174 = vsub.f32 %v2172, %v2173
    %v2175 = vand.u32 %v2174, 4294901760
    %2176 = vmatmul.f32.gmra.mxu0 %v2175
    %v2177 = vpop.f32.mrf.mxu0
    %v2178 = vadd.f32 0.0, %v2177
    %v2179 = vand.u32 %v920, 4294901760
    %v2180 = vsub.f32 %v920, %v2179
    %v2181 = vand.u32 %v2180, 4294901760
    %v2182 = vsub.f32 %v2180, %v2181
    %v2183 = vand.u32 %v2182, 4294901760
    %2184 = vmatmul.f32.gmra.mxu0 %v2183
    %v2185 = vpop.f32.mrf.mxu0
    %v2186 = vadd.f32 0.0, %v2185
    %v2187 = vand.u32 %v923, 4294901760
    %v2188 = vsub.f32 %v923, %v2187
    %v2189 = vand.u32 %v2188, 4294901760
    %v2190 = vsub.f32 %v2188, %v2189
    %v2191 = vand.u32 %v2190, 4294901760
    %2192 = vmatmul.f32.gmra.mxu0 %v2191
    %v2193 = vpop.f32.mrf.mxu0
    %v2194 = vadd.f32 0.0, %v2193
    %v2195 = vand.u32 %v926, 4294901760
    %v2196 = vsub.f32 %v926, %v2195
    %v2197 = vand.u32 %v2196, 4294901760
    %v2198 = vsub.f32 %v2196, %v2197
    %v2199 = vand.u32 %v2198, 4294901760
    %2200 = vmatmul.f32.gmra.mxu0 %v2199
    %v2201 = vpop.f32.mrf.mxu0
    %v2202 = vadd.f32 0.0, %v2201
    %v2203 = vand.u32 %v929, 4294901760
    %v2204 = vsub.f32 %v929, %v2203
    %v2205 = vand.u32 %v2204, 4294901760
    %v2206 = vsub.f32 %v2204, %v2205
    %v2207 = vand.u32 %v2206, 4294901760
    %2208 = vmatmul.f32.gmra.mxu0 %v2207
    %v2209 = vpop.f32.mrf.mxu0
    %v2210 = vadd.f32 0.0, %v2209
    %v2211 = vand.u32 %v932, 4294901760
    %v2212 = vsub.f32 %v932, %v2211
    %v2213 = vand.u32 %v2212, 4294901760
    %v2214 = vsub.f32 %v2212, %v2213
    %v2215 = vand.u32 %v2214, 4294901760
    %2216 = vmatmul.f32.gmra.mxu0 %v2215
    %v2217 = vpop.f32.mrf.mxu0
    %v2218 = vadd.f32 0.0, %v2217
    %v2219 = vand.u32 %v935, 4294901760
    %v2220 = vsub.f32 %v935, %v2219
    %v2221 = vand.u32 %v2220, 4294901760
    %v2222 = vsub.f32 %v2220, %v2221
    %v2223 = vand.u32 %v2222, 4294901760
    %2224 = vmatmul.f32.gmra.mxu0 %v2223
    %v2225 = vpop.f32.mrf.mxu0
    %v2226 = vadd.f32 0.0, %v2225
    %v2227 = vand.u32 %v938, 4294901760
    %v2228 = vsub.f32 %v938, %v2227
    %v2229 = vand.u32 %v2228, 4294901760
    %v2230 = vsub.f32 %v2228, %v2229
    %v2231 = vand.u32 %v2230, 4294901760
    %2232 = vmatmul.f32.gmra.mxu0 %v2231
    %v2233 = vpop.f32.mrf.mxu0
    %v2234 = vadd.f32 0.0, %v2233
    %v2235 = vand.u32 %v941, 4294901760
    %v2236 = vsub.f32 %v941, %v2235
    %v2237 = vand.u32 %v2236, 4294901760
    %v2238 = vsub.f32 %v2236, %v2237
    %v2239 = vand.u32 %v2238, 4294901760
    %2240 = vmatmul.f32.gmra.mxu0 %v2239
    %v2241 = vpop.f32.mrf.mxu0
    %v2242 = vadd.f32 0.0, %v2241
    %v2243 = vand.u32 %v944, 4294901760
    %v2244 = vsub.f32 %v944, %v2243
    %v2245 = vand.u32 %v2244, 4294901760
    %v2246 = vsub.f32 %v2244, %v2245
    %v2247 = vand.u32 %v2246, 4294901760
    %2248 = vmatmul.f32.gmra.mxu0 %v2247
    %v2249 = vpop.f32.mrf.mxu0
    %v2250 = vadd.f32 0.0, %v2249
    %v2251 = vand.u32 %v947, 4294901760
    %v2252 = vsub.f32 %v947, %v2251
    %v2253 = vand.u32 %v2252, 4294901760
    %v2254 = vsub.f32 %v2252, %v2253
    %v2255 = vand.u32 %v2254, 4294901760
    %2256 = vmatmul.f32.gmra.mxu0 %v2255
    %v2257 = vpop.f32.mrf.mxu0
    %v2258 = vadd.f32 0.0, %v2257
    %v2259 = vand.u32 %v950, 4294901760
    %v2260 = vsub.f32 %v950, %v2259
    %v2261 = vand.u32 %v2260, 4294901760
    %v2262 = vsub.f32 %v2260, %v2261
    %v2263 = vand.u32 %v2262, 4294901760
    %2264 = vmatmul.f32.gmra.mxu0 %v2263
    %v2265 = vpop.f32.mrf.mxu0
    %v2266 = vadd.f32 0.0, %v2265
    %v2267 = vand.u32 %v953, 4294901760
    %v2268 = vsub.f32 %v953, %v2267
    %v2269 = vand.u32 %v2268, 4294901760
    %v2270 = vsub.f32 %v2268, %v2269
    %v2271 = vand.u32 %v2270, 4294901760
    %2272 = vmatmul.f32.gmra.mxu0 %v2271
    %v2273 = vpop.f32.mrf.mxu0
    %v2274 = vadd.f32 0.0, %v2273
    %v2275 = vand.u32 %v956, 4294901760
    %v2276 = vsub.f32 %v956, %v2275
    %v2277 = vand.u32 %v2276, 4294901760
    %v2278 = vsub.f32 %v2276, %v2277
    %v2279 = vand.u32 %v2278, 4294901760
    %2280 = vmatmul.f32.gmra.mxu0 %v2279
    %v2281 = vpop.f32.mrf.mxu0
    %v2282 = vadd.f32 0.0, %v2281
    %v2283 = vand.u32 %v959, 4294901760
    %v2284 = vsub.f32 %v959, %v2283
    %v2285 = vand.u32 %v2284, 4294901760
    %v2286 = vsub.f32 %v2284, %v2285
    %v2287 = vand.u32 %v2286, 4294901760
    %2288 = vmatmul.f32.gmra.mxu0 %v2287
    %v2289 = vpop.f32.mrf.mxu0
    %v2290 = vadd.f32 0.0, %v2289
    %v2291 = vand.u32 %v962, 4294901760
    %v2292 = vsub.f32 %v962, %v2291
    %v2293 = vand.u32 %v2292, 4294901760
    %v2294 = vsub.f32 %v2292, %v2293
    %v2295 = vand.u32 %v2294, 4294901760
    %2296 = vmatmul.f32.gmra.mxu0 %v2295
    %v2297 = vpop.f32.mrf.mxu0
    %v2298 = vadd.f32 0.0, %v2297
    %v2299 = vand.u32 %v965, 4294901760
    %v2300 = vsub.f32 %v965, %v2299
    %v2301 = vand.u32 %v2300, 4294901760
    %v2302 = vsub.f32 %v2300, %v2301
    %v2303 = vand.u32 %v2302, 4294901760
    %2304 = vmatmul.f32.gmra.mxu0 %v2303
    %v2305 = vpop.f32.mrf.mxu0
    %v2306 = vadd.f32 0.0, %v2305
    %v2307 = vand.u32 %v968, 4294901760
    %v2308 = vsub.f32 %v968, %v2307
    %v2309 = vand.u32 %v2308, 4294901760
    %v2310 = vsub.f32 %v2308, %v2309
    %v2311 = vand.u32 %v2310, 4294901760
    %2312 = vmatmul.f32.gmra.mxu0 %v2311
    %v2313 = vpop.f32.mrf.mxu0
    %v2314 = vadd.f32 0.0, %v2313
    %v2315 = vand.u32 %v971, 4294901760
    %v2316 = vsub.f32 %v971, %v2315
    %v2317 = vand.u32 %v2316, 4294901760
    %v2318 = vsub.f32 %v2316, %v2317
    %v2319 = vand.u32 %v2318, 4294901760
    %2320 = vmatmul.f32.gmra.mxu0 %v2319
    %v2321 = vpop.f32.mrf.mxu0
    %v2322 = vadd.f32 0.0, %v2321
    %v2323 = vand.u32 %v974, 4294901760
    %v2324 = vsub.f32 %v974, %v2323
    %v2325 = vand.u32 %v2324, 4294901760
    %v2326 = vsub.f32 %v2324, %v2325
    %v2327 = vand.u32 %v2326, 4294901760
    %2328 = vmatmul.f32.gmra.mxu0 %v2327
    %v2329 = vpop.f32.mrf.mxu0
    %v2330 = vadd.f32 0.0, %v2329
    %v2331 = vand.u32 %v977, 4294901760
    %v2332 = vsub.f32 %v977, %v2331
    %v2333 = vand.u32 %v2332, 4294901760
    %v2334 = vsub.f32 %v2332, %v2333
    %v2335 = vand.u32 %v2334, 4294901760
    %2336 = vmatmul.f32.gmra.mxu0 %v2335
    %v2337 = vpop.f32.mrf.mxu0
    %v2338 = vadd.f32 0.0, %v2337
    %v2339 = vand.u32 %v980, 4294901760
    %v2340 = vsub.f32 %v980, %v2339
    %v2341 = vand.u32 %v2340, 4294901760
    %v2342 = vsub.f32 %v2340, %v2341
    %v2343 = vand.u32 %v2342, 4294901760
    %2344 = vmatmul.f32.gmra.mxu0 %v2343
    %v2345 = vpop.f32.mrf.mxu0
    %v2346 = vadd.f32 0.0, %v2345
    %v2347 = vand.u32 %v983, 4294901760
    %v2348 = vsub.f32 %v983, %v2347
    %v2349 = vand.u32 %v2348, 4294901760
    %v2350 = vsub.f32 %v2348, %v2349
    %v2351 = vand.u32 %v2350, 4294901760
    %2352 = vmatmul.f32.gmra.mxu0 %v2351
    %v2353 = vpop.f32.mrf.mxu0
    %v2354 = vadd.f32 0.0, %v2353
    %v2355 = vand.u32 %v986, 4294901760
    %v2356 = vsub.f32 %v986, %v2355
    %v2357 = vand.u32 %v2356, 4294901760
    %v2358 = vsub.f32 %v2356, %v2357
    %v2359 = vand.u32 %v2358, 4294901760
    %2360 = vmatmul.f32.gmra.mxu0 %v2359
    %v2361 = vpop.f32.mrf.mxu0
    %v2362 = vadd.f32 0.0, %v2361
    %v2363 = vand.u32 %v989, 4294901760
    %v2364 = vsub.f32 %v989, %v2363
    %v2365 = vand.u32 %v2364, 4294901760
    %v2366 = vsub.f32 %v2364, %v2365
    %v2367 = vand.u32 %v2366, 4294901760
    %2368 = vmatmul.f32.gmra.mxu0 %v2367
    %v2369 = vpop.f32.mrf.mxu0
    %v2370 = vadd.f32 0.0, %v2369
    %2371 = vdwg.mxu0
    %2372 = vmatpush.msra.mxu0 0.0
    %2373 = vmatpush.msra.mxu0 0.0
    %2374 = vmatpush.msra.mxu0 0.0
    %2375 = vmatpush.msra.mxu0 0.0
    %2376 = vmatpush.msra.mxu0 0.0
    %2377 = vmatpush.msra.mxu0 0.0
    %2378 = vmatpush.msra.mxu0 0.0
    %2379 = vmatpush.msra.mxu0 0.0
    %2380 = vmatpush.msra.mxu0 0.0
    %2381 = vmatpush.msra.mxu0 0.0
    %2382 = vmatpush.msra.mxu0 0.0
    %2383 = vmatpush.msra.mxu0 0.0
    %2384 = vmatpush.msra.mxu0 0.0
    %2385 = vmatpush.msra.mxu0 0.0
    %2386 = vmatpush.msra.mxu0 0.0
    %v2387 = vand.u32 %v824, 4294901760
    %v2388 = vsub.f32 %v824, %v2387
    %v2389 = vand.u32 %v2388, 4294901760
    %v2390 = vsub.f32 %v2388, %v2389
    %v2391 = vand.u32 %v2390, 4294901760
    %2392 = vmatpush.msra.mxu0 %v2391
    %v2393 = vand.u32 %v896, 4294901760
    %2394 = vmatmul.f32.gmra.mxu0 %v2393
    %v2395 = vpop.f32.mrf.mxu0
    %v2396 = vadd.f32 %v2122, %v2395
    %v2397 = vand.u32 %v899, 4294901760
    %2398 = vmatmul.f32.gmra.mxu0 %v2397
    %v2399 = vpop.f32.mrf.mxu0
    %v2400 = vadd.f32 %v2130, %v2399
    %v2401 = vand.u32 %v902, 4294901760
    %2402 = vmatmul.f32.gmra.mxu0 %v2401
    %v2403 = vpop.f32.mrf.mxu0
    %v2404 = vadd.f32 %v2138, %v2403
    %v2405 = vand.u32 %v905, 4294901760
    %2406 = vmatmul.f32.gmra.mxu0 %v2405
    %v2407 = vpop.f32.mrf.mxu0
    %v2408 = vadd.f32 %v2146, %v2407
    %v2409 = vand.u32 %v908, 4294901760
    %2410 = vmatmul.f32.gmra.mxu0 %v2409
    %v2411 = vpop.f32.mrf.mxu0
    %v2412 = vadd.f32 %v2154, %v2411
    %v2413 = vand.u32 %v911, 4294901760
    %2414 = vmatmul.f32.gmra.mxu0 %v2413
    %v2415 = vpop.f32.mrf.mxu0
    %v2416 = vadd.f32 %v2162, %v2415
    %v2417 = vand.u32 %v914, 4294901760
    %2418 = vmatmul.f32.gmra.mxu0 %v2417
    %v2419 = vpop.f32.mrf.mxu0
    %v2420 = vadd.f32 %v2170, %v2419
    %v2421 = vand.u32 %v917, 4294901760
    %2422 = vmatmul.f32.gmra.mxu0 %v2421
    %v2423 = vpop.f32.mrf.mxu0
    %v2424 = vadd.f32 %v2178, %v2423
    %v2425 = vand.u32 %v920, 4294901760
    %2426 = vmatmul.f32.gmra.mxu0 %v2425
    %v2427 = vpop.f32.mrf.mxu0
    %v2428 = vadd.f32 %v2186, %v2427
    %v2429 = vand.u32 %v923, 4294901760
    %2430 = vmatmul.f32.gmra.mxu0 %v2429
    %v2431 = vpop.f32.mrf.mxu0
    %v2432 = vadd.f32 %v2194, %v2431
    %v2433 = vand.u32 %v926, 4294901760
    %2434 = vmatmul.f32.gmra.mxu0 %v2433
    %v2435 = vpop.f32.mrf.mxu0
    %v2436 = vadd.f32 %v2202, %v2435
    %v2437 = vand.u32 %v929, 4294901760
    %2438 = vmatmul.f32.gmra.mxu0 %v2437
    %v2439 = vpop.f32.mrf.mxu0
    %v2440 = vadd.f32 %v2210, %v2439
    %v2441 = vand.u32 %v932, 4294901760
    %2442 = vmatmul.f32.gmra.mxu0 %v2441
    %v2443 = vpop.f32.mrf.mxu0
    %v2444 = vadd.f32 %v2218, %v2443
    %v2445 = vand.u32 %v935, 4294901760
    %2446 = vmatmul.f32.gmra.mxu0 %v2445
    %v2447 = vpop.f32.mrf.mxu0
    %v2448 = vadd.f32 %v2226, %v2447
    %v2449 = vand.u32 %v938, 4294901760
    %2450 = vmatmul.f32.gmra.mxu0 %v2449
    %v2451 = vpop.f32.mrf.mxu0
    %v2452 = vadd.f32 %v2234, %v2451
    %v2453 = vand.u32 %v941, 4294901760
    %2454 = vmatmul.f32.gmra.mxu0 %v2453
    %v2455 = vpop.f32.mrf.mxu0
    %v2456 = vadd.f32 %v2242, %v2455
    %v2457 = vand.u32 %v944, 4294901760
    %2458 = vmatmul.f32.gmra.mxu0 %v2457
    %v2459 = vpop.f32.mrf.mxu0
    %v2460 = vadd.f32 %v2250, %v2459
    %v2461 = vand.u32 %v947, 4294901760
    %2462 = vmatmul.f32.gmra.mxu0 %v2461
    %v2463 = vpop.f32.mrf.mxu0
    %v2464 = vadd.f32 %v2258, %v2463
    %v2465 = vand.u32 %v950, 4294901760
    %2466 = vmatmul.f32.gmra.mxu0 %v2465
    %v2467 = vpop.f32.mrf.mxu0
    %v2468 = vadd.f32 %v2266, %v2467
    %v2469 = vand.u32 %v953, 4294901760
    %2470 = vmatmul.f32.gmra.mxu0 %v2469
    %v2471 = vpop.f32.mrf.mxu0
    %v2472 = vadd.f32 %v2274, %v2471
    %v2473 = vand.u32 %v956, 4294901760
    %2474 = vmatmul.f32.gmra.mxu0 %v2473
    %v2475 = vpop.f32.mrf.mxu0
    %v2476 = vadd.f32 %v2282, %v2475
    %v2477 = vand.u32 %v959, 4294901760
    %2478 = vmatmul.f32.gmra.mxu0 %v2477
    %v2479 = vpop.f32.mrf.mxu0
    %v2480 = vadd.f32 %v2290, %v2479
    %v2481 = vand.u32 %v962, 4294901760
    %2482 = vmatmul.f32.gmra.mxu0 %v2481
    %v2483 = vpop.f32.mrf.mxu0
    %v2484 = vadd.f32 %v2298, %v2483
    %v2485 = vand.u32 %v965, 4294901760
    %2486 = vmatmul.f32.gmra.mxu0 %v2485
    %v2487 = vpop.f32.mrf.mxu0
    %v2488 = vadd.f32 %v2306, %v2487
    %v2489 = vand.u32 %v968, 4294901760
    %2490 = vmatmul.f32.gmra.mxu0 %v2489
    %v2491 = vpop.f32.mrf.mxu0
    %v2492 = vadd.f32 %v2314, %v2491
    %v2493 = vand.u32 %v971, 4294901760
    %2494 = vmatmul.f32.gmra.mxu0 %v2493
    %v2495 = vpop.f32.mrf.mxu0
    %v2496 = vadd.f32 %v2322, %v2495
    %v2497 = vand.u32 %v974, 4294901760
    %2498 = vmatmul.f32.gmra.mxu0 %v2497
    %v2499 = vpop.f32.mrf.mxu0
    %v2500 = vadd.f32 %v2330, %v2499
    %v2501 = vand.u32 %v977, 4294901760
    %2502 = vmatmul.f32.gmra.mxu0 %v2501
    %v2503 = vpop.f32.mrf.mxu0
    %v2504 = vadd.f32 %v2338, %v2503
    %v2505 = vand.u32 %v980, 4294901760
    %2506 = vmatmul.f32.gmra.mxu0 %v2505
    %v2507 = vpop.f32.mrf.mxu0
    %v2508 = vadd.f32 %v2346, %v2507
    %v2509 = vand.u32 %v983, 4294901760
    %2510 = vmatmul.f32.gmra.mxu0 %v2509
    %v2511 = vpop.f32.mrf.mxu0
    %v2512 = vadd.f32 %v2354, %v2511
    %v2513 = vand.u32 %v986, 4294901760
    %2514 = vmatmul.f32.gmra.mxu0 %v2513
    %v2515 = vpop.f32.mrf.mxu0
    %v2516 = vadd.f32 %v2362, %v2515
    %v2517 = vand.u32 %v989, 4294901760
    %2518 = vmatmul.f32.gmra.mxu0 %v2517
    %v2519 = vpop.f32.mrf.mxu0
    %v2520 = vadd.f32 %v2370, %v2519
    %2521 = vdwg.mxu0
    %2522 = vmatpush.msra.mxu0 0.0
    %2523 = vmatpush.msra.mxu0 0.0
    %2524 = vmatpush.msra.mxu0 0.0
    %2525 = vmatpush.msra.mxu0 0.0
    %2526 = vmatpush.msra.mxu0 0.0
    %2527 = vmatpush.msra.mxu0 0.0
    %2528 = vmatpush.msra.mxu0 0.0
    %2529 = vmatpush.msra.mxu0 0.0
    %2530 = vmatpush.msra.mxu0 0.0
    %2531 = vmatpush.msra.mxu0 0.0
    %2532 = vmatpush.msra.mxu0 0.0
    %2533 = vmatpush.msra.mxu0 0.0
    %2534 = vmatpush.msra.mxu0 0.0
    %2535 = vmatpush.msra.mxu0 0.0
    %2536 = vmatpush.msra.mxu0 0.0
    %v2537 = vand.u32 %v824, 4294901760
    %v2538 = vsub.f32 %v824, %v2537
    %2539 = vmatpush.msra.mxu0 %v2538
    %v2540 = vand.u32 %v896, 4294901760
    %v2541 = vsub.f32 %v896, %v2540
    %2542 = vmatmul.f32.gmra.mxu0 %v2541
    %v2543 = vpop.f32.mrf.mxu0
    %v2544 = vadd.f32 %v2396, %v2543
    %v2545 = vand.u32 %v899, 4294901760
    %v2546 = vsub.f32 %v899, %v2545
    %2547 = vmatmul.f32.gmra.mxu0 %v2546
    %v2548 = vpop.f32.mrf.mxu0
    %v2549 = vadd.f32 %v2400, %v2548
    %v2550 = vand.u32 %v902, 4294901760
    %v2551 = vsub.f32 %v902, %v2550
    %2552 = vmatmul.f32.gmra.mxu0 %v2551
    %v2553 = vpop.f32.mrf.mxu0
    %v2554 = vadd.f32 %v2404, %v2553
    %v2555 = vand.u32 %v905, 4294901760
    %v2556 = vsub.f32 %v905, %v2555
    %2557 = vmatmul.f32.gmra.mxu0 %v2556
    %v2558 = vpop.f32.mrf.mxu0
    %v2559 = vadd.f32 %v2408, %v2558
    %v2560 = vand.u32 %v908, 4294901760
    %v2561 = vsub.f32 %v908, %v2560
    %2562 = vmatmul.f32.gmra.mxu0 %v2561
    %v2563 = vpop.f32.mrf.mxu0
    %v2564 = vadd.f32 %v2412, %v2563
    %v2565 = vand.u32 %v911, 4294901760
    %v2566 = vsub.f32 %v911, %v2565
    %2567 = vmatmul.f32.gmra.mxu0 %v2566
    %v2568 = vpop.f32.mrf.mxu0
    %v2569 = vadd.f32 %v2416, %v2568
    %v2570 = vand.u32 %v914, 4294901760
    %v2571 = vsub.f32 %v914, %v2570
    %2572 = vmatmul.f32.gmra.mxu0 %v2571
    %v2573 = vpop.f32.mrf.mxu0
    %v2574 = vadd.f32 %v2420, %v2573
    %v2575 = vand.u32 %v917, 4294901760
    %v2576 = vsub.f32 %v917, %v2575
    %2577 = vmatmul.f32.gmra.mxu0 %v2576
    %v2578 = vpop.f32.mrf.mxu0
    %v2579 = vadd.f32 %v2424, %v2578
    %v2580 = vand.u32 %v920, 4294901760
    %v2581 = vsub.f32 %v920, %v2580
    %2582 = vmatmul.f32.gmra.mxu0 %v2581
    %v2583 = vpop.f32.mrf.mxu0
    %v2584 = vadd.f32 %v2428, %v2583
    %v2585 = vand.u32 %v923, 4294901760
    %v2586 = vsub.f32 %v923, %v2585
    %2587 = vmatmul.f32.gmra.mxu0 %v2586
    %v2588 = vpop.f32.mrf.mxu0
    %v2589 = vadd.f32 %v2432, %v2588
    %v2590 = vand.u32 %v926, 4294901760
    %v2591 = vsub.f32 %v926, %v2590
    %2592 = vmatmul.f32.gmra.mxu0 %v2591
    %v2593 = vpop.f32.mrf.mxu0
    %v2594 = vadd.f32 %v2436, %v2593
    %v2595 = vand.u32 %v929, 4294901760
    %v2596 = vsub.f32 %v929, %v2595
    %2597 = vmatmul.f32.gmra.mxu0 %v2596
    %v2598 = vpop.f32.mrf.mxu0
    %v2599 = vadd.f32 %v2440, %v2598
    %v2600 = vand.u32 %v932, 4294901760
    %v2601 = vsub.f32 %v932, %v2600
    %2602 = vmatmul.f32.gmra.mxu0 %v2601
    %v2603 = vpop.f32.mrf.mxu0
    %v2604 = vadd.f32 %v2444, %v2603
    %v2605 = vand.u32 %v935, 4294901760
    %v2606 = vsub.f32 %v935, %v2605
    %2607 = vmatmul.f32.gmra.mxu0 %v2606
    %v2608 = vpop.f32.mrf.mxu0
    %v2609 = vadd.f32 %v2448, %v2608
    %v2610 = vand.u32 %v938, 4294901760
    %v2611 = vsub.f32 %v938, %v2610
    %2612 = vmatmul.f32.gmra.mxu0 %v2611
    %v2613 = vpop.f32.mrf.mxu0
    %v2614 = vadd.f32 %v2452, %v2613
    %v2615 = vand.u32 %v941, 4294901760
    %v2616 = vsub.f32 %v941, %v2615
    %2617 = vmatmul.f32.gmra.mxu0 %v2616
    %v2618 = vpop.f32.mrf.mxu0
    %v2619 = vadd.f32 %v2456, %v2618
    %v2620 = vand.u32 %v944, 4294901760
    %v2621 = vsub.f32 %v944, %v2620
    %2622 = vmatmul.f32.gmra.mxu0 %v2621
    %v2623 = vpop.f32.mrf.mxu0
    %v2624 = vadd.f32 %v2460, %v2623
    %v2625 = vand.u32 %v947, 4294901760
    %v2626 = vsub.f32 %v947, %v2625
    %2627 = vmatmul.f32.gmra.mxu0 %v2626
    %v2628 = vpop.f32.mrf.mxu0
    %v2629 = vadd.f32 %v2464, %v2628
    %v2630 = vand.u32 %v950, 4294901760
    %v2631 = vsub.f32 %v950, %v2630
    %2632 = vmatmul.f32.gmra.mxu0 %v2631
    %v2633 = vpop.f32.mrf.mxu0
    %v2634 = vadd.f32 %v2468, %v2633
    %v2635 = vand.u32 %v953, 4294901760
    %v2636 = vsub.f32 %v953, %v2635
    %2637 = vmatmul.f32.gmra.mxu0 %v2636
    %v2638 = vpop.f32.mrf.mxu0
    %v2639 = vadd.f32 %v2472, %v2638
    %v2640 = vand.u32 %v956, 4294901760
    %v2641 = vsub.f32 %v956, %v2640
    %2642 = vmatmul.f32.gmra.mxu0 %v2641
    %v2643 = vpop.f32.mrf.mxu0
    %v2644 = vadd.f32 %v2476, %v2643
    %v2645 = vand.u32 %v959, 4294901760
    %v2646 = vsub.f32 %v959, %v2645
    %2647 = vmatmul.f32.gmra.mxu0 %v2646
    %v2648 = vpop.f32.mrf.mxu0
    %v2649 = vadd.f32 %v2480, %v2648
    %v2650 = vand.u32 %v962, 4294901760
    %v2651 = vsub.f32 %v962, %v2650
    %2652 = vmatmul.f32.gmra.mxu0 %v2651
    %v2653 = vpop.f32.mrf.mxu0
    %v2654 = vadd.f32 %v2484, %v2653
    %v2655 = vand.u32 %v965, 4294901760
    %v2656 = vsub.f32 %v965, %v2655
    %2657 = vmatmul.f32.gmra.mxu0 %v2656
    %v2658 = vpop.f32.mrf.mxu0
    %v2659 = vadd.f32 %v2488, %v2658
    %v2660 = vand.u32 %v968, 4294901760
    %v2661 = vsub.f32 %v968, %v2660
    %2662 = vmatmul.f32.gmra.mxu0 %v2661
    %v2663 = vpop.f32.mrf.mxu0
    %v2664 = vadd.f32 %v2492, %v2663
    %v2665 = vand.u32 %v971, 4294901760
    %v2666 = vsub.f32 %v971, %v2665
    %2667 = vmatmul.f32.gmra.mxu0 %v2666
    %v2668 = vpop.f32.mrf.mxu0
    %v2669 = vadd.f32 %v2496, %v2668
    %v2670 = vand.u32 %v974, 4294901760
    %v2671 = vsub.f32 %v974, %v2670
    %2672 = vmatmul.f32.gmra.mxu0 %v2671
    %v2673 = vpop.f32.mrf.mxu0
    %v2674 = vadd.f32 %v2500, %v2673
    %v2675 = vand.u32 %v977, 4294901760
    %v2676 = vsub.f32 %v977, %v2675
    %2677 = vmatmul.f32.gmra.mxu0 %v2676
    %v2678 = vpop.f32.mrf.mxu0
    %v2679 = vadd.f32 %v2504, %v2678
    %v2680 = vand.u32 %v980, 4294901760
    %v2681 = vsub.f32 %v980, %v2680
    %2682 = vmatmul.f32.gmra.mxu0 %v2681
    %v2683 = vpop.f32.mrf.mxu0
    %v2684 = vadd.f32 %v2508, %v2683
    %v2685 = vand.u32 %v983, 4294901760
    %v2686 = vsub.f32 %v983, %v2685
    %2687 = vmatmul.f32.gmra.mxu0 %v2686
    %v2688 = vpop.f32.mrf.mxu0
    %v2689 = vadd.f32 %v2512, %v2688
    %v2690 = vand.u32 %v986, 4294901760
    %v2691 = vsub.f32 %v986, %v2690
    %2692 = vmatmul.f32.gmra.mxu0 %v2691
    %v2693 = vpop.f32.mrf.mxu0
    %v2694 = vadd.f32 %v2516, %v2693
    %v2695 = vand.u32 %v989, 4294901760
    %v2696 = vsub.f32 %v989, %v2695
    %2697 = vmatmul.f32.gmra.mxu0 %v2696
    %v2698 = vpop.f32.mrf.mxu0
    %v2699 = vadd.f32 %v2520, %v2698
    %2700 = vdwg.mxu0
    %2701 = vmatpush.msra.mxu0 0.0
    %2702 = vmatpush.msra.mxu0 0.0
    %2703 = vmatpush.msra.mxu0 0.0
    %2704 = vmatpush.msra.mxu0 0.0
    %2705 = vmatpush.msra.mxu0 0.0
    %2706 = vmatpush.msra.mxu0 0.0
    %2707 = vmatpush.msra.mxu0 0.0
    %2708 = vmatpush.msra.mxu0 0.0
    %2709 = vmatpush.msra.mxu0 0.0
    %2710 = vmatpush.msra.mxu0 0.0
    %2711 = vmatpush.msra.mxu0 0.0
    %2712 = vmatpush.msra.mxu0 0.0
    %2713 = vmatpush.msra.mxu0 0.0
    %2714 = vmatpush.msra.mxu0 0.0
    %2715 = vmatpush.msra.mxu0 0.0
    %v2716 = vand.u32 %v824, 4294901760
    %2717 = vmatpush.msra.mxu0 %v2716
    %v2718 = vand.u32 %v896, 4294901760
    %v2719 = vsub.f32 %v896, %v2718
    %v2720 = vand.u32 %v2719, 4294901760
    %2721 = vmatmul.f32.gmra.mxu0 %v2720
    %v2722 = vpop.f32.mrf.mxu0
    %v2723 = vadd.f32 %v2544, %v2722
    %v2724 = vand.u32 %v899, 4294901760
    %v2725 = vsub.f32 %v899, %v2724
    %v2726 = vand.u32 %v2725, 4294901760
    %2727 = vmatmul.f32.gmra.mxu0 %v2726
    %v2728 = vpop.f32.mrf.mxu0
    %v2729 = vadd.f32 %v2549, %v2728
    %v2730 = vand.u32 %v902, 4294901760
    %v2731 = vsub.f32 %v902, %v2730
    %v2732 = vand.u32 %v2731, 4294901760
    %2733 = vmatmul.f32.gmra.mxu0 %v2732
    %v2734 = vpop.f32.mrf.mxu0
    %v2735 = vadd.f32 %v2554, %v2734
    %v2736 = vand.u32 %v905, 4294901760
    %v2737 = vsub.f32 %v905, %v2736
    %v2738 = vand.u32 %v2737, 4294901760
    %2739 = vmatmul.f32.gmra.mxu0 %v2738
    %v2740 = vpop.f32.mrf.mxu0
    %v2741 = vadd.f32 %v2559, %v2740
    %v2742 = vand.u32 %v908, 4294901760
    %v2743 = vsub.f32 %v908, %v2742
    %v2744 = vand.u32 %v2743, 4294901760
    %2745 = vmatmul.f32.gmra.mxu0 %v2744
    %v2746 = vpop.f32.mrf.mxu0
    %v2747 = vadd.f32 %v2564, %v2746
    %v2748 = vand.u32 %v911, 4294901760
    %v2749 = vsub.f32 %v911, %v2748
    %v2750 = vand.u32 %v2749, 4294901760
    %2751 = vmatmul.f32.gmra.mxu0 %v2750
    %v2752 = vpop.f32.mrf.mxu0
    %v2753 = vadd.f32 %v2569, %v2752
    %v2754 = vand.u32 %v914, 4294901760
    %v2755 = vsub.f32 %v914, %v2754
    %v2756 = vand.u32 %v2755, 4294901760
    %2757 = vmatmul.f32.gmra.mxu0 %v2756
    %v2758 = vpop.f32.mrf.mxu0
    %v2759 = vadd.f32 %v2574, %v2758
    %v2760 = vand.u32 %v917, 4294901760
    %v2761 = vsub.f32 %v917, %v2760
    %v2762 = vand.u32 %v2761, 4294901760
    %2763 = vmatmul.f32.gmra.mxu0 %v2762
    %v2764 = vpop.f32.mrf.mxu0
    %v2765 = vadd.f32 %v2579, %v2764
    %v2766 = vand.u32 %v920, 4294901760
    %v2767 = vsub.f32 %v920, %v2766
    %v2768 = vand.u32 %v2767, 4294901760
    %2769 = vmatmul.f32.gmra.mxu0 %v2768
    %v2770 = vpop.f32.mrf.mxu0
    %v2771 = vadd.f32 %v2584, %v2770
    %v2772 = vand.u32 %v923, 4294901760
    %v2773 = vsub.f32 %v923, %v2772
    %v2774 = vand.u32 %v2773, 4294901760
    %2775 = vmatmul.f32.gmra.mxu0 %v2774
    %v2776 = vpop.f32.mrf.mxu0
    %v2777 = vadd.f32 %v2589, %v2776
    %v2778 = vand.u32 %v926, 4294901760
    %v2779 = vsub.f32 %v926, %v2778
    %v2780 = vand.u32 %v2779, 4294901760
    %2781 = vmatmul.f32.gmra.mxu0 %v2780
    %v2782 = vpop.f32.mrf.mxu0
    %v2783 = vadd.f32 %v2594, %v2782
    %v2784 = vand.u32 %v929, 4294901760
    %v2785 = vsub.f32 %v929, %v2784
    %v2786 = vand.u32 %v2785, 4294901760
    %2787 = vmatmul.f32.gmra.mxu0 %v2786
    %v2788 = vpop.f32.mrf.mxu0
    %v2789 = vadd.f32 %v2599, %v2788
    %v2790 = vand.u32 %v932, 4294901760
    %v2791 = vsub.f32 %v932, %v2790
    %v2792 = vand.u32 %v2791, 4294901760
    %2793 = vmatmul.f32.gmra.mxu0 %v2792
    %v2794 = vpop.f32.mrf.mxu0
    %v2795 = vadd.f32 %v2604, %v2794
    %v2796 = vand.u32 %v935, 4294901760
    %v2797 = vsub.f32 %v935, %v2796
    %v2798 = vand.u32 %v2797, 4294901760
    %2799 = vmatmul.f32.gmra.mxu0 %v2798
    %v2800 = vpop.f32.mrf.mxu0
    %v2801 = vadd.f32 %v2609, %v2800
    %v2802 = vand.u32 %v938, 4294901760
    %v2803 = vsub.f32 %v938, %v2802
    %v2804 = vand.u32 %v2803, 4294901760
    %2805 = vmatmul.f32.gmra.mxu0 %v2804
    %v2806 = vpop.f32.mrf.mxu0
    %v2807 = vadd.f32 %v2614, %v2806
    %v2808 = vand.u32 %v941, 4294901760
    %v2809 = vsub.f32 %v941, %v2808
    %v2810 = vand.u32 %v2809, 4294901760
    %2811 = vmatmul.f32.gmra.mxu0 %v2810
    %v2812 = vpop.f32.mrf.mxu0
    %v2813 = vadd.f32 %v2619, %v2812
    %v2814 = vand.u32 %v944, 4294901760
    %v2815 = vsub.f32 %v944, %v2814
    %v2816 = vand.u32 %v2815, 4294901760
    %2817 = vmatmul.f32.gmra.mxu0 %v2816
    %v2818 = vpop.f32.mrf.mxu0
    %v2819 = vadd.f32 %v2624, %v2818
    %v2820 = vand.u32 %v947, 4294901760
    %v2821 = vsub.f32 %v947, %v2820
    %v2822 = vand.u32 %v2821, 4294901760
    %2823 = vmatmul.f32.gmra.mxu0 %v2822
    %v2824 = vpop.f32.mrf.mxu0
    %v2825 = vadd.f32 %v2629, %v2824
    %v2826 = vand.u32 %v950, 4294901760
    %v2827 = vsub.f32 %v950, %v2826
    %v2828 = vand.u32 %v2827, 4294901760
    %2829 = vmatmul.f32.gmra.mxu0 %v2828
    %v2830 = vpop.f32.mrf.mxu0
    %v2831 = vadd.f32 %v2634, %v2830
    %v2832 = vand.u32 %v953, 4294901760
    %v2833 = vsub.f32 %v953, %v2832
    %v2834 = vand.u32 %v2833, 4294901760
    %2835 = vmatmul.f32.gmra.mxu0 %v2834
    %v2836 = vpop.f32.mrf.mxu0
    %v2837 = vadd.f32 %v2639, %v2836
    %v2838 = vand.u32 %v956, 4294901760
    %v2839 = vsub.f32 %v956, %v2838
    %v2840 = vand.u32 %v2839, 4294901760
    %2841 = vmatmul.f32.gmra.mxu0 %v2840
    %v2842 = vpop.f32.mrf.mxu0
    %v2843 = vadd.f32 %v2644, %v2842
    %v2844 = vand.u32 %v959, 4294901760
    %v2845 = vsub.f32 %v959, %v2844
    %v2846 = vand.u32 %v2845, 4294901760
    %2847 = vmatmul.f32.gmra.mxu0 %v2846
    %v2848 = vpop.f32.mrf.mxu0
    %v2849 = vadd.f32 %v2649, %v2848
    %v2850 = vand.u32 %v962, 4294901760
    %v2851 = vsub.f32 %v962, %v2850
    %v2852 = vand.u32 %v2851, 4294901760
    %2853 = vmatmul.f32.gmra.mxu0 %v2852
    %v2854 = vpop.f32.mrf.mxu0
    %v2855 = vadd.f32 %v2654, %v2854
    %v2856 = vand.u32 %v965, 4294901760
    %v2857 = vsub.f32 %v965, %v2856
    %v2858 = vand.u32 %v2857, 4294901760
    %2859 = vmatmul.f32.gmra.mxu0 %v2858
    %v2860 = vpop.f32.mrf.mxu0
    %v2861 = vadd.f32 %v2659, %v2860
    %v2862 = vand.u32 %v968, 4294901760
    %v2863 = vsub.f32 %v968, %v2862
    %v2864 = vand.u32 %v2863, 4294901760
    %2865 = vmatmul.f32.gmra.mxu0 %v2864
    %v2866 = vpop.f32.mrf.mxu0
    %v2867 = vadd.f32 %v2664, %v2866
    %v2868 = vand.u32 %v971, 4294901760
    %v2869 = vsub.f32 %v971, %v2868
    %v2870 = vand.u32 %v2869, 4294901760
    %2871 = vmatmul.f32.gmra.mxu0 %v2870
    %v2872 = vpop.f32.mrf.mxu0
    %v2873 = vadd.f32 %v2669, %v2872
    %v2874 = vand.u32 %v974, 4294901760
    %v2875 = vsub.f32 %v974, %v2874
    %v2876 = vand.u32 %v2875, 4294901760
    %2877 = vmatmul.f32.gmra.mxu0 %v2876
    %v2878 = vpop.f32.mrf.mxu0
    %v2879 = vadd.f32 %v2674, %v2878
    %v2880 = vand.u32 %v977, 4294901760
    %v2881 = vsub.f32 %v977, %v2880
    %v2882 = vand.u32 %v2881, 4294901760
    %2883 = vmatmul.f32.gmra.mxu0 %v2882
    %v2884 = vpop.f32.mrf.mxu0
    %v2885 = vadd.f32 %v2679, %v2884
    %v2886 = vand.u32 %v980, 4294901760
    %v2887 = vsub.f32 %v980, %v2886
    %v2888 = vand.u32 %v2887, 4294901760
    %2889 = vmatmul.f32.gmra.mxu0 %v2888
    %v2890 = vpop.f32.mrf.mxu0
    %v2891 = vadd.f32 %v2684, %v2890
    %v2892 = vand.u32 %v983, 4294901760
    %v2893 = vsub.f32 %v983, %v2892
    %v2894 = vand.u32 %v2893, 4294901760
    %2895 = vmatmul.f32.gmra.mxu0 %v2894
    %v2896 = vpop.f32.mrf.mxu0
    %v2897 = vadd.f32 %v2689, %v2896
    %v2898 = vand.u32 %v986, 4294901760
    %v2899 = vsub.f32 %v986, %v2898
    %v2900 = vand.u32 %v2899, 4294901760
    %2901 = vmatmul.f32.gmra.mxu0 %v2900
    %v2902 = vpop.f32.mrf.mxu0
    %v2903 = vadd.f32 %v2694, %v2902
    %v2904 = vand.u32 %v989, 4294901760
    %v2905 = vsub.f32 %v989, %v2904
    %v2906 = vand.u32 %v2905, 4294901760
    %2907 = vmatmul.f32.gmra.mxu0 %v2906
    %v2908 = vpop.f32.mrf.mxu0
    %v2909 = vadd.f32 %v2699, %v2908
    %2910 = vdwg.mxu0
    %2911 = vmatpush.msra.mxu0 0.0
    %2912 = vmatpush.msra.mxu0 0.0
    %2913 = vmatpush.msra.mxu0 0.0
    %2914 = vmatpush.msra.mxu0 0.0
    %2915 = vmatpush.msra.mxu0 0.0
    %2916 = vmatpush.msra.mxu0 0.0
    %2917 = vmatpush.msra.mxu0 0.0
    %2918 = vmatpush.msra.mxu0 0.0
    %2919 = vmatpush.msra.mxu0 0.0
    %2920 = vmatpush.msra.mxu0 0.0
    %2921 = vmatpush.msra.mxu0 0.0
    %2922 = vmatpush.msra.mxu0 0.0
    %2923 = vmatpush.msra.mxu0 0.0
    %2924 = vmatpush.msra.mxu0 0.0
    %2925 = vmatpush.msra.mxu0 0.0
    %v2926 = vand.u32 %v824, 4294901760
    %v2927 = vsub.f32 %v824, %v2926
    %v2928 = vand.u32 %v2927, 4294901760
    %2929 = vmatpush.msra.mxu0 %v2928
    %v2930 = vand.u32 %v896, 4294901760
    %2931 = vmatmul.f32.gmra.mxu0 %v2930
    %v2932 = vpop.f32.mrf.mxu0
    %v2933 = vadd.f32 %v2723, %v2932
    %v2934 = vand.u32 %v899, 4294901760
    %2935 = vmatmul.f32.gmra.mxu0 %v2934
    %v2936 = vpop.f32.mrf.mxu0
    %v2937 = vadd.f32 %v2729, %v2936
    %v2938 = vand.u32 %v902, 4294901760
    %2939 = vmatmul.f32.gmra.mxu0 %v2938
    %v2940 = vpop.f32.mrf.mxu0
    %v2941 = vadd.f32 %v2735, %v2940
    %v2942 = vand.u32 %v905, 4294901760
    %2943 = vmatmul.f32.gmra.mxu0 %v2942
    %v2944 = vpop.f32.mrf.mxu0
    %v2945 = vadd.f32 %v2741, %v2944
    %v2946 = vand.u32 %v908, 4294901760
    %2947 = vmatmul.f32.gmra.mxu0 %v2946
    %v2948 = vpop.f32.mrf.mxu0
    %v2949 = vadd.f32 %v2747, %v2948
    %v2950 = vand.u32 %v911, 4294901760
    %2951 = vmatmul.f32.gmra.mxu0 %v2950
    %v2952 = vpop.f32.mrf.mxu0
    %v2953 = vadd.f32 %v2753, %v2952
    %v2954 = vand.u32 %v914, 4294901760
    %2955 = vmatmul.f32.gmra.mxu0 %v2954
    %v2956 = vpop.f32.mrf.mxu0
    %v2957 = vadd.f32 %v2759, %v2956
    %v2958 = vand.u32 %v917, 4294901760
    %2959 = vmatmul.f32.gmra.mxu0 %v2958
    %v2960 = vpop.f32.mrf.mxu0
    %v2961 = vadd.f32 %v2765, %v2960
    %v2962 = vand.u32 %v920, 4294901760
    %2963 = vmatmul.f32.gmra.mxu0 %v2962
    %v2964 = vpop.f32.mrf.mxu0
    %v2965 = vadd.f32 %v2771, %v2964
    %v2966 = vand.u32 %v923, 4294901760
    %2967 = vmatmul.f32.gmra.mxu0 %v2966
    %v2968 = vpop.f32.mrf.mxu0
    %v2969 = vadd.f32 %v2777, %v2968
    %v2970 = vand.u32 %v926, 4294901760
    %2971 = vmatmul.f32.gmra.mxu0 %v2970
    %v2972 = vpop.f32.mrf.mxu0
    %v2973 = vadd.f32 %v2783, %v2972
    %v2974 = vand.u32 %v929, 4294901760
    %2975 = vmatmul.f32.gmra.mxu0 %v2974
    %v2976 = vpop.f32.mrf.mxu0
    %v2977 = vadd.f32 %v2789, %v2976
    %v2978 = vand.u32 %v932, 4294901760
    %2979 = vmatmul.f32.gmra.mxu0 %v2978
    %v2980 = vpop.f32.mrf.mxu0
    %v2981 = vadd.f32 %v2795, %v2980
    %v2982 = vand.u32 %v935, 4294901760
    %2983 = vmatmul.f32.gmra.mxu0 %v2982
    %v2984 = vpop.f32.mrf.mxu0
    %v2985 = vadd.f32 %v2801, %v2984
    %v2986 = vand.u32 %v938, 4294901760
    %2987 = vmatmul.f32.gmra.mxu0 %v2986
    %v2988 = vpop.f32.mrf.mxu0
    %v2989 = vadd.f32 %v2807, %v2988
    %v2990 = vand.u32 %v941, 4294901760
    %2991 = vmatmul.f32.gmra.mxu0 %v2990
    %v2992 = vpop.f32.mrf.mxu0
    %v2993 = vadd.f32 %v2813, %v2992
    %v2994 = vand.u32 %v944, 4294901760
    %2995 = vmatmul.f32.gmra.mxu0 %v2994
    %v2996 = vpop.f32.mrf.mxu0
    %v2997 = vadd.f32 %v2819, %v2996
    %v2998 = vand.u32 %v947, 4294901760
    %2999 = vmatmul.f32.gmra.mxu0 %v2998
    %v3000 = vpop.f32.mrf.mxu0
    %v3001 = vadd.f32 %v2825, %v3000
    %v3002 = vand.u32 %v950, 4294901760
    %3003 = vmatmul.f32.gmra.mxu0 %v3002
    %v3004 = vpop.f32.mrf.mxu0
    %v3005 = vadd.f32 %v2831, %v3004
    %v3006 = vand.u32 %v953, 4294901760
    %3007 = vmatmul.f32.gmra.mxu0 %v3006
    %v3008 = vpop.f32.mrf.mxu0
    %v3009 = vadd.f32 %v2837, %v3008
    %v3010 = vand.u32 %v956, 4294901760
    %3011 = vmatmul.f32.gmra.mxu0 %v3010
    %v3012 = vpop.f32.mrf.mxu0
    %v3013 = vadd.f32 %v2843, %v3012
    %v3014 = vand.u32 %v959, 4294901760
    %3015 = vmatmul.f32.gmra.mxu0 %v3014
    %v3016 = vpop.f32.mrf.mxu0
    %v3017 = vadd.f32 %v2849, %v3016
    %v3018 = vand.u32 %v962, 4294901760
    %3019 = vmatmul.f32.gmra.mxu0 %v3018
    %v3020 = vpop.f32.mrf.mxu0
    %v3021 = vadd.f32 %v2855, %v3020
    %v3022 = vand.u32 %v965, 4294901760
    %3023 = vmatmul.f32.gmra.mxu0 %v3022
    %v3024 = vpop.f32.mrf.mxu0
    %v3025 = vadd.f32 %v2861, %v3024
    %v3026 = vand.u32 %v968, 4294901760
    %3027 = vmatmul.f32.gmra.mxu0 %v3026
    %v3028 = vpop.f32.mrf.mxu0
    %v3029 = vadd.f32 %v2867, %v3028
    %v3030 = vand.u32 %v971, 4294901760
    %3031 = vmatmul.f32.gmra.mxu0 %v3030
    %v3032 = vpop.f32.mrf.mxu0
    %v3033 = vadd.f32 %v2873, %v3032
    %v3034 = vand.u32 %v974, 4294901760
    %3035 = vmatmul.f32.gmra.mxu0 %v3034
    %v3036 = vpop.f32.mrf.mxu0
    %v3037 = vadd.f32 %v2879, %v3036
    %v3038 = vand.u32 %v977, 4294901760
    %3039 = vmatmul.f32.gmra.mxu0 %v3038
    %v3040 = vpop.f32.mrf.mxu0
    %v3041 = vadd.f32 %v2885, %v3040
    %v3042 = vand.u32 %v980, 4294901760
    %3043 = vmatmul.f32.gmra.mxu0 %v3042
    %v3044 = vpop.f32.mrf.mxu0
    %v3045 = vadd.f32 %v2891, %v3044
    %v3046 = vand.u32 %v983, 4294901760
    %3047 = vmatmul.f32.gmra.mxu0 %v3046
    %v3048 = vpop.f32.mrf.mxu0
    %v3049 = vadd.f32 %v2897, %v3048
    %v3050 = vand.u32 %v986, 4294901760
    %3051 = vmatmul.f32.gmra.mxu0 %v3050
    %v3052 = vpop.f32.mrf.mxu0
    %v3053 = vadd.f32 %v2903, %v3052
    %v3054 = vand.u32 %v989, 4294901760
    %3055 = vmatmul.f32.gmra.mxu0 %v3054
    %v3056 = vpop.f32.mrf.mxu0
    %v3057 = vadd.f32 %v2909, %v3056
    %3058 = vdwg.mxu0
    %3059 = vmatpush.msra.mxu0 0.0
    %3060 = vmatpush.msra.mxu0 0.0
    %3061 = vmatpush.msra.mxu0 0.0
    %3062 = vmatpush.msra.mxu0 0.0
    %3063 = vmatpush.msra.mxu0 0.0
    %3064 = vmatpush.msra.mxu0 0.0
    %3065 = vmatpush.msra.mxu0 0.0
    %3066 = vmatpush.msra.mxu0 0.0
    %3067 = vmatpush.msra.mxu0 0.0
    %3068 = vmatpush.msra.mxu0 0.0
    %3069 = vmatpush.msra.mxu0 0.0
    %3070 = vmatpush.msra.mxu0 0.0
    %3071 = vmatpush.msra.mxu0 0.0
    %3072 = vmatpush.msra.mxu0 0.0
    %3073 = vmatpush.msra.mxu0 0.0
    %v3074 = vand.u32 %v824, 4294901760
    %3075 = vmatpush.msra.mxu0 %v3074
    %v3076 = vand.u32 %v896, 4294901760
    %3077 = vmatmul.f32.gmra.mxu0 %v3076
    %v3078 = vpop.f32.mrf.mxu0
    %v3079 = vadd.f32 %v2933, %v3078
    %v3080 = vand.u32 %v899, 4294901760
    %3081 = vmatmul.f32.gmra.mxu0 %v3080
    %v3082 = vpop.f32.mrf.mxu0
    %v3083 = vadd.f32 %v2937, %v3082
    %v3084 = vand.u32 %v902, 4294901760
    %3085 = vmatmul.f32.gmra.mxu0 %v3084
    %v3086 = vpop.f32.mrf.mxu0
    %v3087 = vadd.f32 %v2941, %v3086
    %v3088 = vand.u32 %v905, 4294901760
    %3089 = vmatmul.f32.gmra.mxu0 %v3088
    %v3090 = vpop.f32.mrf.mxu0
    %v3091 = vadd.f32 %v2945, %v3090
    %v3092 = vand.u32 %v908, 4294901760
    %3093 = vmatmul.f32.gmra.mxu0 %v3092
    %v3094 = vpop.f32.mrf.mxu0
    %v3095 = vadd.f32 %v2949, %v3094
    %v3096 = vand.u32 %v911, 4294901760
    %3097 = vmatmul.f32.gmra.mxu0 %v3096
    %v3098 = vpop.f32.mrf.mxu0
    %v3099 = vadd.f32 %v2953, %v3098
    %v3100 = vand.u32 %v914, 4294901760
    %3101 = vmatmul.f32.gmra.mxu0 %v3100
    %v3102 = vpop.f32.mrf.mxu0
    %v3103 = vadd.f32 %v2957, %v3102
    %v3104 = vand.u32 %v917, 4294901760
    %3105 = vmatmul.f32.gmra.mxu0 %v3104
    %v3106 = vpop.f32.mrf.mxu0
    %v3107 = vadd.f32 %v2961, %v3106
    %v3108 = vand.u32 %v920, 4294901760
    %3109 = vmatmul.f32.gmra.mxu0 %v3108
    %v3110 = vpop.f32.mrf.mxu0
    %v3111 = vadd.f32 %v2965, %v3110
    %v3112 = vand.u32 %v923, 4294901760
    %3113 = vmatmul.f32.gmra.mxu0 %v3112
    %v3114 = vpop.f32.mrf.mxu0
    %v3115 = vadd.f32 %v2969, %v3114
    %v3116 = vand.u32 %v926, 4294901760
    %3117 = vmatmul.f32.gmra.mxu0 %v3116
    %v3118 = vpop.f32.mrf.mxu0
    %v3119 = vadd.f32 %v2973, %v3118
    %v3120 = vand.u32 %v929, 4294901760
    %3121 = vmatmul.f32.gmra.mxu0 %v3120
    %v3122 = vpop.f32.mrf.mxu0
    %v3123 = vadd.f32 %v2977, %v3122
    %v3124 = vand.u32 %v932, 4294901760
    %3125 = vmatmul.f32.gmra.mxu0 %v3124
    %v3126 = vpop.f32.mrf.mxu0
    %v3127 = vadd.f32 %v2981, %v3126
    %v3128 = vand.u32 %v935, 4294901760
    %3129 = vmatmul.f32.gmra.mxu0 %v3128
    %v3130 = vpop.f32.mrf.mxu0
    %v3131 = vadd.f32 %v2985, %v3130
    %v3132 = vand.u32 %v938, 4294901760
    %3133 = vmatmul.f32.gmra.mxu0 %v3132
    %v3134 = vpop.f32.mrf.mxu0
    %v3135 = vadd.f32 %v2989, %v3134
    %v3136 = vand.u32 %v941, 4294901760
    %3137 = vmatmul.f32.gmra.mxu0 %v3136
    %v3138 = vpop.f32.mrf.mxu0
    %v3139 = vadd.f32 %v2993, %v3138
    %v3140 = vand.u32 %v944, 4294901760
    %3141 = vmatmul.f32.gmra.mxu0 %v3140
    %v3142 = vpop.f32.mrf.mxu0
    %v3143 = vadd.f32 %v2997, %v3142
    %v3144 = vand.u32 %v947, 4294901760
    %3145 = vmatmul.f32.gmra.mxu0 %v3144
    %v3146 = vpop.f32.mrf.mxu0
    %v3147 = vadd.f32 %v3001, %v3146
    %v3148 = vand.u32 %v950, 4294901760
    %3149 = vmatmul.f32.gmra.mxu0 %v3148
    %v3150 = vpop.f32.mrf.mxu0
    %v3151 = vadd.f32 %v3005, %v3150
    %v3152 = vand.u32 %v953, 4294901760
    %3153 = vmatmul.f32.gmra.mxu0 %v3152
    %v3154 = vpop.f32.mrf.mxu0
    %v3155 = vadd.f32 %v3009, %v3154
    %v3156 = vand.u32 %v956, 4294901760
    %3157 = vmatmul.f32.gmra.mxu0 %v3156
    %v3158 = vpop.f32.mrf.mxu0
    %v3159 = vadd.f32 %v3013, %v3158
    %v3160 = vand.u32 %v959, 4294901760
    %3161 = vmatmul.f32.gmra.mxu0 %v3160
    %v3162 = vpop.f32.mrf.mxu0
    %v3163 = vadd.f32 %v3017, %v3162
    %v3164 = vand.u32 %v962, 4294901760
    %3165 = vmatmul.f32.gmra.mxu0 %v3164
    %v3166 = vpop.f32.mrf.mxu0
    %v3167 = vadd.f32 %v3021, %v3166
    %v3168 = vand.u32 %v965, 4294901760
    %3169 = vmatmul.f32.gmra.mxu0 %v3168
    %v3170 = vpop.f32.mrf.mxu0
    %v3171 = vadd.f32 %v3025, %v3170
    %v3172 = vand.u32 %v968, 4294901760
    %3173 = vmatmul.f32.gmra.mxu0 %v3172
    %v3174 = vpop.f32.mrf.mxu0
    %v3175 = vadd.f32 %v3029, %v3174
    %v3176 = vand.u32 %v971, 4294901760
    %3177 = vmatmul.f32.gmra.mxu0 %v3176
    %v3178 = vpop.f32.mrf.mxu0
    %v3179 = vadd.f32 %v3033, %v3178
    %v3180 = vand.u32 %v974, 4294901760
    %3181 = vmatmul.f32.gmra.mxu0 %v3180
    %v3182 = vpop.f32.mrf.mxu0
    %v3183 = vadd.f32 %v3037, %v3182
    %v3184 = vand.u32 %v977, 4294901760
    %3185 = vmatmul.f32.gmra.mxu0 %v3184
    %v3186 = vpop.f32.mrf.mxu0
    %v3187 = vadd.f32 %v3041, %v3186
    %v3188 = vand.u32 %v980, 4294901760
    %3189 = vmatmul.f32.gmra.mxu0 %v3188
    %v3190 = vpop.f32.mrf.mxu0
    %v3191 = vadd.f32 %v3045, %v3190
    %v3192 = vand.u32 %v983, 4294901760
    %3193 = vmatmul.f32.gmra.mxu0 %v3192
    %v3194 = vpop.f32.mrf.mxu0
    %v3195 = vadd.f32 %v3049, %v3194
    %v3196 = vand.u32 %v986, 4294901760
    %3197 = vmatmul.f32.gmra.mxu0 %v3196
    %v3198 = vpop.f32.mrf.mxu0
    %v3199 = vadd.f32 %v3053, %v3198
    %v3200 = vand.u32 %v989, 4294901760
    %3201 = vmatmul.f32.gmra.mxu0 %v3200
    %v3202 = vpop.f32.mrf.mxu0
    %v3203 = vadd.f32 %v3057, %v3202
    %3204 = vdwg.mxu0
    %v3205 = vmax.f32 %v1972, %v3079
    %3206 = vmax.xlane.f32.xlu0 %v3205
    %v3207 = vpop.xlane.xlu0 %3206
    %v3208 = vmax.f32 %v1976, %v3083
    %3209 = vmax.xlane.f32.xlu0 %v3208
    %v3210 = vpop.xlane.xlu0 %3209
    %v3211 = vmax.f32 %v1980, %v3087
    %3212 = vmax.xlane.f32.xlu0 %v3211
    %v3213 = vpop.xlane.xlu0 %3212
    %v3214 = vmax.f32 %v1984, %v3091
    %3215 = vmax.xlane.f32.xlu0 %v3214
    %v3216 = vpop.xlane.xlu0 %3215
    %v3217 = vmax.f32 %v1988, %v3095
    %3218 = vmax.xlane.f32.xlu0 %v3217
    %v3219 = vpop.xlane.xlu0 %3218
    %v3220 = vmax.f32 %v1992, %v3099
    %3221 = vmax.xlane.f32.xlu0 %v3220
    %v3222 = vpop.xlane.xlu0 %3221
    %v3223 = vmax.f32 %v1996, %v3103
    %3224 = vmax.xlane.f32.xlu0 %v3223
    %v3225 = vpop.xlane.xlu0 %3224
    %v3226 = vmax.f32 %v2000, %v3107
    %3227 = vmax.xlane.f32.xlu0 %v3226
    %v3228 = vpop.xlane.xlu0 %3227
    %v3229 = vmax.f32 %v2004, %v3111
    %3230 = vmax.xlane.f32.xlu0 %v3229
    %v3231 = vpop.xlane.xlu0 %3230
    %v3232 = vmax.f32 %v2008, %v3115
    %3233 = vmax.xlane.f32.xlu0 %v3232
    %v3234 = vpop.xlane.xlu0 %3233
    %v3235 = vmax.f32 %v2012, %v3119
    %3236 = vmax.xlane.f32.xlu0 %v3235
    %v3237 = vpop.xlane.xlu0 %3236
    %v3238 = vmax.f32 %v2016, %v3123
    %3239 = vmax.xlane.f32.xlu0 %v3238
    %v3240 = vpop.xlane.xlu0 %3239
    %v3241 = vmax.f32 %v2020, %v3127
    %3242 = vmax.xlane.f32.xlu0 %v3241
    %v3243 = vpop.xlane.xlu0 %3242
    %v3244 = vmax.f32 %v2024, %v3131
    %3245 = vmax.xlane.f32.xlu0 %v3244
    %v3246 = vpop.xlane.xlu0 %3245
    %v3247 = vmax.f32 %v2028, %v3135
    %3248 = vmax.xlane.f32.xlu0 %v3247
    %v3249 = vpop.xlane.xlu0 %3248
    %v3250 = vmax.f32 %v2032, %v3139
    %3251 = vmax.xlane.f32.xlu0 %v3250
    %v3252 = vpop.xlane.xlu0 %3251
    %v3253 = vmax.f32 %v2036, %v3143
    %3254 = vmax.xlane.f32.xlu0 %v3253
    %v3255 = vpop.xlane.xlu0 %3254
    %v3256 = vmax.f32 %v2040, %v3147
    %3257 = vmax.xlane.f32.xlu0 %v3256
    %v3258 = vpop.xlane.xlu0 %3257
    %v3259 = vmax.f32 %v2044, %v3151
    %3260 = vmax.xlane.f32.xlu0 %v3259
    %v3261 = vpop.xlane.xlu0 %3260
    %v3262 = vmax.f32 %v2048, %v3155
    %3263 = vmax.xlane.f32.xlu0 %v3262
    %v3264 = vpop.xlane.xlu0 %3263
    %v3265 = vmax.f32 %v2052, %v3159
    %3266 = vmax.xlane.f32.xlu0 %v3265
    %v3267 = vpop.xlane.xlu0 %3266
    %v3268 = vmax.f32 %v2056, %v3163
    %3269 = vmax.xlane.f32.xlu0 %v3268
    %v3270 = vpop.xlane.xlu0 %3269
    %v3271 = vmax.f32 %v2060, %v3167
    %3272 = vmax.xlane.f32.xlu0 %v3271
    %v3273 = vpop.xlane.xlu0 %3272
    %v3274 = vmax.f32 %v2064, %v3171
    %3275 = vmax.xlane.f32.xlu0 %v3274
    %v3276 = vpop.xlane.xlu0 %3275
    %v3277 = vmax.f32 %v2068, %v3175
    %3278 = vmax.xlane.f32.xlu0 %v3277
    %v3279 = vpop.xlane.xlu0 %3278
    %v3280 = vmax.f32 %v2072, %v3179
    %3281 = vmax.xlane.f32.xlu0 %v3280
    %v3282 = vpop.xlane.xlu0 %3281
    %v3283 = vmax.f32 %v2076, %v3183
    %3284 = vmax.xlane.f32.xlu0 %v3283
    %v3285 = vpop.xlane.xlu0 %3284
    %v3286 = vmax.f32 %v2080, %v3187
    %3287 = vmax.xlane.f32.xlu0 %v3286
    %v3288 = vpop.xlane.xlu0 %3287
    %v3289 = vmax.f32 %v2084, %v3191
    %3290 = vmax.xlane.f32.xlu0 %v3289
    %v3291 = vpop.xlane.xlu0 %3290
    %v3292 = vmax.f32 %v2088, %v3195
    %3293 = vmax.xlane.f32.xlu0 %v3292
    %v3294 = vpop.xlane.xlu0 %3293
    %v3295 = vmax.f32 %v2092, %v3199
    %3296 = vmax.xlane.f32.xlu0 %v3295
    %v3297 = vpop.xlane.xlu0 %3296
    %v3298 = vmax.f32 %v2096, %v3203
    %3299 = vmax.xlane.f32.xlu0 %v3298
    %v3300 = vpop.xlane.xlu0 %3299
    %v3301 = vsub.f32 %v1972, %v3207
    %v3302 = vsub.f32 %v3079, %v3207
    %v3303 = vsub.f32 %v1976, %v3210
    %v3304 = vsub.f32 %v3083, %v3210
    %v3305 = vsub.f32 %v1980, %v3213
    %v3306 = vsub.f32 %v3087, %v3213
    %v3307 = vsub.f32 %v1984, %v3216
    %v3308 = vsub.f32 %v3091, %v3216
    %v3309 = vsub.f32 %v1988, %v3219
    %v3310 = vsub.f32 %v3095, %v3219
    %v3311 = vsub.f32 %v1992, %v3222
    %v3312 = vsub.f32 %v3099, %v3222
    %v3313 = vsub.f32 %v1996, %v3225
    %v3314 = vsub.f32 %v3103, %v3225
    %v3315 = vsub.f32 %v2000, %v3228
    %v3316 = vsub.f32 %v3107, %v3228
    %v3317 = vsub.f32 %v2004, %v3231
    %v3318 = vsub.f32 %v3111, %v3231
    %v3319 = vsub.f32 %v2008, %v3234
    %v3320 = vsub.f32 %v3115, %v3234
    %v3321 = vsub.f32 %v2012, %v3237
    %v3322 = vsub.f32 %v3119, %v3237
    %v3323 = vsub.f32 %v2016, %v3240
    %v3324 = vsub.f32 %v3123, %v3240
    %v3325 = vsub.f32 %v2020, %v3243
    %v3326 = vsub.f32 %v3127, %v3243
    %v3327 = vsub.f32 %v2024, %v3246
    %v3328 = vsub.f32 %v3131, %v3246
    %v3329 = vsub.f32 %v2028, %v3249
    %v3330 = vsub.f32 %v3135, %v3249
    %v3331 = vsub.f32 %v2032, %v3252
    %v3332 = vsub.f32 %v3139, %v3252
    %v3333 = vsub.f32 %v2036, %v3255
    %v3334 = vsub.f32 %v3143, %v3255
    %v3335 = vsub.f32 %v2040, %v3258
    %v3336 = vsub.f32 %v3147, %v3258
    %v3337 = vsub.f32 %v2044, %v3261
    %v3338 = vsub.f32 %v3151, %v3261
    %v3339 = vsub.f32 %v2048, %v3264
    %v3340 = vsub.f32 %v3155, %v3264
    %v3341 = vsub.f32 %v2052, %v3267
    %v3342 = vsub.f32 %v3159, %v3267
    %v3343 = vsub.f32 %v2056, %v3270
    %v3344 = vsub.f32 %v3163, %v3270
    %v3345 = vsub.f32 %v2060, %v3273
    %v3346 = vsub.f32 %v3167, %v3273
    %v3347 = vsub.f32 %v2064, %v3276
    %v3348 = vsub.f32 %v3171, %v3276
    %v3349 = vsub.f32 %v2068, %v3279
    %v3350 = vsub.f32 %v3175, %v3279
    %v3351 = vsub.f32 %v2072, %v3282
    %v3352 = vsub.f32 %v3179, %v3282
    %v3353 = vsub.f32 %v2076, %v3285
    %v3354 = vsub.f32 %v3183, %v3285
    %v3355 = vsub.f32 %v2080, %v3288
    %v3356 = vsub.f32 %v3187, %v3288
    %v3357 = vsub.f32 %v2084, %v3291
    %v3358 = vsub.f32 %v3191, %v3291
    %v3359 = vsub.f32 %v2088, %v3294
    %v3360 = vsub.f32 %v3195, %v3294
    %v3361 = vsub.f32 %v2092, %v3297
    %v3362 = vsub.f32 %v3199, %v3297
    %v3363 = vsub.f32 %v2096, %v3300
    %v3364 = vsub.f32 %v3203, %v3300
    %v3365 = vmul.f32 %v3301, 1.442695
    %v3366 = vpow.pop %v3365
    %v3367 = vmul.f32 %v3302, 1.442695
    %v3368 = vpow.pop %v3367
    %v3369 = vmul.f32 %v3303, 1.442695
    %v3370 = vpow.pop %v3369
    %v3371 = vmul.f32 %v3304, 1.442695
    %v3372 = vpow.pop %v3371
    %v3373 = vmul.f32 %v3305, 1.442695
    %v3374 = vpow.pop %v3373
    %v3375 = vmul.f32 %v3306, 1.442695
    %v3376 = vpow.pop %v3375
    %v3377 = vmul.f32 %v3307, 1.442695
    %v3378 = vpow.pop %v3377
    %v3379 = vmul.f32 %v3308, 1.442695
    %v3380 = vpow.pop %v3379
    %v3381 = vmul.f32 %v3309, 1.442695
    %v3382 = vpow.pop %v3381
    %v3383 = vmul.f32 %v3310, 1.442695
    %v3384 = vpow.pop %v3383
    %v3385 = vmul.f32 %v3311, 1.442695
    %v3386 = vpow.pop %v3385
    %v3387 = vmul.f32 %v3312, 1.442695
    %v3388 = vpow.pop %v3387
    %v3389 = vmul.f32 %v3313, 1.442695
    %v3390 = vpow.pop %v3389
    %v3391 = vmul.f32 %v3314, 1.442695
    %v3392 = vpow.pop %v3391
    %v3393 = vmul.f32 %v3315, 1.442695
    %v3394 = vpow.pop %v3393
    %v3395 = vmul.f32 %v3316, 1.442695
    %v3396 = vpow.pop %v3395
    %v3397 = vmul.f32 %v3317, 1.442695
    %v3398 = vpow.pop %v3397
    %v3399 = vmul.f32 %v3318, 1.442695
    %v3400 = vpow.pop %v3399
    %v3401 = vmul.f32 %v3319, 1.442695
    %v3402 = vpow.pop %v3401
    %v3403 = vmul.f32 %v3320, 1.442695
    %v3404 = vpow.pop %v3403
    %v3405 = vmul.f32 %v3321, 1.442695
    %v3406 = vpow.pop %v3405
    %v3407 = vmul.f32 %v3322, 1.442695
    %v3408 = vpow.pop %v3407
    %v3409 = vmul.f32 %v3323, 1.442695
    %v3410 = vpow.pop %v3409
    %v3411 = vmul.f32 %v3324, 1.442695
    %v3412 = vpow.pop %v3411
    %v3413 = vmul.f32 %v3325, 1.442695
    %v3414 = vpow.pop %v3413
    %v3415 = vmul.f32 %v3326, 1.442695
    %v3416 = vpow.pop %v3415
    %v3417 = vmul.f32 %v3327, 1.442695
    %v3418 = vpow.pop %v3417
    %v3419 = vmul.f32 %v3328, 1.442695
    %v3420 = vpow.pop %v3419
    %v3421 = vmul.f32 %v3329, 1.442695
    %v3422 = vpow.pop %v3421
    %v3423 = vmul.f32 %v3330, 1.442695
    %v3424 = vpow.pop %v3423
    %v3425 = vmul.f32 %v3331, 1.442695
    %v3426 = vpow.pop %v3425
    %v3427 = vmul.f32 %v3332, 1.442695
    %v3428 = vpow.pop %v3427
    %v3429 = vmul.f32 %v3333, 1.442695
    %v3430 = vpow.pop %v3429
    %v3431 = vmul.f32 %v3334, 1.442695
    %v3432 = vpow.pop %v3431
    %v3433 = vmul.f32 %v3335, 1.442695
    %v3434 = vpow.pop %v3433
    %v3435 = vmul.f32 %v3336, 1.442695
    %v3436 = vpow.pop %v3435
    %v3437 = vmul.f32 %v3337, 1.442695
    %v3438 = vpow.pop %v3437
    %v3439 = vmul.f32 %v3338, 1.442695
    %v3440 = vpow.pop %v3439
    %v3441 = vmul.f32 %v3339, 1.442695
    %v3442 = vpow.pop %v3441
    %v3443 = vmul.f32 %v3340, 1.442695
    %v3444 = vpow.pop %v3443
    %v3445 = vmul.f32 %v3341, 1.442695
    %v3446 = vpow.pop %v3445
    %v3447 = vmul.f32 %v3342, 1.442695
    %v3448 = vpow.pop %v3447
    %v3449 = vmul.f32 %v3343, 1.442695
    %v3450 = vpow.pop %v3449
    %v3451 = vmul.f32 %v3344, 1.442695
    %v3452 = vpow.pop %v3451
    %v3453 = vmul.f32 %v3345, 1.442695
    %v3454 = vpow.pop %v3453
    %v3455 = vmul.f32 %v3346, 1.442695
    %v3456 = vpow.pop %v3455
    %v3457 = vmul.f32 %v3347, 1.442695
    %v3458 = vpow.pop %v3457
    %v3459 = vmul.f32 %v3348, 1.442695
    %v3460 = vpow.pop %v3459
    %v3461 = vmul.f32 %v3349, 1.442695
    %v3462 = vpow.pop %v3461
    %v3463 = vmul.f32 %v3350, 1.442695
    %v3464 = vpow.pop %v3463
    %v3465 = vmul.f32 %v3351, 1.442695
    %v3466 = vpow.pop %v3465
    %v3467 = vmul.f32 %v3352, 1.442695
    %v3468 = vpow.pop %v3467
    %v3469 = vmul.f32 %v3353, 1.442695
    %v3470 = vpow.pop %v3469
    %v3471 = vmul.f32 %v3354, 1.442695
    %v3472 = vpow.pop %v3471
    %v3473 = vmul.f32 %v3355, 1.442695
    %v3474 = vpow.pop %v3473
    %v3475 = vmul.f32 %v3356, 1.442695
    %v3476 = vpow.pop %v3475
    %v3477 = vmul.f32 %v3357, 1.442695
    %v3478 = vpow.pop %v3477
    %v3479 = vmul.f32 %v3358, 1.442695
    %v3480 = vpow.pop %v3479
    %v3481 = vmul.f32 %v3359, 1.442695
    %v3482 = vpow.pop %v3481
    %v3483 = vmul.f32 %v3360, 1.442695
    %v3484 = vpow.pop %v3483
    %v3485 = vmul.f32 %v3361, 1.442695
    %v3486 = vpow.pop %v3485
    %v3487 = vmul.f32 %v3362, 1.442695
    %v3488 = vpow.pop %v3487
    %v3489 = vmul.f32 %v3363, 1.442695
    %v3490 = vpow.pop %v3489
    %v3491 = vmul.f32 %v3364, 1.442695
    %v3492 = vpow.pop %v3491
    %v3493 = vand.u32 %v3426, 4294901760
    %3494 = vmatpush.xpose.msra.mxu0 %v3493
    %v3495 = vand.u32 %v3422, 4294901760
    %3496 = vmatpush.xpose.msra.mxu0 %v3495
    %v3497 = vand.u32 %v3418, 4294901760
    %3498 = vmatpush.xpose.msra.mxu0 %v3497
    %v3499 = vand.u32 %v3414, 4294901760
    %3500 = vmatpush.xpose.msra.mxu0 %v3499
    %v3501 = vand.u32 %v3410, 4294901760
    %3502 = vmatpush.xpose.msra.mxu0 %v3501
    %v3503 = vand.u32 %v3406, 4294901760
    %3504 = vmatpush.xpose.msra.mxu0 %v3503
    %v3505 = vand.u32 %v3402, 4294901760
    %3506 = vmatpush.xpose.msra.mxu0 %v3505
    %v3507 = vand.u32 %v3398, 4294901760
    %3508 = vmatpush.xpose.msra.mxu0 %v3507
    %v3509 = vand.u32 %v3394, 4294901760
    %3510 = vmatpush.xpose.msra.mxu0 %v3509
    %v3511 = vand.u32 %v3390, 4294901760
    %3512 = vmatpush.xpose.msra.mxu0 %v3511
    %v3513 = vand.u32 %v3386, 4294901760
    %3514 = vmatpush.xpose.msra.mxu0 %v3513
    %v3515 = vand.u32 %v3382, 4294901760
    %3516 = vmatpush.xpose.msra.mxu0 %v3515
    %v3517 = vand.u32 %v3378, 4294901760
    %3518 = vmatpush.xpose.msra.mxu0 %v3517
    %v3519 = vand.u32 %v3374, 4294901760
    %3520 = vmatpush.xpose.msra.mxu0 %v3519
    %v3521 = vand.u32 %v3370, 4294901760
    %3522 = vmatpush.xpose.msra.mxu0 %v3521
    %v3523 = vand.u32 %v3366, 4294901760
    %3524 = vmatpush.xpose.msra.mxu0 %v3523
    %v3525 = vand.u32 %v620, 4294901760
    %v3526 = vsub.f32 %v620, %v3525
    %v3527 = vand.u32 %v3526, 4294901760
    %v3528 = vsub.f32 %v3526, %v3527
    %v3529 = vand.u32 %v3528, 4294901760
    %3530 = vmatmul.f32.gmra.mxu0 %v3529
    %v3531 = vpop.f32.mrf.mxu0
    %v3532 = vadd.f32 0.0, %v3531
    %3533 = vdwg.mxu0
    %v3534 = vand.u32 %v3426, 4294901760
    %v3535 = vsub.f32 %v3426, %v3534
    %v3536 = vand.u32 %v3535, 4294901760
    %v3537 = vsub.f32 %v3535, %v3536
    %v3538 = vand.u32 %v3537, 4294901760
    %3539 = vmatpush.xpose.msra.mxu0 %v3538
    %v3540 = vand.u32 %v3422, 4294901760
    %v3541 = vsub.f32 %v3422, %v3540
    %v3542 = vand.u32 %v3541, 4294901760
    %v3543 = vsub.f32 %v3541, %v3542
    %v3544 = vand.u32 %v3543, 4294901760
    %3545 = vmatpush.xpose.msra.mxu0 %v3544
    %v3546 = vand.u32 %v3418, 4294901760
    %v3547 = vsub.f32 %v3418, %v3546
    %v3548 = vand.u32 %v3547, 4294901760
    %v3549 = vsub.f32 %v3547, %v3548
    %v3550 = vand.u32 %v3549, 4294901760
    %3551 = vmatpush.xpose.msra.mxu0 %v3550
    %v3552 = vand.u32 %v3414, 4294901760
    %v3553 = vsub.f32 %v3414, %v3552
    %v3554 = vand.u32 %v3553, 4294901760
    %v3555 = vsub.f32 %v3553, %v3554
    %v3556 = vand.u32 %v3555, 4294901760
    %3557 = vmatpush.xpose.msra.mxu0 %v3556
    %v3558 = vand.u32 %v3410, 4294901760
    %v3559 = vsub.f32 %v3410, %v3558
    %v3560 = vand.u32 %v3559, 4294901760
    %v3561 = vsub.f32 %v3559, %v3560
    %v3562 = vand.u32 %v3561, 4294901760
    %3563 = vmatpush.xpose.msra.mxu0 %v3562
    %v3564 = vand.u32 %v3406, 4294901760
    %v3565 = vsub.f32 %v3406, %v3564
    %v3566 = vand.u32 %v3565, 4294901760
    %v3567 = vsub.f32 %v3565, %v3566
    %v3568 = vand.u32 %v3567, 4294901760
    %3569 = vmatpush.xpose.msra.mxu0 %v3568
    %v3570 = vand.u32 %v3402, 4294901760
    %v3571 = vsub.f32 %v3402, %v3570
    %v3572 = vand.u32 %v3571, 4294901760
    %v3573 = vsub.f32 %v3571, %v3572
    %v3574 = vand.u32 %v3573, 4294901760
    %3575 = vmatpush.xpose.msra.mxu0 %v3574
    %v3576 = vand.u32 %v3398, 4294901760
    %v3577 = vsub.f32 %v3398, %v3576
    %v3578 = vand.u32 %v3577, 4294901760
    %v3579 = vsub.f32 %v3577, %v3578
    %v3580 = vand.u32 %v3579, 4294901760
    %3581 = vmatpush.xpose.msra.mxu0 %v3580
    %v3582 = vand.u32 %v3394, 4294901760
    %v3583 = vsub.f32 %v3394, %v3582
    %v3584 = vand.u32 %v3583, 4294901760
    %v3585 = vsub.f32 %v3583, %v3584
    %v3586 = vand.u32 %v3585, 4294901760
    %3587 = vmatpush.xpose.msra.mxu0 %v3586
    %v3588 = vand.u32 %v3390, 4294901760
    %v3589 = vsub.f32 %v3390, %v3588
    %v3590 = vand.u32 %v3589, 4294901760
    %v3591 = vsub.f32 %v3589, %v3590
    %v3592 = vand.u32 %v3591, 4294901760
    %3593 = vmatpush.xpose.msra.mxu0 %v3592
    %v3594 = vand.u32 %v3386, 4294901760
    %v3595 = vsub.f32 %v3386, %v3594
    %v3596 = vand.u32 %v3595, 4294901760
    %v3597 = vsub.f32 %v3595, %v3596
    %v3598 = vand.u32 %v3597, 4294901760
    %3599 = vmatpush.xpose.msra.mxu0 %v3598
    %v3600 = vand.u32 %v3382, 4294901760
    %v3601 = vsub.f32 %v3382, %v3600
    %v3602 = vand.u32 %v3601, 4294901760
    %v3603 = vsub.f32 %v3601, %v3602
    %v3604 = vand.u32 %v3603, 4294901760
    %3605 = vmatpush.xpose.msra.mxu0 %v3604
    %v3606 = vand.u32 %v3378, 4294901760
    %v3607 = vsub.f32 %v3378, %v3606
    %v3608 = vand.u32 %v3607, 4294901760
    %v3609 = vsub.f32 %v3607, %v3608
    %v3610 = vand.u32 %v3609, 4294901760
    %3611 = vmatpush.xpose.msra.mxu0 %v3610
    %v3612 = vand.u32 %v3374, 4294901760
    %v3613 = vsub.f32 %v3374, %v3612
    %v3614 = vand.u32 %v3613, 4294901760
    %v3615 = vsub.f32 %v3613, %v3614
    %v3616 = vand.u32 %v3615, 4294901760
    %3617 = vmatpush.xpose.msra.mxu0 %v3616
    %v3618 = vand.u32 %v3370, 4294901760
    %v3619 = vsub.f32 %v3370, %v3618
    %v3620 = vand.u32 %v3619, 4294901760
    %v3621 = vsub.f32 %v3619, %v3620
    %v3622 = vand.u32 %v3621, 4294901760
    %3623 = vmatpush.xpose.msra.mxu0 %v3622
    %v3624 = vand.u32 %v3366, 4294901760
    %v3625 = vsub.f32 %v3366, %v3624
    %v3626 = vand.u32 %v3625, 4294901760
    %v3627 = vsub.f32 %v3625, %v3626
    %v3628 = vand.u32 %v3627, 4294901760
    %3629 = vmatpush.xpose.msra.mxu0 %v3628
    %v3630 = vand.u32 %v620, 4294901760
    %3631 = vmatmul.f32.gmra.mxu0 %v3630
    %v3632 = vpop.f32.mrf.mxu0
    %v3633 = vadd.f32 %v3532, %v3632
    %3634 = vdwg.mxu0
    %v3635 = vand.u32 %v3426, 4294901760
    %v3636 = vsub.f32 %v3426, %v3635
    %3637 = vmatpush.xpose.msra.mxu0 %v3636
    %v3638 = vand.u32 %v3422, 4294901760
    %v3639 = vsub.f32 %v3422, %v3638
    %3640 = vmatpush.xpose.msra.mxu0 %v3639
    %v3641 = vand.u32 %v3418, 4294901760
    %v3642 = vsub.f32 %v3418, %v3641
    %3643 = vmatpush.xpose.msra.mxu0 %v3642
    %v3644 = vand.u32 %v3414, 4294901760
    %v3645 = vsub.f32 %v3414, %v3644
    %3646 = vmatpush.xpose.msra.mxu0 %v3645
    %v3647 = vand.u32 %v3410, 4294901760
    %v3648 = vsub.f32 %v3410, %v3647
    %3649 = vmatpush.xpose.msra.mxu0 %v3648
    %v3650 = vand.u32 %v3406, 4294901760
    %v3651 = vsub.f32 %v3406, %v3650
    %3652 = vmatpush.xpose.msra.mxu0 %v3651
    %v3653 = vand.u32 %v3402, 4294901760
    %v3654 = vsub.f32 %v3402, %v3653
    %3655 = vmatpush.xpose.msra.mxu0 %v3654
    %v3656 = vand.u32 %v3398, 4294901760
    %v3657 = vsub.f32 %v3398, %v3656
    %3658 = vmatpush.xpose.msra.mxu0 %v3657
    %v3659 = vand.u32 %v3394, 4294901760
    %v3660 = vsub.f32 %v3394, %v3659
    %3661 = vmatpush.xpose.msra.mxu0 %v3660
    %v3662 = vand.u32 %v3390, 4294901760
    %v3663 = vsub.f32 %v3390, %v3662
    %3664 = vmatpush.xpose.msra.mxu0 %v3663
    %v3665 = vand.u32 %v3386, 4294901760
    %v3666 = vsub.f32 %v3386, %v3665
    %3667 = vmatpush.xpose.msra.mxu0 %v3666
    %v3668 = vand.u32 %v3382, 4294901760
    %v3669 = vsub.f32 %v3382, %v3668
    %3670 = vmatpush.xpose.msra.mxu0 %v3669
    %v3671 = vand.u32 %v3378, 4294901760
    %v3672 = vsub.f32 %v3378, %v3671
    %3673 = vmatpush.xpose.msra.mxu0 %v3672
    %v3674 = vand.u32 %v3374, 4294901760
    %v3675 = vsub.f32 %v3374, %v3674
    %3676 = vmatpush.xpose.msra.mxu0 %v3675
    %v3677 = vand.u32 %v3370, 4294901760
    %v3678 = vsub.f32 %v3370, %v3677
    %3679 = vmatpush.xpose.msra.mxu0 %v3678
    %v3680 = vand.u32 %v3366, 4294901760
    %v3681 = vsub.f32 %v3366, %v3680
    %3682 = vmatpush.xpose.msra.mxu0 %v3681
    %v3683 = vand.u32 %v620, 4294901760
    %v3684 = vsub.f32 %v620, %v3683
    %3685 = vmatmul.f32.gmra.mxu0 %v3684
    %v3686 = vpop.f32.mrf.mxu0
    %v3687 = vadd.f32 %v3633, %v3686
    %3688 = vdwg.mxu0
    %v3689 = vand.u32 %v3426, 4294901760
    %3690 = vmatpush.xpose.msra.mxu0 %v3689
    %v3691 = vand.u32 %v3422, 4294901760
    %3692 = vmatpush.xpose.msra.mxu0 %v3691
    %v3693 = vand.u32 %v3418, 4294901760
    %3694 = vmatpush.xpose.msra.mxu0 %v3693
    %v3695 = vand.u32 %v3414, 4294901760
    %3696 = vmatpush.xpose.msra.mxu0 %v3695
    %v3697 = vand.u32 %v3410, 4294901760
    %3698 = vmatpush.xpose.msra.mxu0 %v3697
    %v3699 = vand.u32 %v3406, 4294901760
    %3700 = vmatpush.xpose.msra.mxu0 %v3699
    %v3701 = vand.u32 %v3402, 4294901760
    %3702 = vmatpush.xpose.msra.mxu0 %v3701
    %v3703 = vand.u32 %v3398, 4294901760
    %3704 = vmatpush.xpose.msra.mxu0 %v3703
    %v3705 = vand.u32 %v3394, 4294901760
    %3706 = vmatpush.xpose.msra.mxu0 %v3705
    %v3707 = vand.u32 %v3390, 4294901760
    %3708 = vmatpush.xpose.msra.mxu0 %v3707
    %v3709 = vand.u32 %v3386, 4294901760
    %3710 = vmatpush.xpose.msra.mxu0 %v3709
    %v3711 = vand.u32 %v3382, 4294901760
    %3712 = vmatpush.xpose.msra.mxu0 %v3711
    %v3713 = vand.u32 %v3378, 4294901760
    %3714 = vmatpush.xpose.msra.mxu0 %v3713
    %v3715 = vand.u32 %v3374, 4294901760
    %3716 = vmatpush.xpose.msra.mxu0 %v3715
    %v3717 = vand.u32 %v3370, 4294901760
    %3718 = vmatpush.xpose.msra.mxu0 %v3717
    %v3719 = vand.u32 %v3366, 4294901760
    %3720 = vmatpush.xpose.msra.mxu0 %v3719
    %v3721 = vand.u32 %v620, 4294901760
    %v3722 = vsub.f32 %v620, %v3721
    %v3723 = vand.u32 %v3722, 4294901760
    %3724 = vmatmul.f32.gmra.mxu0 %v3723
    %v3725 = vpop.f32.mrf.mxu0
    %v3726 = vadd.f32 %v3687, %v3725
    %3727 = vdwg.mxu0
    %v3728 = vand.u32 %v3426, 4294901760
    %v3729 = vsub.f32 %v3426, %v3728
    %v3730 = vand.u32 %v3729, 4294901760
    %3731 = vmatpush.xpose.msra.mxu0 %v3730
    %v3732 = vand.u32 %v3422, 4294901760
    %v3733 = vsub.f32 %v3422, %v3732
    %v3734 = vand.u32 %v3733, 4294901760
    %3735 = vmatpush.xpose.msra.mxu0 %v3734
    %v3736 = vand.u32 %v3418, 4294901760
    %v3737 = vsub.f32 %v3418, %v3736
    %v3738 = vand.u32 %v3737, 4294901760
    %3739 = vmatpush.xpose.msra.mxu0 %v3738
    %v3740 = vand.u32 %v3414, 4294901760
    %v3741 = vsub.f32 %v3414, %v3740
    %v3742 = vand.u32 %v3741, 4294901760
    %3743 = vmatpush.xpose.msra.mxu0 %v3742
    %v3744 = vand.u32 %v3410, 4294901760
    %v3745 = vsub.f32 %v3410, %v3744
    %v3746 = vand.u32 %v3745, 4294901760
    %3747 = vmatpush.xpose.msra.mxu0 %v3746
    %v3748 = vand.u32 %v3406, 4294901760
    %v3749 = vsub.f32 %v3406, %v3748
    %v3750 = vand.u32 %v3749, 4294901760
    %3751 = vmatpush.xpose.msra.mxu0 %v3750
    %v3752 = vand.u32 %v3402, 4294901760
    %v3753 = vsub.f32 %v3402, %v3752
    %v3754 = vand.u32 %v3753, 4294901760
    %3755 = vmatpush.xpose.msra.mxu0 %v3754
    %v3756 = vand.u32 %v3398, 4294901760
    %v3757 = vsub.f32 %v3398, %v3756
    %v3758 = vand.u32 %v3757, 4294901760
    %3759 = vmatpush.xpose.msra.mxu0 %v3758
    %v3760 = vand.u32 %v3394, 4294901760
    %v3761 = vsub.f32 %v3394, %v3760
    %v3762 = vand.u32 %v3761, 4294901760
    %3763 = vmatpush.xpose.msra.mxu0 %v3762
    %v3764 = vand.u32 %v3390, 4294901760
    %v3765 = vsub.f32 %v3390, %v3764
    %v3766 = vand.u32 %v3765, 4294901760
    %3767 = vmatpush.xpose.msra.mxu0 %v3766
    %v3768 = vand.u32 %v3386, 4294901760
    %v3769 = vsub.f32 %v3386, %v3768
    %v3770 = vand.u32 %v3769, 4294901760
    %3771 = vmatpush.xpose.msra.mxu0 %v3770
    %v3772 = vand.u32 %v3382, 4294901760
    %v3773 = vsub.f32 %v3382, %v3772
    %v3774 = vand.u32 %v3773, 4294901760
    %3775 = vmatpush.xpose.msra.mxu0 %v3774
    %v3776 = vand.u32 %v3378, 4294901760
    %v3777 = vsub.f32 %v3378, %v3776
    %v3778 = vand.u32 %v3777, 4294901760
    %3779 = vmatpush.xpose.msra.mxu0 %v3778
    %v3780 = vand.u32 %v3374, 4294901760
    %v3781 = vsub.f32 %v3374, %v3780
    %v3782 = vand.u32 %v3781, 4294901760
    %3783 = vmatpush.xpose.msra.mxu0 %v3782
    %v3784 = vand.u32 %v3370, 4294901760
    %v3785 = vsub.f32 %v3370, %v3784
    %v3786 = vand.u32 %v3785, 4294901760
    %3787 = vmatpush.xpose.msra.mxu0 %v3786
    %v3788 = vand.u32 %v3366, 4294901760
    %v3789 = vsub.f32 %v3366, %v3788
    %v3790 = vand.u32 %v3789, 4294901760
    %3791 = vmatpush.xpose.msra.mxu0 %v3790
    %v3792 = vand.u32 %v620, 4294901760
    %3793 = vmatmul.f32.gmra.mxu0 %v3792
    %v3794 = vpop.f32.mrf.mxu0
    %v3795 = vadd.f32 %v3726, %v3794
    %3796 = vdwg.mxu0
    %v3797 = vand.u32 %v3426, 4294901760
    %3798 = vmatpush.xpose.msra.mxu0 %v3797
    %v3799 = vand.u32 %v3422, 4294901760
    %3800 = vmatpush.xpose.msra.mxu0 %v3799
    %v3801 = vand.u32 %v3418, 4294901760
    %3802 = vmatpush.xpose.msra.mxu0 %v3801
    %v3803 = vand.u32 %v3414, 4294901760
    %3804 = vmatpush.xpose.msra.mxu0 %v3803
    %v3805 = vand.u32 %v3410, 4294901760
    %3806 = vmatpush.xpose.msra.mxu0 %v3805
    %v3807 = vand.u32 %v3406, 4294901760
    %3808 = vmatpush.xpose.msra.mxu0 %v3807
    %v3809 = vand.u32 %v3402, 4294901760
    %3810 = vmatpush.xpose.msra.mxu0 %v3809
    %v3811 = vand.u32 %v3398, 4294901760
    %3812 = vmatpush.xpose.msra.mxu0 %v3811
    %v3813 = vand.u32 %v3394, 4294901760
    %3814 = vmatpush.xpose.msra.mxu0 %v3813
    %v3815 = vand.u32 %v3390, 4294901760
    %3816 = vmatpush.xpose.msra.mxu0 %v3815
    %v3817 = vand.u32 %v3386, 4294901760
    %3818 = vmatpush.xpose.msra.mxu0 %v3817
    %v3819 = vand.u32 %v3382, 4294901760
    %3820 = vmatpush.xpose.msra.mxu0 %v3819
    %v3821 = vand.u32 %v3378, 4294901760
    %3822 = vmatpush.xpose.msra.mxu0 %v3821
    %v3823 = vand.u32 %v3374, 4294901760
    %3824 = vmatpush.xpose.msra.mxu0 %v3823
    %v3825 = vand.u32 %v3370, 4294901760
    %3826 = vmatpush.xpose.msra.mxu0 %v3825
    %v3827 = vand.u32 %v3366, 4294901760
    %3828 = vmatpush.xpose.msra.mxu0 %v3827
    %v3829 = vand.u32 %v620, 4294901760
    %3830 = vmatmul.f32.gmra.mxu0 %v3829
    %v3831 = vpop.f32.mrf.mxu0
    %v3832 = vadd.f32 %v3795, %v3831
    %3833 = vdwg.mxu0
    %v3834 = vand.u32 %v3428, 4294901760
    %3835 = vmatpush.xpose.msra.mxu0 %v3834
    %v3836 = vand.u32 %v3424, 4294901760
    %3837 = vmatpush.xpose.msra.mxu0 %v3836
    %v3838 = vand.u32 %v3420, 4294901760
    %3839 = vmatpush.xpose.msra.mxu0 %v3838
    %v3840 = vand.u32 %v3416, 4294901760
    %3841 = vmatpush.xpose.msra.mxu0 %v3840
    %v3842 = vand.u32 %v3412, 4294901760
    %3843 = vmatpush.xpose.msra.mxu0 %v3842
    %v3844 = vand.u32 %v3408, 4294901760
    %3845 = vmatpush.xpose.msra.mxu0 %v3844
    %v3846 = vand.u32 %v3404, 4294901760
    %3847 = vmatpush.xpose.msra.mxu0 %v3846
    %v3848 = vand.u32 %v3400, 4294901760
    %3849 = vmatpush.xpose.msra.mxu0 %v3848
    %v3850 = vand.u32 %v3396, 4294901760
    %3851 = vmatpush.xpose.msra.mxu0 %v3850
    %v3852 = vand.u32 %v3392, 4294901760
    %3853 = vmatpush.xpose.msra.mxu0 %v3852
    %v3854 = vand.u32 %v3388, 4294901760
    %3855 = vmatpush.xpose.msra.mxu0 %v3854
    %v3856 = vand.u32 %v3384, 4294901760
    %3857 = vmatpush.xpose.msra.mxu0 %v3856
    %v3858 = vand.u32 %v3380, 4294901760
    %3859 = vmatpush.xpose.msra.mxu0 %v3858
    %v3860 = vand.u32 %v3376, 4294901760
    %3861 = vmatpush.xpose.msra.mxu0 %v3860
    %v3862 = vand.u32 %v3372, 4294901760
    %3863 = vmatpush.xpose.msra.mxu0 %v3862
    %v3864 = vand.u32 %v3368, 4294901760
    %3865 = vmatpush.xpose.msra.mxu0 %v3864
    %v3866 = vand.u32 %v828, 4294901760
    %v3867 = vsub.f32 %v828, %v3866
    %v3868 = vand.u32 %v3867, 4294901760
    %v3869 = vsub.f32 %v3867, %v3868
    %v3870 = vand.u32 %v3869, 4294901760
    %3871 = vmatmul.f32.gmra.mxu0 %v3870
    %v3872 = vpop.f32.mrf.mxu0
    %v3873 = vadd.f32 %v3832, %v3872
    %3874 = vdwg.mxu0
    %v3875 = vand.u32 %v3428, 4294901760
    %v3876 = vsub.f32 %v3428, %v3875
    %v3877 = vand.u32 %v3876, 4294901760
    %v3878 = vsub.f32 %v3876, %v3877
    %v3879 = vand.u32 %v3878, 4294901760
    %3880 = vmatpush.xpose.msra.mxu0 %v3879
    %v3881 = vand.u32 %v3424, 4294901760
    %v3882 = vsub.f32 %v3424, %v3881
    %v3883 = vand.u32 %v3882, 4294901760
    %v3884 = vsub.f32 %v3882, %v3883
    %v3885 = vand.u32 %v3884, 4294901760
    %3886 = vmatpush.xpose.msra.mxu0 %v3885
    %v3887 = vand.u32 %v3420, 4294901760
    %v3888 = vsub.f32 %v3420, %v3887
    %v3889 = vand.u32 %v3888, 4294901760
    %v3890 = vsub.f32 %v3888, %v3889
    %v3891 = vand.u32 %v3890, 4294901760
    %3892 = vmatpush.xpose.msra.mxu0 %v3891
    %v3893 = vand.u32 %v3416, 4294901760
    %v3894 = vsub.f32 %v3416, %v3893
    %v3895 = vand.u32 %v3894, 4294901760
    %v3896 = vsub.f32 %v3894, %v3895
    %v3897 = vand.u32 %v3896, 4294901760
    %3898 = vmatpush.xpose.msra.mxu0 %v3897
    %v3899 = vand.u32 %v3412, 4294901760
    %v3900 = vsub.f32 %v3412, %v3899
    %v3901 = vand.u32 %v3900, 4294901760
    %v3902 = vsub.f32 %v3900, %v3901
    %v3903 = vand.u32 %v3902, 4294901760
    %3904 = vmatpush.xpose.msra.mxu0 %v3903
    %v3905 = vand.u32 %v3408, 4294901760
    %v3906 = vsub.f32 %v3408, %v3905
    %v3907 = vand.u32 %v3906, 4294901760
    %v3908 = vsub.f32 %v3906, %v3907
    %v3909 = vand.u32 %v3908, 4294901760
    %3910 = vmatpush.xpose.msra.mxu0 %v3909
    %v3911 = vand.u32 %v3404, 4294901760
    %v3912 = vsub.f32 %v3404, %v3911
    %v3913 = vand.u32 %v3912, 4294901760
    %v3914 = vsub.f32 %v3912, %v3913
    %v3915 = vand.u32 %v3914, 4294901760
    %3916 = vmatpush.xpose.msra.mxu0 %v3915
    %v3917 = vand.u32 %v3400, 4294901760
    %v3918 = vsub.f32 %v3400, %v3917
    %v3919 = vand.u32 %v3918, 4294901760
    %v3920 = vsub.f32 %v3918, %v3919
    %v3921 = vand.u32 %v3920, 4294901760
    %3922 = vmatpush.xpose.msra.mxu0 %v3921
    %v3923 = vand.u32 %v3396, 4294901760
    %v3924 = vsub.f32 %v3396, %v3923
    %v3925 = vand.u32 %v3924, 4294901760
    %v3926 = vsub.f32 %v3924, %v3925
    %v3927 = vand.u32 %v3926, 4294901760
    %3928 = vmatpush.xpose.msra.mxu0 %v3927
    %v3929 = vand.u32 %v3392, 4294901760
    %v3930 = vsub.f32 %v3392, %v3929
    %v3931 = vand.u32 %v3930, 4294901760
    %v3932 = vsub.f32 %v3930, %v3931
    %v3933 = vand.u32 %v3932, 4294901760
    %3934 = vmatpush.xpose.msra.mxu0 %v3933
    %v3935 = vand.u32 %v3388, 4294901760
    %v3936 = vsub.f32 %v3388, %v3935
    %v3937 = vand.u32 %v3936, 4294901760
    %v3938 = vsub.f32 %v3936, %v3937
    %v3939 = vand.u32 %v3938, 4294901760
    %3940 = vmatpush.xpose.msra.mxu0 %v3939
    %v3941 = vand.u32 %v3384, 4294901760
    %v3942 = vsub.f32 %v3384, %v3941
    %v3943 = vand.u32 %v3942, 4294901760
    %v3944 = vsub.f32 %v3942, %v3943
    %v3945 = vand.u32 %v3944, 4294901760
    %3946 = vmatpush.xpose.msra.mxu0 %v3945
    %v3947 = vand.u32 %v3380, 4294901760
    %v3948 = vsub.f32 %v3380, %v3947
    %v3949 = vand.u32 %v3948, 4294901760
    %v3950 = vsub.f32 %v3948, %v3949
    %v3951 = vand.u32 %v3950, 4294901760
    %3952 = vmatpush.xpose.msra.mxu0 %v3951
    %v3953 = vand.u32 %v3376, 4294901760
    %v3954 = vsub.f32 %v3376, %v3953
    %v3955 = vand.u32 %v3954, 4294901760
    %v3956 = vsub.f32 %v3954, %v3955
    %v3957 = vand.u32 %v3956, 4294901760
    %3958 = vmatpush.xpose.msra.mxu0 %v3957
    %v3959 = vand.u32 %v3372, 4294901760
    %v3960 = vsub.f32 %v3372, %v3959
    %v3961 = vand.u32 %v3960, 4294901760
    %v3962 = vsub.f32 %v3960, %v3961
    %v3963 = vand.u32 %v3962, 4294901760
    %3964 = vmatpush.xpose.msra.mxu0 %v3963
    %v3965 = vand.u32 %v3368, 4294901760
    %v3966 = vsub.f32 %v3368, %v3965
    %v3967 = vand.u32 %v3966, 4294901760
    %v3968 = vsub.f32 %v3966, %v3967
    %v3969 = vand.u32 %v3968, 4294901760
    %3970 = vmatpush.xpose.msra.mxu0 %v3969
    %v3971 = vand.u32 %v828, 4294901760
    %3972 = vmatmul.f32.gmra.mxu0 %v3971
    %v3973 = vpop.f32.mrf.mxu0
    %v3974 = vadd.f32 %v3873, %v3973
    %3975 = vdwg.mxu0
    %v3976 = vand.u32 %v3428, 4294901760
    %v3977 = vsub.f32 %v3428, %v3976
    %3978 = vmatpush.xpose.msra.mxu0 %v3977
    %v3979 = vand.u32 %v3424, 4294901760
    %v3980 = vsub.f32 %v3424, %v3979
    %3981 = vmatpush.xpose.msra.mxu0 %v3980
    %v3982 = vand.u32 %v3420, 4294901760
    %v3983 = vsub.f32 %v3420, %v3982
    %3984 = vmatpush.xpose.msra.mxu0 %v3983
    %v3985 = vand.u32 %v3416, 4294901760
    %v3986 = vsub.f32 %v3416, %v3985
    %3987 = vmatpush.xpose.msra.mxu0 %v3986
    %v3988 = vand.u32 %v3412, 4294901760
    %v3989 = vsub.f32 %v3412, %v3988
    %3990 = vmatpush.xpose.msra.mxu0 %v3989
    %v3991 = vand.u32 %v3408, 4294901760
    %v3992 = vsub.f32 %v3408, %v3991
    %3993 = vmatpush.xpose.msra.mxu0 %v3992
    %v3994 = vand.u32 %v3404, 4294901760
    %v3995 = vsub.f32 %v3404, %v3994
    %3996 = vmatpush.xpose.msra.mxu0 %v3995
    %v3997 = vand.u32 %v3400, 4294901760
    %v3998 = vsub.f32 %v3400, %v3997
    %3999 = vmatpush.xpose.msra.mxu0 %v3998
    %v4000 = vand.u32 %v3396, 4294901760
    %v4001 = vsub.f32 %v3396, %v4000
    %4002 = vmatpush.xpose.msra.mxu0 %v4001
    %v4003 = vand.u32 %v3392, 4294901760
    %v4004 = vsub.f32 %v3392, %v4003
    %4005 = vmatpush.xpose.msra.mxu0 %v4004
    %v4006 = vand.u32 %v3388, 4294901760
    %v4007 = vsub.f32 %v3388, %v4006
    %4008 = vmatpush.xpose.msra.mxu0 %v4007
    %v4009 = vand.u32 %v3384, 4294901760
    %v4010 = vsub.f32 %v3384, %v4009
    %4011 = vmatpush.xpose.msra.mxu0 %v4010
    %v4012 = vand.u32 %v3380, 4294901760
    %v4013 = vsub.f32 %v3380, %v4012
    %4014 = vmatpush.xpose.msra.mxu0 %v4013
    %v4015 = vand.u32 %v3376, 4294901760
    %v4016 = vsub.f32 %v3376, %v4015
    %4017 = vmatpush.xpose.msra.mxu0 %v4016
    %v4018 = vand.u32 %v3372, 4294901760
    %v4019 = vsub.f32 %v3372, %v4018
    %4020 = vmatpush.xpose.msra.mxu0 %v4019
    %v4021 = vand.u32 %v3368, 4294901760
    %v4022 = vsub.f32 %v3368, %v4021
    %4023 = vmatpush.xpose.msra.mxu0 %v4022
    %v4024 = vand.u32 %v828, 4294901760
    %v4025 = vsub.f32 %v828, %v4024
    %4026 = vmatmul.f32.gmra.mxu0 %v4025
    %v4027 = vpop.f32.mrf.mxu0
    %v4028 = vadd.f32 %v3974, %v4027
    %4029 = vdwg.mxu0
    %v4030 = vand.u32 %v3428, 4294901760
    %4031 = vmatpush.xpose.msra.mxu0 %v4030
    %v4032 = vand.u32 %v3424, 4294901760
    %4033 = vmatpush.xpose.msra.mxu0 %v4032
    %v4034 = vand.u32 %v3420, 4294901760
    %4035 = vmatpush.xpose.msra.mxu0 %v4034
    %v4036 = vand.u32 %v3416, 4294901760
    %4037 = vmatpush.xpose.msra.mxu0 %v4036
    %v4038 = vand.u32 %v3412, 4294901760
    %4039 = vmatpush.xpose.msra.mxu0 %v4038
    %v4040 = vand.u32 %v3408, 4294901760
    %4041 = vmatpush.xpose.msra.mxu0 %v4040
    %v4042 = vand.u32 %v3404, 4294901760
    %4043 = vmatpush.xpose.msra.mxu0 %v4042
    %v4044 = vand.u32 %v3400, 4294901760
    %4045 = vmatpush.xpose.msra.mxu0 %v4044
    %v4046 = vand.u32 %v3396, 4294901760
    %4047 = vmatpush.xpose.msra.mxu0 %v4046
    %v4048 = vand.u32 %v3392, 4294901760
    %4049 = vmatpush.xpose.msra.mxu0 %v4048
    %v4050 = vand.u32 %v3388, 4294901760
    %4051 = vmatpush.xpose.msra.mxu0 %v4050
    %v4052 = vand.u32 %v3384, 4294901760
    %4053 = vmatpush.xpose.msra.mxu0 %v4052
    %v4054 = vand.u32 %v3380, 4294901760
    %4055 = vmatpush.xpose.msra.mxu0 %v4054
    %v4056 = vand.u32 %v3376, 4294901760
    %4057 = vmatpush.xpose.msra.mxu0 %v4056
    %v4058 = vand.u32 %v3372, 4294901760
    %4059 = vmatpush.xpose.msra.mxu0 %v4058
    %v4060 = vand.u32 %v3368, 4294901760
    %4061 = vmatpush.xpose.msra.mxu0 %v4060
    %v4062 = vand.u32 %v828, 4294901760
    %v4063 = vsub.f32 %v828, %v4062
    %v4064 = vand.u32 %v4063, 4294901760
    %4065 = vmatmul.f32.gmra.mxu0 %v4064
    %v4066 = vpop.f32.mrf.mxu0
    %v4067 = vadd.f32 %v4028, %v4066
    %4068 = vdwg.mxu0
    %v4069 = vand.u32 %v3428, 4294901760
    %v4070 = vsub.f32 %v3428, %v4069
    %v4071 = vand.u32 %v4070, 4294901760
    %4072 = vmatpush.xpose.msra.mxu0 %v4071
    %v4073 = vand.u32 %v3424, 4294901760
    %v4074 = vsub.f32 %v3424, %v4073
    %v4075 = vand.u32 %v4074, 4294901760
    %4076 = vmatpush.xpose.msra.mxu0 %v4075
    %v4077 = vand.u32 %v3420, 4294901760
    %v4078 = vsub.f32 %v3420, %v4077
    %v4079 = vand.u32 %v4078, 4294901760
    %4080 = vmatpush.xpose.msra.mxu0 %v4079
    %v4081 = vand.u32 %v3416, 4294901760
    %v4082 = vsub.f32 %v3416, %v4081
    %v4083 = vand.u32 %v4082, 4294901760
    %4084 = vmatpush.xpose.msra.mxu0 %v4083
    %v4085 = vand.u32 %v3412, 4294901760
    %v4086 = vsub.f32 %v3412, %v4085
    %v4087 = vand.u32 %v4086, 4294901760
    %4088 = vmatpush.xpose.msra.mxu0 %v4087
    %v4089 = vand.u32 %v3408, 4294901760
    %v4090 = vsub.f32 %v3408, %v4089
    %v4091 = vand.u32 %v4090, 4294901760
    %4092 = vmatpush.xpose.msra.mxu0 %v4091
    %v4093 = vand.u32 %v3404, 4294901760
    %v4094 = vsub.f32 %v3404, %v4093
    %v4095 = vand.u32 %v4094, 4294901760
    %4096 = vmatpush.xpose.msra.mxu0 %v4095
    %v4097 = vand.u32 %v3400, 4294901760
    %v4098 = vsub.f32 %v3400, %v4097
    %v4099 = vand.u32 %v4098, 4294901760
    %4100 = vmatpush.xpose.msra.mxu0 %v4099
    %v4101 = vand.u32 %v3396, 4294901760
    %v4102 = vsub.f32 %v3396, %v4101
    %v4103 = vand.u32 %v4102, 4294901760
    %4104 = vmatpush.xpose.msra.mxu0 %v4103
    %v4105 = vand.u32 %v3392, 4294901760
    %v4106 = vsub.f32 %v3392, %v4105
    %v4107 = vand.u32 %v4106, 4294901760
    %4108 = vmatpush.xpose.msra.mxu0 %v4107
    %v4109 = vand.u32 %v3388, 4294901760
    %v4110 = vsub.f32 %v3388, %v4109
    %v4111 = vand.u32 %v4110, 4294901760
    %4112 = vmatpush.xpose.msra.mxu0 %v4111
    %v4113 = vand.u32 %v3384, 4294901760
    %v4114 = vsub.f32 %v3384, %v4113
    %v4115 = vand.u32 %v4114, 4294901760
    %4116 = vmatpush.xpose.msra.mxu0 %v4115
    %v4117 = vand.u32 %v3380, 4294901760
    %v4118 = vsub.f32 %v3380, %v4117
    %v4119 = vand.u32 %v4118, 4294901760
    %4120 = vmatpush.xpose.msra.mxu0 %v4119
    %v4121 = vand.u32 %v3376, 4294901760
    %v4122 = vsub.f32 %v3376, %v4121
    %v4123 = vand.u32 %v4122, 4294901760
    %4124 = vmatpush.xpose.msra.mxu0 %v4123
    %v4125 = vand.u32 %v3372, 4294901760
    %v4126 = vsub.f32 %v3372, %v4125
    %v4127 = vand.u32 %v4126, 4294901760
    %4128 = vmatpush.xpose.msra.mxu0 %v4127
    %v4129 = vand.u32 %v3368, 4294901760
    %v4130 = vsub.f32 %v3368, %v4129
    %v4131 = vand.u32 %v4130, 4294901760
    %4132 = vmatpush.xpose.msra.mxu0 %v4131
    %v4133 = vand.u32 %v828, 4294901760
    %4134 = vmatmul.f32.gmra.mxu0 %v4133
    %v4135 = vpop.f32.mrf.mxu0
    %v4136 = vadd.f32 %v4067, %v4135
    %4137 = vdwg.mxu0
    %v4138 = vand.u32 %v3428, 4294901760
    %4139 = vmatpush.xpose.msra.mxu0 %v4138
    %v4140 = vand.u32 %v3424, 4294901760
    %4141 = vmatpush.xpose.msra.mxu0 %v4140
    %v4142 = vand.u32 %v3420, 4294901760
    %4143 = vmatpush.xpose.msra.mxu0 %v4142
    %v4144 = vand.u32 %v3416, 4294901760
    %4145 = vmatpush.xpose.msra.mxu0 %v4144
    %v4146 = vand.u32 %v3412, 4294901760
    %4147 = vmatpush.xpose.msra.mxu0 %v4146
    %v4148 = vand.u32 %v3408, 4294901760
    %4149 = vmatpush.xpose.msra.mxu0 %v4148
    %v4150 = vand.u32 %v3404, 4294901760
    %4151 = vmatpush.xpose.msra.mxu0 %v4150
    %v4152 = vand.u32 %v3400, 4294901760
    %4153 = vmatpush.xpose.msra.mxu0 %v4152
    %v4154 = vand.u32 %v3396, 4294901760
    %4155 = vmatpush.xpose.msra.mxu0 %v4154
    %v4156 = vand.u32 %v3392, 4294901760
    %4157 = vmatpush.xpose.msra.mxu0 %v4156
    %v4158 = vand.u32 %v3388, 4294901760
    %4159 = vmatpush.xpose.msra.mxu0 %v4158
    %v4160 = vand.u32 %v3384, 4294901760
    %4161 = vmatpush.xpose.msra.mxu0 %v4160
    %v4162 = vand.u32 %v3380, 4294901760
    %4163 = vmatpush.xpose.msra.mxu0 %v4162
    %v4164 = vand.u32 %v3376, 4294901760
    %4165 = vmatpush.xpose.msra.mxu0 %v4164
    %v4166 = vand.u32 %v3372, 4294901760
    %4167 = vmatpush.xpose.msra.mxu0 %v4166
    %v4168 = vand.u32 %v3368, 4294901760
    %4169 = vmatpush.xpose.msra.mxu0 %v4168
    %v4170 = vand.u32 %v828, 4294901760
    %4171 = vmatmul.f32.gmra.mxu0 %v4170
    %v4172 = vpop.f32.mrf.mxu0
    %v4173 = vadd.f32 %v4136, %v4172
    %4174 = vdwg.mxu0
    %v4175 = vand.u32 %v3490, 4294901760
    %4176 = vmatpush.xpose.msra.mxu0 %v4175
    %v4177 = vand.u32 %v3486, 4294901760
    %4178 = vmatpush.xpose.msra.mxu0 %v4177
    %v4179 = vand.u32 %v3482, 4294901760
    %4180 = vmatpush.xpose.msra.mxu0 %v4179
    %v4181 = vand.u32 %v3478, 4294901760
    %4182 = vmatpush.xpose.msra.mxu0 %v4181
    %v4183 = vand.u32 %v3474, 4294901760
    %4184 = vmatpush.xpose.msra.mxu0 %v4183
    %v4185 = vand.u32 %v3470, 4294901760
    %4186 = vmatpush.xpose.msra.mxu0 %v4185
    %v4187 = vand.u32 %v3466, 4294901760
    %4188 = vmatpush.xpose.msra.mxu0 %v4187
    %v4189 = vand.u32 %v3462, 4294901760
    %4190 = vmatpush.xpose.msra.mxu0 %v4189
    %v4191 = vand.u32 %v3458, 4294901760
    %4192 = vmatpush.xpose.msra.mxu0 %v4191
    %v4193 = vand.u32 %v3454, 4294901760
    %4194 = vmatpush.xpose.msra.mxu0 %v4193
    %v4195 = vand.u32 %v3450, 4294901760
    %4196 = vmatpush.xpose.msra.mxu0 %v4195
    %v4197 = vand.u32 %v3446, 4294901760
    %4198 = vmatpush.xpose.msra.mxu0 %v4197
    %v4199 = vand.u32 %v3442, 4294901760
    %4200 = vmatpush.xpose.msra.mxu0 %v4199
    %v4201 = vand.u32 %v3438, 4294901760
    %4202 = vmatpush.xpose.msra.mxu0 %v4201
    %v4203 = vand.u32 %v3434, 4294901760
    %4204 = vmatpush.xpose.msra.mxu0 %v4203
    %v4205 = vand.u32 %v3430, 4294901760
    %4206 = vmatpush.xpose.msra.mxu0 %v4205
    %v4207 = vand.u32 %v620, 4294901760
    %v4208 = vsub.f32 %v620, %v4207
    %v4209 = vand.u32 %v4208, 4294901760
    %v4210 = vsub.f32 %v4208, %v4209
    %v4211 = vand.u32 %v4210, 4294901760
    %4212 = vmatmul.f32.gmra.mxu0 %v4211
    %v4213 = vpop.f32.mrf.mxu0
    %v4214 = vadd.f32 0.0, %v4213
    %4215 = vdwg.mxu0
    %v4216 = vand.u32 %v3490, 4294901760
    %v4217 = vsub.f32 %v3490, %v4216
    %v4218 = vand.u32 %v4217, 4294901760
    %v4219 = vsub.f32 %v4217, %v4218
    %v4220 = vand.u32 %v4219, 4294901760
    %4221 = vmatpush.xpose.msra.mxu0 %v4220
    %v4222 = vand.u32 %v3486, 4294901760
    %v4223 = vsub.f32 %v3486, %v4222
    %v4224 = vand.u32 %v4223, 4294901760
    %v4225 = vsub.f32 %v4223, %v4224
    %v4226 = vand.u32 %v4225, 4294901760
    %4227 = vmatpush.xpose.msra.mxu0 %v4226
    %v4228 = vand.u32 %v3482, 4294901760
    %v4229 = vsub.f32 %v3482, %v4228
    %v4230 = vand.u32 %v4229, 4294901760
    %v4231 = vsub.f32 %v4229, %v4230
    %v4232 = vand.u32 %v4231, 4294901760
    %4233 = vmatpush.xpose.msra.mxu0 %v4232
    %v4234 = vand.u32 %v3478, 4294901760
    %v4235 = vsub.f32 %v3478, %v4234
    %v4236 = vand.u32 %v4235, 4294901760
    %v4237 = vsub.f32 %v4235, %v4236
    %v4238 = vand.u32 %v4237, 4294901760
    %4239 = vmatpush.xpose.msra.mxu0 %v4238
    %v4240 = vand.u32 %v3474, 4294901760
    %v4241 = vsub.f32 %v3474, %v4240
    %v4242 = vand.u32 %v4241, 4294901760
    %v4243 = vsub.f32 %v4241, %v4242
    %v4244 = vand.u32 %v4243, 4294901760
    %4245 = vmatpush.xpose.msra.mxu0 %v4244
    %v4246 = vand.u32 %v3470, 4294901760
    %v4247 = vsub.f32 %v3470, %v4246
    %v4248 = vand.u32 %v4247, 4294901760
    %v4249 = vsub.f32 %v4247, %v4248
    %v4250 = vand.u32 %v4249, 4294901760
    %4251 = vmatpush.xpose.msra.mxu0 %v4250
    %v4252 = vand.u32 %v3466, 4294901760
    %v4253 = vsub.f32 %v3466, %v4252
    %v4254 = vand.u32 %v4253, 4294901760
    %v4255 = vsub.f32 %v4253, %v4254
    %v4256 = vand.u32 %v4255, 4294901760
    %4257 = vmatpush.xpose.msra.mxu0 %v4256
    %v4258 = vand.u32 %v3462, 4294901760
    %v4259 = vsub.f32 %v3462, %v4258
    %v4260 = vand.u32 %v4259, 4294901760
    %v4261 = vsub.f32 %v4259, %v4260
    %v4262 = vand.u32 %v4261, 4294901760
    %4263 = vmatpush.xpose.msra.mxu0 %v4262
    %v4264 = vand.u32 %v3458, 4294901760
    %v4265 = vsub.f32 %v3458, %v4264
    %v4266 = vand.u32 %v4265, 4294901760
    %v4267 = vsub.f32 %v4265, %v4266
    %v4268 = vand.u32 %v4267, 4294901760
    %4269 = vmatpush.xpose.msra.mxu0 %v4268
    %v4270 = vand.u32 %v3454, 4294901760
    %v4271 = vsub.f32 %v3454, %v4270
    %v4272 = vand.u32 %v4271, 4294901760
    %v4273 = vsub.f32 %v4271, %v4272
    %v4274 = vand.u32 %v4273, 4294901760
    %4275 = vmatpush.xpose.msra.mxu0 %v4274
    %v4276 = vand.u32 %v3450, 4294901760
    %v4277 = vsub.f32 %v3450, %v4276
    %v4278 = vand.u32 %v4277, 4294901760
    %v4279 = vsub.f32 %v4277, %v4278
    %v4280 = vand.u32 %v4279, 4294901760
    %4281 = vmatpush.xpose.msra.mxu0 %v4280
    %v4282 = vand.u32 %v3446, 4294901760
    %v4283 = vsub.f32 %v3446, %v4282
    %v4284 = vand.u32 %v4283, 4294901760
    %v4285 = vsub.f32 %v4283, %v4284
    %v4286 = vand.u32 %v4285, 4294901760
    %4287 = vmatpush.xpose.msra.mxu0 %v4286
    %v4288 = vand.u32 %v3442, 4294901760
    %v4289 = vsub.f32 %v3442, %v4288
    %v4290 = vand.u32 %v4289, 4294901760
    %v4291 = vsub.f32 %v4289, %v4290
    %v4292 = vand.u32 %v4291, 4294901760
    %4293 = vmatpush.xpose.msra.mxu0 %v4292
    %v4294 = vand.u32 %v3438, 4294901760
    %v4295 = vsub.f32 %v3438, %v4294
    %v4296 = vand.u32 %v4295, 4294901760
    %v4297 = vsub.f32 %v4295, %v4296
    %v4298 = vand.u32 %v4297, 4294901760
    %4299 = vmatpush.xpose.msra.mxu0 %v4298
    %v4300 = vand.u32 %v3434, 4294901760
    %v4301 = vsub.f32 %v3434, %v4300
    %v4302 = vand.u32 %v4301, 4294901760
    %v4303 = vsub.f32 %v4301, %v4302
    %v4304 = vand.u32 %v4303, 4294901760
    %4305 = vmatpush.xpose.msra.mxu0 %v4304
    %v4306 = vand.u32 %v3430, 4294901760
    %v4307 = vsub.f32 %v3430, %v4306
    %v4308 = vand.u32 %v4307, 4294901760
    %v4309 = vsub.f32 %v4307, %v4308
    %v4310 = vand.u32 %v4309, 4294901760
    %4311 = vmatpush.xpose.msra.mxu0 %v4310
    %v4312 = vand.u32 %v620, 4294901760
    %4313 = vmatmul.f32.gmra.mxu0 %v4312
    %v4314 = vpop.f32.mrf.mxu0
    %v4315 = vadd.f32 %v4214, %v4314
    %4316 = vdwg.mxu0
    %v4317 = vand.u32 %v3490, 4294901760
    %v4318 = vsub.f32 %v3490, %v4317
    %4319 = vmatpush.xpose.msra.mxu0 %v4318
    %v4320 = vand.u32 %v3486, 4294901760
    %v4321 = vsub.f32 %v3486, %v4320
    %4322 = vmatpush.xpose.msra.mxu0 %v4321
    %v4323 = vand.u32 %v3482, 4294901760
    %v4324 = vsub.f32 %v3482, %v4323
    %4325 = vmatpush.xpose.msra.mxu0 %v4324
    %v4326 = vand.u32 %v3478, 4294901760
    %v4327 = vsub.f32 %v3478, %v4326
    %4328 = vmatpush.xpose.msra.mxu0 %v4327
    %v4329 = vand.u32 %v3474, 4294901760
    %v4330 = vsub.f32 %v3474, %v4329
    %4331 = vmatpush.xpose.msra.mxu0 %v4330
    %v4332 = vand.u32 %v3470, 4294901760
    %v4333 = vsub.f32 %v3470, %v4332
    %4334 = vmatpush.xpose.msra.mxu0 %v4333
    %v4335 = vand.u32 %v3466, 4294901760
    %v4336 = vsub.f32 %v3466, %v4335
    %4337 = vmatpush.xpose.msra.mxu0 %v4336
    %v4338 = vand.u32 %v3462, 4294901760
    %v4339 = vsub.f32 %v3462, %v4338
    %4340 = vmatpush.xpose.msra.mxu0 %v4339
    %v4341 = vand.u32 %v3458, 4294901760
    %v4342 = vsub.f32 %v3458, %v4341
    %4343 = vmatpush.xpose.msra.mxu0 %v4342
    %v4344 = vand.u32 %v3454, 4294901760
    %v4345 = vsub.f32 %v3454, %v4344
    %4346 = vmatpush.xpose.msra.mxu0 %v4345
    %v4347 = vand.u32 %v3450, 4294901760
    %v4348 = vsub.f32 %v3450, %v4347
    %4349 = vmatpush.xpose.msra.mxu0 %v4348
    %v4350 = vand.u32 %v3446, 4294901760
    %v4351 = vsub.f32 %v3446, %v4350
    %4352 = vmatpush.xpose.msra.mxu0 %v4351
    %v4353 = vand.u32 %v3442, 4294901760
    %v4354 = vsub.f32 %v3442, %v4353
    %4355 = vmatpush.xpose.msra.mxu0 %v4354
    %v4356 = vand.u32 %v3438, 4294901760
    %v4357 = vsub.f32 %v3438, %v4356
    %4358 = vmatpush.xpose.msra.mxu0 %v4357
    %v4359 = vand.u32 %v3434, 4294901760
    %v4360 = vsub.f32 %v3434, %v4359
    %4361 = vmatpush.xpose.msra.mxu0 %v4360
    %v4362 = vand.u32 %v3430, 4294901760
    %v4363 = vsub.f32 %v3430, %v4362
    %4364 = vmatpush.xpose.msra.mxu0 %v4363
    %v4365 = vand.u32 %v620, 4294901760
    %v4366 = vsub.f32 %v620, %v4365
    %4367 = vmatmul.f32.gmra.mxu0 %v4366
    %v4368 = vpop.f32.mrf.mxu0
    %v4369 = vadd.f32 %v4315, %v4368
    %4370 = vdwg.mxu0
    %v4371 = vand.u32 %v3490, 4294901760
    %4372 = vmatpush.xpose.msra.mxu0 %v4371
    %v4373 = vand.u32 %v3486, 4294901760
    %4374 = vmatpush.xpose.msra.mxu0 %v4373
    %v4375 = vand.u32 %v3482, 4294901760
    %4376 = vmatpush.xpose.msra.mxu0 %v4375
    %v4377 = vand.u32 %v3478, 4294901760
    %4378 = vmatpush.xpose.msra.mxu0 %v4377
    %v4379 = vand.u32 %v3474, 4294901760
    %4380 = vmatpush.xpose.msra.mxu0 %v4379
    %v4381 = vand.u32 %v3470, 4294901760
    %4382 = vmatpush.xpose.msra.mxu0 %v4381
    %v4383 = vand.u32 %v3466, 4294901760
    %4384 = vmatpush.xpose.msra.mxu0 %v4383
    %v4385 = vand.u32 %v3462, 4294901760
    %4386 = vmatpush.xpose.msra.mxu0 %v4385
    %v4387 = vand.u32 %v3458, 4294901760
    %4388 = vmatpush.xpose.msra.mxu0 %v4387
    %v4389 = vand.u32 %v3454, 4294901760
    %4390 = vmatpush.xpose.msra.mxu0 %v4389
    %v4391 = vand.u32 %v3450, 4294901760
    %4392 = vmatpush.xpose.msra.mxu0 %v4391
    %v4393 = vand.u32 %v3446, 4294901760
    %4394 = vmatpush.xpose.msra.mxu0 %v4393
    %v4395 = vand.u32 %v3442, 4294901760
    %4396 = vmatpush.xpose.msra.mxu0 %v4395
    %v4397 = vand.u32 %v3438, 4294901760
    %4398 = vmatpush.xpose.msra.mxu0 %v4397
    %v4399 = vand.u32 %v3434, 4294901760
    %4400 = vmatpush.xpose.msra.mxu0 %v4399
    %v4401 = vand.u32 %v3430, 4294901760
    %4402 = vmatpush.xpose.msra.mxu0 %v4401
    %v4403 = vand.u32 %v620, 4294901760
    %v4404 = vsub.f32 %v620, %v4403
    %v4405 = vand.u32 %v4404, 4294901760
    %4406 = vmatmul.f32.gmra.mxu0 %v4405
    %v4407 = vpop.f32.mrf.mxu0
    %v4408 = vadd.f32 %v4369, %v4407
    %4409 = vdwg.mxu0
    %v4410 = vand.u32 %v3490, 4294901760
    %v4411 = vsub.f32 %v3490, %v4410
    %v4412 = vand.u32 %v4411, 4294901760
    %4413 = vmatpush.xpose.msra.mxu0 %v4412
    %v4414 = vand.u32 %v3486, 4294901760
    %v4415 = vsub.f32 %v3486, %v4414
    %v4416 = vand.u32 %v4415, 4294901760
    %4417 = vmatpush.xpose.msra.mxu0 %v4416
    %v4418 = vand.u32 %v3482, 4294901760
    %v4419 = vsub.f32 %v3482, %v4418
    %v4420 = vand.u32 %v4419, 4294901760
    %4421 = vmatpush.xpose.msra.mxu0 %v4420
    %v4422 = vand.u32 %v3478, 4294901760
    %v4423 = vsub.f32 %v3478, %v4422
    %v4424 = vand.u32 %v4423, 4294901760
    %4425 = vmatpush.xpose.msra.mxu0 %v4424
    %v4426 = vand.u32 %v3474, 4294901760
    %v4427 = vsub.f32 %v3474, %v4426
    %v4428 = vand.u32 %v4427, 4294901760
    %4429 = vmatpush.xpose.msra.mxu0 %v4428
    %v4430 = vand.u32 %v3470, 4294901760
    %v4431 = vsub.f32 %v3470, %v4430
    %v4432 = vand.u32 %v4431, 4294901760
    %4433 = vmatpush.xpose.msra.mxu0 %v4432
    %v4434 = vand.u32 %v3466, 4294901760
    %v4435 = vsub.f32 %v3466, %v4434
    %v4436 = vand.u32 %v4435, 4294901760
    %4437 = vmatpush.xpose.msra.mxu0 %v4436
    %v4438 = vand.u32 %v3462, 4294901760
    %v4439 = vsub.f32 %v3462, %v4438
    %v4440 = vand.u32 %v4439, 4294901760
    %4441 = vmatpush.xpose.msra.mxu0 %v4440
    %v4442 = vand.u32 %v3458, 4294901760
    %v4443 = vsub.f32 %v3458, %v4442
    %v4444 = vand.u32 %v4443, 4294901760
    %4445 = vmatpush.xpose.msra.mxu0 %v4444
    %v4446 = vand.u32 %v3454, 4294901760
    %v4447 = vsub.f32 %v3454, %v4446
    %v4448 = vand.u32 %v4447, 4294901760
    %4449 = vmatpush.xpose.msra.mxu0 %v4448
    %v4450 = vand.u32 %v3450, 4294901760
    %v4451 = vsub.f32 %v3450, %v4450
    %v4452 = vand.u32 %v4451, 4294901760
    %4453 = vmatpush.xpose.msra.mxu0 %v4452
    %v4454 = vand.u32 %v3446, 4294901760
    %v4455 = vsub.f32 %v3446, %v4454
    %v4456 = vand.u32 %v4455, 4294901760
    %4457 = vmatpush.xpose.msra.mxu0 %v4456
    %v4458 = vand.u32 %v3442, 4294901760
    %v4459 = vsub.f32 %v3442, %v4458
    %v4460 = vand.u32 %v4459, 4294901760
    %4461 = vmatpush.xpose.msra.mxu0 %v4460
    %v4462 = vand.u32 %v3438, 4294901760
    %v4463 = vsub.f32 %v3438, %v4462
    %v4464 = vand.u32 %v4463, 4294901760
    %4465 = vmatpush.xpose.msra.mxu0 %v4464
    %v4466 = vand.u32 %v3434, 4294901760
    %v4467 = vsub.f32 %v3434, %v4466
    %v4468 = vand.u32 %v4467, 4294901760
    %4469 = vmatpush.xpose.msra.mxu0 %v4468
    %v4470 = vand.u32 %v3430, 4294901760
    %v4471 = vsub.f32 %v3430, %v4470
    %v4472 = vand.u32 %v4471, 4294901760
    %4473 = vmatpush.xpose.msra.mxu0 %v4472
    %v4474 = vand.u32 %v620, 4294901760
    %4475 = vmatmul.f32.gmra.mxu0 %v4474
    %v4476 = vpop.f32.mrf.mxu0
    %v4477 = vadd.f32 %v4408, %v4476
    %4478 = vdwg.mxu0
    %v4479 = vand.u32 %v3490, 4294901760
    %4480 = vmatpush.xpose.msra.mxu0 %v4479
    %v4481 = vand.u32 %v3486, 4294901760
    %4482 = vmatpush.xpose.msra.mxu0 %v4481
    %v4483 = vand.u32 %v3482, 4294901760
    %4484 = vmatpush.xpose.msra.mxu0 %v4483
    %v4485 = vand.u32 %v3478, 4294901760
    %4486 = vmatpush.xpose.msra.mxu0 %v4485
    %v4487 = vand.u32 %v3474, 4294901760
    %4488 = vmatpush.xpose.msra.mxu0 %v4487
    %v4489 = vand.u32 %v3470, 4294901760
    %4490 = vmatpush.xpose.msra.mxu0 %v4489
    %v4491 = vand.u32 %v3466, 4294901760
    %4492 = vmatpush.xpose.msra.mxu0 %v4491
    %v4493 = vand.u32 %v3462, 4294901760
    %4494 = vmatpush.xpose.msra.mxu0 %v4493
    %v4495 = vand.u32 %v3458, 4294901760
    %4496 = vmatpush.xpose.msra.mxu0 %v4495
    %v4497 = vand.u32 %v3454, 4294901760
    %4498 = vmatpush.xpose.msra.mxu0 %v4497
    %v4499 = vand.u32 %v3450, 4294901760
    %4500 = vmatpush.xpose.msra.mxu0 %v4499
    %v4501 = vand.u32 %v3446, 4294901760
    %4502 = vmatpush.xpose.msra.mxu0 %v4501
    %v4503 = vand.u32 %v3442, 4294901760
    %4504 = vmatpush.xpose.msra.mxu0 %v4503
    %v4505 = vand.u32 %v3438, 4294901760
    %4506 = vmatpush.xpose.msra.mxu0 %v4505
    %v4507 = vand.u32 %v3434, 4294901760
    %4508 = vmatpush.xpose.msra.mxu0 %v4507
    %v4509 = vand.u32 %v3430, 4294901760
    %4510 = vmatpush.xpose.msra.mxu0 %v4509
    %v4511 = vand.u32 %v620, 4294901760
    %4512 = vmatmul.f32.gmra.mxu0 %v4511
    %v4513 = vpop.f32.mrf.mxu0
    %v4514 = vadd.f32 %v4477, %v4513
    %4515 = vdwg.mxu0
    %v4516 = vand.u32 %v3492, 4294901760
    %4517 = vmatpush.xpose.msra.mxu0 %v4516
    %v4518 = vand.u32 %v3488, 4294901760
    %4519 = vmatpush.xpose.msra.mxu0 %v4518
    %v4520 = vand.u32 %v3484, 4294901760
    %4521 = vmatpush.xpose.msra.mxu0 %v4520
    %v4522 = vand.u32 %v3480, 4294901760
    %4523 = vmatpush.xpose.msra.mxu0 %v4522
    %v4524 = vand.u32 %v3476, 4294901760
    %4525 = vmatpush.xpose.msra.mxu0 %v4524
    %v4526 = vand.u32 %v3472, 4294901760
    %4527 = vmatpush.xpose.msra.mxu0 %v4526
    %v4528 = vand.u32 %v3468, 4294901760
    %4529 = vmatpush.xpose.msra.mxu0 %v4528
    %v4530 = vand.u32 %v3464, 4294901760
    %4531 = vmatpush.xpose.msra.mxu0 %v4530
    %v4532 = vand.u32 %v3460, 4294901760
    %4533 = vmatpush.xpose.msra.mxu0 %v4532
    %v4534 = vand.u32 %v3456, 4294901760
    %4535 = vmatpush.xpose.msra.mxu0 %v4534
    %v4536 = vand.u32 %v3452, 4294901760
    %4537 = vmatpush.xpose.msra.mxu0 %v4536
    %v4538 = vand.u32 %v3448, 4294901760
    %4539 = vmatpush.xpose.msra.mxu0 %v4538
    %v4540 = vand.u32 %v3444, 4294901760
    %4541 = vmatpush.xpose.msra.mxu0 %v4540
    %v4542 = vand.u32 %v3440, 4294901760
    %4543 = vmatpush.xpose.msra.mxu0 %v4542
    %v4544 = vand.u32 %v3436, 4294901760
    %4545 = vmatpush.xpose.msra.mxu0 %v4544
    %v4546 = vand.u32 %v3432, 4294901760
    %4547 = vmatpush.xpose.msra.mxu0 %v4546
    %v4548 = vand.u32 %v828, 4294901760
    %v4549 = vsub.f32 %v828, %v4548
    %v4550 = vand.u32 %v4549, 4294901760
    %v4551 = vsub.f32 %v4549, %v4550
    %v4552 = vand.u32 %v4551, 4294901760
    %4553 = vmatmul.f32.gmra.mxu0 %v4552
    %v4554 = vpop.f32.mrf.mxu0
    %v4555 = vadd.f32 %v4514, %v4554
    %4556 = vdwg.mxu0
    %v4557 = vand.u32 %v3492, 4294901760
    %v4558 = vsub.f32 %v3492, %v4557
    %v4559 = vand.u32 %v4558, 4294901760
    %v4560 = vsub.f32 %v4558, %v4559
    %v4561 = vand.u32 %v4560, 4294901760
    %4562 = vmatpush.xpose.msra.mxu0 %v4561
    %v4563 = vand.u32 %v3488, 4294901760
    %v4564 = vsub.f32 %v3488, %v4563
    %v4565 = vand.u32 %v4564, 4294901760
    %v4566 = vsub.f32 %v4564, %v4565
    %v4567 = vand.u32 %v4566, 4294901760
    %4568 = vmatpush.xpose.msra.mxu0 %v4567
    %v4569 = vand.u32 %v3484, 4294901760
    %v4570 = vsub.f32 %v3484, %v4569
    %v4571 = vand.u32 %v4570, 4294901760
    %v4572 = vsub.f32 %v4570, %v4571
    %v4573 = vand.u32 %v4572, 4294901760
    %4574 = vmatpush.xpose.msra.mxu0 %v4573
    %v4575 = vand.u32 %v3480, 4294901760
    %v4576 = vsub.f32 %v3480, %v4575
    %v4577 = vand.u32 %v4576, 4294901760
    %v4578 = vsub.f32 %v4576, %v4577
    %v4579 = vand.u32 %v4578, 4294901760
    %4580 = vmatpush.xpose.msra.mxu0 %v4579
    %v4581 = vand.u32 %v3476, 4294901760
    %v4582 = vsub.f32 %v3476, %v4581
    %v4583 = vand.u32 %v4582, 4294901760
    %v4584 = vsub.f32 %v4582, %v4583
    %v4585 = vand.u32 %v4584, 4294901760
    %4586 = vmatpush.xpose.msra.mxu0 %v4585
    %v4587 = vand.u32 %v3472, 4294901760
    %v4588 = vsub.f32 %v3472, %v4587
    %v4589 = vand.u32 %v4588, 4294901760
    %v4590 = vsub.f32 %v4588, %v4589
    %v4591 = vand.u32 %v4590, 4294901760
    %4592 = vmatpush.xpose.msra.mxu0 %v4591
    %v4593 = vand.u32 %v3468, 4294901760
    %v4594 = vsub.f32 %v3468, %v4593
    %v4595 = vand.u32 %v4594, 4294901760
    %v4596 = vsub.f32 %v4594, %v4595
    %v4597 = vand.u32 %v4596, 4294901760
    %4598 = vmatpush.xpose.msra.mxu0 %v4597
    %v4599 = vand.u32 %v3464, 4294901760
    %v4600 = vsub.f32 %v3464, %v4599
    %v4601 = vand.u32 %v4600, 4294901760
    %v4602 = vsub.f32 %v4600, %v4601
    %v4603 = vand.u32 %v4602, 4294901760
    %4604 = vmatpush.xpose.msra.mxu0 %v4603
    %v4605 = vand.u32 %v3460, 4294901760
    %v4606 = vsub.f32 %v3460, %v4605
    %v4607 = vand.u32 %v4606, 4294901760
    %v4608 = vsub.f32 %v4606, %v4607
    %v4609 = vand.u32 %v4608, 4294901760
    %4610 = vmatpush.xpose.msra.mxu0 %v4609
    %v4611 = vand.u32 %v3456, 4294901760
    %v4612 = vsub.f32 %v3456, %v4611
    %v4613 = vand.u32 %v4612, 4294901760
    %v4614 = vsub.f32 %v4612, %v4613
    %v4615 = vand.u32 %v4614, 4294901760
    %4616 = vmatpush.xpose.msra.mxu0 %v4615
    %v4617 = vand.u32 %v3452, 4294901760
    %v4618 = vsub.f32 %v3452, %v4617
    %v4619 = vand.u32 %v4618, 4294901760
    %v4620 = vsub.f32 %v4618, %v4619
    %v4621 = vand.u32 %v4620, 4294901760
    %4622 = vmatpush.xpose.msra.mxu0 %v4621
    %v4623 = vand.u32 %v3448, 4294901760
    %v4624 = vsub.f32 %v3448, %v4623
    %v4625 = vand.u32 %v4624, 4294901760
    %v4626 = vsub.f32 %v4624, %v4625
    %v4627 = vand.u32 %v4626, 4294901760
    %4628 = vmatpush.xpose.msra.mxu0 %v4627
    %v4629 = vand.u32 %v3444, 4294901760
    %v4630 = vsub.f32 %v3444, %v4629
    %v4631 = vand.u32 %v4630, 4294901760
    %v4632 = vsub.f32 %v4630, %v4631
    %v4633 = vand.u32 %v4632, 4294901760
    %4634 = vmatpush.xpose.msra.mxu0 %v4633
    %v4635 = vand.u32 %v3440, 4294901760
    %v4636 = vsub.f32 %v3440, %v4635
    %v4637 = vand.u32 %v4636, 4294901760
    %v4638 = vsub.f32 %v4636, %v4637
    %v4639 = vand.u32 %v4638, 4294901760
    %4640 = vmatpush.xpose.msra.mxu0 %v4639
    %v4641 = vand.u32 %v3436, 4294901760
    %v4642 = vsub.f32 %v3436, %v4641
    %v4643 = vand.u32 %v4642, 4294901760
    %v4644 = vsub.f32 %v4642, %v4643
    %v4645 = vand.u32 %v4644, 4294901760
    %4646 = vmatpush.xpose.msra.mxu0 %v4645
    %v4647 = vand.u32 %v3432, 4294901760
    %v4648 = vsub.f32 %v3432, %v4647
    %v4649 = vand.u32 %v4648, 4294901760
    %v4650 = vsub.f32 %v4648, %v4649
    %v4651 = vand.u32 %v4650, 4294901760
    %4652 = vmatpush.xpose.msra.mxu0 %v4651
    %v4653 = vand.u32 %v828, 4294901760
    %4654 = vmatmul.f32.gmra.mxu0 %v4653
    %v4655 = vpop.f32.mrf.mxu0
    %v4656 = vadd.f32 %v4555, %v4655
    %4657 = vdwg.mxu0
    %v4658 = vand.u32 %v3492, 4294901760
    %v4659 = vsub.f32 %v3492, %v4658
    %4660 = vmatpush.xpose.msra.mxu0 %v4659
    %v4661 = vand.u32 %v3488, 4294901760
    %v4662 = vsub.f32 %v3488, %v4661
    %4663 = vmatpush.xpose.msra.mxu0 %v4662
    %v4664 = vand.u32 %v3484, 4294901760
    %v4665 = vsub.f32 %v3484, %v4664
    %4666 = vmatpush.xpose.msra.mxu0 %v4665
    %v4667 = vand.u32 %v3480, 4294901760
    %v4668 = vsub.f32 %v3480, %v4667
    %4669 = vmatpush.xpose.msra.mxu0 %v4668
    %v4670 = vand.u32 %v3476, 4294901760
    %v4671 = vsub.f32 %v3476, %v4670
    %4672 = vmatpush.xpose.msra.mxu0 %v4671
    %v4673 = vand.u32 %v3472, 4294901760
    %v4674 = vsub.f32 %v3472, %v4673
    %4675 = vmatpush.xpose.msra.mxu0 %v4674
    %v4676 = vand.u32 %v3468, 4294901760
    %v4677 = vsub.f32 %v3468, %v4676
    %4678 = vmatpush.xpose.msra.mxu0 %v4677
    %v4679 = vand.u32 %v3464, 4294901760
    %v4680 = vsub.f32 %v3464, %v4679
    %4681 = vmatpush.xpose.msra.mxu0 %v4680
    %v4682 = vand.u32 %v3460, 4294901760
    %v4683 = vsub.f32 %v3460, %v4682
    %4684 = vmatpush.xpose.msra.mxu0 %v4683
    %v4685 = vand.u32 %v3456, 4294901760
    %v4686 = vsub.f32 %v3456, %v4685
    %4687 = vmatpush.xpose.msra.mxu0 %v4686
    %v4688 = vand.u32 %v3452, 4294901760
    %v4689 = vsub.f32 %v3452, %v4688
    %4690 = vmatpush.xpose.msra.mxu0 %v4689
    %v4691 = vand.u32 %v3448, 4294901760
    %v4692 = vsub.f32 %v3448, %v4691
    %4693 = vmatpush.xpose.msra.mxu0 %v4692
    %v4694 = vand.u32 %v3444, 4294901760
    %v4695 = vsub.f32 %v3444, %v4694
    %4696 = vmatpush.xpose.msra.mxu0 %v4695
    %v4697 = vand.u32 %v3440, 4294901760
    %v4698 = vsub.f32 %v3440, %v4697
    %4699 = vmatpush.xpose.msra.mxu0 %v4698
    %v4700 = vand.u32 %v3436, 4294901760
    %v4701 = vsub.f32 %v3436, %v4700
    %4702 = vmatpush.xpose.msra.mxu0 %v4701
    %v4703 = vand.u32 %v3432, 4294901760
    %v4704 = vsub.f32 %v3432, %v4703
    %4705 = vmatpush.xpose.msra.mxu0 %v4704
    %v4706 = vand.u32 %v828, 4294901760
    %v4707 = vsub.f32 %v828, %v4706
    %4708 = vmatmul.f32.gmra.mxu0 %v4707
    %v4709 = vpop.f32.mrf.mxu0
    %v4710 = vadd.f32 %v4656, %v4709
    %4711 = vdwg.mxu0
    %v4712 = vand.u32 %v3492, 4294901760
    %4713 = vmatpush.xpose.msra.mxu0 %v4712
    %v4714 = vand.u32 %v3488, 4294901760
    %4715 = vmatpush.xpose.msra.mxu0 %v4714
    %v4716 = vand.u32 %v3484, 4294901760
    %4717 = vmatpush.xpose.msra.mxu0 %v4716
    %v4718 = vand.u32 %v3480, 4294901760
    %4719 = vmatpush.xpose.msra.mxu0 %v4718
    %v4720 = vand.u32 %v3476, 4294901760
    %4721 = vmatpush.xpose.msra.mxu0 %v4720
    %v4722 = vand.u32 %v3472, 4294901760
    %4723 = vmatpush.xpose.msra.mxu0 %v4722
    %v4724 = vand.u32 %v3468, 4294901760
    %4725 = vmatpush.xpose.msra.mxu0 %v4724
    %v4726 = vand.u32 %v3464, 4294901760
    %4727 = vmatpush.xpose.msra.mxu0 %v4726
    %v4728 = vand.u32 %v3460, 4294901760
    %4729 = vmatpush.xpose.msra.mxu0 %v4728
    %v4730 = vand.u32 %v3456, 4294901760
    %4731 = vmatpush.xpose.msra.mxu0 %v4730
    %v4732 = vand.u32 %v3452, 4294901760
    %4733 = vmatpush.xpose.msra.mxu0 %v4732
    %v4734 = vand.u32 %v3448, 4294901760
    %4735 = vmatpush.xpose.msra.mxu0 %v4734
    %v4736 = vand.u32 %v3444, 4294901760
    %4737 = vmatpush.xpose.msra.mxu0 %v4736
    %v4738 = vand.u32 %v3440, 4294901760
    %4739 = vmatpush.xpose.msra.mxu0 %v4738
    %v4740 = vand.u32 %v3436, 4294901760
    %4741 = vmatpush.xpose.msra.mxu0 %v4740
    %v4742 = vand.u32 %v3432, 4294901760
    %4743 = vmatpush.xpose.msra.mxu0 %v4742
    %v4744 = vand.u32 %v828, 4294901760
    %v4745 = vsub.f32 %v828, %v4744
    %v4746 = vand.u32 %v4745, 4294901760
    %4747 = vmatmul.f32.gmra.mxu0 %v4746
    %v4748 = vpop.f32.mrf.mxu0
    %v4749 = vadd.f32 %v4710, %v4748
    %4750 = vdwg.mxu0
    %v4751 = vand.u32 %v3492, 4294901760
    %v4752 = vsub.f32 %v3492, %v4751
    %v4753 = vand.u32 %v4752, 4294901760
    %4754 = vmatpush.xpose.msra.mxu0 %v4753
    %v4755 = vand.u32 %v3488, 4294901760
    %v4756 = vsub.f32 %v3488, %v4755
    %v4757 = vand.u32 %v4756, 4294901760
    %4758 = vmatpush.xpose.msra.mxu0 %v4757
    %v4759 = vand.u32 %v3484, 4294901760
    %v4760 = vsub.f32 %v3484, %v4759
    %v4761 = vand.u32 %v4760, 4294901760
    %4762 = vmatpush.xpose.msra.mxu0 %v4761
    %v4763 = vand.u32 %v3480, 4294901760
    %v4764 = vsub.f32 %v3480, %v4763
    %v4765 = vand.u32 %v4764, 4294901760
    %4766 = vmatpush.xpose.msra.mxu0 %v4765
    %v4767 = vand.u32 %v3476, 4294901760
    %v4768 = vsub.f32 %v3476, %v4767
    %v4769 = vand.u32 %v4768, 4294901760
    %4770 = vmatpush.xpose.msra.mxu0 %v4769
    %v4771 = vand.u32 %v3472, 4294901760
    %v4772 = vsub.f32 %v3472, %v4771
    %v4773 = vand.u32 %v4772, 4294901760
    %4774 = vmatpush.xpose.msra.mxu0 %v4773
    %v4775 = vand.u32 %v3468, 4294901760
    %v4776 = vsub.f32 %v3468, %v4775
    %v4777 = vand.u32 %v4776, 4294901760
    %4778 = vmatpush.xpose.msra.mxu0 %v4777
    %v4779 = vand.u32 %v3464, 4294901760
    %v4780 = vsub.f32 %v3464, %v4779
    %v4781 = vand.u32 %v4780, 4294901760
    %4782 = vmatpush.xpose.msra.mxu0 %v4781
    %v4783 = vand.u32 %v3460, 4294901760
    %v4784 = vsub.f32 %v3460, %v4783
    %v4785 = vand.u32 %v4784, 4294901760
    %4786 = vmatpush.xpose.msra.mxu0 %v4785
    %v4787 = vand.u32 %v3456, 4294901760
    %v4788 = vsub.f32 %v3456, %v4787
    %v4789 = vand.u32 %v4788, 4294901760
    %4790 = vmatpush.xpose.msra.mxu0 %v4789
    %v4791 = vand.u32 %v3452, 4294901760
    %v4792 = vsub.f32 %v3452, %v4791
    %v4793 = vand.u32 %v4792, 4294901760
    %4794 = vmatpush.xpose.msra.mxu0 %v4793
    %v4795 = vand.u32 %v3448, 4294901760
    %v4796 = vsub.f32 %v3448, %v4795
    %v4797 = vand.u32 %v4796, 4294901760
    %4798 = vmatpush.xpose.msra.mxu0 %v4797
    %v4799 = vand.u32 %v3444, 4294901760
    %v4800 = vsub.f32 %v3444, %v4799
    %v4801 = vand.u32 %v4800, 4294901760
    %4802 = vmatpush.xpose.msra.mxu0 %v4801
    %v4803 = vand.u32 %v3440, 4294901760
    %v4804 = vsub.f32 %v3440, %v4803
    %v4805 = vand.u32 %v4804, 4294901760
    %4806 = vmatpush.xpose.msra.mxu0 %v4805
    %v4807 = vand.u32 %v3436, 4294901760
    %v4808 = vsub.f32 %v3436, %v4807
    %v4809 = vand.u32 %v4808, 4294901760
    %4810 = vmatpush.xpose.msra.mxu0 %v4809
    %v4811 = vand.u32 %v3432, 4294901760
    %v4812 = vsub.f32 %v3432, %v4811
    %v4813 = vand.u32 %v4812, 4294901760
    %4814 = vmatpush.xpose.msra.mxu0 %v4813
    %v4815 = vand.u32 %v828, 4294901760
    %4816 = vmatmul.f32.gmra.mxu0 %v4815
    %v4817 = vpop.f32.mrf.mxu0
    %v4818 = vadd.f32 %v4749, %v4817
    %4819 = vdwg.mxu0
    %v4820 = vand.u32 %v3492, 4294901760
    %4821 = vmatpush.xpose.msra.mxu0 %v4820
    %v4822 = vand.u32 %v3488, 4294901760
    %4823 = vmatpush.xpose.msra.mxu0 %v4822
    %v4824 = vand.u32 %v3484, 4294901760
    %4825 = vmatpush.xpose.msra.mxu0 %v4824
    %v4826 = vand.u32 %v3480, 4294901760
    %4827 = vmatpush.xpose.msra.mxu0 %v4826
    %v4828 = vand.u32 %v3476, 4294901760
    %4829 = vmatpush.xpose.msra.mxu0 %v4828
    %v4830 = vand.u32 %v3472, 4294901760
    %4831 = vmatpush.xpose.msra.mxu0 %v4830
    %v4832 = vand.u32 %v3468, 4294901760
    %4833 = vmatpush.xpose.msra.mxu0 %v4832
    %v4834 = vand.u32 %v3464, 4294901760
    %4835 = vmatpush.xpose.msra.mxu0 %v4834
    %v4836 = vand.u32 %v3460, 4294901760
    %4837 = vmatpush.xpose.msra.mxu0 %v4836
    %v4838 = vand.u32 %v3456, 4294901760
    %4839 = vmatpush.xpose.msra.mxu0 %v4838
    %v4840 = vand.u32 %v3452, 4294901760
    %4841 = vmatpush.xpose.msra.mxu0 %v4840
    %v4842 = vand.u32 %v3448, 4294901760
    %4843 = vmatpush.xpose.msra.mxu0 %v4842
    %v4844 = vand.u32 %v3444, 4294901760
    %4845 = vmatpush.xpose.msra.mxu0 %v4844
    %v4846 = vand.u32 %v3440, 4294901760
    %4847 = vmatpush.xpose.msra.mxu0 %v4846
    %v4848 = vand.u32 %v3436, 4294901760
    %4849 = vmatpush.xpose.msra.mxu0 %v4848
    %v4850 = vand.u32 %v3432, 4294901760
    %4851 = vmatpush.xpose.msra.mxu0 %v4850
    %v4852 = vand.u32 %v828, 4294901760
    %4853 = vmatmul.f32.gmra.mxu0 %v4852
    %v4854 = vpop.f32.mrf.mxu0
    %v4855 = vadd.f32 %v4818, %v4854
    %4856 = vdwg.mxu0
    %v4857 = vrcp.pop %v4173
    %v4858 = vmul.f32 %v4173, %v4857
    %v4859 = vsub.f32 1.0, %v4858
    %v4860 = vmul.f32 %v4857, %v4859
    %v4861 = vadd.f32 %v4857, %v4860
    %vm4862 = vweird.f32 %v4173
    %vm4863 = vweird.f32 %v4857
    %vm4864 = vmor %vm4862, %vm4863
    %v4865 = vsel %vm4864, %v4857, %v4861
    %v4866 = vand.u32 2147483647, %v4173
    %vm4867 = vcmp.eq.f32.partialorder %v4866, 8.507059e+37
    %v4868 = vand.u32 %v4173, 2147483648
    %v4869 = vor.u32 1.1754944e-38, %v4868
    %v4870 = vsel %vm4867, %v4869, %v4865
    %v4871 = vrcp.pop %v4855
    %v4872 = vmul.f32 %v4855, %v4871
    %v4873 = vsub.f32 1.0, %v4872
    %v4874 = vmul.f32 %v4871, %v4873
    %v4875 = vadd.f32 %v4871, %v4874
    %vm4876 = vweird.f32 %v4855
    %vm4877 = vweird.f32 %v4871
    %vm4878 = vmor %vm4876, %vm4877
    %v4879 = vsel %vm4878, %v4871, %v4875
    %v4880 = vand.u32 2147483647, %v4855
    %vm4881 = vcmp.eq.f32.partialorder %v4880, 8.507059e+37
    %v4882 = vand.u32 %v4855, 2147483648
    %v4883 = vor.u32 1.1754944e-38, %v4882
    %v4884 = vsel %vm4881, %v4883, %v4879
    %4885 = vrot.lane.b32.xlu0 %v18, 120
    %v4886 = vpop.permute.xlu0 %4885
    %v4887 = vsel %vm894, %v4886, 0
    %4889 = vmatpush.msra.mxu0 0.0
    %4890 = vmatpush.msra.mxu0 0.0
    %4891 = vmatpush.msra.mxu0 0.0
    %4892 = vmatpush.msra.mxu0 0.0
    %4893 = vmatpush.msra.mxu0 0.0
    %4894 = vmatpush.msra.mxu0 0.0
    %4895 = vmatpush.msra.mxu0 0.0
    %4896 = vmatpush.msra.mxu0 0.0
    %4897 = vmatpush.msra.mxu0 0.0
    %4898 = vmatpush.msra.mxu0 0.0
    %4899 = vmatpush.msra.mxu0 0.0
    %4900 = vmatpush.msra.mxu0 0.0
    %4901 = vmatpush.msra.mxu0 0.0
    %4902 = vmatpush.msra.mxu0 0.0
    %4903 = vmatpush.msra.mxu0 0.0
    %v4904 = vand.u32 %v4173, 4294901760
    %4905 = vmatpush.msra.mxu0 %v4904
    %v4906 = vand.u32 %v4887, 4294901760
    %v4907 = vsub.f32 %v4887, %v4906
    %v4908 = vand.u32 %v4907, 4294901760
    %v4909 = vsub.f32 %v4907, %v4908
    %v4910 = vand.u32 %v4909, 4294901760
    %4911 = vmatmul.f32.gmra.mxu0 %v4910
    %v4912 = vpop.f32.mrf.mxu0
    %v4913 = vadd.f32 0.0, %v4912
    %4914 = vdwg.mxu0
    %4915 = vmatpush.msra.mxu0 0.0
    %4916 = vmatpush.msra.mxu0 0.0
    %4917 = vmatpush.msra.mxu0 0.0
    %4918 = vmatpush.msra.mxu0 0.0
    %4919 = vmatpush.msra.mxu0 0.0
    %4920 = vmatpush.msra.mxu0 0.0
    %4921 = vmatpush.msra.mxu0 0.0
    %4922 = vmatpush.msra.mxu0 0.0
    %4923 = vmatpush.msra.mxu0 0.0
    %4924 = vmatpush.msra.mxu0 0.0
    %4925 = vmatpush.msra.mxu0 0.0
    %4926 = vmatpush.msra.mxu0 0.0
    %4927 = vmatpush.msra.mxu0 0.0
    %4928 = vmatpush.msra.mxu0 0.0
    %4929 = vmatpush.msra.mxu0 0.0
    %v4930 = vand.u32 %v4173, 4294901760
    %v4931 = vsub.f32 %v4173, %v4930
    %v4932 = vand.u32 %v4931, 4294901760
    %v4933 = vsub.f32 %v4931, %v4932
    %v4934 = vand.u32 %v4933, 4294901760
    %4935 = vmatpush.msra.mxu0 %v4934
    %v4936 = vand.u32 %v4887, 4294901760
    %4937 = vmatmul.f32.gmra.mxu0 %v4936
    %v4938 = vpop.f32.mrf.mxu0
    %v4939 = vadd.f32 %v4913, %v4938
    %4940 = vdwg.mxu0
    %4941 = vmatpush.msra.mxu0 0.0
    %4942 = vmatpush.msra.mxu0 0.0
    %4943 = vmatpush.msra.mxu0 0.0
    %4944 = vmatpush.msra.mxu0 0.0
    %4945 = vmatpush.msra.mxu0 0.0
    %4946 = vmatpush.msra.mxu0 0.0
    %4947 = vmatpush.msra.mxu0 0.0
    %4948 = vmatpush.msra.mxu0 0.0
    %4949 = vmatpush.msra.mxu0 0.0
    %4950 = vmatpush.msra.mxu0 0.0
    %4951 = vmatpush.msra.mxu0 0.0
    %4952 = vmatpush.msra.mxu0 0.0
    %4953 = vmatpush.msra.mxu0 0.0
    %4954 = vmatpush.msra.mxu0 0.0
    %4955 = vmatpush.msra.mxu0 0.0
    %v4956 = vand.u32 %v4173, 4294901760
    %v4957 = vsub.f32 %v4173, %v4956
    %4958 = vmatpush.msra.mxu0 %v4957
    %v4959 = vand.u32 %v4887, 4294901760
    %v4960 = vsub.f32 %v4887, %v4959
    %4961 = vmatmul.f32.gmra.mxu0 %v4960
    %v4962 = vpop.f32.mrf.mxu0
    %v4963 = vadd.f32 %v4939, %v4962
    %4964 = vdwg.mxu0
    %4965 = vmatpush.msra.mxu0 0.0
    %4966 = vmatpush.msra.mxu0 0.0
    %4967 = vmatpush.msra.mxu0 0.0
    %4968 = vmatpush.msra.mxu0 0.0
    %4969 = vmatpush.msra.mxu0 0.0
    %4970 = vmatpush.msra.mxu0 0.0
    %4971 = vmatpush.msra.mxu0 0.0
    %4972 = vmatpush.msra.mxu0 0.0
    %4973 = vmatpush.msra.mxu0 0.0
    %4974 = vmatpush.msra.mxu0 0.0
    %4975 = vmatpush.msra.mxu0 0.0
    %4976 = vmatpush.msra.mxu0 0.0
    %4977 = vmatpush.msra.mxu0 0.0
    %4978 = vmatpush.msra.mxu0 0.0
    %4979 = vmatpush.msra.mxu0 0.0
    %v4980 = vand.u32 %v4173, 4294901760
    %4981 = vmatpush.msra.mxu0 %v4980
    %v4982 = vand.u32 %v4887, 4294901760
    %v4983 = vsub.f32 %v4887, %v4982
    %v4984 = vand.u32 %v4983, 4294901760
    %4985 = vmatmul.f32.gmra.mxu0 %v4984
    %v4986 = vpop.f32.mrf.mxu0
    %v4987 = vadd.f32 %v4963, %v4986
    %4988 = vdwg.mxu0
    %4989 = vmatpush.msra.mxu0 0.0
    %4990 = vmatpush.msra.mxu0 0.0
    %4991 = vmatpush.msra.mxu0 0.0
    %4992 = vmatpush.msra.mxu0 0.0
    %4993 = vmatpush.msra.mxu0 0.0
    %4994 = vmatpush.msra.mxu0 0.0
    %4995 = vmatpush.msra.mxu0 0.0
    %4996 = vmatpush.msra.mxu0 0.0
    %4997 = vmatpush.msra.mxu0 0.0
    %4998 = vmatpush.msra.mxu0 0.0
    %4999 = vmatpush.msra.mxu0 0.0
    %5000 = vmatpush.msra.mxu0 0.0
    %5001 = vmatpush.msra.mxu0 0.0
    %5002 = vmatpush.msra.mxu0 0.0
    %5003 = vmatpush.msra.mxu0 0.0
    %v5004 = vand.u32 %v4173, 4294901760
    %v5005 = vsub.f32 %v4173, %v5004
    %v5006 = vand.u32 %v5005, 4294901760
    %5007 = vmatpush.msra.mxu0 %v5006
    %v5008 = vand.u32 %v4887, 4294901760
    %5009 = vmatmul.f32.gmra.mxu0 %v5008
    %v5010 = vpop.f32.mrf.mxu0
    %v5011 = vadd.f32 %v4987, %v5010
    %5012 = vdwg.mxu0
    %5013 = vmatpush.msra.mxu0 0.0
    %5014 = vmatpush.msra.mxu0 0.0
    %5015 = vmatpush.msra.mxu0 0.0
    %5016 = vmatpush.msra.mxu0 0.0
    %5017 = vmatpush.msra.mxu0 0.0
    %5018 = vmatpush.msra.mxu0 0.0
    %5019 = vmatpush.msra.mxu0 0.0
    %5020 = vmatpush.msra.mxu0 0.0
    %5021 = vmatpush.msra.mxu0 0.0
    %5022 = vmatpush.msra.mxu0 0.0
    %5023 = vmatpush.msra.mxu0 0.0
    %5024 = vmatpush.msra.mxu0 0.0
    %5025 = vmatpush.msra.mxu0 0.0
    %5026 = vmatpush.msra.mxu0 0.0
    %5027 = vmatpush.msra.mxu0 0.0
    %v5028 = vand.u32 %v4173, 4294901760
    %5029 = vmatpush.msra.mxu0 %v5028
    %v5030 = vand.u32 %v4887, 4294901760
    %5031 = vmatmul.f32.gmra.mxu0 %v5030
    %v5032 = vpop.f32.mrf.mxu0
    %v5033 = vadd.f32 %v5011, %v5032
    %5034 = vdwg.mxu0
    %5035 = vmatpush.msra.mxu0 0.0
    %5036 = vmatpush.msra.mxu0 0.0
    %5037 = vmatpush.msra.mxu0 0.0
    %5038 = vmatpush.msra.mxu0 0.0
    %5039 = vmatpush.msra.mxu0 0.0
    %5040 = vmatpush.msra.mxu0 0.0
    %5041 = vmatpush.msra.mxu0 0.0
    %5042 = vmatpush.msra.mxu0 0.0
    %5043 = vmatpush.msra.mxu0 0.0
    %5044 = vmatpush.msra.mxu0 0.0
    %5045 = vmatpush.msra.mxu0 0.0
    %5046 = vmatpush.msra.mxu0 0.0
    %5047 = vmatpush.msra.mxu0 0.0
    %5048 = vmatpush.msra.mxu0 0.0
    %5049 = vmatpush.msra.mxu0 0.0
    %v5050 = vand.u32 %v4855, 4294901760
    %5051 = vmatpush.msra.mxu0 %v5050
    %v5052 = vand.u32 %v4887, 4294901760
    %v5053 = vsub.f32 %v4887, %v5052
    %v5054 = vand.u32 %v5053, 4294901760
    %v5055 = vsub.f32 %v5053, %v5054
    %v5056 = vand.u32 %v5055, 4294901760
    %5057 = vmatmul.f32.gmra.mxu0 %v5056
    %v5058 = vpop.f32.mrf.mxu0
    %v5059 = vadd.f32 0.0, %v5058
    %5060 = vdwg.mxu0
    %5061 = vmatpush.msra.mxu0 0.0
    %5062 = vmatpush.msra.mxu0 0.0
    %5063 = vmatpush.msra.mxu0 0.0
    %5064 = vmatpush.msra.mxu0 0.0
    %5065 = vmatpush.msra.mxu0 0.0
    %5066 = vmatpush.msra.mxu0 0.0
    %5067 = vmatpush.msra.mxu0 0.0
    %5068 = vmatpush.msra.mxu0 0.0
    %5069 = vmatpush.msra.mxu0 0.0
    %5070 = vmatpush.msra.mxu0 0.0
    %5071 = vmatpush.msra.mxu0 0.0
    %5072 = vmatpush.msra.mxu0 0.0
    %5073 = vmatpush.msra.mxu0 0.0
    %5074 = vmatpush.msra.mxu0 0.0
    %5075 = vmatpush.msra.mxu0 0.0
    %v5076 = vand.u32 %v4855, 4294901760
    %v5077 = vsub.f32 %v4855, %v5076
    %v5078 = vand.u32 %v5077, 4294901760
    %v5079 = vsub.f32 %v5077, %v5078
    %v5080 = vand.u32 %v5079, 4294901760
    %5081 = vmatpush.msra.mxu0 %v5080
    %v5082 = vand.u32 %v4887, 4294901760
    %5083 = vmatmul.f32.gmra.mxu0 %v5082
    %v5084 = vpop.f32.mrf.mxu0
    %v5085 = vadd.f32 %v5059, %v5084
    %5086 = vdwg.mxu0
    %5087 = vmatpush.msra.mxu0 0.0
    %5088 = vmatpush.msra.mxu0 0.0
    %5089 = vmatpush.msra.mxu0 0.0
    %5090 = vmatpush.msra.mxu0 0.0
    %5091 = vmatpush.msra.mxu0 0.0
    %5092 = vmatpush.msra.mxu0 0.0
    %5093 = vmatpush.msra.mxu0 0.0
    %5094 = vmatpush.msra.mxu0 0.0
    %5095 = vmatpush.msra.mxu0 0.0
    %5096 = vmatpush.msra.mxu0 0.0
    %5097 = vmatpush.msra.mxu0 0.0
    %5098 = vmatpush.msra.mxu0 0.0
    %5099 = vmatpush.msra.mxu0 0.0
    %5100 = vmatpush.msra.mxu0 0.0
    %5101 = vmatpush.msra.mxu0 0.0
    %v5102 = vand.u32 %v4855, 4294901760
    %v5103 = vsub.f32 %v4855, %v5102
    %5104 = vmatpush.msra.mxu0 %v5103
    %v5105 = vand.u32 %v4887, 4294901760
    %v5106 = vsub.f32 %v4887, %v5105
    %5107 = vmatmul.f32.gmra.mxu0 %v5106
    %v5108 = vpop.f32.mrf.mxu0
    %v5109 = vadd.f32 %v5085, %v5108
    %5110 = vdwg.mxu0
    %5111 = vmatpush.msra.mxu0 0.0
    %5112 = vmatpush.msra.mxu0 0.0
    %5113 = vmatpush.msra.mxu0 0.0
    %5114 = vmatpush.msra.mxu0 0.0
    %5115 = vmatpush.msra.mxu0 0.0
    %5116 = vmatpush.msra.mxu0 0.0
    %5117 = vmatpush.msra.mxu0 0.0
    %5118 = vmatpush.msra.mxu0 0.0
    %5119 = vmatpush.msra.mxu0 0.0
    %5120 = vmatpush.msra.mxu0 0.0
    %5121 = vmatpush.msra.mxu0 0.0
    %5122 = vmatpush.msra.mxu0 0.0
    %5123 = vmatpush.msra.mxu0 0.0
    %5124 = vmatpush.msra.mxu0 0.0
    %5125 = vmatpush.msra.mxu0 0.0
    %v5126 = vand.u32 %v4855, 4294901760
    %5127 = vmatpush.msra.mxu0 %v5126
    %v5128 = vand.u32 %v4887, 4294901760
    %v5129 = vsub.f32 %v4887, %v5128
    %v5130 = vand.u32 %v5129, 4294901760
    %5131 = vmatmul.f32.gmra.mxu0 %v5130
    %v5132 = vpop.f32.mrf.mxu0
    %v5133 = vadd.f32 %v5109, %v5132
    %5134 = vdwg.mxu0
    %5135 = vmatpush.msra.mxu0 0.0
    %5136 = vmatpush.msra.mxu0 0.0
    %5137 = vmatpush.msra.mxu0 0.0
    %5138 = vmatpush.msra.mxu0 0.0
    %5139 = vmatpush.msra.mxu0 0.0
    %5140 = vmatpush.msra.mxu0 0.0
    %5141 = vmatpush.msra.mxu0 0.0
    %5142 = vmatpush.msra.mxu0 0.0
    %5143 = vmatpush.msra.mxu0 0.0
    %5144 = vmatpush.msra.mxu0 0.0
    %5145 = vmatpush.msra.mxu0 0.0
    %5146 = vmatpush.msra.mxu0 0.0
    %5147 = vmatpush.msra.mxu0 0.0
    %5148 = vmatpush.msra.mxu0 0.0
    %5149 = vmatpush.msra.mxu0 0.0
    %v5150 = vand.u32 %v4855, 4294901760
    %v5151 = vsub.f32 %v4855, %v5150
    %v5152 = vand.u32 %v5151, 4294901760
    %5153 = vmatpush.msra.mxu0 %v5152
    %v5154 = vand.u32 %v4887, 4294901760
    %5155 = vmatmul.f32.gmra.mxu0 %v5154
    %v5156 = vpop.f32.mrf.mxu0
    %v5157 = vadd.f32 %v5133, %v5156
    %5158 = vdwg.mxu0
    %5159 = vmatpush.msra.mxu0 0.0
    %5160 = vmatpush.msra.mxu0 0.0
    %5161 = vmatpush.msra.mxu0 0.0
    %5162 = vmatpush.msra.mxu0 0.0
    %5163 = vmatpush.msra.mxu0 0.0
    %5164 = vmatpush.msra.mxu0 0.0
    %5165 = vmatpush.msra.mxu0 0.0
    %5166 = vmatpush.msra.mxu0 0.0
    %5167 = vmatpush.msra.mxu0 0.0
    %5168 = vmatpush.msra.mxu0 0.0
    %5169 = vmatpush.msra.mxu0 0.0
    %5170 = vmatpush.msra.mxu0 0.0
    %5171 = vmatpush.msra.mxu0 0.0
    %5172 = vmatpush.msra.mxu0 0.0
    %5173 = vmatpush.msra.mxu0 0.0
    %v5174 = vand.u32 %v4855, 4294901760
    %5175 = vmatpush.msra.mxu0 %v5174
    %v5176 = vand.u32 %v4887, 4294901760
    %5177 = vmatmul.f32.gmra.mxu0 %v5176
    %v5178 = vpop.f32.mrf.mxu0
    %v5179 = vadd.f32 %v5157, %v5178
    %5180 = vdwg.mxu0
    %v5181 = vperm.slane %v4870, 4
    %v5182 = vperm.slane %v4884, 4
    %v5183 = vmul.f32 %v5033, %v5181
    %v5184 = vmul.f32 %v5179, %v5182
    %5185 = vset.pattern.permute.xlu0 16
    %5186 = vperm.xlu0 %5185, %v18
    %v5187 = vpop.permute.xlu0 %5186
    %v5189 = vadd.f32 %v5183, %v5187
    %v5190 = vadd.f32 %v5184, %v5187
    %5191 = vst [vmem:[#allocation1] ss:$2 sm:$0xff] %v25
    %v5192 = vld.sshfl [vmem:[#allocation1] sm:$0xff pattern:$0x75316420]
    %v5193 = vld.sshfl [vmem:[#allocation1 + $0x8] sm:$0xff pattern:$0x75316420]
    %v5196 = vadd.f32 %v5189, %v5192
    %v5197 = vadd.f32 %v5190, %v5193
    %v5200 = vrot.slane %v5197, 4
    %v5201 = vsel %vm32, %v5196, %v5200
    %5203 = vst [vmem:[#allocation2] sm:$0xff] %v5201
    %s5204 = scalar_lea.vmem %s0, 8
    %v5205 = vld [vmem:[%s5204] sm:$0xff]
    %5207 = vst [vmem:[#allocation1] ss:$2 sm:$0xff] %v5205
    %v5208 = vld.sshfl [vmem:[#allocation1] sm:$0xff pattern:$0x75316420]
    %v5209 = vld.sshfl [vmem:[#allocation1 + $0x8] sm:$0xff pattern:$0x75316420]
    %v5212 = vsel %vm32, %v5208, 0.0
    %v5213 = vsel %vm32, %v5209, 0.0
    %v5214 = vadd.f32 %v5212, %v5213
    %5215 = vadd.xlane.f32.xlu0 %v5214
    %v5216 = vpop.xlane.xlu0 %5215
    %v5218 = vsel %vm32, %v5216, 0
    %5220 = vmatpush.msra.mxu0 0.0
    %5221 = vmatpush.msra.mxu0 0.0
    %5222 = vmatpush.msra.mxu0 0.0
    %5223 = vmatpush.msra.mxu0 0.0
    %5224 = vmatpush.msra.mxu0 0.0
    %5225 = vmatpush.msra.mxu0 0.0
    %5226 = vmatpush.msra.mxu0 0.0
    %5227 = vmatpush.msra.mxu0 0.0
    %5228 = vmatpush.msra.mxu0 0.0
    %5229 = vmatpush.msra.mxu0 0.0
    %5230 = vmatpush.msra.mxu0 0.0
    %5231 = vmatpush.msra.mxu0 0.0
    %5232 = vmatpush.msra.mxu0 0.0
    %5233 = vmatpush.msra.mxu0 0.0
    %5234 = vmatpush.msra.mxu0 0.0
    %v5235 = vand.u32 %v5218, 4294901760
    %5236 = vmatpush.msra.mxu0 %v5235
    %v5237 = vand.u32 %v40, 4294901760
    %v5238 = vsub.f32 %v40, %v5237
    %v5239 = vand.u32 %v5238, 4294901760
    %v5240 = vsub.f32 %v5238, %v5239
    %v5241 = vand.u32 %v5240, 4294901760
    %5242 = vmatmul.f32.gmra.mxu0 %v5241
    %v5243 = vpop.f32.mrf.mxu0
    %v5244 = vadd.f32 0.0, %v5243
    %5245 = vdwg.mxu0
    %5246 = vmatpush.msra.mxu0 0.0
    %5247 = vmatpush.msra.mxu0 0.0
    %5248 = vmatpush.msra.mxu0 0.0
    %5249 = vmatpush.msra.mxu0 0.0
    %5250 = vmatpush.msra.mxu0 0.0
    %5251 = vmatpush.msra.mxu0 0.0
    %5252 = vmatpush.msra.mxu0 0.0
    %5253 = vmatpush.msra.mxu0 0.0
    %5254 = vmatpush.msra.mxu0 0.0
    %5255 = vmatpush.msra.mxu0 0.0
    %5256 = vmatpush.msra.mxu0 0.0
    %5257 = vmatpush.msra.mxu0 0.0
    %5258 = vmatpush.msra.mxu0 0.0
    %5259 = vmatpush.msra.mxu0 0.0
    %5260 = vmatpush.msra.mxu0 0.0
    %v5261 = vand.u32 %v5218, 4294901760
    %v5262 = vsub.f32 %v5218, %v5261
    %v5263 = vand.u32 %v5262, 4294901760
    %v5264 = vsub.f32 %v5262, %v5263
    %v5265 = vand.u32 %v5264, 4294901760
    %5266 = vmatpush.msra.mxu0 %v5265
    %v5267 = vand.u32 %v40, 4294901760
    %5268 = vmatmul.f32.gmra.mxu0 %v5267
    %v5269 = vpop.f32.mrf.mxu0
    %v5270 = vadd.f32 %v5244, %v5269
    %5271 = vdwg.mxu0
    %5272 = vmatpush.msra.mxu0 0.0
    %5273 = vmatpush.msra.mxu0 0.0
    %5274 = vmatpush.msra.mxu0 0.0
    %5275 = vmatpush.msra.mxu0 0.0
    %5276 = vmatpush.msra.mxu0 0.0
    %5277 = vmatpush.msra.mxu0 0.0
    %5278 = vmatpush.msra.mxu0 0.0
    %5279 = vmatpush.msra.mxu0 0.0
    %5280 = vmatpush.msra.mxu0 0.0
    %5281 = vmatpush.msra.mxu0 0.0
    %5282 = vmatpush.msra.mxu0 0.0
    %5283 = vmatpush.msra.mxu0 0.0
    %5284 = vmatpush.msra.mxu0 0.0
    %5285 = vmatpush.msra.mxu0 0.0
    %5286 = vmatpush.msra.mxu0 0.0
    %v5287 = vand.u32 %v5218, 4294901760
    %v5288 = vsub.f32 %v5218, %v5287
    %5289 = vmatpush.msra.mxu0 %v5288
    %v5290 = vand.u32 %v40, 4294901760
    %v5291 = vsub.f32 %v40, %v5290
    %5292 = vmatmul.f32.gmra.mxu0 %v5291
    %v5293 = vpop.f32.mrf.mxu0
    %v5294 = vadd.f32 %v5270, %v5293
    %5295 = vdwg.mxu0
    %5296 = vmatpush.msra.mxu0 0.0
    %5297 = vmatpush.msra.mxu0 0.0
    %5298 = vmatpush.msra.mxu0 0.0
    %5299 = vmatpush.msra.mxu0 0.0
    %5300 = vmatpush.msra.mxu0 0.0
    %5301 = vmatpush.msra.mxu0 0.0
    %5302 = vmatpush.msra.mxu0 0.0
    %5303 = vmatpush.msra.mxu0 0.0
    %5304 = vmatpush.msra.mxu0 0.0
    %5305 = vmatpush.msra.mxu0 0.0
    %5306 = vmatpush.msra.mxu0 0.0
    %5307 = vmatpush.msra.mxu0 0.0
    %5308 = vmatpush.msra.mxu0 0.0
    %5309 = vmatpush.msra.mxu0 0.0
    %5310 = vmatpush.msra.mxu0 0.0
    %v5311 = vand.u32 %v5218, 4294901760
    %5312 = vmatpush.msra.mxu0 %v5311
    %v5313 = vand.u32 %v40, 4294901760
    %v5314 = vsub.f32 %v40, %v5313
    %v5315 = vand.u32 %v5314, 4294901760
    %5316 = vmatmul.f32.gmra.mxu0 %v5315
    %v5317 = vpop.f32.mrf.mxu0
    %v5318 = vadd.f32 %v5294, %v5317
    %5319 = vdwg.mxu0
    %5320 = vmatpush.msra.mxu0 0.0
    %5321 = vmatpush.msra.mxu0 0.0
    %5322 = vmatpush.msra.mxu0 0.0
    %5323 = vmatpush.msra.mxu0 0.0
    %5324 = vmatpush.msra.mxu0 0.0
    %5325 = vmatpush.msra.mxu0 0.0
    %5326 = vmatpush.msra.mxu0 0.0
    %5327 = vmatpush.msra.mxu0 0.0
    %5328 = vmatpush.msra.mxu0 0.0
    %5329 = vmatpush.msra.mxu0 0.0
    %5330 = vmatpush.msra.mxu0 0.0
    %5331 = vmatpush.msra.mxu0 0.0
    %5332 = vmatpush.msra.mxu0 0.0
    %5333 = vmatpush.msra.mxu0 0.0
    %5334 = vmatpush.msra.mxu0 0.0
    %v5335 = vand.u32 %v5218, 4294901760
    %v5336 = vsub.f32 %v5218, %v5335
    %v5337 = vand.u32 %v5336, 4294901760
    %5338 = vmatpush.msra.mxu0 %v5337
    %v5339 = vand.u32 %v40, 4294901760
    %5340 = vmatmul.f32.gmra.mxu0 %v5339
    %v5341 = vpop.f32.mrf.mxu0
    %v5342 = vadd.f32 %v5318, %v5341
    %5343 = vdwg.mxu0
    %5344 = vmatpush.msra.mxu0 0.0
    %5345 = vmatpush.msra.mxu0 0.0
    %5346 = vmatpush.msra.mxu0 0.0
    %5347 = vmatpush.msra.mxu0 0.0
    %5348 = vmatpush.msra.mxu0 0.0
    %5349 = vmatpush.msra.mxu0 0.0
    %5350 = vmatpush.msra.mxu0 0.0
    %5351 = vmatpush.msra.mxu0 0.0
    %5352 = vmatpush.msra.mxu0 0.0
    %5353 = vmatpush.msra.mxu0 0.0
    %5354 = vmatpush.msra.mxu0 0.0
    %5355 = vmatpush.msra.mxu0 0.0
    %5356 = vmatpush.msra.mxu0 0.0
    %5357 = vmatpush.msra.mxu0 0.0
    %5358 = vmatpush.msra.mxu0 0.0
    %v5359 = vand.u32 %v5218, 4294901760
    %5360 = vmatpush.msra.mxu0 %v5359
    %v5361 = vand.u32 %v40, 4294901760
    %5362 = vmatmul.f32.gmra.mxu0 %v5361
    %v5363 = vpop.f32.mrf.mxu0
    %v5364 = vadd.f32 %v5342, %v5363
    %5365 = vdwg.mxu0
    %5367 = vset.pattern.permute.xlu0 0
    %5368 = vperm.xlu0 %5367, %v5364
    %v5369 = vpop.permute.xlu0 %5368
    %v5371 = vunpack.c.l.s4 839922192
    %v5372 = vunpack.c.0.s8 %v5371
    %v5373 = vperm.slane %v5369, %v5372
    %v5375 = vsub.f32 %v5205, %v5373
    %v5376 = vmul.f32 %v5375, %v5375
    %5378 = vst [vmem:[#allocation1] ss:$2 sm:$0xff] %v5376
    %v5379 = vld.sshfl [vmem:[#allocation1] sm:$0xff pattern:$0x75316420]
    %v5380 = vld.sshfl [vmem:[#allocation1 + $0x8] sm:$0xff pattern:$0x75316420]
    %v5383 = vsel %vm32, %v5379, 0.0
    %v5384 = vsel %vm32, %v5380, 0.0
    %v5385 = vadd.f32 %v5383, %v5384
    %5386 = vadd.xlane.f32.xlu0 %v5385
    %v5387 = vpop.xlane.xlu0 %5386
    %v5389 = vsel %vm32, %v5387, 0
    %5391 = vmatpush.msra.mxu0 0.0
    %5392 = vmatpush.msra.mxu0 0.0
    %5393 = vmatpush.msra.mxu0 0.0
    %5394 = vmatpush.msra.mxu0 0.0
    %5395 = vmatpush.msra.mxu0 0.0
    %5396 = vmatpush.msra.mxu0 0.0
    %5397 = vmatpush.msra.mxu0 0.0
    %5398 = vmatpush.msra.mxu0 0.0
    %5399 = vmatpush.msra.mxu0 0.0
    %5400 = vmatpush.msra.mxu0 0.0
    %5401 = vmatpush.msra.mxu0 0.0
    %5402 = vmatpush.msra.mxu0 0.0
    %5403 = vmatpush.msra.mxu0 0.0
    %5404 = vmatpush.msra.mxu0 0.0
    %5405 = vmatpush.msra.mxu0 0.0
    %v5406 = vand.u32 %v5389, 4294901760
    %5407 = vmatpush.msra.mxu0 %v5406
    %v5408 = vand.u32 %v40, 4294901760
    %v5409 = vsub.f32 %v40, %v5408
    %v5410 = vand.u32 %v5409, 4294901760
    %v5411 = vsub.f32 %v5409, %v5410
    %v5412 = vand.u32 %v5411, 4294901760
    %5413 = vmatmul.f32.gmra.mxu0 %v5412
    %v5414 = vpop.f32.mrf.mxu0
    %v5415 = vadd.f32 1e-05, %v5414
    %5416 = vdwg.mxu0
    %5417 = vmatpush.msra.mxu0 0.0
    %5418 = vmatpush.msra.mxu0 0.0
    %5419 = vmatpush.msra.mxu0 0.0
    %5420 = vmatpush.msra.mxu0 0.0
    %5421 = vmatpush.msra.mxu0 0.0
    %5422 = vmatpush.msra.mxu0 0.0
    %5423 = vmatpush.msra.mxu0 0.0
    %5424 = vmatpush.msra.mxu0 0.0
    %5425 = vmatpush.msra.mxu0 0.0
    %5426 = vmatpush.msra.mxu0 0.0
    %5427 = vmatpush.msra.mxu0 0.0
    %5428 = vmatpush.msra.mxu0 0.0
    %5429 = vmatpush.msra.mxu0 0.0
    %5430 = vmatpush.msra.mxu0 0.0
    %5431 = vmatpush.msra.mxu0 0.0
    %v5432 = vand.u32 %v5389, 4294901760
    %v5433 = vsub.f32 %v5389, %v5432
    %v5434 = vand.u32 %v5433, 4294901760
    %v5435 = vsub.f32 %v5433, %v5434
    %v5436 = vand.u32 %v5435, 4294901760
    %5437 = vmatpush.msra.mxu0 %v5436
    %v5438 = vand.u32 %v40, 4294901760
    %5439 = vmatmul.f32.gmra.mxu0 %v5438
    %v5440 = vpop.f32.mrf.mxu0
    %v5441 = vadd.f32 %v5415, %v5440
    %5442 = vdwg.mxu0
    %5443 = vmatpush.msra.mxu0 0.0
    %5444 = vmatpush.msra.mxu0 0.0
    %5445 = vmatpush.msra.mxu0 0.0
    %5446 = vmatpush.msra.mxu0 0.0
    %5447 = vmatpush.msra.mxu0 0.0
    %5448 = vmatpush.msra.mxu0 0.0
    %5449 = vmatpush.msra.mxu0 0.0
    %5450 = vmatpush.msra.mxu0 0.0
    %5451 = vmatpush.msra.mxu0 0.0
    %5452 = vmatpush.msra.mxu0 0.0
    %5453 = vmatpush.msra.mxu0 0.0
    %5454 = vmatpush.msra.mxu0 0.0
    %5455 = vmatpush.msra.mxu0 0.0
    %5456 = vmatpush.msra.mxu0 0.0
    %5457 = vmatpush.msra.mxu0 0.0
    %v5458 = vand.u32 %v5389, 4294901760
    %v5459 = vsub.f32 %v5389, %v5458
    %5460 = vmatpush.msra.mxu0 %v5459
    %v5461 = vand.u32 %v40, 4294901760
    %v5462 = vsub.f32 %v40, %v5461
    %5463 = vmatmul.f32.gmra.mxu0 %v5462
    %v5464 = vpop.f32.mrf.mxu0
    %v5465 = vadd.f32 %v5441, %v5464
    %5466 = vdwg.mxu0
    %5467 = vmatpush.msra.mxu0 0.0
    %5468 = vmatpush.msra.mxu0 0.0
    %5469 = vmatpush.msra.mxu0 0.0
    %5470 = vmatpush.msra.mxu0 0.0
    %5471 = vmatpush.msra.mxu0 0.0
    %5472 = vmatpush.msra.mxu0 0.0
    %5473 = vmatpush.msra.mxu0 0.0
    %5474 = vmatpush.msra.mxu0 0.0
    %5475 = vmatpush.msra.mxu0 0.0
    %5476 = vmatpush.msra.mxu0 0.0
    %5477 = vmatpush.msra.mxu0 0.0
    %5478 = vmatpush.msra.mxu0 0.0
    %5479 = vmatpush.msra.mxu0 0.0
    %5480 = vmatpush.msra.mxu0 0.0
    %5481 = vmatpush.msra.mxu0 0.0
    %v5482 = vand.u32 %v5389, 4294901760
    %5483 = vmatpush.msra.mxu0 %v5482
    %v5484 = vand.u32 %v40, 4294901760
    %v5485 = vsub.f32 %v40, %v5484
    %v5486 = vand.u32 %v5485, 4294901760
    %5487 = vmatmul.f32.gmra.mxu0 %v5486
    %v5488 = vpop.f32.mrf.mxu0
    %v5489 = vadd.f32 %v5465, %v5488
    %5490 = vdwg.mxu0
    %5491 = vmatpush.msra.mxu0 0.0
    %5492 = vmatpush.msra.mxu0 0.0
    %5493 = vmatpush.msra.mxu0 0.0
    %5494 = vmatpush.msra.mxu0 0.0
    %5495 = vmatpush.msra.mxu0 0.0
    %5496 = vmatpush.msra.mxu0 0.0
    %5497 = vmatpush.msra.mxu0 0.0
    %5498 = vmatpush.msra.mxu0 0.0
    %5499 = vmatpush.msra.mxu0 0.0
    %5500 = vmatpush.msra.mxu0 0.0
    %5501 = vmatpush.msra.mxu0 0.0
    %5502 = vmatpush.msra.mxu0 0.0
    %5503 = vmatpush.msra.mxu0 0.0
    %5504 = vmatpush.msra.mxu0 0.0
    %5505 = vmatpush.msra.mxu0 0.0
    %v5506 = vand.u32 %v5389, 4294901760
    %v5507 = vsub.f32 %v5389, %v5506
    %v5508 = vand.u32 %v5507, 4294901760
    %5509 = vmatpush.msra.mxu0 %v5508
    %v5510 = vand.u32 %v40, 4294901760
    %5511 = vmatmul.f32.gmra.mxu0 %v5510
    %v5512 = vpop.f32.mrf.mxu0
    %v5513 = vadd.f32 %v5489, %v5512
    %5514 = vdwg.mxu0
    %5515 = vmatpush.msra.mxu0 0.0
    %5516 = vmatpush.msra.mxu0 0.0
    %5517 = vmatpush.msra.mxu0 0.0
    %5518 = vmatpush.msra.mxu0 0.0
    %5519 = vmatpush.msra.mxu0 0.0
    %5520 = vmatpush.msra.mxu0 0.0
    %5521 = vmatpush.msra.mxu0 0.0
    %5522 = vmatpush.msra.mxu0 0.0
    %5523 = vmatpush.msra.mxu0 0.0
    %5524 = vmatpush.msra.mxu0 0.0
    %5525 = vmatpush.msra.mxu0 0.0
    %5526 = vmatpush.msra.mxu0 0.0
    %5527 = vmatpush.msra.mxu0 0.0
    %5528 = vmatpush.msra.mxu0 0.0
    %5529 = vmatpush.msra.mxu0 0.0
    %v5530 = vand.u32 %v5389, 4294901760
    %5531 = vmatpush.msra.mxu0 %v5530
    %v5532 = vand.u32 %v40, 4294901760
    %5533 = vmatmul.f32.gmra.mxu0 %v5532
    %v5534 = vpop.f32.mrf.mxu0
    %v5535 = vadd.f32 %v5513, %v5534
    %5536 = vdwg.mxu0
    %v5537 = vrsqrt.pop %v5535
    %v5538 = vmul.f32 %v5537, %v5535
    %v5539 = vmul.f32 %v5538, %v5537
    %v5540 = vmul.f32 0.5, %v5539
    %v5541 = vsub.f32 1.5, %v5540
    %v5542 = vmul.f32 %v5537, %v5541
    %vm5543 = vweird.f32 %v5535
    %vm5544 = vweird.f32 %v5537
    %vm5545 = vmor %vm5543, %vm5544
    %v5546 = vsel %vm5545, %v5537, %v5542
    %5548 = vset.pattern.permute.xlu0 0
    %5549 = vperm.xlu0 %5548, %v5546
    %v5550 = vpop.permute.xlu0 %5549
    %v5552 = vunpack.c.l.s4 839922192
    %v5553 = vunpack.c.0.s8 %v5552
    %v5554 = vperm.slane %v5550, %v5553
    %v5556 = vmul.f32 %v5375, %v5554
    %5558 = vst [vmem:[#allocation1] ss:$2 sm:$0xff] %v5556
    %v5559 = vld.sshfl [vmem:[#allocation1] sm:$0xff pattern:$0x75316420]
    %v5560 = vld.sshfl [vmem:[#allocation1 + $0x8] sm:$0xff pattern:$0x75316420]
    %v5561 = vsel %vm32, %v5559, 0
    %v5563 = vsel %vm32, %v5560, 0
    %5565 = vmatpush.msra.mxu0 0.0
    %5566 = vmatpush.msra.mxu0 0.0
    %5567 = vmatpush.msra.mxu0 0.0
    %5568 = vmatpush.msra.mxu0 0.0
    %5569 = vmatpush.msra.mxu0 0.0
    %5570 = vmatpush.msra.mxu0 0.0
    %5571 = vmatpush.msra.mxu0 0.0
    %5572 = vmatpush.msra.mxu0 0.0
    %5573 = vmatpush.msra.mxu0 0.0
    %5574 = vmatpush.msra.mxu0 0.0
    %5575 = vmatpush.msra.mxu0 0.0
    %5576 = vmatpush.msra.mxu0 0.0
    %5577 = vmatpush.msra.mxu0 0.0
    %5578 = vmatpush.msra.mxu0 0.0
    %5579 = vmatpush.msra.mxu0 0.0
    %v5580 = vand.u32 %v5561, 4294901760
    %5581 = vmatpush.msra.mxu0 %v5580
    %v5582 = vand.u32 %v402, 4294901760
    %v5583 = vsub.f32 %v402, %v5582
    %v5584 = vand.u32 %v5583, 4294901760
    %v5585 = vsub.f32 %v5583, %v5584
    %v5586 = vand.u32 %v5585, 4294901760
    %5587 = vmatmul.f32.gmra.mxu0 %v5586
    %v5588 = vpop.f32.mrf.mxu0
    %v5589 = vadd.f32 %v385, %v5588
    %v5590 = vand.u32 %v405, 4294901760
    %v5591 = vsub.f32 %v405, %v5590
    %v5592 = vand.u32 %v5591, 4294901760
    %v5593 = vsub.f32 %v5591, %v5592
    %v5594 = vand.u32 %v5593, 4294901760
    %5595 = vmatmul.f32.gmra.mxu0 %v5594
    %v5596 = vpop.f32.mrf.mxu0
    %v5597 = vadd.f32 %v390, %v5596
    %v5598 = vand.u32 %v408, 4294901760
    %v5599 = vsub.f32 %v408, %v5598
    %v5600 = vand.u32 %v5599, 4294901760
    %v5601 = vsub.f32 %v5599, %v5600
    %v5602 = vand.u32 %v5601, 4294901760
    %5603 = vmatmul.f32.gmra.mxu0 %v5602
    %v5604 = vpop.f32.mrf.mxu0
    %v5605 = vadd.f32 %v395, %v5604
    %5606 = vdwg.mxu0
    %5607 = vmatpush.msra.mxu0 0.0
    %5608 = vmatpush.msra.mxu0 0.0
    %5609 = vmatpush.msra.mxu0 0.0
    %5610 = vmatpush.msra.mxu0 0.0
    %5611 = vmatpush.msra.mxu0 0.0
    %5612 = vmatpush.msra.mxu0 0.0
    %5613 = vmatpush.msra.mxu0 0.0
    %5614 = vmatpush.msra.mxu0 0.0
    %5615 = vmatpush.msra.mxu0 0.0
    %5616 = vmatpush.msra.mxu0 0.0
    %5617 = vmatpush.msra.mxu0 0.0
    %5618 = vmatpush.msra.mxu0 0.0
    %5619 = vmatpush.msra.mxu0 0.0
    %5620 = vmatpush.msra.mxu0 0.0
    %5621 = vmatpush.msra.mxu0 0.0
    %v5622 = vand.u32 %v5561, 4294901760
    %v5623 = vsub.f32 %v5561, %v5622
    %v5624 = vand.u32 %v5623, 4294901760
    %v5625 = vsub.f32 %v5623, %v5624
    %v5626 = vand.u32 %v5625, 4294901760
    %5627 = vmatpush.msra.mxu0 %v5626
    %v5628 = vand.u32 %v402, 4294901760
    %5629 = vmatmul.f32.gmra.mxu0 %v5628
    %v5630 = vpop.f32.mrf.mxu0
    %v5631 = vadd.f32 %v5589, %v5630
    %v5632 = vand.u32 %v405, 4294901760
    %5633 = vmatmul.f32.gmra.mxu0 %v5632
    %v5634 = vpop.f32.mrf.mxu0
    %v5635 = vadd.f32 %v5597, %v5634
    %v5636 = vand.u32 %v408, 4294901760
    %5637 = vmatmul.f32.gmra.mxu0 %v5636
    %v5638 = vpop.f32.mrf.mxu0
    %v5639 = vadd.f32 %v5605, %v5638
    %5640 = vdwg.mxu0
    %5641 = vmatpush.msra.mxu0 0.0
    %5642 = vmatpush.msra.mxu0 0.0
    %5643 = vmatpush.msra.mxu0 0.0
    %5644 = vmatpush.msra.mxu0 0.0
    %5645 = vmatpush.msra.mxu0 0.0
    %5646 = vmatpush.msra.mxu0 0.0
    %5647 = vmatpush.msra.mxu0 0.0
    %5648 = vmatpush.msra.mxu0 0.0
    %5649 = vmatpush.msra.mxu0 0.0
    %5650 = vmatpush.msra.mxu0 0.0
    %5651 = vmatpush.msra.mxu0 0.0
    %5652 = vmatpush.msra.mxu0 0.0
    %5653 = vmatpush.msra.mxu0 0.0
    %5654 = vmatpush.msra.mxu0 0.0
    %5655 = vmatpush.msra.mxu0 0.0
    %v5656 = vand.u32 %v5561, 4294901760
    %v5657 = vsub.f32 %v5561, %v5656
    %5658 = vmatpush.msra.mxu0 %v5657
    %v5659 = vand.u32 %v402, 4294901760
    %v5660 = vsub.f32 %v402, %v5659
    %5661 = vmatmul.f32.gmra.mxu0 %v5660
    %v5662 = vpop.f32.mrf.mxu0
    %v5663 = vadd.f32 %v5631, %v5662
    %v5664 = vand.u32 %v405, 4294901760
    %v5665 = vsub.f32 %v405, %v5664
    %5666 = vmatmul.f32.gmra.mxu0 %v5665
    %v5667 = vpop.f32.mrf.mxu0
    %v5668 = vadd.f32 %v5635, %v5667
    %v5669 = vand.u32 %v408, 4294901760
    %v5670 = vsub.f32 %v408, %v5669
    %5671 = vmatmul.f32.gmra.mxu0 %v5670
    %v5672 = vpop.f32.mrf.mxu0
    %v5673 = vadd.f32 %v5639, %v5672
    %5674 = vdwg.mxu0
    %5675 = vmatpush.msra.mxu0 0.0
    %5676 = vmatpush.msra.mxu0 0.0
    %5677 = vmatpush.msra.mxu0 0.0
    %5678 = vmatpush.msra.mxu0 0.0
    %5679 = vmatpush.msra.mxu0 0.0
    %5680 = vmatpush.msra.mxu0 0.0
    %5681 = vmatpush.msra.mxu0 0.0
    %5682 = vmatpush.msra.mxu0 0.0
    %5683 = vmatpush.msra.mxu0 0.0
    %5684 = vmatpush.msra.mxu0 0.0
    %5685 = vmatpush.msra.mxu0 0.0
    %5686 = vmatpush.msra.mxu0 0.0
    %5687 = vmatpush.msra.mxu0 0.0
    %5688 = vmatpush.msra.mxu0 0.0
    %5689 = vmatpush.msra.mxu0 0.0
    %v5690 = vand.u32 %v5561, 4294901760
    %5691 = vmatpush.msra.mxu0 %v5690
    %v5692 = vand.u32 %v402, 4294901760
    %v5693 = vsub.f32 %v402, %v5692
    %v5694 = vand.u32 %v5693, 4294901760
    %5695 = vmatmul.f32.gmra.mxu0 %v5694
    %v5696 = vpop.f32.mrf.mxu0
    %v5697 = vadd.f32 %v5663, %v5696
    %v5698 = vand.u32 %v405, 4294901760
    %v5699 = vsub.f32 %v405, %v5698
    %v5700 = vand.u32 %v5699, 4294901760
    %5701 = vmatmul.f32.gmra.mxu0 %v5700
    %v5702 = vpop.f32.mrf.mxu0
    %v5703 = vadd.f32 %v5668, %v5702
    %v5704 = vand.u32 %v408, 4294901760
    %v5705 = vsub.f32 %v408, %v5704
    %v5706 = vand.u32 %v5705, 4294901760
    %5707 = vmatmul.f32.gmra.mxu0 %v5706
    %v5708 = vpop.f32.mrf.mxu0
    %v5709 = vadd.f32 %v5673, %v5708
    %5710 = vdwg.mxu0
    %5711 = vmatpush.msra.mxu0 0.0
    %5712 = vmatpush.msra.mxu0 0.0
    %5713 = vmatpush.msra.mxu0 0.0
    %5714 = vmatpush.msra.mxu0 0.0
    %5715 = vmatpush.msra.mxu0 0.0
    %5716 = vmatpush.msra.mxu0 0.0
    %5717 = vmatpush.msra.mxu0 0.0
    %5718 = vmatpush.msra.mxu0 0.0
    %5719 = vmatpush.msra.mxu0 0.0
    %5720 = vmatpush.msra.mxu0 0.0
    %5721 = vmatpush.msra.mxu0 0.0
    %5722 = vmatpush.msra.mxu0 0.0
    %5723 = vmatpush.msra.mxu0 0.0
    %5724 = vmatpush.msra.mxu0 0.0
    %5725 = vmatpush.msra.mxu0 0.0
    %v5726 = vand.u32 %v5561, 4294901760
    %v5727 = vsub.f32 %v5561, %v5726
    %v5728 = vand.u32 %v5727, 4294901760
    %5729 = vmatpush.msra.mxu0 %v5728
    %v5730 = vand.u32 %v402, 4294901760
    %5731 = vmatmul.f32.gmra.mxu0 %v5730
    %v5732 = vpop.f32.mrf.mxu0
    %v5733 = vadd.f32 %v5697, %v5732
    %v5734 = vand.u32 %v405, 4294901760
    %5735 = vmatmul.f32.gmra.mxu0 %v5734
    %v5736 = vpop.f32.mrf.mxu0
    %v5737 = vadd.f32 %v5703, %v5736
    %v5738 = vand.u32 %v408, 4294901760
    %5739 = vmatmul.f32.gmra.mxu0 %v5738
    %v5740 = vpop.f32.mrf.mxu0
    %v5741 = vadd.f32 %v5709, %v5740
    %5742 = vdwg.mxu0
    %5743 = vmatpush.msra.mxu0 0.0
    %5744 = vmatpush.msra.mxu0 0.0
    %5745 = vmatpush.msra.mxu0 0.0
    %5746 = vmatpush.msra.mxu0 0.0
    %5747 = vmatpush.msra.mxu0 0.0
    %5748 = vmatpush.msra.mxu0 0.0
    %5749 = vmatpush.msra.mxu0 0.0
    %5750 = vmatpush.msra.mxu0 0.0
    %5751 = vmatpush.msra.mxu0 0.0
    %5752 = vmatpush.msra.mxu0 0.0
    %5753 = vmatpush.msra.mxu0 0.0
    %5754 = vmatpush.msra.mxu0 0.0
    %5755 = vmatpush.msra.mxu0 0.0
    %5756 = vmatpush.msra.mxu0 0.0
    %5757 = vmatpush.msra.mxu0 0.0
    %v5758 = vand.u32 %v5561, 4294901760
    %5759 = vmatpush.msra.mxu0 %v5758
    %v5760 = vand.u32 %v402, 4294901760
    %5761 = vmatmul.f32.gmra.mxu0 %v5760
    %v5762 = vpop.f32.mrf.mxu0
    %v5763 = vadd.f32 %v5733, %v5762
    %v5764 = vand.u32 %v405, 4294901760
    %5765 = vmatmul.f32.gmra.mxu0 %v5764
    %v5766 = vpop.f32.mrf.mxu0
    %v5767 = vadd.f32 %v5737, %v5766
    %v5768 = vand.u32 %v408, 4294901760
    %5769 = vmatmul.f32.gmra.mxu0 %v5768
    %v5770 = vpop.f32.mrf.mxu0
    %v5771 = vadd.f32 %v5741, %v5770
    %5772 = vdwg.mxu0
    %5773 = vmatpush.msra.mxu0 0.0
    %5774 = vmatpush.msra.mxu0 0.0
    %5775 = vmatpush.msra.mxu0 0.0
    %5776 = vmatpush.msra.mxu0 0.0
    %5777 = vmatpush.msra.mxu0 0.0
    %5778 = vmatpush.msra.mxu0 0.0
    %5779 = vmatpush.msra.mxu0 0.0
    %5780 = vmatpush.msra.mxu0 0.0
    %5781 = vmatpush.msra.mxu0 0.0
    %5782 = vmatpush.msra.mxu0 0.0
    %5783 = vmatpush.msra.mxu0 0.0
    %5784 = vmatpush.msra.mxu0 0.0
    %5785 = vmatpush.msra.mxu0 0.0
    %5786 = vmatpush.msra.mxu0 0.0
    %5787 = vmatpush.msra.mxu0 0.0
    %v5788 = vand.u32 %v5563, 4294901760
    %5789 = vmatpush.msra.mxu0 %v5788
    %v5790 = vand.u32 %v402, 4294901760
    %v5791 = vsub.f32 %v402, %v5790
    %v5792 = vand.u32 %v5791, 4294901760
    %v5793 = vsub.f32 %v5791, %v5792
    %v5794 = vand.u32 %v5793, 4294901760
    %5795 = vmatmul.f32.gmra.mxu0 %v5794
    %v5796 = vpop.f32.mrf.mxu0
    %v5797 = vadd.f32 %v385, %v5796
    %v5798 = vand.u32 %v405, 4294901760
    %v5799 = vsub.f32 %v405, %v5798
    %v5800 = vand.u32 %v5799, 4294901760
    %v5801 = vsub.f32 %v5799, %v5800
    %v5802 = vand.u32 %v5801, 4294901760
    %5803 = vmatmul.f32.gmra.mxu0 %v5802
    %v5804 = vpop.f32.mrf.mxu0
    %v5805 = vadd.f32 %v390, %v5804
    %v5806 = vand.u32 %v408, 4294901760
    %v5807 = vsub.f32 %v408, %v5806
    %v5808 = vand.u32 %v5807, 4294901760
    %v5809 = vsub.f32 %v5807, %v5808
    %v5810 = vand.u32 %v5809, 4294901760
    %5811 = vmatmul.f32.gmra.mxu0 %v5810
    %v5812 = vpop.f32.mrf.mxu0
    %v5813 = vadd.f32 %v395, %v5812
    %5814 = vdwg.mxu0
    %5815 = vmatpush.msra.mxu0 0.0
    %5816 = vmatpush.msra.mxu0 0.0
    %5817 = vmatpush.msra.mxu0 0.0
    %5818 = vmatpush.msra.mxu0 0.0
    %5819 = vmatpush.msra.mxu0 0.0
    %5820 = vmatpush.msra.mxu0 0.0
    %5821 = vmatpush.msra.mxu0 0.0
    %5822 = vmatpush.msra.mxu0 0.0
    %5823 = vmatpush.msra.mxu0 0.0
    %5824 = vmatpush.msra.mxu0 0.0
    %5825 = vmatpush.msra.mxu0 0.0
    %5826 = vmatpush.msra.mxu0 0.0
    %5827 = vmatpush.msra.mxu0 0.0
    %5828 = vmatpush.msra.mxu0 0.0
    %5829 = vmatpush.msra.mxu0 0.0
    %v5830 = vand.u32 %v5563, 4294901760
    %v5831 = vsub.f32 %v5563, %v5830
    %v5832 = vand.u32 %v5831, 4294901760
    %v5833 = vsub.f32 %v5831, %v5832
    %v5834 = vand.u32 %v5833, 4294901760
    %5835 = vmatpush.msra.mxu0 %v5834
    %v5836 = vand.u32 %v402, 4294901760
    %5837 = vmatmul.f32.gmra.mxu0 %v5836
    %v5838 = vpop.f32.mrf.mxu0
    %v5839 = vadd.f32 %v5797, %v5838
    %v5840 = vand.u32 %v405, 4294901760
    %5841 = vmatmul.f32.gmra.mxu0 %v5840
    %v5842 = vpop.f32.mrf.mxu0
    %v5843 = vadd.f32 %v5805, %v5842
    %v5844 = vand.u32 %v408, 4294901760
    %5845 = vmatmul.f32.gmra.mxu0 %v5844
    %v5846 = vpop.f32.mrf.mxu0
    %v5847 = vadd.f32 %v5813, %v5846
    %5848 = vdwg.mxu0
    %5849 = vmatpush.msra.mxu0 0.0
    %5850 = vmatpush.msra.mxu0 0.0
    %5851 = vmatpush.msra.mxu0 0.0
    %5852 = vmatpush.msra.mxu0 0.0
    %5853 = vmatpush.msra.mxu0 0.0
    %5854 = vmatpush.msra.mxu0 0.0
    %5855 = vmatpush.msra.mxu0 0.0
    %5856 = vmatpush.msra.mxu0 0.0
    %5857 = vmatpush.msra.mxu0 0.0
    %5858 = vmatpush.msra.mxu0 0.0
    %5859 = vmatpush.msra.mxu0 0.0
    %5860 = vmatpush.msra.mxu0 0.0
    %5861 = vmatpush.msra.mxu0 0.0
    %5862 = vmatpush.msra.mxu0 0.0
    %5863 = vmatpush.msra.mxu0 0.0
    %v5864 = vand.u32 %v5563, 4294901760
    %v5865 = vsub.f32 %v5563, %v5864
    %5866 = vmatpush.msra.mxu0 %v5865
    %v5867 = vand.u32 %v402, 4294901760
    %v5868 = vsub.f32 %v402, %v5867
    %5869 = vmatmul.f32.gmra.mxu0 %v5868
    %v5870 = vpop.f32.mrf.mxu0
    %v5871 = vadd.f32 %v5839, %v5870
    %v5872 = vand.u32 %v405, 4294901760
    %v5873 = vsub.f32 %v405, %v5872
    %5874 = vmatmul.f32.gmra.mxu0 %v5873
    %v5875 = vpop.f32.mrf.mxu0
    %v5876 = vadd.f32 %v5843, %v5875
    %v5877 = vand.u32 %v408, 4294901760
    %v5878 = vsub.f32 %v408, %v5877
    %5879 = vmatmul.f32.gmra.mxu0 %v5878
    %v5880 = vpop.f32.mrf.mxu0
    %v5881 = vadd.f32 %v5847, %v5880
    %5882 = vdwg.mxu0
    %5883 = vmatpush.msra.mxu0 0.0
    %5884 = vmatpush.msra.mxu0 0.0
    %5885 = vmatpush.msra.mxu0 0.0
    %5886 = vmatpush.msra.mxu0 0.0
    %5887 = vmatpush.msra.mxu0 0.0
    %5888 = vmatpush.msra.mxu0 0.0
    %5889 = vmatpush.msra.mxu0 0.0
    %5890 = vmatpush.msra.mxu0 0.0
    %5891 = vmatpush.msra.mxu0 0.0
    %5892 = vmatpush.msra.mxu0 0.0
    %5893 = vmatpush.msra.mxu0 0.0
    %5894 = vmatpush.msra.mxu0 0.0
    %5895 = vmatpush.msra.mxu0 0.0
    %5896 = vmatpush.msra.mxu0 0.0
    %5897 = vmatpush.msra.mxu0 0.0
    %v5898 = vand.u32 %v5563, 4294901760
    %5899 = vmatpush.msra.mxu0 %v5898
    %v5900 = vand.u32 %v402, 4294901760
    %v5901 = vsub.f32 %v402, %v5900
    %v5902 = vand.u32 %v5901, 4294901760
    %5903 = vmatmul.f32.gmra.mxu0 %v5902
    %v5904 = vpop.f32.mrf.mxu0
    %v5905 = vadd.f32 %v5871, %v5904
    %v5906 = vand.u32 %v405, 4294901760
    %v5907 = vsub.f32 %v405, %v5906
    %v5908 = vand.u32 %v5907, 4294901760
    %5909 = vmatmul.f32.gmra.mxu0 %v5908
    %v5910 = vpop.f32.mrf.mxu0
    %v5911 = vadd.f32 %v5876, %v5910
    %v5912 = vand.u32 %v408, 4294901760
    %v5913 = vsub.f32 %v408, %v5912
    %v5914 = vand.u32 %v5913, 4294901760
    %5915 = vmatmul.f32.gmra.mxu0 %v5914
    %v5916 = vpop.f32.mrf.mxu0
    %v5917 = vadd.f32 %v5881, %v5916
    %5918 = vdwg.mxu0
    %5919 = vmatpush.msra.mxu0 0.0
    %5920 = vmatpush.msra.mxu0 0.0
    %5921 = vmatpush.msra.mxu0 0.0
    %5922 = vmatpush.msra.mxu0 0.0
    %5923 = vmatpush.msra.mxu0 0.0
    %5924 = vmatpush.msra.mxu0 0.0
    %5925 = vmatpush.msra.mxu0 0.0
    %5926 = vmatpush.msra.mxu0 0.0
    %5927 = vmatpush.msra.mxu0 0.0
    %5928 = vmatpush.msra.mxu0 0.0
    %5929 = vmatpush.msra.mxu0 0.0
    %5930 = vmatpush.msra.mxu0 0.0
    %5931 = vmatpush.msra.mxu0 0.0
    %5932 = vmatpush.msra.mxu0 0.0
    %5933 = vmatpush.msra.mxu0 0.0
    %v5934 = vand.u32 %v5563, 4294901760
    %v5935 = vsub.f32 %v5563, %v5934
    %v5936 = vand.u32 %v5935, 4294901760
    %5937 = vmatpush.msra.mxu0 %v5936
    %v5938 = vand.u32 %v402, 4294901760
    %5939 = vmatmul.f32.gmra.mxu0 %v5938
    %v5940 = vpop.f32.mrf.mxu0
    %v5941 = vadd.f32 %v5905, %v5940
    %v5942 = vand.u32 %v405, 4294901760
    %5943 = vmatmul.f32.gmra.mxu0 %v5942
    %v5944 = vpop.f32.mrf.mxu0
    %v5945 = vadd.f32 %v5911, %v5944
    %v5946 = vand.u32 %v408, 4294901760
    %5947 = vmatmul.f32.gmra.mxu0 %v5946
    %v5948 = vpop.f32.mrf.mxu0
    %v5949 = vadd.f32 %v5917, %v5948
    %5950 = vdwg.mxu0
    %5951 = vmatpush.msra.mxu0 0.0
    %5952 = vmatpush.msra.mxu0 0.0
    %5953 = vmatpush.msra.mxu0 0.0
    %5954 = vmatpush.msra.mxu0 0.0
    %5955 = vmatpush.msra.mxu0 0.0
    %5956 = vmatpush.msra.mxu0 0.0
    %5957 = vmatpush.msra.mxu0 0.0
    %5958 = vmatpush.msra.mxu0 0.0
    %5959 = vmatpush.msra.mxu0 0.0
    %5960 = vmatpush.msra.mxu0 0.0
    %5961 = vmatpush.msra.mxu0 0.0
    %5962 = vmatpush.msra.mxu0 0.0
    %5963 = vmatpush.msra.mxu0 0.0
    %5964 = vmatpush.msra.mxu0 0.0
    %5965 = vmatpush.msra.mxu0 0.0
    %v5966 = vand.u32 %v5563, 4294901760
    %5967 = vmatpush.msra.mxu0 %v5966
    %v5968 = vand.u32 %v402, 4294901760
    %5969 = vmatmul.f32.gmra.mxu0 %v5968
    %v5970 = vpop.f32.mrf.mxu0
    %v5971 = vadd.f32 %v5941, %v5970
    %v5972 = vand.u32 %v405, 4294901760
    %5973 = vmatmul.f32.gmra.mxu0 %v5972
    %v5974 = vpop.f32.mrf.mxu0
    %v5975 = vadd.f32 %v5945, %v5974
    %v5976 = vand.u32 %v408, 4294901760
    %5977 = vmatmul.f32.gmra.mxu0 %v5976
    %v5978 = vpop.f32.mrf.mxu0
    %v5979 = vadd.f32 %v5949, %v5978
    %5980 = vdwg.mxu0
    %5981 = vxpose.xlu0.b32.start [1/16] %v5763, 128
    %5982 = vxpose.xlu0.b32.cont [2/16] 0.0, 128
    %5983 = vxpose.xlu0.b32.cont [3/16] 0.0, 128
    %5984 = vxpose.xlu0.b32.cont [4/16] 0.0, 128
    %5985 = vxpose.xlu0.b32.cont [5/16] 0.0, 128
    %5986 = vxpose.xlu0.b32.cont [6/16] 0.0, 128
    %5987 = vxpose.xlu0.b32.cont [7/16] 0.0, 128
    %5988 = vxpose.xlu0.b32.cont [8/16] 0.0, 128
    %5989 = vxpose.xlu0.b32.cont [9/16] 0.0, 128
    %5990 = vxpose.xlu0.b32.cont [10/16] 0.0, 128
    %5991 = vxpose.xlu0.b32.cont [11/16] 0.0, 128
    %5992 = vxpose.xlu0.b32.cont [12/16] 0.0, 128
    %5993 = vxpose.xlu0.b32.cont [13/16] 0.0, 128
    %5994 = vxpose.xlu0.b32.cont [14/16] 0.0, 128
    %5995 = vxpose.xlu0.b32.cont [15/16] 0.0, 128
    %5996 = vxpose.xlu0.b32.end [16/16] 0.0, 128
    %v5997 = vpop.trf.xlu0
    %v5998 = vpop.trf.xlu0
    %v5999 = vpop.trf.xlu0
    %v6000 = vpop.trf.xlu0
    %v6001 = vpop.trf.xlu0
    %v6002 = vpop.trf.xlu0
    %v6003 = vpop.trf.xlu0
    %v6004 = vpop.trf.xlu0
    %v6005 = vpop.trf.xlu0
    %v6006 = vpop.trf.xlu0
    %v6007 = vpop.trf.xlu0
    %v6008 = vpop.trf.xlu0
    %v6009 = vpop.trf.xlu0
    %v6010 = vpop.trf.xlu0
    %v6011 = vpop.trf.xlu0
    %v6012 = vpop.trf.xlu0
    %6013 = vxpose.xlu0.b32.start [1/16] %v5971, 128
    %6014 = vxpose.xlu0.b32.cont [2/16] 0.0, 128
    %6015 = vxpose.xlu0.b32.cont [3/16] 0.0, 128
    %6016 = vxpose.xlu0.b32.cont [4/16] 0.0, 128
    %6017 = vxpose.xlu0.b32.cont [5/16] 0.0, 128
    %6018 = vxpose.xlu0.b32.cont [6/16] 0.0, 128
    %6019 = vxpose.xlu0.b32.cont [7/16] 0.0, 128
    %6020 = vxpose.xlu0.b32.cont [8/16] 0.0, 128
    %6021 = vxpose.xlu0.b32.cont [9/16] 0.0, 128
    %6022 = vxpose.xlu0.b32.cont [10/16] 0.0, 128
    %6023 = vxpose.xlu0.b32.cont [11/16] 0.0, 128
    %6024 = vxpose.xlu0.b32.cont [12/16] 0.0, 128
    %6025 = vxpose.xlu0.b32.cont [13/16] 0.0, 128
    %6026 = vxpose.xlu0.b32.cont [14/16] 0.0, 128
    %6027 = vxpose.xlu0.b32.cont [15/16] 0.0, 128
    %6028 = vxpose.xlu0.b32.end [16/16] 0.0, 128
    %v6029 = vpop.trf.xlu0
    %v6030 = vpop.trf.xlu0
    %v6031 = vpop.trf.xlu0
    %v6032 = vpop.trf.xlu0
    %v6033 = vpop.trf.xlu0
    %v6034 = vpop.trf.xlu0
    %v6035 = vpop.trf.xlu0
    %v6036 = vpop.trf.xlu0
    %v6037 = vpop.trf.xlu0
    %v6038 = vpop.trf.xlu0
    %v6039 = vpop.trf.xlu0
    %v6040 = vpop.trf.xlu0
    %v6041 = vpop.trf.xlu0
    %v6042 = vpop.trf.xlu0
    %v6043 = vpop.trf.xlu0
    %v6044 = vpop.trf.xlu0
    %v6046 = vsel %vm894, %v5997, 0
    %v6049 = vsel %vm894, %v5998, 0
    %v6052 = vsel %vm894, %v5999, 0
    %v6055 = vsel %vm894, %v6000, 0
    %v6058 = vsel %vm894, %v6001, 0
    %v6061 = vsel %vm894, %v6002, 0
    %v6064 = vsel %vm894, %v6003, 0
    %v6067 = vsel %vm894, %v6004, 0
    %v6070 = vsel %vm894, %v6005, 0
    %v6073 = vsel %vm894, %v6006, 0
    %v6076 = vsel %vm894, %v6007, 0
    %v6079 = vsel %vm894, %v6008, 0
    %v6082 = vsel %vm894, %v6009, 0
    %v6085 = vsel %vm894, %v6010, 0
    %v6088 = vsel %vm894, %v6011, 0
    %v6091 = vsel %vm894, %v6012, 0
    %v6094 = vsel %vm894, %v6029, 0
    %v6097 = vsel %vm894, %v6030, 0
    %v6100 = vsel %vm894, %v6031, 0
    %v6103 = vsel %vm894, %v6032, 0
    %v6106 = vsel %vm894, %v6033, 0
    %v6109 = vsel %vm894, %v6034, 0
    %v6112 = vsel %vm894, %v6035, 0
    %v6115 = vsel %vm894, %v6036, 0
    %v6118 = vsel %vm894, %v6037, 0
    %v6121 = vsel %vm894, %v6038, 0
    %v6124 = vsel %vm894, %v6039, 0
    %v6127 = vsel %vm894, %v6040, 0
    %v6130 = vsel %vm894, %v6041, 0
    %v6133 = vsel %vm894, %v6042, 0
    %v6136 = vsel %vm894, %v6043, 0
    %v6139 = vsel %vm894, %v6044, 0
    %6141 = vmatpush.msra.mxu0 0.0
    %6142 = vmatpush.msra.mxu0 0.0
    %6143 = vmatpush.msra.mxu0 0.0
    %6144 = vmatpush.msra.mxu0 0.0
    %6145 = vmatpush.msra.mxu0 0.0
    %6146 = vmatpush.msra.mxu0 0.0
    %6147 = vmatpush.msra.mxu0 0.0
    %6148 = vmatpush.msra.mxu0 0.0
    %6149 = vmatpush.msra.mxu0 0.0
    %6150 = vmatpush.msra.mxu0 0.0
    %6151 = vmatpush.msra.mxu0 0.0
    %6152 = vmatpush.msra.mxu0 0.0
    %6153 = vmatpush.msra.mxu0 0.0
    %6154 = vmatpush.msra.mxu0 0.0
    %6155 = vmatpush.msra.mxu0 0.0
    %v6156 = vand.u32 %v5767, 4294901760
    %6157 = vmatpush.msra.mxu0 %v6156
    %v6158 = vand.u32 %v6046, 4294901760
    %v6159 = vsub.f32 %v6046, %v6158
    %v6160 = vand.u32 %v6159, 4294901760
    %v6161 = vsub.f32 %v6159, %v6160
    %v6162 = vand.u32 %v6161, 4294901760
    %6163 = vmatmul.f32.gmra.mxu0 %v6162
    %v6164 = vpop.f32.mrf.mxu0
    %v6165 = vadd.f32 0.0, %v6164
    %v6166 = vand.u32 %v6049, 4294901760
    %v6167 = vsub.f32 %v6049, %v6166
    %v6168 = vand.u32 %v6167, 4294901760
    %v6169 = vsub.f32 %v6167, %v6168
    %v6170 = vand.u32 %v6169, 4294901760
    %6171 = vmatmul.f32.gmra.mxu0 %v6170
    %v6172 = vpop.f32.mrf.mxu0
    %v6173 = vadd.f32 0.0, %v6172
    %v6174 = vand.u32 %v6052, 4294901760
    %v6175 = vsub.f32 %v6052, %v6174
    %v6176 = vand.u32 %v6175, 4294901760
    %v6177 = vsub.f32 %v6175, %v6176
    %v6178 = vand.u32 %v6177, 4294901760
    %6179 = vmatmul.f32.gmra.mxu0 %v6178
    %v6180 = vpop.f32.mrf.mxu0
    %v6181 = vadd.f32 0.0, %v6180
    %v6182 = vand.u32 %v6055, 4294901760
    %v6183 = vsub.f32 %v6055, %v6182
    %v6184 = vand.u32 %v6183, 4294901760
    %v6185 = vsub.f32 %v6183, %v6184
    %v6186 = vand.u32 %v6185, 4294901760
    %6187 = vmatmul.f32.gmra.mxu0 %v6186
    %v6188 = vpop.f32.mrf.mxu0
    %v6189 = vadd.f32 0.0, %v6188
    %v6190 = vand.u32 %v6058, 4294901760
    %v6191 = vsub.f32 %v6058, %v6190
    %v6192 = vand.u32 %v6191, 4294901760
    %v6193 = vsub.f32 %v6191, %v6192
    %v6194 = vand.u32 %v6193, 4294901760
    %6195 = vmatmul.f32.gmra.mxu0 %v6194
    %v6196 = vpop.f32.mrf.mxu0
    %v6197 = vadd.f32 0.0, %v6196
    %v6198 = vand.u32 %v6061, 4294901760
    %v6199 = vsub.f32 %v6061, %v6198
    %v6200 = vand.u32 %v6199, 4294901760
    %v6201 = vsub.f32 %v6199, %v6200
    %v6202 = vand.u32 %v6201, 4294901760
    %6203 = vmatmul.f32.gmra.mxu0 %v6202
    %v6204 = vpop.f32.mrf.mxu0
    %v6205 = vadd.f32 0.0, %v6204
    %v6206 = vand.u32 %v6064, 4294901760
    %v6207 = vsub.f32 %v6064, %v6206
    %v6208 = vand.u32 %v6207, 4294901760
    %v6209 = vsub.f32 %v6207, %v6208
    %v6210 = vand.u32 %v6209, 4294901760
    %6211 = vmatmul.f32.gmra.mxu0 %v6210
    %v6212 = vpop.f32.mrf.mxu0
    %v6213 = vadd.f32 0.0, %v6212
    %v6214 = vand.u32 %v6067, 4294901760
    %v6215 = vsub.f32 %v6067, %v6214
    %v6216 = vand.u32 %v6215, 4294901760
    %v6217 = vsub.f32 %v6215, %v6216
    %v6218 = vand.u32 %v6217, 4294901760
    %6219 = vmatmul.f32.gmra.mxu0 %v6218
    %v6220 = vpop.f32.mrf.mxu0
    %v6221 = vadd.f32 0.0, %v6220
    %v6222 = vand.u32 %v6070, 4294901760
    %v6223 = vsub.f32 %v6070, %v6222
    %v6224 = vand.u32 %v6223, 4294901760
    %v6225 = vsub.f32 %v6223, %v6224
    %v6226 = vand.u32 %v6225, 4294901760
    %6227 = vmatmul.f32.gmra.mxu0 %v6226
    %v6228 = vpop.f32.mrf.mxu0
    %v6229 = vadd.f32 0.0, %v6228
    %v6230 = vand.u32 %v6073, 4294901760
    %v6231 = vsub.f32 %v6073, %v6230
    %v6232 = vand.u32 %v6231, 4294901760
    %v6233 = vsub.f32 %v6231, %v6232
    %v6234 = vand.u32 %v6233, 4294901760
    %6235 = vmatmul.f32.gmra.mxu0 %v6234
    %v6236 = vpop.f32.mrf.mxu0
    %v6237 = vadd.f32 0.0, %v6236
    %v6238 = vand.u32 %v6076, 4294901760
    %v6239 = vsub.f32 %v6076, %v6238
    %v6240 = vand.u32 %v6239, 4294901760
    %v6241 = vsub.f32 %v6239, %v6240
    %v6242 = vand.u32 %v6241, 4294901760
    %6243 = vmatmul.f32.gmra.mxu0 %v6242
    %v6244 = vpop.f32.mrf.mxu0
    %v6245 = vadd.f32 0.0, %v6244
    %v6246 = vand.u32 %v6079, 4294901760
    %v6247 = vsub.f32 %v6079, %v6246
    %v6248 = vand.u32 %v6247, 4294901760
    %v6249 = vsub.f32 %v6247, %v6248
    %v6250 = vand.u32 %v6249, 4294901760
    %6251 = vmatmul.f32.gmra.mxu0 %v6250
    %v6252 = vpop.f32.mrf.mxu0
    %v6253 = vadd.f32 0.0, %v6252
    %v6254 = vand.u32 %v6082, 4294901760
    %v6255 = vsub.f32 %v6082, %v6254
    %v6256 = vand.u32 %v6255, 4294901760
    %v6257 = vsub.f32 %v6255, %v6256
    %v6258 = vand.u32 %v6257, 4294901760
    %6259 = vmatmul.f32.gmra.mxu0 %v6258
    %v6260 = vpop.f32.mrf.mxu0
    %v6261 = vadd.f32 0.0, %v6260
    %v6262 = vand.u32 %v6085, 4294901760
    %v6263 = vsub.f32 %v6085, %v6262
    %v6264 = vand.u32 %v6263, 4294901760
    %v6265 = vsub.f32 %v6263, %v6264
    %v6266 = vand.u32 %v6265, 4294901760
    %6267 = vmatmul.f32.gmra.mxu0 %v6266
    %v6268 = vpop.f32.mrf.mxu0
    %v6269 = vadd.f32 0.0, %v6268
    %v6270 = vand.u32 %v6088, 4294901760
    %v6271 = vsub.f32 %v6088, %v6270
    %v6272 = vand.u32 %v6271, 4294901760
    %v6273 = vsub.f32 %v6271, %v6272
    %v6274 = vand.u32 %v6273, 4294901760
    %6275 = vmatmul.f32.gmra.mxu0 %v6274
    %v6276 = vpop.f32.mrf.mxu0
    %v6277 = vadd.f32 0.0, %v6276
    %v6278 = vand.u32 %v6091, 4294901760
    %v6279 = vsub.f32 %v6091, %v6278
    %v6280 = vand.u32 %v6279, 4294901760
    %v6281 = vsub.f32 %v6279, %v6280
    %v6282 = vand.u32 %v6281, 4294901760
    %6283 = vmatmul.f32.gmra.mxu0 %v6282
    %v6284 = vpop.f32.mrf.mxu0
    %v6285 = vadd.f32 0.0, %v6284
    %v6286 = vand.u32 %v6094, 4294901760
    %v6287 = vsub.f32 %v6094, %v6286
    %v6288 = vand.u32 %v6287, 4294901760
    %v6289 = vsub.f32 %v6287, %v6288
    %v6290 = vand.u32 %v6289, 4294901760
    %6291 = vmatmul.f32.gmra.mxu0 %v6290
    %v6292 = vpop.f32.mrf.mxu0
    %v6293 = vadd.f32 0.0, %v6292
    %v6294 = vand.u32 %v6097, 4294901760
    %v6295 = vsub.f32 %v6097, %v6294
    %v6296 = vand.u32 %v6295, 4294901760
    %v6297 = vsub.f32 %v6295, %v6296
    %v6298 = vand.u32 %v6297, 4294901760
    %6299 = vmatmul.f32.gmra.mxu0 %v6298
    %v6300 = vpop.f32.mrf.mxu0
    %v6301 = vadd.f32 0.0, %v6300
    %v6302 = vand.u32 %v6100, 4294901760
    %v6303 = vsub.f32 %v6100, %v6302
    %v6304 = vand.u32 %v6303, 4294901760
    %v6305 = vsub.f32 %v6303, %v6304
    %v6306 = vand.u32 %v6305, 4294901760
    %6307 = vmatmul.f32.gmra.mxu0 %v6306
    %v6308 = vpop.f32.mrf.mxu0
    %v6309 = vadd.f32 0.0, %v6308
    %v6310 = vand.u32 %v6103, 4294901760
    %v6311 = vsub.f32 %v6103, %v6310
    %v6312 = vand.u32 %v6311, 4294901760
    %v6313 = vsub.f32 %v6311, %v6312
    %v6314 = vand.u32 %v6313, 4294901760
    %6315 = vmatmul.f32.gmra.mxu0 %v6314
    %v6316 = vpop.f32.mrf.mxu0
    %v6317 = vadd.f32 0.0, %v6316
    %v6318 = vand.u32 %v6106, 4294901760
    %v6319 = vsub.f32 %v6106, %v6318
    %v6320 = vand.u32 %v6319, 4294901760
    %v6321 = vsub.f32 %v6319, %v6320
    %v6322 = vand.u32 %v6321, 4294901760
    %6323 = vmatmul.f32.gmra.mxu0 %v6322
    %v6324 = vpop.f32.mrf.mxu0
    %v6325 = vadd.f32 0.0, %v6324
    %v6326 = vand.u32 %v6109, 4294901760
    %v6327 = vsub.f32 %v6109, %v6326
    %v6328 = vand.u32 %v6327, 4294901760
    %v6329 = vsub.f32 %v6327, %v6328
    %v6330 = vand.u32 %v6329, 4294901760
    %6331 = vmatmul.f32.gmra.mxu0 %v6330
    %v6332 = vpop.f32.mrf.mxu0
    %v6333 = vadd.f32 0.0, %v6332
    %v6334 = vand.u32 %v6112, 4294901760
    %v6335 = vsub.f32 %v6112, %v6334
    %v6336 = vand.u32 %v6335, 4294901760
    %v6337 = vsub.f32 %v6335, %v6336
    %v6338 = vand.u32 %v6337, 4294901760
    %6339 = vmatmul.f32.gmra.mxu0 %v6338
    %v6340 = vpop.f32.mrf.mxu0
    %v6341 = vadd.f32 0.0, %v6340
    %v6342 = vand.u32 %v6115, 4294901760
    %v6343 = vsub.f32 %v6115, %v6342
    %v6344 = vand.u32 %v6343, 4294901760
    %v6345 = vsub.f32 %v6343, %v6344
    %v6346 = vand.u32 %v6345, 4294901760
    %6347 = vmatmul.f32.gmra.mxu0 %v6346
    %v6348 = vpop.f32.mrf.mxu0
    %v6349 = vadd.f32 0.0, %v6348
    %v6350 = vand.u32 %v6118, 4294901760
    %v6351 = vsub.f32 %v6118, %v6350
    %v6352 = vand.u32 %v6351, 4294901760
    %v6353 = vsub.f32 %v6351, %v6352
    %v6354 = vand.u32 %v6353, 4294901760
    %6355 = vmatmul.f32.gmra.mxu0 %v6354
    %v6356 = vpop.f32.mrf.mxu0
    %v6357 = vadd.f32 0.0, %v6356
    %v6358 = vand.u32 %v6121, 4294901760
    %v6359 = vsub.f32 %v6121, %v6358
    %v6360 = vand.u32 %v6359, 4294901760
    %v6361 = vsub.f32 %v6359, %v6360
    %v6362 = vand.u32 %v6361, 4294901760
    %6363 = vmatmul.f32.gmra.mxu0 %v6362
    %v6364 = vpop.f32.mrf.mxu0
    %v6365 = vadd.f32 0.0, %v6364
    %v6366 = vand.u32 %v6124, 4294901760
    %v6367 = vsub.f32 %v6124, %v6366
    %v6368 = vand.u32 %v6367, 4294901760
    %v6369 = vsub.f32 %v6367, %v6368
    %v6370 = vand.u32 %v6369, 4294901760
    %6371 = vmatmul.f32.gmra.mxu0 %v6370
    %v6372 = vpop.f32.mrf.mxu0
    %v6373 = vadd.f32 0.0, %v6372
    %v6374 = vand.u32 %v6127, 4294901760
    %v6375 = vsub.f32 %v6127, %v6374
    %v6376 = vand.u32 %v6375, 4294901760
    %v6377 = vsub.f32 %v6375, %v6376
    %v6378 = vand.u32 %v6377, 4294901760
    %6379 = vmatmul.f32.gmra.mxu0 %v6378
    %v6380 = vpop.f32.mrf.mxu0
    %v6381 = vadd.f32 0.0, %v6380
    %v6382 = vand.u32 %v6130, 4294901760
    %v6383 = vsub.f32 %v6130, %v6382
    %v6384 = vand.u32 %v6383, 4294901760
    %v6385 = vsub.f32 %v6383, %v6384
    %v6386 = vand.u32 %v6385, 4294901760
    %6387 = vmatmul.f32.gmra.mxu0 %v6386
    %v6388 = vpop.f32.mrf.mxu0
    %v6389 = vadd.f32 0.0, %v6388
    %v6390 = vand.u32 %v6133, 4294901760
    %v6391 = vsub.f32 %v6133, %v6390
    %v6392 = vand.u32 %v6391, 4294901760
    %v6393 = vsub.f32 %v6391, %v6392
    %v6394 = vand.u32 %v6393, 4294901760
    %6395 = vmatmul.f32.gmra.mxu0 %v6394
    %v6396 = vpop.f32.mrf.mxu0
    %v6397 = vadd.f32 0.0, %v6396
    %v6398 = vand.u32 %v6136, 4294901760
    %v6399 = vsub.f32 %v6136, %v6398
    %v6400 = vand.u32 %v6399, 4294901760
    %v6401 = vsub.f32 %v6399, %v6400
    %v6402 = vand.u32 %v6401, 4294901760
    %6403 = vmatmul.f32.gmra.mxu0 %v6402
    %v6404 = vpop.f32.mrf.mxu0
    %v6405 = vadd.f32 0.0, %v6404
    %v6406 = vand.u32 %v6139, 4294901760
    %v6407 = vsub.f32 %v6139, %v6406
    %v6408 = vand.u32 %v6407, 4294901760
    %v6409 = vsub.f32 %v6407, %v6408
    %v6410 = vand.u32 %v6409, 4294901760
    %6411 = vmatmul.f32.gmra.mxu0 %v6410
    %v6412 = vpop.f32.mrf.mxu0
    %v6413 = vadd.f32 0.0, %v6412
    %6414 = vdwg.mxu0
    %6415 = vmatpush.msra.mxu0 0.0
    %6416 = vmatpush.msra.mxu0 0.0
    %6417 = vmatpush.msra.mxu0 0.0
    %6418 = vmatpush.msra.mxu0 0.0
    %6419 = vmatpush.msra.mxu0 0.0
    %6420 = vmatpush.msra.mxu0 0.0
    %6421 = vmatpush.msra.mxu0 0.0
    %6422 = vmatpush.msra.mxu0 0.0
    %6423 = vmatpush.msra.mxu0 0.0
    %6424 = vmatpush.msra.mxu0 0.0
    %6425 = vmatpush.msra.mxu0 0.0
    %6426 = vmatpush.msra.mxu0 0.0
    %6427 = vmatpush.msra.mxu0 0.0
    %6428 = vmatpush.msra.mxu0 0.0
    %6429 = vmatpush.msra.mxu0 0.0
    %v6430 = vand.u32 %v5767, 4294901760
    %v6431 = vsub.f32 %v5767, %v6430
    %v6432 = vand.u32 %v6431, 4294901760
    %v6433 = vsub.f32 %v6431, %v6432
    %v6434 = vand.u32 %v6433, 4294901760
    %6435 = vmatpush.msra.mxu0 %v6434
    %v6436 = vand.u32 %v6046, 4294901760
    %6437 = vmatmul.f32.gmra.mxu0 %v6436
    %v6438 = vpop.f32.mrf.mxu0
    %v6439 = vadd.f32 %v6165, %v6438
    %v6440 = vand.u32 %v6049, 4294901760
    %6441 = vmatmul.f32.gmra.mxu0 %v6440
    %v6442 = vpop.f32.mrf.mxu0
    %v6443 = vadd.f32 %v6173, %v6442
    %v6444 = vand.u32 %v6052, 4294901760
    %6445 = vmatmul.f32.gmra.mxu0 %v6444
    %v6446 = vpop.f32.mrf.mxu0
    %v6447 = vadd.f32 %v6181, %v6446
    %v6448 = vand.u32 %v6055, 4294901760
    %6449 = vmatmul.f32.gmra.mxu0 %v6448
    %v6450 = vpop.f32.mrf.mxu0
    %v6451 = vadd.f32 %v6189, %v6450
    %v6452 = vand.u32 %v6058, 4294901760
    %6453 = vmatmul.f32.gmra.mxu0 %v6452
    %v6454 = vpop.f32.mrf.mxu0
    %v6455 = vadd.f32 %v6197, %v6454
    %v6456 = vand.u32 %v6061, 4294901760
    %6457 = vmatmul.f32.gmra.mxu0 %v6456
    %v6458 = vpop.f32.mrf.mxu0
    %v6459 = vadd.f32 %v6205, %v6458
    %v6460 = vand.u32 %v6064, 4294901760
    %6461 = vmatmul.f32.gmra.mxu0 %v6460
    %v6462 = vpop.f32.mrf.mxu0
    %v6463 = vadd.f32 %v6213, %v6462
    %v6464 = vand.u32 %v6067, 4294901760
    %6465 = vmatmul.f32.gmra.mxu0 %v6464
    %v6466 = vpop.f32.mrf.mxu0
    %v6467 = vadd.f32 %v6221, %v6466
    %v6468 = vand.u32 %v6070, 4294901760
    %6469 = vmatmul.f32.gmra.mxu0 %v6468
    %v6470 = vpop.f32.mrf.mxu0
    %v6471 = vadd.f32 %v6229, %v6470
    %v6472 = vand.u32 %v6073, 4294901760
    %6473 = vmatmul.f32.gmra.mxu0 %v6472
    %v6474 = vpop.f32.mrf.mxu0
    %v6475 = vadd.f32 %v6237, %v6474
    %v6476 = vand.u32 %v6076, 4294901760
    %6477 = vmatmul.f32.gmra.mxu0 %v6476
    %v6478 = vpop.f32.mrf.mxu0
    %v6479 = vadd.f32 %v6245, %v6478
    %v6480 = vand.u32 %v6079, 4294901760
    %6481 = vmatmul.f32.gmra.mxu0 %v6480
    %v6482 = vpop.f32.mrf.mxu0
    %v6483 = vadd.f32 %v6253, %v6482
    %v6484 = vand.u32 %v6082, 4294901760
    %6485 = vmatmul.f32.gmra.mxu0 %v6484
    %v6486 = vpop.f32.mrf.mxu0
    %v6487 = vadd.f32 %v6261, %v6486
    %v6488 = vand.u32 %v6085, 4294901760
    %6489 = vmatmul.f32.gmra.mxu0 %v6488
    %v6490 = vpop.f32.mrf.mxu0
    %v6491 = vadd.f32 %v6269, %v6490
    %v6492 = vand.u32 %v6088, 4294901760
    %6493 = vmatmul.f32.gmra.mxu0 %v6492
    %v6494 = vpop.f32.mrf.mxu0
    %v6495 = vadd.f32 %v6277, %v6494
    %v6496 = vand.u32 %v6091, 4294901760
    %6497 = vmatmul.f32.gmra.mxu0 %v6496
    %v6498 = vpop.f32.mrf.mxu0
    %v6499 = vadd.f32 %v6285, %v6498
    %v6500 = vand.u32 %v6094, 4294901760
    %6501 = vmatmul.f32.gmra.mxu0 %v6500
    %v6502 = vpop.f32.mrf.mxu0
    %v6503 = vadd.f32 %v6293, %v6502
    %v6504 = vand.u32 %v6097, 4294901760
    %6505 = vmatmul.f32.gmra.mxu0 %v6504
    %v6506 = vpop.f32.mrf.mxu0
    %v6507 = vadd.f32 %v6301, %v6506
    %v6508 = vand.u32 %v6100, 4294901760
    %6509 = vmatmul.f32.gmra.mxu0 %v6508
    %v6510 = vpop.f32.mrf.mxu0
    %v6511 = vadd.f32 %v6309, %v6510
    %v6512 = vand.u32 %v6103, 4294901760
    %6513 = vmatmul.f32.gmra.mxu0 %v6512
    %v6514 = vpop.f32.mrf.mxu0
    %v6515 = vadd.f32 %v6317, %v6514
    %v6516 = vand.u32 %v6106, 4294901760
    %6517 = vmatmul.f32.gmra.mxu0 %v6516
    %v6518 = vpop.f32.mrf.mxu0
    %v6519 = vadd.f32 %v6325, %v6518
    %v6520 = vand.u32 %v6109, 4294901760
    %6521 = vmatmul.f32.gmra.mxu0 %v6520
    %v6522 = vpop.f32.mrf.mxu0
    %v6523 = vadd.f32 %v6333, %v6522
    %v6524 = vand.u32 %v6112, 4294901760
    %6525 = vmatmul.f32.gmra.mxu0 %v6524
    %v6526 = vpop.f32.mrf.mxu0
    %v6527 = vadd.f32 %v6341, %v6526
    %v6528 = vand.u32 %v6115, 4294901760
    %6529 = vmatmul.f32.gmra.mxu0 %v6528
    %v6530 = vpop.f32.mrf.mxu0
    %v6531 = vadd.f32 %v6349, %v6530
    %v6532 = vand.u32 %v6118, 4294901760
    %6533 = vmatmul.f32.gmra.mxu0 %v6532
    %v6534 = vpop.f32.mrf.mxu0
    %v6535 = vadd.f32 %v6357, %v6534
    %v6536 = vand.u32 %v6121, 4294901760
    %6537 = vmatmul.f32.gmra.mxu0 %v6536
    %v6538 = vpop.f32.mrf.mxu0
    %v6539 = vadd.f32 %v6365, %v6538
    %v6540 = vand.u32 %v6124, 4294901760
    %6541 = vmatmul.f32.gmra.mxu0 %v6540
    %v6542 = vpop.f32.mrf.mxu0
    %v6543 = vadd.f32 %v6373, %v6542
    %v6544 = vand.u32 %v6127, 4294901760
    %6545 = vmatmul.f32.gmra.mxu0 %v6544
    %v6546 = vpop.f32.mrf.mxu0
    %v6547 = vadd.f32 %v6381, %v6546
    %v6548 = vand.u32 %v6130, 4294901760
    %6549 = vmatmul.f32.gmra.mxu0 %v6548
    %v6550 = vpop.f32.mrf.mxu0
    %v6551 = vadd.f32 %v6389, %v6550
    %v6552 = vand.u32 %v6133, 4294901760
    %6553 = vmatmul.f32.gmra.mxu0 %v6552
    %v6554 = vpop.f32.mrf.mxu0
    %v6555 = vadd.f32 %v6397, %v6554
    %v6556 = vand.u32 %v6136, 4294901760
    %6557 = vmatmul.f32.gmra.mxu0 %v6556
    %v6558 = vpop.f32.mrf.mxu0
    %v6559 = vadd.f32 %v6405, %v6558
    %v6560 = vand.u32 %v6139, 4294901760
    %6561 = vmatmul.f32.gmra.mxu0 %v6560
    %v6562 = vpop.f32.mrf.mxu0
    %v6563 = vadd.f32 %v6413, %v6562
    %6564 = vdwg.mxu0
    %6565 = vmatpush.msra.mxu0 0.0
    %6566 = vmatpush.msra.mxu0 0.0
    %6567 = vmatpush.msra.mxu0 0.0
    %6568 = vmatpush.msra.mxu0 0.0
    %6569 = vmatpush.msra.mxu0 0.0
    %6570 = vmatpush.msra.mxu0 0.0
    %6571 = vmatpush.msra.mxu0 0.0
    %6572 = vmatpush.msra.mxu0 0.0
    %6573 = vmatpush.msra.mxu0 0.0
    %6574 = vmatpush.msra.mxu0 0.0
    %6575 = vmatpush.msra.mxu0 0.0
    %6576 = vmatpush.msra.mxu0 0.0
    %6577 = vmatpush.msra.mxu0 0.0
    %6578 = vmatpush.msra.mxu0 0.0
    %6579 = vmatpush.msra.mxu0 0.0
    %v6580 = vand.u32 %v5767, 4294901760
    %v6581 = vsub.f32 %v5767, %v6580
    %6582 = vmatpush.msra.mxu0 %v6581
    %v6583 = vand.u32 %v6046, 4294901760
    %v6584 = vsub.f32 %v6046, %v6583
    %6585 = vmatmul.f32.gmra.mxu0 %v6584
    %v6586 = vpop.f32.mrf.mxu0
    %v6587 = vadd.f32 %v6439, %v6586
    %v6588 = vand.u32 %v6049, 4294901760
    %v6589 = vsub.f32 %v6049, %v6588
    %6590 = vmatmul.f32.gmra.mxu0 %v6589
    %v6591 = vpop.f32.mrf.mxu0
    %v6592 = vadd.f32 %v6443, %v6591
    %v6593 = vand.u32 %v6052, 4294901760
    %v6594 = vsub.f32 %v6052, %v6593
    %6595 = vmatmul.f32.gmra.mxu0 %v6594
    %v6596 = vpop.f32.mrf.mxu0
    %v6597 = vadd.f32 %v6447, %v6596
    %v6598 = vand.u32 %v6055, 4294901760
    %v6599 = vsub.f32 %v6055, %v6598
    %6600 = vmatmul.f32.gmra.mxu0 %v6599
    %v6601 = vpop.f32.mrf.mxu0
    %v6602 = vadd.f32 %v6451, %v6601
    %v6603 = vand.u32 %v6058, 4294901760
    %v6604 = vsub.f32 %v6058, %v6603
    %6605 = vmatmul.f32.gmra.mxu0 %v6604
    %v6606 = vpop.f32.mrf.mxu0
    %v6607 = vadd.f32 %v6455, %v6606
    %v6608 = vand.u32 %v6061, 4294901760
    %v6609 = vsub.f32 %v6061, %v6608
    %6610 = vmatmul.f32.gmra.mxu0 %v6609
    %v6611 = vpop.f32.mrf.mxu0
    %v6612 = vadd.f32 %v6459, %v6611
    %v6613 = vand.u32 %v6064, 4294901760
    %v6614 = vsub.f32 %v6064, %v6613
    %6615 = vmatmul.f32.gmra.mxu0 %v6614
    %v6616 = vpop.f32.mrf.mxu0
    %v6617 = vadd.f32 %v6463, %v6616
    %v6618 = vand.u32 %v6067, 4294901760
    %v6619 = vsub.f32 %v6067, %v6618
    %6620 = vmatmul.f32.gmra.mxu0 %v6619
    %v6621 = vpop.f32.mrf.mxu0
    %v6622 = vadd.f32 %v6467, %v6621
    %v6623 = vand.u32 %v6070, 4294901760
    %v6624 = vsub.f32 %v6070, %v6623
    %6625 = vmatmul.f32.gmra.mxu0 %v6624
    %v6626 = vpop.f32.mrf.mxu0
    %v6627 = vadd.f32 %v6471, %v6626
    %v6628 = vand.u32 %v6073, 4294901760
    %v6629 = vsub.f32 %v6073, %v6628
    %6630 = vmatmul.f32.gmra.mxu0 %v6629
    %v6631 = vpop.f32.mrf.mxu0
    %v6632 = vadd.f32 %v6475, %v6631
    %v6633 = vand.u32 %v6076, 4294901760
    %v6634 = vsub.f32 %v6076, %v6633
    %6635 = vmatmul.f32.gmra.mxu0 %v6634
    %v6636 = vpop.f32.mrf.mxu0
    %v6637 = vadd.f32 %v6479, %v6636
    %v6638 = vand.u32 %v6079, 4294901760
    %v6639 = vsub.f32 %v6079, %v6638
    %6640 = vmatmul.f32.gmra.mxu0 %v6639
    %v6641 = vpop.f32.mrf.mxu0
    %v6642 = vadd.f32 %v6483, %v6641
    %v6643 = vand.u32 %v6082, 4294901760
    %v6644 = vsub.f32 %v6082, %v6643
    %6645 = vmatmul.f32.gmra.mxu0 %v6644
    %v6646 = vpop.f32.mrf.mxu0
    %v6647 = vadd.f32 %v6487, %v6646
    %v6648 = vand.u32 %v6085, 4294901760
    %v6649 = vsub.f32 %v6085, %v6648
    %6650 = vmatmul.f32.gmra.mxu0 %v6649
    %v6651 = vpop.f32.mrf.mxu0
    %v6652 = vadd.f32 %v6491, %v6651
    %v6653 = vand.u32 %v6088, 4294901760
    %v6654 = vsub.f32 %v6088, %v6653
    %6655 = vmatmul.f32.gmra.mxu0 %v6654
    %v6656 = vpop.f32.mrf.mxu0
    %v6657 = vadd.f32 %v6495, %v6656
    %v6658 = vand.u32 %v6091, 4294901760
    %v6659 = vsub.f32 %v6091, %v6658
    %6660 = vmatmul.f32.gmra.mxu0 %v6659
    %v6661 = vpop.f32.mrf.mxu0
    %v6662 = vadd.f32 %v6499, %v6661
    %v6663 = vand.u32 %v6094, 4294901760
    %v6664 = vsub.f32 %v6094, %v6663
    %6665 = vmatmul.f32.gmra.mxu0 %v6664
    %v6666 = vpop.f32.mrf.mxu0
    %v6667 = vadd.f32 %v6503, %v6666
    %v6668 = vand.u32 %v6097, 4294901760
    %v6669 = vsub.f32 %v6097, %v6668
    %6670 = vmatmul.f32.gmra.mxu0 %v6669
    %v6671 = vpop.f32.mrf.mxu0
    %v6672 = vadd.f32 %v6507, %v6671
    %v6673 = vand.u32 %v6100, 4294901760
    %v6674 = vsub.f32 %v6100, %v6673
    %6675 = vmatmul.f32.gmra.mxu0 %v6674
    %v6676 = vpop.f32.mrf.mxu0
    %v6677 = vadd.f32 %v6511, %v6676
    %v6678 = vand.u32 %v6103, 4294901760
    %v6679 = vsub.f32 %v6103, %v6678
    %6680 = vmatmul.f32.gmra.mxu0 %v6679
    %v6681 = vpop.f32.mrf.mxu0
    %v6682 = vadd.f32 %v6515, %v6681
    %v6683 = vand.u32 %v6106, 4294901760
    %v6684 = vsub.f32 %v6106, %v6683
    %6685 = vmatmul.f32.gmra.mxu0 %v6684
    %v6686 = vpop.f32.mrf.mxu0
    %v6687 = vadd.f32 %v6519, %v6686
    %v6688 = vand.u32 %v6109, 4294901760
    %v6689 = vsub.f32 %v6109, %v6688
    %6690 = vmatmul.f32.gmra.mxu0 %v6689
    %v6691 = vpop.f32.mrf.mxu0
    %v6692 = vadd.f32 %v6523, %v6691
    %v6693 = vand.u32 %v6112, 4294901760
    %v6694 = vsub.f32 %v6112, %v6693
    %6695 = vmatmul.f32.gmra.mxu0 %v6694
    %v6696 = vpop.f32.mrf.mxu0
    %v6697 = vadd.f32 %v6527, %v6696
    %v6698 = vand.u32 %v6115, 4294901760
    %v6699 = vsub.f32 %v6115, %v6698
    %6700 = vmatmul.f32.gmra.mxu0 %v6699
    %v6701 = vpop.f32.mrf.mxu0
    %v6702 = vadd.f32 %v6531, %v6701
    %v6703 = vand.u32 %v6118, 4294901760
    %v6704 = vsub.f32 %v6118, %v6703
    %6705 = vmatmul.f32.gmra.mxu0 %v6704
    %v6706 = vpop.f32.mrf.mxu0
    %v6707 = vadd.f32 %v6535, %v6706
    %v6708 = vand.u32 %v6121, 4294901760
    %v6709 = vsub.f32 %v6121, %v6708
    %6710 = vmatmul.f32.gmra.mxu0 %v6709
    %v6711 = vpop.f32.mrf.mxu0
    %v6712 = vadd.f32 %v6539, %v6711
    %v6713 = vand.u32 %v6124, 4294901760
    %v6714 = vsub.f32 %v6124, %v6713
    %6715 = vmatmul.f32.gmra.mxu0 %v6714
    %v6716 = vpop.f32.mrf.mxu0
    %v6717 = vadd.f32 %v6543, %v6716
    %v6718 = vand.u32 %v6127, 4294901760
    %v6719 = vsub.f32 %v6127, %v6718
    %6720 = vmatmul.f32.gmra.mxu0 %v6719
    %v6721 = vpop.f32.mrf.mxu0
    %v6722 = vadd.f32 %v6547, %v6721
    %v6723 = vand.u32 %v6130, 4294901760
    %v6724 = vsub.f32 %v6130, %v6723
    %6725 = vmatmul.f32.gmra.mxu0 %v6724
    %v6726 = vpop.f32.mrf.mxu0
    %v6727 = vadd.f32 %v6551, %v6726
    %v6728 = vand.u32 %v6133, 4294901760
    %v6729 = vsub.f32 %v6133, %v6728
    %6730 = vmatmul.f32.gmra.mxu0 %v6729
    %v6731 = vpop.f32.mrf.mxu0
    %v6732 = vadd.f32 %v6555, %v6731
    %v6733 = vand.u32 %v6136, 4294901760
    %v6734 = vsub.f32 %v6136, %v6733
    %6735 = vmatmul.f32.gmra.mxu0 %v6734
    %v6736 = vpop.f32.mrf.mxu0
    %v6737 = vadd.f32 %v6559, %v6736
    %v6738 = vand.u32 %v6139, 4294901760
    %v6739 = vsub.f32 %v6139, %v6738
    %6740 = vmatmul.f32.gmra.mxu0 %v6739
    %v6741 = vpop.f32.mrf.mxu0
    %v6742 = vadd.f32 %v6563, %v6741
    %6743 = vdwg.mxu0
    %6744 = vmatpush.msra.mxu0 0.0
    %6745 = vmatpush.msra.mxu0 0.0
    %6746 = vmatpush.msra.mxu0 0.0
    %6747 = vmatpush.msra.mxu0 0.0
    %6748 = vmatpush.msra.mxu0 0.0
    %6749 = vmatpush.msra.mxu0 0.0
    %6750 = vmatpush.msra.mxu0 0.0
    %6751 = vmatpush.msra.mxu0 0.0
    %6752 = vmatpush.msra.mxu0 0.0
    %6753 = vmatpush.msra.mxu0 0.0
    %6754 = vmatpush.msra.mxu0 0.0
    %6755 = vmatpush.msra.mxu0 0.0
    %6756 = vmatpush.msra.mxu0 0.0
    %6757 = vmatpush.msra.mxu0 0.0
    %6758 = vmatpush.msra.mxu0 0.0
    %v6759 = vand.u32 %v5767, 4294901760
    %6760 = vmatpush.msra.mxu0 %v6759
    %v6761 = vand.u32 %v6046, 4294901760
    %v6762 = vsub.f32 %v6046, %v6761
    %v6763 = vand.u32 %v6762, 4294901760
    %6764 = vmatmul.f32.gmra.mxu0 %v6763
    %v6765 = vpop.f32.mrf.mxu0
    %v6766 = vadd.f32 %v6587, %v6765
    %v6767 = vand.u32 %v6049, 4294901760
    %v6768 = vsub.f32 %v6049, %v6767
    %v6769 = vand.u32 %v6768, 4294901760
    %6770 = vmatmul.f32.gmra.mxu0 %v6769
    %v6771 = vpop.f32.mrf.mxu0
    %v6772 = vadd.f32 %v6592, %v6771
    %v6773 = vand.u32 %v6052, 4294901760
    %v6774 = vsub.f32 %v6052, %v6773
    %v6775 = vand.u32 %v6774, 4294901760
    %6776 = vmatmul.f32.gmra.mxu0 %v6775
    %v6777 = vpop.f32.mrf.mxu0
    %v6778 = vadd.f32 %v6597, %v6777
    %v6779 = vand.u32 %v6055, 4294901760
    %v6780 = vsub.f32 %v6055, %v6779
    %v6781 = vand.u32 %v6780, 4294901760
    %6782 = vmatmul.f32.gmra.mxu0 %v6781
    %v6783 = vpop.f32.mrf.mxu0
    %v6784 = vadd.f32 %v6602, %v6783
    %v6785 = vand.u32 %v6058, 4294901760
    %v6786 = vsub.f32 %v6058, %v6785
    %v6787 = vand.u32 %v6786, 4294901760
    %6788 = vmatmul.f32.gmra.mxu0 %v6787
    %v6789 = vpop.f32.mrf.mxu0
    %v6790 = vadd.f32 %v6607, %v6789
    %v6791 = vand.u32 %v6061, 4294901760
    %v6792 = vsub.f32 %v6061, %v6791
    %v6793 = vand.u32 %v6792, 4294901760
    %6794 = vmatmul.f32.gmra.mxu0 %v6793
    %v6795 = vpop.f32.mrf.mxu0
    %v6796 = vadd.f32 %v6612, %v6795
    %v6797 = vand.u32 %v6064, 4294901760
    %v6798 = vsub.f32 %v6064, %v6797
    %v6799 = vand.u32 %v6798, 4294901760
    %6800 = vmatmul.f32.gmra.mxu0 %v6799
    %v6801 = vpop.f32.mrf.mxu0
    %v6802 = vadd.f32 %v6617, %v6801
    %v6803 = vand.u32 %v6067, 4294901760
    %v6804 = vsub.f32 %v6067, %v6803
    %v6805 = vand.u32 %v6804, 4294901760
    %6806 = vmatmul.f32.gmra.mxu0 %v6805
    %v6807 = vpop.f32.mrf.mxu0
    %v6808 = vadd.f32 %v6622, %v6807
    %v6809 = vand.u32 %v6070, 4294901760
    %v6810 = vsub.f32 %v6070, %v6809
    %v6811 = vand.u32 %v6810, 4294901760
    %6812 = vmatmul.f32.gmra.mxu0 %v6811
    %v6813 = vpop.f32.mrf.mxu0
    %v6814 = vadd.f32 %v6627, %v6813
    %v6815 = vand.u32 %v6073, 4294901760
    %v6816 = vsub.f32 %v6073, %v6815
    %v6817 = vand.u32 %v6816, 4294901760
    %6818 = vmatmul.f32.gmra.mxu0 %v6817
    %v6819 = vpop.f32.mrf.mxu0
    %v6820 = vadd.f32 %v6632, %v6819
    %v6821 = vand.u32 %v6076, 4294901760
    %v6822 = vsub.f32 %v6076, %v6821
    %v6823 = vand.u32 %v6822, 4294901760
    %6824 = vmatmul.f32.gmra.mxu0 %v6823
    %v6825 = vpop.f32.mrf.mxu0
    %v6826 = vadd.f32 %v6637, %v6825
    %v6827 = vand.u32 %v6079, 4294901760
    %v6828 = vsub.f32 %v6079, %v6827
    %v6829 = vand.u32 %v6828, 4294901760
    %6830 = vmatmul.f32.gmra.mxu0 %v6829
    %v6831 = vpop.f32.mrf.mxu0
    %v6832 = vadd.f32 %v6642, %v6831
    %v6833 = vand.u32 %v6082, 4294901760
    %v6834 = vsub.f32 %v6082, %v6833
    %v6835 = vand.u32 %v6834, 4294901760
    %6836 = vmatmul.f32.gmra.mxu0 %v6835
    %v6837 = vpop.f32.mrf.mxu0
    %v6838 = vadd.f32 %v6647, %v6837
    %v6839 = vand.u32 %v6085, 4294901760
    %v6840 = vsub.f32 %v6085, %v6839
    %v6841 = vand.u32 %v6840, 4294901760
    %6842 = vmatmul.f32.gmra.mxu0 %v6841
    %v6843 = vpop.f32.mrf.mxu0
    %v6844 = vadd.f32 %v6652, %v6843
    %v6845 = vand.u32 %v6088, 4294901760
    %v6846 = vsub.f32 %v6088, %v6845
    %v6847 = vand.u32 %v6846, 4294901760
    %6848 = vmatmul.f32.gmra.mxu0 %v6847
    %v6849 = vpop.f32.mrf.mxu0
    %v6850 = vadd.f32 %v6657, %v6849
    %v6851 = vand.u32 %v6091, 4294901760
    %v6852 = vsub.f32 %v6091, %v6851
    %v6853 = vand.u32 %v6852, 4294901760
    %6854 = vmatmul.f32.gmra.mxu0 %v6853
    %v6855 = vpop.f32.mrf.mxu0
    %v6856 = vadd.f32 %v6662, %v6855
    %v6857 = vand.u32 %v6094, 4294901760
    %v6858 = vsub.f32 %v6094, %v6857
    %v6859 = vand.u32 %v6858, 4294901760
    %6860 = vmatmul.f32.gmra.mxu0 %v6859
    %v6861 = vpop.f32.mrf.mxu0
    %v6862 = vadd.f32 %v6667, %v6861
    %v6863 = vand.u32 %v6097, 4294901760
    %v6864 = vsub.f32 %v6097, %v6863
    %v6865 = vand.u32 %v6864, 4294901760
    %6866 = vmatmul.f32.gmra.mxu0 %v6865
    %v6867 = vpop.f32.mrf.mxu0
    %v6868 = vadd.f32 %v6672, %v6867
    %v6869 = vand.u32 %v6100, 4294901760
    %v6870 = vsub.f32 %v6100, %v6869
    %v6871 = vand.u32 %v6870, 4294901760
    %6872 = vmatmul.f32.gmra.mxu0 %v6871
    %v6873 = vpop.f32.mrf.mxu0
    %v6874 = vadd.f32 %v6677, %v6873
    %v6875 = vand.u32 %v6103, 4294901760
    %v6876 = vsub.f32 %v6103, %v6875
    %v6877 = vand.u32 %v6876, 4294901760
    %6878 = vmatmul.f32.gmra.mxu0 %v6877
    %v6879 = vpop.f32.mrf.mxu0
    %v6880 = vadd.f32 %v6682, %v6879
    %v6881 = vand.u32 %v6106, 4294901760
    %v6882 = vsub.f32 %v6106, %v6881
    %v6883 = vand.u32 %v6882, 4294901760
    %6884 = vmatmul.f32.gmra.mxu0 %v6883
    %v6885 = vpop.f32.mrf.mxu0
    %v6886 = vadd.f32 %v6687, %v6885
    %v6887 = vand.u32 %v6109, 4294901760
    %v6888 = vsub.f32 %v6109, %v6887
    %v6889 = vand.u32 %v6888, 4294901760
    %6890 = vmatmul.f32.gmra.mxu0 %v6889
    %v6891 = vpop.f32.mrf.mxu0
    %v6892 = vadd.f32 %v6692, %v6891
    %v6893 = vand.u32 %v6112, 4294901760
    %v6894 = vsub.f32 %v6112, %v6893
    %v6895 = vand.u32 %v6894, 4294901760
    %6896 = vmatmul.f32.gmra.mxu0 %v6895
    %v6897 = vpop.f32.mrf.mxu0
    %v6898 = vadd.f32 %v6697, %v6897
    %v6899 = vand.u32 %v6115, 4294901760
    %v6900 = vsub.f32 %v6115, %v6899
    %v6901 = vand.u32 %v6900, 4294901760
    %6902 = vmatmul.f32.gmra.mxu0 %v6901
    %v6903 = vpop.f32.mrf.mxu0
    %v6904 = vadd.f32 %v6702, %v6903
    %v6905 = vand.u32 %v6118, 4294901760
    %v6906 = vsub.f32 %v6118, %v6905
    %v6907 = vand.u32 %v6906, 4294901760
    %6908 = vmatmul.f32.gmra.mxu0 %v6907
    %v6909 = vpop.f32.mrf.mxu0
    %v6910 = vadd.f32 %v6707, %v6909
    %v6911 = vand.u32 %v6121, 4294901760
    %v6912 = vsub.f32 %v6121, %v6911
    %v6913 = vand.u32 %v6912, 4294901760
    %6914 = vmatmul.f32.gmra.mxu0 %v6913
    %v6915 = vpop.f32.mrf.mxu0
    %v6916 = vadd.f32 %v6712, %v6915
    %v6917 = vand.u32 %v6124, 4294901760
    %v6918 = vsub.f32 %v6124, %v6917
    %v6919 = vand.u32 %v6918, 4294901760
    %6920 = vmatmul.f32.gmra.mxu0 %v6919
    %v6921 = vpop.f32.mrf.mxu0
    %v6922 = vadd.f32 %v6717, %v6921
    %v6923 = vand.u32 %v6127, 4294901760
    %v6924 = vsub.f32 %v6127, %v6923
    %v6925 = vand.u32 %v6924, 4294901760
    %6926 = vmatmul.f32.gmra.mxu0 %v6925
    %v6927 = vpop.f32.mrf.mxu0
    %v6928 = vadd.f32 %v6722, %v6927
    %v6929 = vand.u32 %v6130, 4294901760
    %v6930 = vsub.f32 %v6130, %v6929
    %v6931 = vand.u32 %v6930, 4294901760
    %6932 = vmatmul.f32.gmra.mxu0 %v6931
    %v6933 = vpop.f32.mrf.mxu0
    %v6934 = vadd.f32 %v6727, %v6933
    %v6935 = vand.u32 %v6133, 4294901760
    %v6936 = vsub.f32 %v6133, %v6935
    %v6937 = vand.u32 %v6936, 4294901760
    %6938 = vmatmul.f32.gmra.mxu0 %v6937
    %v6939 = vpop.f32.mrf.mxu0
    %v6940 = vadd.f32 %v6732, %v6939
    %v6941 = vand.u32 %v6136, 4294901760
    %v6942 = vsub.f32 %v6136, %v6941
    %v6943 = vand.u32 %v6942, 4294901760
    %6944 = vmatmul.f32.gmra.mxu0 %v6943
    %v6945 = vpop.f32.mrf.mxu0
    %v6946 = vadd.f32 %v6737, %v6945
    %v6947 = vand.u32 %v6139, 4294901760
    %v6948 = vsub.f32 %v6139, %v6947
    %v6949 = vand.u32 %v6948, 4294901760
    %6950 = vmatmul.f32.gmra.mxu0 %v6949
    %v6951 = vpop.f32.mrf.mxu0
    %v6952 = vadd.f32 %v6742, %v6951
    %6953 = vdwg.mxu0
    %6954 = vmatpush.msra.mxu0 0.0
    %6955 = vmatpush.msra.mxu0 0.0
    %6956 = vmatpush.msra.mxu0 0.0
    %6957 = vmatpush.msra.mxu0 0.0
    %6958 = vmatpush.msra.mxu0 0.0
    %6959 = vmatpush.msra.mxu0 0.0
    %6960 = vmatpush.msra.mxu0 0.0
    %6961 = vmatpush.msra.mxu0 0.0
    %6962 = vmatpush.msra.mxu0 0.0
    %6963 = vmatpush.msra.mxu0 0.0
    %6964 = vmatpush.msra.mxu0 0.0
    %6965 = vmatpush.msra.mxu0 0.0
    %6966 = vmatpush.msra.mxu0 0.0
    %6967 = vmatpush.msra.mxu0 0.0
    %6968 = vmatpush.msra.mxu0 0.0
    %v6969 = vand.u32 %v5767, 4294901760
    %v6970 = vsub.f32 %v5767, %v6969
    %v6971 = vand.u32 %v6970, 4294901760
    %6972 = vmatpush.msra.mxu0 %v6971
    %v6973 = vand.u32 %v6046, 4294901760
    %6974 = vmatmul.f32.gmra.mxu0 %v6973
    %v6975 = vpop.f32.mrf.mxu0
    %v6976 = vadd.f32 %v6766, %v6975
    %v6977 = vand.u32 %v6049, 4294901760
    %6978 = vmatmul.f32.gmra.mxu0 %v6977
    %v6979 = vpop.f32.mrf.mxu0
    %v6980 = vadd.f32 %v6772, %v6979
    %v6981 = vand.u32 %v6052, 4294901760
    %6982 = vmatmul.f32.gmra.mxu0 %v6981
    %v6983 = vpop.f32.mrf.mxu0
    %v6984 = vadd.f32 %v6778, %v6983
    %v6985 = vand.u32 %v6055, 4294901760
    %6986 = vmatmul.f32.gmra.mxu0 %v6985
    %v6987 = vpop.f32.mrf.mxu0
    %v6988 = vadd.f32 %v6784, %v6987
    %v6989 = vand.u32 %v6058, 4294901760
    %6990 = vmatmul.f32.gmra.mxu0 %v6989
    %v6991 = vpop.f32.mrf.mxu0
    %v6992 = vadd.f32 %v6790, %v6991
    %v6993 = vand.u32 %v6061, 4294901760
    %6994 = vmatmul.f32.gmra.mxu0 %v6993
    %v6995 = vpop.f32.mrf.mxu0
    %v6996 = vadd.f32 %v6796, %v6995
    %v6997 = vand.u32 %v6064, 4294901760
    %6998 = vmatmul.f32.gmra.mxu0 %v6997
    %v6999 = vpop.f32.mrf.mxu0
    %v7000 = vadd.f32 %v6802, %v6999
    %v7001 = vand.u32 %v6067, 4294901760
    %7002 = vmatmul.f32.gmra.mxu0 %v7001
    %v7003 = vpop.f32.mrf.mxu0
    %v7004 = vadd.f32 %v6808, %v7003
    %v7005 = vand.u32 %v6070, 4294901760
    %7006 = vmatmul.f32.gmra.mxu0 %v7005
    %v7007 = vpop.f32.mrf.mxu0
    %v7008 = vadd.f32 %v6814, %v7007
    %v7009 = vand.u32 %v6073, 4294901760
    %7010 = vmatmul.f32.gmra.mxu0 %v7009
    %v7011 = vpop.f32.mrf.mxu0
    %v7012 = vadd.f32 %v6820, %v7011
    %v7013 = vand.u32 %v6076, 4294901760
    %7014 = vmatmul.f32.gmra.mxu0 %v7013
    %v7015 = vpop.f32.mrf.mxu0
    %v7016 = vadd.f32 %v6826, %v7015
    %v7017 = vand.u32 %v6079, 4294901760
    %7018 = vmatmul.f32.gmra.mxu0 %v7017
    %v7019 = vpop.f32.mrf.mxu0
    %v7020 = vadd.f32 %v6832, %v7019
    %v7021 = vand.u32 %v6082, 4294901760
    %7022 = vmatmul.f32.gmra.mxu0 %v7021
    %v7023 = vpop.f32.mrf.mxu0
    %v7024 = vadd.f32 %v6838, %v7023
    %v7025 = vand.u32 %v6085, 4294901760
    %7026 = vmatmul.f32.gmra.mxu0 %v7025
    %v7027 = vpop.f32.mrf.mxu0
    %v7028 = vadd.f32 %v6844, %v7027
    %v7029 = vand.u32 %v6088, 4294901760
    %7030 = vmatmul.f32.gmra.mxu0 %v7029
    %v7031 = vpop.f32.mrf.mxu0
    %v7032 = vadd.f32 %v6850, %v7031
    %v7033 = vand.u32 %v6091, 4294901760
    %7034 = vmatmul.f32.gmra.mxu0 %v7033
    %v7035 = vpop.f32.mrf.mxu0
    %v7036 = vadd.f32 %v6856, %v7035
    %v7037 = vand.u32 %v6094, 4294901760
    %7038 = vmatmul.f32.gmra.mxu0 %v7037
    %v7039 = vpop.f32.mrf.mxu0
    %v7040 = vadd.f32 %v6862, %v7039
    %v7041 = vand.u32 %v6097, 4294901760
    %7042 = vmatmul.f32.gmra.mxu0 %v7041
    %v7043 = vpop.f32.mrf.mxu0
    %v7044 = vadd.f32 %v6868, %v7043
    %v7045 = vand.u32 %v6100, 4294901760
    %7046 = vmatmul.f32.gmra.mxu0 %v7045
    %v7047 = vpop.f32.mrf.mxu0
    %v7048 = vadd.f32 %v6874, %v7047
    %v7049 = vand.u32 %v6103, 4294901760
    %7050 = vmatmul.f32.gmra.mxu0 %v7049
    %v7051 = vpop.f32.mrf.mxu0
    %v7052 = vadd.f32 %v6880, %v7051
    %v7053 = vand.u32 %v6106, 4294901760
    %7054 = vmatmul.f32.gmra.mxu0 %v7053
    %v7055 = vpop.f32.mrf.mxu0
    %v7056 = vadd.f32 %v6886, %v7055
    %v7057 = vand.u32 %v6109, 4294901760
    %7058 = vmatmul.f32.gmra.mxu0 %v7057
    %v7059 = vpop.f32.mrf.mxu0
    %v7060 = vadd.f32 %v6892, %v7059
    %v7061 = vand.u32 %v6112, 4294901760
    %7062 = vmatmul.f32.gmra.mxu0 %v7061
    %v7063 = vpop.f32.mrf.mxu0
    %v7064 = vadd.f32 %v6898, %v7063
    %v7065 = vand.u32 %v6115, 4294901760
    %7066 = vmatmul.f32.gmra.mxu0 %v7065
    %v7067 = vpop.f32.mrf.mxu0
    %v7068 = vadd.f32 %v6904, %v7067
    %v7069 = vand.u32 %v6118, 4294901760
    %7070 = vmatmul.f32.gmra.mxu0 %v7069
    %v7071 = vpop.f32.mrf.mxu0
    %v7072 = vadd.f32 %v6910, %v7071
    %v7073 = vand.u32 %v6121, 4294901760
    %7074 = vmatmul.f32.gmra.mxu0 %v7073
    %v7075 = vpop.f32.mrf.mxu0
    %v7076 = vadd.f32 %v6916, %v7075
    %v7077 = vand.u32 %v6124, 4294901760
    %7078 = vmatmul.f32.gmra.mxu0 %v7077
    %v7079 = vpop.f32.mrf.mxu0
    %v7080 = vadd.f32 %v6922, %v7079
    %v7081 = vand.u32 %v6127, 4294901760
    %7082 = vmatmul.f32.gmra.mxu0 %v7081
    %v7083 = vpop.f32.mrf.mxu0
    %v7084 = vadd.f32 %v6928, %v7083
    %v7085 = vand.u32 %v6130, 4294901760
    %7086 = vmatmul.f32.gmra.mxu0 %v7085
    %v7087 = vpop.f32.mrf.mxu0
    %v7088 = vadd.f32 %v6934, %v7087
    %v7089 = vand.u32 %v6133, 4294901760
    %7090 = vmatmul.f32.gmra.mxu0 %v7089
    %v7091 = vpop.f32.mrf.mxu0
    %v7092 = vadd.f32 %v6940, %v7091
    %v7093 = vand.u32 %v6136, 4294901760
    %7094 = vmatmul.f32.gmra.mxu0 %v7093
    %v7095 = vpop.f32.mrf.mxu0
    %v7096 = vadd.f32 %v6946, %v7095
    %v7097 = vand.u32 %v6139, 4294901760
    %7098 = vmatmul.f32.gmra.mxu0 %v7097
    %v7099 = vpop.f32.mrf.mxu0
    %v7100 = vadd.f32 %v6952, %v7099
    %7101 = vdwg.mxu0
    %7102 = vmatpush.msra.mxu0 0.0
    %7103 = vmatpush.msra.mxu0 0.0
    %7104 = vmatpush.msra.mxu0 0.0
    %7105 = vmatpush.msra.mxu0 0.0
    %7106 = vmatpush.msra.mxu0 0.0
    %7107 = vmatpush.msra.mxu0 0.0
    %7108 = vmatpush.msra.mxu0 0.0
    %7109 = vmatpush.msra.mxu0 0.0
    %7110 = vmatpush.msra.mxu0 0.0
    %7111 = vmatpush.msra.mxu0 0.0
    %7112 = vmatpush.msra.mxu0 0.0
    %7113 = vmatpush.msra.mxu0 0.0
    %7114 = vmatpush.msra.mxu0 0.0
    %7115 = vmatpush.msra.mxu0 0.0
    %7116 = vmatpush.msra.mxu0 0.0
    %v7117 = vand.u32 %v5767, 4294901760
    %7118 = vmatpush.msra.mxu0 %v7117
    %v7119 = vand.u32 %v6046, 4294901760
    %7120 = vmatmul.f32.gmra.mxu0 %v7119
    %v7121 = vpop.f32.mrf.mxu0
    %v7122 = vadd.f32 %v6976, %v7121
    %v7123 = vand.u32 %v6049, 4294901760
    %7124 = vmatmul.f32.gmra.mxu0 %v7123
    %v7125 = vpop.f32.mrf.mxu0
    %v7126 = vadd.f32 %v6980, %v7125
    %v7127 = vand.u32 %v6052, 4294901760
    %7128 = vmatmul.f32.gmra.mxu0 %v7127
    %v7129 = vpop.f32.mrf.mxu0
    %v7130 = vadd.f32 %v6984, %v7129
    %v7131 = vand.u32 %v6055, 4294901760
    %7132 = vmatmul.f32.gmra.mxu0 %v7131
    %v7133 = vpop.f32.mrf.mxu0
    %v7134 = vadd.f32 %v6988, %v7133
    %v7135 = vand.u32 %v6058, 4294901760
    %7136 = vmatmul.f32.gmra.mxu0 %v7135
    %v7137 = vpop.f32.mrf.mxu0
    %v7138 = vadd.f32 %v6992, %v7137
    %v7139 = vand.u32 %v6061, 4294901760
    %7140 = vmatmul.f32.gmra.mxu0 %v7139
    %v7141 = vpop.f32.mrf.mxu0
    %v7142 = vadd.f32 %v6996, %v7141
    %v7143 = vand.u32 %v6064, 4294901760
    %7144 = vmatmul.f32.gmra.mxu0 %v7143
    %v7145 = vpop.f32.mrf.mxu0
    %v7146 = vadd.f32 %v7000, %v7145
    %v7147 = vand.u32 %v6067, 4294901760
    %7148 = vmatmul.f32.gmra.mxu0 %v7147
    %v7149 = vpop.f32.mrf.mxu0
    %v7150 = vadd.f32 %v7004, %v7149
    %v7151 = vand.u32 %v6070, 4294901760
    %7152 = vmatmul.f32.gmra.mxu0 %v7151
    %v7153 = vpop.f32.mrf.mxu0
    %v7154 = vadd.f32 %v7008, %v7153
    %v7155 = vand.u32 %v6073, 4294901760
    %7156 = vmatmul.f32.gmra.mxu0 %v7155
    %v7157 = vpop.f32.mrf.mxu0
    %v7158 = vadd.f32 %v7012, %v7157
    %v7159 = vand.u32 %v6076, 4294901760
    %7160 = vmatmul.f32.gmra.mxu0 %v7159
    %v7161 = vpop.f32.mrf.mxu0
    %v7162 = vadd.f32 %v7016, %v7161
    %v7163 = vand.u32 %v6079, 4294901760
    %7164 = vmatmul.f32.gmra.mxu0 %v7163
    %v7165 = vpop.f32.mrf.mxu0
    %v7166 = vadd.f32 %v7020, %v7165
    %v7167 = vand.u32 %v6082, 4294901760
    %7168 = vmatmul.f32.gmra.mxu0 %v7167
    %v7169 = vpop.f32.mrf.mxu0
    %v7170 = vadd.f32 %v7024, %v7169
    %v7171 = vand.u32 %v6085, 4294901760
    %7172 = vmatmul.f32.gmra.mxu0 %v7171
    %v7173 = vpop.f32.mrf.mxu0
    %v7174 = vadd.f32 %v7028, %v7173
    %v7175 = vand.u32 %v6088, 4294901760
    %7176 = vmatmul.f32.gmra.mxu0 %v7175
    %v7177 = vpop.f32.mrf.mxu0
    %v7178 = vadd.f32 %v7032, %v7177
    %v7179 = vand.u32 %v6091, 4294901760
    %7180 = vmatmul.f32.gmra.mxu0 %v7179
    %v7181 = vpop.f32.mrf.mxu0
    %v7182 = vadd.f32 %v7036, %v7181
    %v7183 = vand.u32 %v6094, 4294901760
    %7184 = vmatmul.f32.gmra.mxu0 %v7183
    %v7185 = vpop.f32.mrf.mxu0
    %v7186 = vadd.f32 %v7040, %v7185
    %v7187 = vand.u32 %v6097, 4294901760
    %7188 = vmatmul.f32.gmra.mxu0 %v7187
    %v7189 = vpop.f32.mrf.mxu0
    %v7190 = vadd.f32 %v7044, %v7189
    %v7191 = vand.u32 %v6100, 4294901760
    %7192 = vmatmul.f32.gmra.mxu0 %v7191
    %v7193 = vpop.f32.mrf.mxu0
    %v7194 = vadd.f32 %v7048, %v7193
    %v7195 = vand.u32 %v6103, 4294901760
    %7196 = vmatmul.f32.gmra.mxu0 %v7195
    %v7197 = vpop.f32.mrf.mxu0
    %v7198 = vadd.f32 %v7052, %v7197
    %v7199 = vand.u32 %v6106, 4294901760
    %7200 = vmatmul.f32.gmra.mxu0 %v7199
    %v7201 = vpop.f32.mrf.mxu0
    %v7202 = vadd.f32 %v7056, %v7201
    %v7203 = vand.u32 %v6109, 4294901760
    %7204 = vmatmul.f32.gmra.mxu0 %v7203
    %v7205 = vpop.f32.mrf.mxu0
    %v7206 = vadd.f32 %v7060, %v7205
    %v7207 = vand.u32 %v6112, 4294901760
    %7208 = vmatmul.f32.gmra.mxu0 %v7207
    %v7209 = vpop.f32.mrf.mxu0
    %v7210 = vadd.f32 %v7064, %v7209
    %v7211 = vand.u32 %v6115, 4294901760
    %7212 = vmatmul.f32.gmra.mxu0 %v7211
    %v7213 = vpop.f32.mrf.mxu0
    %v7214 = vadd.f32 %v7068, %v7213
    %v7215 = vand.u32 %v6118, 4294901760
    %7216 = vmatmul.f32.gmra.mxu0 %v7215
    %v7217 = vpop.f32.mrf.mxu0
    %v7218 = vadd.f32 %v7072, %v7217
    %v7219 = vand.u32 %v6121, 4294901760
    %7220 = vmatmul.f32.gmra.mxu0 %v7219
    %v7221 = vpop.f32.mrf.mxu0
    %v7222 = vadd.f32 %v7076, %v7221
    %v7223 = vand.u32 %v6124, 4294901760
    %7224 = vmatmul.f32.gmra.mxu0 %v7223
    %v7225 = vpop.f32.mrf.mxu0
    %v7226 = vadd.f32 %v7080, %v7225
    %v7227 = vand.u32 %v6127, 4294901760
    %7228 = vmatmul.f32.gmra.mxu0 %v7227
    %v7229 = vpop.f32.mrf.mxu0
    %v7230 = vadd.f32 %v7084, %v7229
    %v7231 = vand.u32 %v6130, 4294901760
    %7232 = vmatmul.f32.gmra.mxu0 %v7231
    %v7233 = vpop.f32.mrf.mxu0
    %v7234 = vadd.f32 %v7088, %v7233
    %v7235 = vand.u32 %v6133, 4294901760
    %7236 = vmatmul.f32.gmra.mxu0 %v7235
    %v7237 = vpop.f32.mrf.mxu0
    %v7238 = vadd.f32 %v7092, %v7237
    %v7239 = vand.u32 %v6136, 4294901760
    %7240 = vmatmul.f32.gmra.mxu0 %v7239
    %v7241 = vpop.f32.mrf.mxu0
    %v7242 = vadd.f32 %v7096, %v7241
    %v7243 = vand.u32 %v6139, 4294901760
    %7244 = vmatmul.f32.gmra.mxu0 %v7243
    %v7245 = vpop.f32.mrf.mxu0
    %v7246 = vadd.f32 %v7100, %v7245
    %7247 = vdwg.mxu0
    %7248 = vmatpush.msra.mxu0 0.0
    %7249 = vmatpush.msra.mxu0 0.0
    %7250 = vmatpush.msra.mxu0 0.0
    %7251 = vmatpush.msra.mxu0 0.0
    %7252 = vmatpush.msra.mxu0 0.0
    %7253 = vmatpush.msra.mxu0 0.0
    %7254 = vmatpush.msra.mxu0 0.0
    %7255 = vmatpush.msra.mxu0 0.0
    %7256 = vmatpush.msra.mxu0 0.0
    %7257 = vmatpush.msra.mxu0 0.0
    %7258 = vmatpush.msra.mxu0 0.0
    %7259 = vmatpush.msra.mxu0 0.0
    %7260 = vmatpush.msra.mxu0 0.0
    %7261 = vmatpush.msra.mxu0 0.0
    %7262 = vmatpush.msra.mxu0 0.0
    %v7263 = vand.u32 %v5975, 4294901760
    %7264 = vmatpush.msra.mxu0 %v7263
    %v7265 = vand.u32 %v6046, 4294901760
    %v7266 = vsub.f32 %v6046, %v7265
    %v7267 = vand.u32 %v7266, 4294901760
    %v7268 = vsub.f32 %v7266, %v7267
    %v7269 = vand.u32 %v7268, 4294901760
    %7270 = vmatmul.f32.gmra.mxu0 %v7269
    %v7271 = vpop.f32.mrf.mxu0
    %v7272 = vadd.f32 0.0, %v7271
    %v7273 = vand.u32 %v6049, 4294901760
    %v7274 = vsub.f32 %v6049, %v7273
    %v7275 = vand.u32 %v7274, 4294901760
    %v7276 = vsub.f32 %v7274, %v7275
    %v7277 = vand.u32 %v7276, 4294901760
    %7278 = vmatmul.f32.gmra.mxu0 %v7277
    %v7279 = vpop.f32.mrf.mxu0
    %v7280 = vadd.f32 0.0, %v7279
    %v7281 = vand.u32 %v6052, 4294901760
    %v7282 = vsub.f32 %v6052, %v7281
    %v7283 = vand.u32 %v7282, 4294901760
    %v7284 = vsub.f32 %v7282, %v7283
    %v7285 = vand.u32 %v7284, 4294901760
    %7286 = vmatmul.f32.gmra.mxu0 %v7285
    %v7287 = vpop.f32.mrf.mxu0
    %v7288 = vadd.f32 0.0, %v7287
    %v7289 = vand.u32 %v6055, 4294901760
    %v7290 = vsub.f32 %v6055, %v7289
    %v7291 = vand.u32 %v7290, 4294901760
    %v7292 = vsub.f32 %v7290, %v7291
    %v7293 = vand.u32 %v7292, 4294901760
    %7294 = vmatmul.f32.gmra.mxu0 %v7293
    %v7295 = vpop.f32.mrf.mxu0
    %v7296 = vadd.f32 0.0, %v7295
    %v7297 = vand.u32 %v6058, 4294901760
    %v7298 = vsub.f32 %v6058, %v7297
    %v7299 = vand.u32 %v7298, 4294901760
    %v7300 = vsub.f32 %v7298, %v7299
    %v7301 = vand.u32 %v7300, 4294901760
    %7302 = vmatmul.f32.gmra.mxu0 %v7301
    %v7303 = vpop.f32.mrf.mxu0
    %v7304 = vadd.f32 0.0, %v7303
    %v7305 = vand.u32 %v6061, 4294901760
    %v7306 = vsub.f32 %v6061, %v7305
    %v7307 = vand.u32 %v7306, 4294901760
    %v7308 = vsub.f32 %v7306, %v7307
    %v7309 = vand.u32 %v7308, 4294901760
    %7310 = vmatmul.f32.gmra.mxu0 %v7309
    %v7311 = vpop.f32.mrf.mxu0
    %v7312 = vadd.f32 0.0, %v7311
    %v7313 = vand.u32 %v6064, 4294901760
    %v7314 = vsub.f32 %v6064, %v7313
    %v7315 = vand.u32 %v7314, 4294901760
    %v7316 = vsub.f32 %v7314, %v7315
    %v7317 = vand.u32 %v7316, 4294901760
    %7318 = vmatmul.f32.gmra.mxu0 %v7317
    %v7319 = vpop.f32.mrf.mxu0
    %v7320 = vadd.f32 0.0, %v7319
    %v7321 = vand.u32 %v6067, 4294901760
    %v7322 = vsub.f32 %v6067, %v7321
    %v7323 = vand.u32 %v7322, 4294901760
    %v7324 = vsub.f32 %v7322, %v7323
    %v7325 = vand.u32 %v7324, 4294901760
    %7326 = vmatmul.f32.gmra.mxu0 %v7325
    %v7327 = vpop.f32.mrf.mxu0
    %v7328 = vadd.f32 0.0, %v7327
    %v7329 = vand.u32 %v6070, 4294901760
    %v7330 = vsub.f32 %v6070, %v7329
    %v7331 = vand.u32 %v7330, 4294901760
    %v7332 = vsub.f32 %v7330, %v7331
    %v7333 = vand.u32 %v7332, 4294901760
    %7334 = vmatmul.f32.gmra.mxu0 %v7333
    %v7335 = vpop.f32.mrf.mxu0
    %v7336 = vadd.f32 0.0, %v7335
    %v7337 = vand.u32 %v6073, 4294901760
    %v7338 = vsub.f32 %v6073, %v7337
    %v7339 = vand.u32 %v7338, 4294901760
    %v7340 = vsub.f32 %v7338, %v7339
    %v7341 = vand.u32 %v7340, 4294901760
    %7342 = vmatmul.f32.gmra.mxu0 %v7341
    %v7343 = vpop.f32.mrf.mxu0
    %v7344 = vadd.f32 0.0, %v7343
    %v7345 = vand.u32 %v6076, 4294901760
    %v7346 = vsub.f32 %v6076, %v7345
    %v7347 = vand.u32 %v7346, 4294901760
    %v7348 = vsub.f32 %v7346, %v7347
    %v7349 = vand.u32 %v7348, 4294901760
    %7350 = vmatmul.f32.gmra.mxu0 %v7349
    %v7351 = vpop.f32.mrf.mxu0
    %v7352 = vadd.f32 0.0, %v7351
    %v7353 = vand.u32 %v6079, 4294901760
    %v7354 = vsub.f32 %v6079, %v7353
    %v7355 = vand.u32 %v7354, 4294901760
    %v7356 = vsub.f32 %v7354, %v7355
    %v7357 = vand.u32 %v7356, 4294901760
    %7358 = vmatmul.f32.gmra.mxu0 %v7357
    %v7359 = vpop.f32.mrf.mxu0
    %v7360 = vadd.f32 0.0, %v7359
    %v7361 = vand.u32 %v6082, 4294901760
    %v7362 = vsub.f32 %v6082, %v7361
    %v7363 = vand.u32 %v7362, 4294901760
    %v7364 = vsub.f32 %v7362, %v7363
    %v7365 = vand.u32 %v7364, 4294901760
    %7366 = vmatmul.f32.gmra.mxu0 %v7365
    %v7367 = vpop.f32.mrf.mxu0
    %v7368 = vadd.f32 0.0, %v7367
    %v7369 = vand.u32 %v6085, 4294901760
    %v7370 = vsub.f32 %v6085, %v7369
    %v7371 = vand.u32 %v7370, 4294901760
    %v7372 = vsub.f32 %v7370, %v7371
    %v7373 = vand.u32 %v7372, 4294901760
    %7374 = vmatmul.f32.gmra.mxu0 %v7373
    %v7375 = vpop.f32.mrf.mxu0
    %v7376 = vadd.f32 0.0, %v7375
    %v7377 = vand.u32 %v6088, 4294901760
    %v7378 = vsub.f32 %v6088, %v7377
    %v7379 = vand.u32 %v7378, 4294901760
    %v7380 = vsub.f32 %v7378, %v7379
    %v7381 = vand.u32 %v7380, 4294901760
    %7382 = vmatmul.f32.gmra.mxu0 %v7381
    %v7383 = vpop.f32.mrf.mxu0
    %v7384 = vadd.f32 0.0, %v7383
    %v7385 = vand.u32 %v6091, 4294901760
    %v7386 = vsub.f32 %v6091, %v7385
    %v7387 = vand.u32 %v7386, 4294901760
    %v7388 = vsub.f32 %v7386, %v7387
    %v7389 = vand.u32 %v7388, 4294901760
    %7390 = vmatmul.f32.gmra.mxu0 %v7389
    %v7391 = vpop.f32.mrf.mxu0
    %v7392 = vadd.f32 0.0, %v7391
    %v7393 = vand.u32 %v6094, 4294901760
    %v7394 = vsub.f32 %v6094, %v7393
    %v7395 = vand.u32 %v7394, 4294901760
    %v7396 = vsub.f32 %v7394, %v7395
    %v7397 = vand.u32 %v7396, 4294901760
    %7398 = vmatmul.f32.gmra.mxu0 %v7397
    %v7399 = vpop.f32.mrf.mxu0
    %v7400 = vadd.f32 0.0, %v7399
    %v7401 = vand.u32 %v6097, 4294901760
    %v7402 = vsub.f32 %v6097, %v7401
    %v7403 = vand.u32 %v7402, 4294901760
    %v7404 = vsub.f32 %v7402, %v7403
    %v7405 = vand.u32 %v7404, 4294901760
    %7406 = vmatmul.f32.gmra.mxu0 %v7405
    %v7407 = vpop.f32.mrf.mxu0
    %v7408 = vadd.f32 0.0, %v7407
    %v7409 = vand.u32 %v6100, 4294901760
    %v7410 = vsub.f32 %v6100, %v7409
    %v7411 = vand.u32 %v7410, 4294901760
    %v7412 = vsub.f32 %v7410, %v7411
    %v7413 = vand.u32 %v7412, 4294901760
    %7414 = vmatmul.f32.gmra.mxu0 %v7413
    %v7415 = vpop.f32.mrf.mxu0
    %v7416 = vadd.f32 0.0, %v7415
    %v7417 = vand.u32 %v6103, 4294901760
    %v7418 = vsub.f32 %v6103, %v7417
    %v7419 = vand.u32 %v7418, 4294901760
    %v7420 = vsub.f32 %v7418, %v7419
    %v7421 = vand.u32 %v7420, 4294901760
    %7422 = vmatmul.f32.gmra.mxu0 %v7421
    %v7423 = vpop.f32.mrf.mxu0
    %v7424 = vadd.f32 0.0, %v7423
    %v7425 = vand.u32 %v6106, 4294901760
    %v7426 = vsub.f32 %v6106, %v7425
    %v7427 = vand.u32 %v7426, 4294901760
    %v7428 = vsub.f32 %v7426, %v7427
    %v7429 = vand.u32 %v7428, 4294901760
    %7430 = vmatmul.f32.gmra.mxu0 %v7429
    %v7431 = vpop.f32.mrf.mxu0
    %v7432 = vadd.f32 0.0, %v7431
    %v7433 = vand.u32 %v6109, 4294901760
    %v7434 = vsub.f32 %v6109, %v7433
    %v7435 = vand.u32 %v7434, 4294901760
    %v7436 = vsub.f32 %v7434, %v7435
    %v7437 = vand.u32 %v7436, 4294901760
    %7438 = vmatmul.f32.gmra.mxu0 %v7437
    %v7439 = vpop.f32.mrf.mxu0
    %v7440 = vadd.f32 0.0, %v7439
    %v7441 = vand.u32 %v6112, 4294901760
    %v7442 = vsub.f32 %v6112, %v7441
    %v7443 = vand.u32 %v7442, 4294901760
    %v7444 = vsub.f32 %v7442, %v7443
    %v7445 = vand.u32 %v7444, 4294901760
    %7446 = vmatmul.f32.gmra.mxu0 %v7445
    %v7447 = vpop.f32.mrf.mxu0
    %v7448 = vadd.f32 0.0, %v7447
    %v7449 = vand.u32 %v6115, 4294901760
    %v7450 = vsub.f32 %v6115, %v7449
    %v7451 = vand.u32 %v7450, 4294901760
    %v7452 = vsub.f32 %v7450, %v7451
    %v7453 = vand.u32 %v7452, 4294901760
    %7454 = vmatmul.f32.gmra.mxu0 %v7453
    %v7455 = vpop.f32.mrf.mxu0
    %v7456 = vadd.f32 0.0, %v7455
    %v7457 = vand.u32 %v6118, 4294901760
    %v7458 = vsub.f32 %v6118, %v7457
    %v7459 = vand.u32 %v7458, 4294901760
    %v7460 = vsub.f32 %v7458, %v7459
    %v7461 = vand.u32 %v7460, 4294901760
    %7462 = vmatmul.f32.gmra.mxu0 %v7461
    %v7463 = vpop.f32.mrf.mxu0
    %v7464 = vadd.f32 0.0, %v7463
    %v7465 = vand.u32 %v6121, 4294901760
    %v7466 = vsub.f32 %v6121, %v7465
    %v7467 = vand.u32 %v7466, 4294901760
    %v7468 = vsub.f32 %v7466, %v7467
    %v7469 = vand.u32 %v7468, 4294901760
    %7470 = vmatmul.f32.gmra.mxu0 %v7469
    %v7471 = vpop.f32.mrf.mxu0
    %v7472 = vadd.f32 0.0, %v7471
    %v7473 = vand.u32 %v6124, 4294901760
    %v7474 = vsub.f32 %v6124, %v7473
    %v7475 = vand.u32 %v7474, 4294901760
    %v7476 = vsub.f32 %v7474, %v7475
    %v7477 = vand.u32 %v7476, 4294901760
    %7478 = vmatmul.f32.gmra.mxu0 %v7477
    %v7479 = vpop.f32.mrf.mxu0
    %v7480 = vadd.f32 0.0, %v7479
    %v7481 = vand.u32 %v6127, 4294901760
    %v7482 = vsub.f32 %v6127, %v7481
    %v7483 = vand.u32 %v7482, 4294901760
    %v7484 = vsub.f32 %v7482, %v7483
    %v7485 = vand.u32 %v7484, 4294901760
    %7486 = vmatmul.f32.gmra.mxu0 %v7485
    %v7487 = vpop.f32.mrf.mxu0
    %v7488 = vadd.f32 0.0, %v7487
    %v7489 = vand.u32 %v6130, 4294901760
    %v7490 = vsub.f32 %v6130, %v7489
    %v7491 = vand.u32 %v7490, 4294901760
    %v7492 = vsub.f32 %v7490, %v7491
    %v7493 = vand.u32 %v7492, 4294901760
    %7494 = vmatmul.f32.gmra.mxu0 %v7493
    %v7495 = vpop.f32.mrf.mxu0
    %v7496 = vadd.f32 0.0, %v7495
    %v7497 = vand.u32 %v6133, 4294901760
    %v7498 = vsub.f32 %v6133, %v7497
    %v7499 = vand.u32 %v7498, 4294901760
    %v7500 = vsub.f32 %v7498, %v7499
    %v7501 = vand.u32 %v7500, 4294901760
    %7502 = vmatmul.f32.gmra.mxu0 %v7501
    %v7503 = vpop.f32.mrf.mxu0
    %v7504 = vadd.f32 0.0, %v7503
    %v7505 = vand.u32 %v6136, 4294901760
    %v7506 = vsub.f32 %v6136, %v7505
    %v7507 = vand.u32 %v7506, 4294901760
    %v7508 = vsub.f32 %v7506, %v7507
    %v7509 = vand.u32 %v7508, 4294901760
    %7510 = vmatmul.f32.gmra.mxu0 %v7509
    %v7511 = vpop.f32.mrf.mxu0
    %v7512 = vadd.f32 0.0, %v7511
    %v7513 = vand.u32 %v6139, 4294901760
    %v7514 = vsub.f32 %v6139, %v7513
    %v7515 = vand.u32 %v7514, 4294901760
    %v7516 = vsub.f32 %v7514, %v7515
    %v7517 = vand.u32 %v7516, 4294901760
    %7518 = vmatmul.f32.gmra.mxu0 %v7517
    %v7519 = vpop.f32.mrf.mxu0
    %v7520 = vadd.f32 0.0, %v7519
    %7521 = vdwg.mxu0
    %7522 = vmatpush.msra.mxu0 0.0
    %7523 = vmatpush.msra.mxu0 0.0
    %7524 = vmatpush.msra.mxu0 0.0
    %7525 = vmatpush.msra.mxu0 0.0
    %7526 = vmatpush.msra.mxu0 0.0
    %7527 = vmatpush.msra.mxu0 0.0
    %7528 = vmatpush.msra.mxu0 0.0
    %7529 = vmatpush.msra.mxu0 0.0
    %7530 = vmatpush.msra.mxu0 0.0
    %7531 = vmatpush.msra.mxu0 0.0
    %7532 = vmatpush.msra.mxu0 0.0
    %7533 = vmatpush.msra.mxu0 0.0
    %7534 = vmatpush.msra.mxu0 0.0
    %7535 = vmatpush.msra.mxu0 0.0
    %7536 = vmatpush.msra.mxu0 0.0
    %v7537 = vand.u32 %v5975, 4294901760
    %v7538 = vsub.f32 %v5975, %v7537
    %v7539 = vand.u32 %v7538, 4294901760
    %v7540 = vsub.f32 %v7538, %v7539
    %v7541 = vand.u32 %v7540, 4294901760
    %7542 = vmatpush.msra.mxu0 %v7541
    %v7543 = vand.u32 %v6046, 4294901760
    %7544 = vmatmul.f32.gmra.mxu0 %v7543
    %v7545 = vpop.f32.mrf.mxu0
    %v7546 = vadd.f32 %v7272, %v7545
    %v7547 = vand.u32 %v6049, 4294901760
    %7548 = vmatmul.f32.gmra.mxu0 %v7547
    %v7549 = vpop.f32.mrf.mxu0
    %v7550 = vadd.f32 %v7280, %v7549
    %v7551 = vand.u32 %v6052, 4294901760
    %7552 = vmatmul.f32.gmra.mxu0 %v7551
    %v7553 = vpop.f32.mrf.mxu0
    %v7554 = vadd.f32 %v7288, %v7553
    %v7555 = vand.u32 %v6055, 4294901760
    %7556 = vmatmul.f32.gmra.mxu0 %v7555
    %v7557 = vpop.f32.mrf.mxu0
    %v7558 = vadd.f32 %v7296, %v7557
    %v7559 = vand.u32 %v6058, 4294901760
    %7560 = vmatmul.f32.gmra.mxu0 %v7559
    %v7561 = vpop.f32.mrf.mxu0
    %v7562 = vadd.f32 %v7304, %v7561
    %v7563 = vand.u32 %v6061, 4294901760
    %7564 = vmatmul.f32.gmra.mxu0 %v7563
    %v7565 = vpop.f32.mrf.mxu0
    %v7566 = vadd.f32 %v7312, %v7565
    %v7567 = vand.u32 %v6064, 4294901760
    %7568 = vmatmul.f32.gmra.mxu0 %v7567
    %v7569 = vpop.f32.mrf.mxu0
    %v7570 = vadd.f32 %v7320, %v7569
    %v7571 = vand.u32 %v6067, 4294901760
    %7572 = vmatmul.f32.gmra.mxu0 %v7571
    %v7573 = vpop.f32.mrf.mxu0
    %v7574 = vadd.f32 %v7328, %v7573
    %v7575 = vand.u32 %v6070, 4294901760
    %7576 = vmatmul.f32.gmra.mxu0 %v7575
    %v7577 = vpop.f32.mrf.mxu0
    %v7578 = vadd.f32 %v7336, %v7577
    %v7579 = vand.u32 %v6073, 4294901760
    %7580 = vmatmul.f32.gmra.mxu0 %v7579
    %v7581 = vpop.f32.mrf.mxu0
    %v7582 = vadd.f32 %v7344, %v7581
    %v7583 = vand.u32 %v6076, 4294901760
    %7584 = vmatmul.f32.gmra.mxu0 %v7583
    %v7585 = vpop.f32.mrf.mxu0
    %v7586 = vadd.f32 %v7352, %v7585
    %v7587 = vand.u32 %v6079, 4294901760
    %7588 = vmatmul.f32.gmra.mxu0 %v7587
    %v7589 = vpop.f32.mrf.mxu0
    %v7590 = vadd.f32 %v7360, %v7589
    %v7591 = vand.u32 %v6082, 4294901760
    %7592 = vmatmul.f32.gmra.mxu0 %v7591
    %v7593 = vpop.f32.mrf.mxu0
    %v7594 = vadd.f32 %v7368, %v7593
    %v7595 = vand.u32 %v6085, 4294901760
    %7596 = vmatmul.f32.gmra.mxu0 %v7595
    %v7597 = vpop.f32.mrf.mxu0
    %v7598 = vadd.f32 %v7376, %v7597
    %v7599 = vand.u32 %v6088, 4294901760
    %7600 = vmatmul.f32.gmra.mxu0 %v7599
    %v7601 = vpop.f32.mrf.mxu0
    %v7602 = vadd.f32 %v7384, %v7601
    %v7603 = vand.u32 %v6091, 4294901760
    %7604 = vmatmul.f32.gmra.mxu0 %v7603
    %v7605 = vpop.f32.mrf.mxu0
    %v7606 = vadd.f32 %v7392, %v7605
    %v7607 = vand.u32 %v6094, 4294901760
    %7608 = vmatmul.f32.gmra.mxu0 %v7607
    %v7609 = vpop.f32.mrf.mxu0
    %v7610 = vadd.f32 %v7400, %v7609
    %v7611 = vand.u32 %v6097, 4294901760
    %7612 = vmatmul.f32.gmra.mxu0 %v7611
    %v7613 = vpop.f32.mrf.mxu0
    %v7614 = vadd.f32 %v7408, %v7613
    %v7615 = vand.u32 %v6100, 4294901760
    %7616 = vmatmul.f32.gmra.mxu0 %v7615
    %v7617 = vpop.f32.mrf.mxu0
    %v7618 = vadd.f32 %v7416, %v7617
    %v7619 = vand.u32 %v6103, 4294901760
    %7620 = vmatmul.f32.gmra.mxu0 %v7619
    %v7621 = vpop.f32.mrf.mxu0
    %v7622 = vadd.f32 %v7424, %v7621
    %v7623 = vand.u32 %v6106, 4294901760
    %7624 = vmatmul.f32.gmra.mxu0 %v7623
    %v7625 = vpop.f32.mrf.mxu0
    %v7626 = vadd.f32 %v7432, %v7625
    %v7627 = vand.u32 %v6109, 4294901760
    %7628 = vmatmul.f32.gmra.mxu0 %v7627
    %v7629 = vpop.f32.mrf.mxu0
    %v7630 = vadd.f32 %v7440, %v7629
    %v7631 = vand.u32 %v6112, 4294901760
    %7632 = vmatmul.f32.gmra.mxu0 %v7631
    %v7633 = vpop.f32.mrf.mxu0
    %v7634 = vadd.f32 %v7448, %v7633
    %v7635 = vand.u32 %v6115, 4294901760
    %7636 = vmatmul.f32.gmra.mxu0 %v7635
    %v7637 = vpop.f32.mrf.mxu0
    %v7638 = vadd.f32 %v7456, %v7637
    %v7639 = vand.u32 %v6118, 4294901760
    %7640 = vmatmul.f32.gmra.mxu0 %v7639
    %v7641 = vpop.f32.mrf.mxu0
    %v7642 = vadd.f32 %v7464, %v7641
    %v7643 = vand.u32 %v6121, 4294901760
    %7644 = vmatmul.f32.gmra.mxu0 %v7643
    %v7645 = vpop.f32.mrf.mxu0
    %v7646 = vadd.f32 %v7472, %v7645
    %v7647 = vand.u32 %v6124, 4294901760
    %7648 = vmatmul.f32.gmra.mxu0 %v7647
    %v7649 = vpop.f32.mrf.mxu0
    %v7650 = vadd.f32 %v7480, %v7649
    %v7651 = vand.u32 %v6127, 4294901760
    %7652 = vmatmul.f32.gmra.mxu0 %v7651
    %v7653 = vpop.f32.mrf.mxu0
    %v7654 = vadd.f32 %v7488, %v7653
    %v7655 = vand.u32 %v6130, 4294901760
    %7656 = vmatmul.f32.gmra.mxu0 %v7655
    %v7657 = vpop.f32.mrf.mxu0
    %v7658 = vadd.f32 %v7496, %v7657
    %v7659 = vand.u32 %v6133, 4294901760
    %7660 = vmatmul.f32.gmra.mxu0 %v7659
    %v7661 = vpop.f32.mrf.mxu0
    %v7662 = vadd.f32 %v7504, %v7661
    %v7663 = vand.u32 %v6136, 4294901760
    %7664 = vmatmul.f32.gmra.mxu0 %v7663
    %v7665 = vpop.f32.mrf.mxu0
    %v7666 = vadd.f32 %v7512, %v7665
    %v7667 = vand.u32 %v6139, 4294901760
    %7668 = vmatmul.f32.gmra.mxu0 %v7667
    %v7669 = vpop.f32.mrf.mxu0
    %v7670 = vadd.f32 %v7520, %v7669
    %7671 = vdwg.mxu0
    %7672 = vmatpush.msra.mxu0 0.0
    %7673 = vmatpush.msra.mxu0 0.0
    %7674 = vmatpush.msra.mxu0 0.0
    %7675 = vmatpush.msra.mxu0 0.0
    %7676 = vmatpush.msra.mxu0 0.0
    %7677 = vmatpush.msra.mxu0 0.0
    %7678 = vmatpush.msra.mxu0 0.0
    %7679 = vmatpush.msra.mxu0 0.0
    %7680 = vmatpush.msra.mxu0 0.0
    %7681 = vmatpush.msra.mxu0 0.0
    %7682 = vmatpush.msra.mxu0 0.0
    %7683 = vmatpush.msra.mxu0 0.0
    %7684 = vmatpush.msra.mxu0 0.0
    %7685 = vmatpush.msra.mxu0 0.0
    %7686 = vmatpush.msra.mxu0 0.0
    %v7687 = vand.u32 %v5975, 4294901760
    %v7688 = vsub.f32 %v5975, %v7687
    %7689 = vmatpush.msra.mxu0 %v7688
    %v7690 = vand.u32 %v6046, 4294901760
    %v7691 = vsub.f32 %v6046, %v7690
    %7692 = vmatmul.f32.gmra.mxu0 %v7691
    %v7693 = vpop.f32.mrf.mxu0
    %v7694 = vadd.f32 %v7546, %v7693
    %v7695 = vand.u32 %v6049, 4294901760
    %v7696 = vsub.f32 %v6049, %v7695
    %7697 = vmatmul.f32.gmra.mxu0 %v7696
    %v7698 = vpop.f32.mrf.mxu0
    %v7699 = vadd.f32 %v7550, %v7698
    %v7700 = vand.u32 %v6052, 4294901760
    %v7701 = vsub.f32 %v6052, %v7700
    %7702 = vmatmul.f32.gmra.mxu0 %v7701
    %v7703 = vpop.f32.mrf.mxu0
    %v7704 = vadd.f32 %v7554, %v7703
    %v7705 = vand.u32 %v6055, 4294901760
    %v7706 = vsub.f32 %v6055, %v7705
    %7707 = vmatmul.f32.gmra.mxu0 %v7706
    %v7708 = vpop.f32.mrf.mxu0
    %v7709 = vadd.f32 %v7558, %v7708
    %v7710 = vand.u32 %v6058, 4294901760
    %v7711 = vsub.f32 %v6058, %v7710
    %7712 = vmatmul.f32.gmra.mxu0 %v7711
    %v7713 = vpop.f32.mrf.mxu0
    %v7714 = vadd.f32 %v7562, %v7713
    %v7715 = vand.u32 %v6061, 4294901760
    %v7716 = vsub.f32 %v6061, %v7715
    %7717 = vmatmul.f32.gmra.mxu0 %v7716
    %v7718 = vpop.f32.mrf.mxu0
    %v7719 = vadd.f32 %v7566, %v7718
    %v7720 = vand.u32 %v6064, 4294901760
    %v7721 = vsub.f32 %v6064, %v7720
    %7722 = vmatmul.f32.gmra.mxu0 %v7721
    %v7723 = vpop.f32.mrf.mxu0
    %v7724 = vadd.f32 %v7570, %v7723
    %v7725 = vand.u32 %v6067, 4294901760
    %v7726 = vsub.f32 %v6067, %v7725
    %7727 = vmatmul.f32.gmra.mxu0 %v7726
    %v7728 = vpop.f32.mrf.mxu0
    %v7729 = vadd.f32 %v7574, %v7728
    %v7730 = vand.u32 %v6070, 4294901760
    %v7731 = vsub.f32 %v6070, %v7730
    %7732 = vmatmul.f32.gmra.mxu0 %v7731
    %v7733 = vpop.f32.mrf.mxu0
    %v7734 = vadd.f32 %v7578, %v7733
    %v7735 = vand.u32 %v6073, 4294901760
    %v7736 = vsub.f32 %v6073, %v7735
    %7737 = vmatmul.f32.gmra.mxu0 %v7736
    %v7738 = vpop.f32.mrf.mxu0
    %v7739 = vadd.f32 %v7582, %v7738
    %v7740 = vand.u32 %v6076, 4294901760
    %v7741 = vsub.f32 %v6076, %v7740
    %7742 = vmatmul.f32.gmra.mxu0 %v7741
    %v7743 = vpop.f32.mrf.mxu0
    %v7744 = vadd.f32 %v7586, %v7743
    %v7745 = vand.u32 %v6079, 4294901760
    %v7746 = vsub.f32 %v6079, %v7745
    %7747 = vmatmul.f32.gmra.mxu0 %v7746
    %v7748 = vpop.f32.mrf.mxu0
    %v7749 = vadd.f32 %v7590, %v7748
    %v7750 = vand.u32 %v6082, 4294901760
    %v7751 = vsub.f32 %v6082, %v7750
    %7752 = vmatmul.f32.gmra.mxu0 %v7751
    %v7753 = vpop.f32.mrf.mxu0
    %v7754 = vadd.f32 %v7594, %v7753
    %v7755 = vand.u32 %v6085, 4294901760
    %v7756 = vsub.f32 %v6085, %v7755
    %7757 = vmatmul.f32.gmra.mxu0 %v7756
    %v7758 = vpop.f32.mrf.mxu0
    %v7759 = vadd.f32 %v7598, %v7758
    %v7760 = vand.u32 %v6088, 4294901760
    %v7761 = vsub.f32 %v6088, %v7760
    %7762 = vmatmul.f32.gmra.mxu0 %v7761
    %v7763 = vpop.f32.mrf.mxu0
    %v7764 = vadd.f32 %v7602, %v7763
    %v7765 = vand.u32 %v6091, 4294901760
    %v7766 = vsub.f32 %v6091, %v7765
    %7767 = vmatmul.f32.gmra.mxu0 %v7766
    %v7768 = vpop.f32.mrf.mxu0
    %v7769 = vadd.f32 %v7606, %v7768
    %v7770 = vand.u32 %v6094, 4294901760
    %v7771 = vsub.f32 %v6094, %v7770
    %7772 = vmatmul.f32.gmra.mxu0 %v7771
    %v7773 = vpop.f32.mrf.mxu0
    %v7774 = vadd.f32 %v7610, %v7773
    %v7775 = vand.u32 %v6097, 4294901760
    %v7776 = vsub.f32 %v6097, %v7775
    %7777 = vmatmul.f32.gmra.mxu0 %v7776
    %v7778 = vpop.f32.mrf.mxu0
    %v7779 = vadd.f32 %v7614, %v7778
    %v7780 = vand.u32 %v6100, 4294901760
    %v7781 = vsub.f32 %v6100, %v7780
    %7782 = vmatmul.f32.gmra.mxu0 %v7781
    %v7783 = vpop.f32.mrf.mxu0
    %v7784 = vadd.f32 %v7618, %v7783
    %v7785 = vand.u32 %v6103, 4294901760
    %v7786 = vsub.f32 %v6103, %v7785
    %7787 = vmatmul.f32.gmra.mxu0 %v7786
    %v7788 = vpop.f32.mrf.mxu0
    %v7789 = vadd.f32 %v7622, %v7788
    %v7790 = vand.u32 %v6106, 4294901760
    %v7791 = vsub.f32 %v6106, %v7790
    %7792 = vmatmul.f32.gmra.mxu0 %v7791
    %v7793 = vpop.f32.mrf.mxu0
    %v7794 = vadd.f32 %v7626, %v7793
    %v7795 = vand.u32 %v6109, 4294901760
    %v7796 = vsub.f32 %v6109, %v7795
    %7797 = vmatmul.f32.gmra.mxu0 %v7796
    %v7798 = vpop.f32.mrf.mxu0
    %v7799 = vadd.f32 %v7630, %v7798
    %v7800 = vand.u32 %v6112, 4294901760
    %v7801 = vsub.f32 %v6112, %v7800
    %7802 = vmatmul.f32.gmra.mxu0 %v7801
    %v7803 = vpop.f32.mrf.mxu0
    %v7804 = vadd.f32 %v7634, %v7803
    %v7805 = vand.u32 %v6115, 4294901760
    %v7806 = vsub.f32 %v6115, %v7805
    %7807 = vmatmul.f32.gmra.mxu0 %v7806
    %v7808 = vpop.f32.mrf.mxu0
    %v7809 = vadd.f32 %v7638, %v7808
    %v7810 = vand.u32 %v6118, 4294901760
    %v7811 = vsub.f32 %v6118, %v7810
    %7812 = vmatmul.f32.gmra.mxu0 %v7811
    %v7813 = vpop.f32.mrf.mxu0
    %v7814 = vadd.f32 %v7642, %v7813
    %v7815 = vand.u32 %v6121, 4294901760
    %v7816 = vsub.f32 %v6121, %v7815
    %7817 = vmatmul.f32.gmra.mxu0 %v7816
    %v7818 = vpop.f32.mrf.mxu0
    %v7819 = vadd.f32 %v7646, %v7818
    %v7820 = vand.u32 %v6124, 4294901760
    %v7821 = vsub.f32 %v6124, %v7820
    %7822 = vmatmul.f32.gmra.mxu0 %v7821
    %v7823 = vpop.f32.mrf.mxu0
    %v7824 = vadd.f32 %v7650, %v7823
    %v7825 = vand.u32 %v6127, 4294901760
    %v7826 = vsub.f32 %v6127, %v7825
    %7827 = vmatmul.f32.gmra.mxu0 %v7826
    %v7828 = vpop.f32.mrf.mxu0
    %v7829 = vadd.f32 %v7654, %v7828
    %v7830 = vand.u32 %v6130, 4294901760
    %v7831 = vsub.f32 %v6130, %v7830
    %7832 = vmatmul.f32.gmra.mxu0 %v7831
    %v7833 = vpop.f32.mrf.mxu0
    %v7834 = vadd.f32 %v7658, %v7833
    %v7835 = vand.u32 %v6133, 4294901760
    %v7836 = vsub.f32 %v6133, %v7835
    %7837 = vmatmul.f32.gmra.mxu0 %v7836
    %v7838 = vpop.f32.mrf.mxu0
    %v7839 = vadd.f32 %v7662, %v7838
    %v7840 = vand.u32 %v6136, 4294901760
    %v7841 = vsub.f32 %v6136, %v7840
    %7842 = vmatmul.f32.gmra.mxu0 %v7841
    %v7843 = vpop.f32.mrf.mxu0
    %v7844 = vadd.f32 %v7666, %v7843
    %v7845 = vand.u32 %v6139, 4294901760
    %v7846 = vsub.f32 %v6139, %v7845
    %7847 = vmatmul.f32.gmra.mxu0 %v7846
    %v7848 = vpop.f32.mrf.mxu0
    %v7849 = vadd.f32 %v7670, %v7848
    %7850 = vdwg.mxu0
    %7851 = vmatpush.msra.mxu0 0.0
    %7852 = vmatpush.msra.mxu0 0.0
    %7853 = vmatpush.msra.mxu0 0.0
    %7854 = vmatpush.msra.mxu0 0.0
    %7855 = vmatpush.msra.mxu0 0.0
    %7856 = vmatpush.msra.mxu0 0.0
    %7857 = vmatpush.msra.mxu0 0.0
    %7858 = vmatpush.msra.mxu0 0.0
    %7859 = vmatpush.msra.mxu0 0.0
    %7860 = vmatpush.msra.mxu0 0.0
    %7861 = vmatpush.msra.mxu0 0.0
    %7862 = vmatpush.msra.mxu0 0.0
    %7863 = vmatpush.msra.mxu0 0.0
    %7864 = vmatpush.msra.mxu0 0.0
    %7865 = vmatpush.msra.mxu0 0.0
    %v7866 = vand.u32 %v5975, 4294901760
    %7867 = vmatpush.msra.mxu0 %v7866
    %v7868 = vand.u32 %v6046, 4294901760
    %v7869 = vsub.f32 %v6046, %v7868
    %v7870 = vand.u32 %v7869, 4294901760
    %7871 = vmatmul.f32.gmra.mxu0 %v7870
    %v7872 = vpop.f32.mrf.mxu0
    %v7873 = vadd.f32 %v7694, %v7872
    %v7874 = vand.u32 %v6049, 4294901760
    %v7875 = vsub.f32 %v6049, %v7874
    %v7876 = vand.u32 %v7875, 4294901760
    %7877 = vmatmul.f32.gmra.mxu0 %v7876
    %v7878 = vpop.f32.mrf.mxu0
    %v7879 = vadd.f32 %v7699, %v7878
    %v7880 = vand.u32 %v6052, 4294901760
    %v7881 = vsub.f32 %v6052, %v7880
    %v7882 = vand.u32 %v7881, 4294901760
    %7883 = vmatmul.f32.gmra.mxu0 %v7882
    %v7884 = vpop.f32.mrf.mxu0
    %v7885 = vadd.f32 %v7704, %v7884
    %v7886 = vand.u32 %v6055, 4294901760
    %v7887 = vsub.f32 %v6055, %v7886
    %v7888 = vand.u32 %v7887, 4294901760
    %7889 = vmatmul.f32.gmra.mxu0 %v7888
    %v7890 = vpop.f32.mrf.mxu0
    %v7891 = vadd.f32 %v7709, %v7890
    %v7892 = vand.u32 %v6058, 4294901760
    %v7893 = vsub.f32 %v6058, %v7892
    %v7894 = vand.u32 %v7893, 4294901760
    %7895 = vmatmul.f32.gmra.mxu0 %v7894
    %v7896 = vpop.f32.mrf.mxu0
    %v7897 = vadd.f32 %v7714, %v7896
    %v7898 = vand.u32 %v6061, 4294901760
    %v7899 = vsub.f32 %v6061, %v7898
    %v7900 = vand.u32 %v7899, 4294901760
    %7901 = vmatmul.f32.gmra.mxu0 %v7900
    %v7902 = vpop.f32.mrf.mxu0
    %v7903 = vadd.f32 %v7719, %v7902
    %v7904 = vand.u32 %v6064, 4294901760
    %v7905 = vsub.f32 %v6064, %v7904
    %v7906 = vand.u32 %v7905, 4294901760
    %7907 = vmatmul.f32.gmra.mxu0 %v7906
    %v7908 = vpop.f32.mrf.mxu0
    %v7909 = vadd.f32 %v7724, %v7908
    %v7910 = vand.u32 %v6067, 4294901760
    %v7911 = vsub.f32 %v6067, %v7910
    %v7912 = vand.u32 %v7911, 4294901760
    %7913 = vmatmul.f32.gmra.mxu0 %v7912
    %v7914 = vpop.f32.mrf.mxu0
    %v7915 = vadd.f32 %v7729, %v7914
    %v7916 = vand.u32 %v6070, 4294901760
    %v7917 = vsub.f32 %v6070, %v7916
    %v7918 = vand.u32 %v7917, 4294901760
    %7919 = vmatmul.f32.gmra.mxu0 %v7918
    %v7920 = vpop.f32.mrf.mxu0
    %v7921 = vadd.f32 %v7734, %v7920
    %v7922 = vand.u32 %v6073, 4294901760
    %v7923 = vsub.f32 %v6073, %v7922
    %v7924 = vand.u32 %v7923, 4294901760
    %7925 = vmatmul.f32.gmra.mxu0 %v7924
    %v7926 = vpop.f32.mrf.mxu0
    %v7927 = vadd.f32 %v7739, %v7926
    %v7928 = vand.u32 %v6076, 4294901760
    %v7929 = vsub.f32 %v6076, %v7928
    %v7930 = vand.u32 %v7929, 4294901760
    %7931 = vmatmul.f32.gmra.mxu0 %v7930
    %v7932 = vpop.f32.mrf.mxu0
    %v7933 = vadd.f32 %v7744, %v7932
    %v7934 = vand.u32 %v6079, 4294901760
    %v7935 = vsub.f32 %v6079, %v7934
    %v7936 = vand.u32 %v7935, 4294901760
    %7937 = vmatmul.f32.gmra.mxu0 %v7936
    %v7938 = vpop.f32.mrf.mxu0
    %v7939 = vadd.f32 %v7749, %v7938
    %v7940 = vand.u32 %v6082, 4294901760
    %v7941 = vsub.f32 %v6082, %v7940
    %v7942 = vand.u32 %v7941, 4294901760
    %7943 = vmatmul.f32.gmra.mxu0 %v7942
    %v7944 = vpop.f32.mrf.mxu0
    %v7945 = vadd.f32 %v7754, %v7944
    %v7946 = vand.u32 %v6085, 4294901760
    %v7947 = vsub.f32 %v6085, %v7946
    %v7948 = vand.u32 %v7947, 4294901760
    %7949 = vmatmul.f32.gmra.mxu0 %v7948
    %v7950 = vpop.f32.mrf.mxu0
    %v7951 = vadd.f32 %v7759, %v7950
    %v7952 = vand.u32 %v6088, 4294901760
    %v7953 = vsub.f32 %v6088, %v7952
    %v7954 = vand.u32 %v7953, 4294901760
    %7955 = vmatmul.f32.gmra.mxu0 %v7954
    %v7956 = vpop.f32.mrf.mxu0
    %v7957 = vadd.f32 %v7764, %v7956
    %v7958 = vand.u32 %v6091, 4294901760
    %v7959 = vsub.f32 %v6091, %v7958
    %v7960 = vand.u32 %v7959, 4294901760
    %7961 = vmatmul.f32.gmra.mxu0 %v7960
    %v7962 = vpop.f32.mrf.mxu0
    %v7963 = vadd.f32 %v7769, %v7962
    %v7964 = vand.u32 %v6094, 4294901760
    %v7965 = vsub.f32 %v6094, %v7964
    %v7966 = vand.u32 %v7965, 4294901760
    %7967 = vmatmul.f32.gmra.mxu0 %v7966
    %v7968 = vpop.f32.mrf.mxu0
    %v7969 = vadd.f32 %v7774, %v7968
    %v7970 = vand.u32 %v6097, 4294901760
    %v7971 = vsub.f32 %v6097, %v7970
    %v7972 = vand.u32 %v7971, 4294901760
    %7973 = vmatmul.f32.gmra.mxu0 %v7972
    %v7974 = vpop.f32.mrf.mxu0
    %v7975 = vadd.f32 %v7779, %v7974
    %v7976 = vand.u32 %v6100, 4294901760
    %v7977 = vsub.f32 %v6100, %v7976
    %v7978 = vand.u32 %v7977, 4294901760
    %7979 = vmatmul.f32.gmra.mxu0 %v7978
    %v7980 = vpop.f32.mrf.mxu0
    %v7981 = vadd.f32 %v7784, %v7980
    %v7982 = vand.u32 %v6103, 4294901760
    %v7983 = vsub.f32 %v6103, %v7982
    %v7984 = vand.u32 %v7983, 4294901760
    %7985 = vmatmul.f32.gmra.mxu0 %v7984
    %v7986 = vpop.f32.mrf.mxu0
    %v7987 = vadd.f32 %v7789, %v7986
    %v7988 = vand.u32 %v6106, 4294901760
    %v7989 = vsub.f32 %v6106, %v7988
    %v7990 = vand.u32 %v7989, 4294901760
    %7991 = vmatmul.f32.gmra.mxu0 %v7990
    %v7992 = vpop.f32.mrf.mxu0
    %v7993 = vadd.f32 %v7794, %v7992
    %v7994 = vand.u32 %v6109, 4294901760
    %v7995 = vsub.f32 %v6109, %v7994
    %v7996 = vand.u32 %v7995, 4294901760
    %7997 = vmatmul.f32.gmra.mxu0 %v7996
    %v7998 = vpop.f32.mrf.mxu0
    %v7999 = vadd.f32 %v7799, %v7998
    %v8000 = vand.u32 %v6112, 4294901760
    %v8001 = vsub.f32 %v6112, %v8000
    %v8002 = vand.u32 %v8001, 4294901760
    %8003 = vmatmul.f32.gmra.mxu0 %v8002
    %v8004 = vpop.f32.mrf.mxu0
    %v8005 = vadd.f32 %v7804, %v8004
    %v8006 = vand.u32 %v6115, 4294901760
    %v8007 = vsub.f32 %v6115, %v8006
    %v8008 = vand.u32 %v8007, 4294901760
    %8009 = vmatmul.f32.gmra.mxu0 %v8008
    %v8010 = vpop.f32.mrf.mxu0
    %v8011 = vadd.f32 %v7809, %v8010
    %v8012 = vand.u32 %v6118, 4294901760
    %v8013 = vsub.f32 %v6118, %v8012
    %v8014 = vand.u32 %v8013, 4294901760
    %8015 = vmatmul.f32.gmra.mxu0 %v8014
    %v8016 = vpop.f32.mrf.mxu0
    %v8017 = vadd.f32 %v7814, %v8016
    %v8018 = vand.u32 %v6121, 4294901760
    %v8019 = vsub.f32 %v6121, %v8018
    %v8020 = vand.u32 %v8019, 4294901760
    %8021 = vmatmul.f32.gmra.mxu0 %v8020
    %v8022 = vpop.f32.mrf.mxu0
    %v8023 = vadd.f32 %v7819, %v8022
    %v8024 = vand.u32 %v6124, 4294901760
    %v8025 = vsub.f32 %v6124, %v8024
    %v8026 = vand.u32 %v8025, 4294901760
    %8027 = vmatmul.f32.gmra.mxu0 %v8026
    %v8028 = vpop.f32.mrf.mxu0
    %v8029 = vadd.f32 %v7824, %v8028
    %v8030 = vand.u32 %v6127, 4294901760
    %v8031 = vsub.f32 %v6127, %v8030
    %v8032 = vand.u32 %v8031, 4294901760
    %8033 = vmatmul.f32.gmra.mxu0 %v8032
    %v8034 = vpop.f32.mrf.mxu0
    %v8035 = vadd.f32 %v7829, %v8034
    %v8036 = vand.u32 %v6130, 4294901760
    %v8037 = vsub.f32 %v6130, %v8036
    %v8038 = vand.u32 %v8037, 4294901760
    %8039 = vmatmul.f32.gmra.mxu0 %v8038
    %v8040 = vpop.f32.mrf.mxu0
    %v8041 = vadd.f32 %v7834, %v8040
    %v8042 = vand.u32 %v6133, 4294901760
    %v8043 = vsub.f32 %v6133, %v8042
    %v8044 = vand.u32 %v8043, 4294901760
    %8045 = vmatmul.f32.gmra.mxu0 %v8044
    %v8046 = vpop.f32.mrf.mxu0
    %v8047 = vadd.f32 %v7839, %v8046
    %v8048 = vand.u32 %v6136, 4294901760
    %v8049 = vsub.f32 %v6136, %v8048
    %v8050 = vand.u32 %v8049, 4294901760
    %8051 = vmatmul.f32.gmra.mxu0 %v8050
    %v8052 = vpop.f32.mrf.mxu0
    %v8053 = vadd.f32 %v7844, %v8052
    %v8054 = vand.u32 %v6139, 4294901760
    %v8055 = vsub.f32 %v6139, %v8054
    %v8056 = vand.u32 %v8055, 4294901760
    %8057 = vmatmul.f32.gmra.mxu0 %v8056
    %v8058 = vpop.f32.mrf.mxu0
    %v8059 = vadd.f32 %v7849, %v8058
    %8060 = vdwg.mxu0
    %8061 = vmatpush.msra.mxu0 0.0
    %8062 = vmatpush.msra.mxu0 0.0
    %8063 = vmatpush.msra.mxu0 0.0
    %8064 = vmatpush.msra.mxu0 0.0
    %8065 = vmatpush.msra.mxu0 0.0
    %8066 = vmatpush.msra.mxu0 0.0
    %8067 = vmatpush.msra.mxu0 0.0
    %8068 = vmatpush.msra.mxu0 0.0
    %8069 = vmatpush.msra.mxu0 0.0
    %8070 = vmatpush.msra.mxu0 0.0
    %8071 = vmatpush.msra.mxu0 0.0
    %8072 = vmatpush.msra.mxu0 0.0
    %8073 = vmatpush.msra.mxu0 0.0
    %8074 = vmatpush.msra.mxu0 0.0
    %8075 = vmatpush.msra.mxu0 0.0
    %v8076 = vand.u32 %v5975, 4294901760
    %v8077 = vsub.f32 %v5975, %v8076
    %v8078 = vand.u32 %v8077, 4294901760
    %8079 = vmatpush.msra.mxu0 %v8078
    %v8080 = vand.u32 %v6046, 4294901760
    %8081 = vmatmul.f32.gmra.mxu0 %v8080
    %v8082 = vpop.f32.mrf.mxu0
    %v8083 = vadd.f32 %v7873, %v8082
    %v8084 = vand.u32 %v6049, 4294901760
    %8085 = vmatmul.f32.gmra.mxu0 %v8084
    %v8086 = vpop.f32.mrf.mxu0
    %v8087 = vadd.f32 %v7879, %v8086
    %v8088 = vand.u32 %v6052, 4294901760
    %8089 = vmatmul.f32.gmra.mxu0 %v8088
    %v8090 = vpop.f32.mrf.mxu0
    %v8091 = vadd.f32 %v7885, %v8090
    %v8092 = vand.u32 %v6055, 4294901760
    %8093 = vmatmul.f32.gmra.mxu0 %v8092
    %v8094 = vpop.f32.mrf.mxu0
    %v8095 = vadd.f32 %v7891, %v8094
    %v8096 = vand.u32 %v6058, 4294901760
    %8097 = vmatmul.f32.gmra.mxu0 %v8096
    %v8098 = vpop.f32.mrf.mxu0
    %v8099 = vadd.f32 %v7897, %v8098
    %v8100 = vand.u32 %v6061, 4294901760
    %8101 = vmatmul.f32.gmra.mxu0 %v8100
    %v8102 = vpop.f32.mrf.mxu0
    %v8103 = vadd.f32 %v7903, %v8102
    %v8104 = vand.u32 %v6064, 4294901760
    %8105 = vmatmul.f32.gmra.mxu0 %v8104
    %v8106 = vpop.f32.mrf.mxu0
    %v8107 = vadd.f32 %v7909, %v8106
    %v8108 = vand.u32 %v6067, 4294901760
    %8109 = vmatmul.f32.gmra.mxu0 %v8108
    %v8110 = vpop.f32.mrf.mxu0
    %v8111 = vadd.f32 %v7915, %v8110
    %v8112 = vand.u32 %v6070, 4294901760
    %8113 = vmatmul.f32.gmra.mxu0 %v8112
    %v8114 = vpop.f32.mrf.mxu0
    %v8115 = vadd.f32 %v7921, %v8114
    %v8116 = vand.u32 %v6073, 4294901760
    %8117 = vmatmul.f32.gmra.mxu0 %v8116
    %v8118 = vpop.f32.mrf.mxu0
    %v8119 = vadd.f32 %v7927, %v8118
    %v8120 = vand.u32 %v6076, 4294901760
    %8121 = vmatmul.f32.gmra.mxu0 %v8120
    %v8122 = vpop.f32.mrf.mxu0
    %v8123 = vadd.f32 %v7933, %v8122
    %v8124 = vand.u32 %v6079, 4294901760
    %8125 = vmatmul.f32.gmra.mxu0 %v8124
    %v8126 = vpop.f32.mrf.mxu0
    %v8127 = vadd.f32 %v7939, %v8126
    %v8128 = vand.u32 %v6082, 4294901760
    %8129 = vmatmul.f32.gmra.mxu0 %v8128
    %v8130 = vpop.f32.mrf.mxu0
    %v8131 = vadd.f32 %v7945, %v8130
    %v8132 = vand.u32 %v6085, 4294901760
    %8133 = vmatmul.f32.gmra.mxu0 %v8132
    %v8134 = vpop.f32.mrf.mxu0
    %v8135 = vadd.f32 %v7951, %v8134
    %v8136 = vand.u32 %v6088, 4294901760
    %8137 = vmatmul.f32.gmra.mxu0 %v8136
    %v8138 = vpop.f32.mrf.mxu0
    %v8139 = vadd.f32 %v7957, %v8138
    %v8140 = vand.u32 %v6091, 4294901760
    %8141 = vmatmul.f32.gmra.mxu0 %v8140
    %v8142 = vpop.f32.mrf.mxu0
    %v8143 = vadd.f32 %v7963, %v8142
    %v8144 = vand.u32 %v6094, 4294901760
    %8145 = vmatmul.f32.gmra.mxu0 %v8144
    %v8146 = vpop.f32.mrf.mxu0
    %v8147 = vadd.f32 %v7969, %v8146
    %v8148 = vand.u32 %v6097, 4294901760
    %8149 = vmatmul.f32.gmra.mxu0 %v8148
    %v8150 = vpop.f32.mrf.mxu0
    %v8151 = vadd.f32 %v7975, %v8150
    %v8152 = vand.u32 %v6100, 4294901760
    %8153 = vmatmul.f32.gmra.mxu0 %v8152
    %v8154 = vpop.f32.mrf.mxu0
    %v8155 = vadd.f32 %v7981, %v8154
    %v8156 = vand.u32 %v6103, 4294901760
    %8157 = vmatmul.f32.gmra.mxu0 %v8156
    %v8158 = vpop.f32.mrf.mxu0
    %v8159 = vadd.f32 %v7987, %v8158
    %v8160 = vand.u32 %v6106, 4294901760
    %8161 = vmatmul.f32.gmra.mxu0 %v8160
    %v8162 = vpop.f32.mrf.mxu0
    %v8163 = vadd.f32 %v7993, %v8162
    %v8164 = vand.u32 %v6109, 4294901760
    %8165 = vmatmul.f32.gmra.mxu0 %v8164
    %v8166 = vpop.f32.mrf.mxu0
    %v8167 = vadd.f32 %v7999, %v8166
    %v8168 = vand.u32 %v6112, 4294901760
    %8169 = vmatmul.f32.gmra.mxu0 %v8168
    %v8170 = vpop.f32.mrf.mxu0
    %v8171 = vadd.f32 %v8005, %v8170
    %v8172 = vand.u32 %v6115, 4294901760
    %8173 = vmatmul.f32.gmra.mxu0 %v8172
    %v8174 = vpop.f32.mrf.mxu0
    %v8175 = vadd.f32 %v8011, %v8174
    %v8176 = vand.u32 %v6118, 4294901760
    %8177 = vmatmul.f32.gmra.mxu0 %v8176
    %v8178 = vpop.f32.mrf.mxu0
    %v8179 = vadd.f32 %v8017, %v8178
    %v8180 = vand.u32 %v6121, 4294901760
    %8181 = vmatmul.f32.gmra.mxu0 %v8180
    %v8182 = vpop.f32.mrf.mxu0
    %v8183 = vadd.f32 %v8023, %v8182
    %v8184 = vand.u32 %v6124, 4294901760
    %8185 = vmatmul.f32.gmra.mxu0 %v8184
    %v8186 = vpop.f32.mrf.mxu0
    %v8187 = vadd.f32 %v8029, %v8186
    %v8188 = vand.u32 %v6127, 4294901760
    %8189 = vmatmul.f32.gmra.mxu0 %v8188
    %v8190 = vpop.f32.mrf.mxu0
    %v8191 = vadd.f32 %v8035, %v8190
    %v8192 = vand.u32 %v6130, 4294901760
    %8193 = vmatmul.f32.gmra.mxu0 %v8192
    %v8194 = vpop.f32.mrf.mxu0
    %v8195 = vadd.f32 %v8041, %v8194
    %v8196 = vand.u32 %v6133, 4294901760
    %8197 = vmatmul.f32.gmra.mxu0 %v8196
    %v8198 = vpop.f32.mrf.mxu0
    %v8199 = vadd.f32 %v8047, %v8198
    %v8200 = vand.u32 %v6136, 4294901760
    %8201 = vmatmul.f32.gmra.mxu0 %v8200
    %v8202 = vpop.f32.mrf.mxu0
    %v8203 = vadd.f32 %v8053, %v8202
    %v8204 = vand.u32 %v6139, 4294901760
    %8205 = vmatmul.f32.gmra.mxu0 %v8204
    %v8206 = vpop.f32.mrf.mxu0
    %v8207 = vadd.f32 %v8059, %v8206
    %8208 = vdwg.mxu0
    %8209 = vmatpush.msra.mxu0 0.0
    %8210 = vmatpush.msra.mxu0 0.0
    %8211 = vmatpush.msra.mxu0 0.0
    %8212 = vmatpush.msra.mxu0 0.0
    %8213 = vmatpush.msra.mxu0 0.0
    %8214 = vmatpush.msra.mxu0 0.0
    %8215 = vmatpush.msra.mxu0 0.0
    %8216 = vmatpush.msra.mxu0 0.0
    %8217 = vmatpush.msra.mxu0 0.0
    %8218 = vmatpush.msra.mxu0 0.0
    %8219 = vmatpush.msra.mxu0 0.0
    %8220 = vmatpush.msra.mxu0 0.0
    %8221 = vmatpush.msra.mxu0 0.0
    %8222 = vmatpush.msra.mxu0 0.0
    %8223 = vmatpush.msra.mxu0 0.0
    %v8224 = vand.u32 %v5975, 4294901760
    %8225 = vmatpush.msra.mxu0 %v8224
    %v8226 = vand.u32 %v6046, 4294901760
    %8227 = vmatmul.f32.gmra.mxu0 %v8226
    %v8228 = vpop.f32.mrf.mxu0
    %v8229 = vadd.f32 %v8083, %v8228
    %v8230 = vand.u32 %v6049, 4294901760
    %8231 = vmatmul.f32.gmra.mxu0 %v8230
    %v8232 = vpop.f32.mrf.mxu0
    %v8233 = vadd.f32 %v8087, %v8232
    %v8234 = vand.u32 %v6052, 4294901760
    %8235 = vmatmul.f32.gmra.mxu0 %v8234
    %v8236 = vpop.f32.mrf.mxu0
    %v8237 = vadd.f32 %v8091, %v8236
    %v8238 = vand.u32 %v6055, 4294901760
    %8239 = vmatmul.f32.gmra.mxu0 %v8238
    %v8240 = vpop.f32.mrf.mxu0
    %v8241 = vadd.f32 %v8095, %v8240
    %v8242 = vand.u32 %v6058, 4294901760
    %8243 = vmatmul.f32.gmra.mxu0 %v8242
    %v8244 = vpop.f32.mrf.mxu0
    %v8245 = vadd.f32 %v8099, %v8244
    %v8246 = vand.u32 %v6061, 4294901760
    %8247 = vmatmul.f32.gmra.mxu0 %v8246
    %v8248 = vpop.f32.mrf.mxu0
    %v8249 = vadd.f32 %v8103, %v8248
    %v8250 = vand.u32 %v6064, 4294901760
    %8251 = vmatmul.f32.gmra.mxu0 %v8250
    %v8252 = vpop.f32.mrf.mxu0
    %v8253 = vadd.f32 %v8107, %v8252
    %v8254 = vand.u32 %v6067, 4294901760
    %8255 = vmatmul.f32.gmra.mxu0 %v8254
    %v8256 = vpop.f32.mrf.mxu0
    %v8257 = vadd.f32 %v8111, %v8256
    %v8258 = vand.u32 %v6070, 4294901760
    %8259 = vmatmul.f32.gmra.mxu0 %v8258
    %v8260 = vpop.f32.mrf.mxu0
    %v8261 = vadd.f32 %v8115, %v8260
    %v8262 = vand.u32 %v6073, 4294901760
    %8263 = vmatmul.f32.gmra.mxu0 %v8262
    %v8264 = vpop.f32.mrf.mxu0
    %v8265 = vadd.f32 %v8119, %v8264
    %v8266 = vand.u32 %v6076, 4294901760
    %8267 = vmatmul.f32.gmra.mxu0 %v8266
    %v8268 = vpop.f32.mrf.mxu0
    %v8269 = vadd.f32 %v8123, %v8268
    %v8270 = vand.u32 %v6079, 4294901760
    %8271 = vmatmul.f32.gmra.mxu0 %v8270
    %v8272 = vpop.f32.mrf.mxu0
    %v8273 = vadd.f32 %v8127, %v8272
    %v8274 = vand.u32 %v6082, 4294901760
    %8275 = vmatmul.f32.gmra.mxu0 %v8274
    %v8276 = vpop.f32.mrf.mxu0
    %v8277 = vadd.f32 %v8131, %v8276
    %v8278 = vand.u32 %v6085, 4294901760
    %8279 = vmatmul.f32.gmra.mxu0 %v8278
    %v8280 = vpop.f32.mrf.mxu0
    %v8281 = vadd.f32 %v8135, %v8280
    %v8282 = vand.u32 %v6088, 4294901760
    %8283 = vmatmul.f32.gmra.mxu0 %v8282
    %v8284 = vpop.f32.mrf.mxu0
    %v8285 = vadd.f32 %v8139, %v8284
    %v8286 = vand.u32 %v6091, 4294901760
    %8287 = vmatmul.f32.gmra.mxu0 %v8286
    %v8288 = vpop.f32.mrf.mxu0
    %v8289 = vadd.f32 %v8143, %v8288
    %v8290 = vand.u32 %v6094, 4294901760
    %8291 = vmatmul.f32.gmra.mxu0 %v8290
    %v8292 = vpop.f32.mrf.mxu0
    %v8293 = vadd.f32 %v8147, %v8292
    %v8294 = vand.u32 %v6097, 4294901760
    %8295 = vmatmul.f32.gmra.mxu0 %v8294
    %v8296 = vpop.f32.mrf.mxu0
    %v8297 = vadd.f32 %v8151, %v8296
    %v8298 = vand.u32 %v6100, 4294901760
    %8299 = vmatmul.f32.gmra.mxu0 %v8298
    %v8300 = vpop.f32.mrf.mxu0
    %v8301 = vadd.f32 %v8155, %v8300
    %v8302 = vand.u32 %v6103, 4294901760
    %8303 = vmatmul.f32.gmra.mxu0 %v8302
    %v8304 = vpop.f32.mrf.mxu0
    %v8305 = vadd.f32 %v8159, %v8304
    %v8306 = vand.u32 %v6106, 4294901760
    %8307 = vmatmul.f32.gmra.mxu0 %v8306
    %v8308 = vpop.f32.mrf.mxu0
    %v8309 = vadd.f32 %v8163, %v8308
    %v8310 = vand.u32 %v6109, 4294901760
    %8311 = vmatmul.f32.gmra.mxu0 %v8310
    %v8312 = vpop.f32.mrf.mxu0
    %v8313 = vadd.f32 %v8167, %v8312
    %v8314 = vand.u32 %v6112, 4294901760
    %8315 = vmatmul.f32.gmra.mxu0 %v8314
    %v8316 = vpop.f32.mrf.mxu0
    %v8317 = vadd.f32 %v8171, %v8316
    %v8318 = vand.u32 %v6115, 4294901760
    %8319 = vmatmul.f32.gmra.mxu0 %v8318
    %v8320 = vpop.f32.mrf.mxu0
    %v8321 = vadd.f32 %v8175, %v8320
    %v8322 = vand.u32 %v6118, 4294901760
    %8323 = vmatmul.f32.gmra.mxu0 %v8322
    %v8324 = vpop.f32.mrf.mxu0
    %v8325 = vadd.f32 %v8179, %v8324
    %v8326 = vand.u32 %v6121, 4294901760
    %8327 = vmatmul.f32.gmra.mxu0 %v8326
    %v8328 = vpop.f32.mrf.mxu0
    %v8329 = vadd.f32 %v8183, %v8328
    %v8330 = vand.u32 %v6124, 4294901760
    %8331 = vmatmul.f32.gmra.mxu0 %v8330
    %v8332 = vpop.f32.mrf.mxu0
    %v8333 = vadd.f32 %v8187, %v8332
    %v8334 = vand.u32 %v6127, 4294901760
    %8335 = vmatmul.f32.gmra.mxu0 %v8334
    %v8336 = vpop.f32.mrf.mxu0
    %v8337 = vadd.f32 %v8191, %v8336
    %v8338 = vand.u32 %v6130, 4294901760
    %8339 = vmatmul.f32.gmra.mxu0 %v8338
    %v8340 = vpop.f32.mrf.mxu0
    %v8341 = vadd.f32 %v8195, %v8340
    %v8342 = vand.u32 %v6133, 4294901760
    %8343 = vmatmul.f32.gmra.mxu0 %v8342
    %v8344 = vpop.f32.mrf.mxu0
    %v8345 = vadd.f32 %v8199, %v8344
    %v8346 = vand.u32 %v6136, 4294901760
    %8347 = vmatmul.f32.gmra.mxu0 %v8346
    %v8348 = vpop.f32.mrf.mxu0
    %v8349 = vadd.f32 %v8203, %v8348
    %v8350 = vand.u32 %v6139, 4294901760
    %8351 = vmatmul.f32.gmra.mxu0 %v8350
    %v8352 = vpop.f32.mrf.mxu0
    %v8353 = vadd.f32 %v8207, %v8352
    %8354 = vdwg.mxu0
    %v8355 = vmax.f32 %v7122, %v8229
    %8356 = vmax.xlane.f32.xlu0 %v8355
    %v8357 = vpop.xlane.xlu0 %8356
    %v8358 = vmax.f32 %v7126, %v8233
    %8359 = vmax.xlane.f32.xlu0 %v8358
    %v8360 = vpop.xlane.xlu0 %8359
    %v8361 = vmax.f32 %v7130, %v8237
    %8362 = vmax.xlane.f32.xlu0 %v8361
    %v8363 = vpop.xlane.xlu0 %8362
    %v8364 = vmax.f32 %v7134, %v8241
    %8365 = vmax.xlane.f32.xlu0 %v8364
    %v8366 = vpop.xlane.xlu0 %8365
    %v8367 = vmax.f32 %v7138, %v8245
    %8368 = vmax.xlane.f32.xlu0 %v8367
    %v8369 = vpop.xlane.xlu0 %8368
    %v8370 = vmax.f32 %v7142, %v8249
    %8371 = vmax.xlane.f32.xlu0 %v8370
    %v8372 = vpop.xlane.xlu0 %8371
    %v8373 = vmax.f32 %v7146, %v8253
    %8374 = vmax.xlane.f32.xlu0 %v8373
    %v8375 = vpop.xlane.xlu0 %8374
    %v8376 = vmax.f32 %v7150, %v8257
    %8377 = vmax.xlane.f32.xlu0 %v8376
    %v8378 = vpop.xlane.xlu0 %8377
    %v8379 = vmax.f32 %v7154, %v8261
    %8380 = vmax.xlane.f32.xlu0 %v8379
    %v8381 = vpop.xlane.xlu0 %8380
    %v8382 = vmax.f32 %v7158, %v8265
    %8383 = vmax.xlane.f32.xlu0 %v8382
    %v8384 = vpop.xlane.xlu0 %8383
    %v8385 = vmax.f32 %v7162, %v8269
    %8386 = vmax.xlane.f32.xlu0 %v8385
    %v8387 = vpop.xlane.xlu0 %8386
    %v8388 = vmax.f32 %v7166, %v8273
    %8389 = vmax.xlane.f32.xlu0 %v8388
    %v8390 = vpop.xlane.xlu0 %8389
    %v8391 = vmax.f32 %v7170, %v8277
    %8392 = vmax.xlane.f32.xlu0 %v8391
    %v8393 = vpop.xlane.xlu0 %8392
    %v8394 = vmax.f32 %v7174, %v8281
    %8395 = vmax.xlane.f32.xlu0 %v8394
    %v8396 = vpop.xlane.xlu0 %8395
    %v8397 = vmax.f32 %v7178, %v8285
    %8398 = vmax.xlane.f32.xlu0 %v8397
    %v8399 = vpop.xlane.xlu0 %8398
    %v8400 = vmax.f32 %v7182, %v8289
    %8401 = vmax.xlane.f32.xlu0 %v8400
    %v8402 = vpop.xlane.xlu0 %8401
    %v8403 = vmax.f32 %v7186, %v8293
    %8404 = vmax.xlane.f32.xlu0 %v8403
    %v8405 = vpop.xlane.xlu0 %8404
    %v8406 = vmax.f32 %v7190, %v8297
    %8407 = vmax.xlane.f32.xlu0 %v8406
    %v8408 = vpop.xlane.xlu0 %8407
    %v8409 = vmax.f32 %v7194, %v8301
    %8410 = vmax.xlane.f32.xlu0 %v8409
    %v8411 = vpop.xlane.xlu0 %8410
    %v8412 = vmax.f32 %v7198, %v8305
    %8413 = vmax.xlane.f32.xlu0 %v8412
    %v8414 = vpop.xlane.xlu0 %8413
    %v8415 = vmax.f32 %v7202, %v8309
    %8416 = vmax.xlane.f32.xlu0 %v8415
    %v8417 = vpop.xlane.xlu0 %8416
    %v8418 = vmax.f32 %v7206, %v8313
    %8419 = vmax.xlane.f32.xlu0 %v8418
    %v8420 = vpop.xlane.xlu0 %8419
    %v8421 = vmax.f32 %v7210, %v8317
    %8422 = vmax.xlane.f32.xlu0 %v8421
    %v8423 = vpop.xlane.xlu0 %8422
    %v8424 = vmax.f32 %v7214, %v8321
    %8425 = vmax.xlane.f32.xlu0 %v8424
    %v8426 = vpop.xlane.xlu0 %8425
    %v8427 = vmax.f32 %v7218, %v8325
    %8428 = vmax.xlane.f32.xlu0 %v8427
    %v8429 = vpop.xlane.xlu0 %8428
    %v8430 = vmax.f32 %v7222, %v8329
    %8431 = vmax.xlane.f32.xlu0 %v8430
    %v8432 = vpop.xlane.xlu0 %8431
    %v8433 = vmax.f32 %v7226, %v8333
    %8434 = vmax.xlane.f32.xlu0 %v8433
    %v8435 = vpop.xlane.xlu0 %8434
    %v8436 = vmax.f32 %v7230, %v8337
    %8437 = vmax.xlane.f32.xlu0 %v8436
    %v8438 = vpop.xlane.xlu0 %8437
    %v8439 = vmax.f32 %v7234, %v8341
    %8440 = vmax.xlane.f32.xlu0 %v8439
    %v8441 = vpop.xlane.xlu0 %8440
    %v8442 = vmax.f32 %v7238, %v8345
    %8443 = vmax.xlane.f32.xlu0 %v8442
    %v8444 = vpop.xlane.xlu0 %8443
    %v8445 = vmax.f32 %v7242, %v8349
    %8446 = vmax.xlane.f32.xlu0 %v8445
    %v8447 = vpop.xlane.xlu0 %8446
    %v8448 = vmax.f32 %v7246, %v8353
    %8449 = vmax.xlane.f32.xlu0 %v8448
    %v8450 = vpop.xlane.xlu0 %8449
    %v8451 = vsub.f32 %v7122, %v8357
    %v8452 = vsub.f32 %v8229, %v8357
    %v8453 = vsub.f32 %v7126, %v8360
    %v8454 = vsub.f32 %v8233, %v8360
    %v8455 = vsub.f32 %v7130, %v8363
    %v8456 = vsub.f32 %v8237, %v8363
    %v8457 = vsub.f32 %v7134, %v8366
    %v8458 = vsub.f32 %v8241, %v8366
    %v8459 = vsub.f32 %v7138, %v8369
    %v8460 = vsub.f32 %v8245, %v8369
    %v8461 = vsub.f32 %v7142, %v8372
    %v8462 = vsub.f32 %v8249, %v8372
    %v8463 = vsub.f32 %v7146, %v8375
    %v8464 = vsub.f32 %v8253, %v8375
    %v8465 = vsub.f32 %v7150, %v8378
    %v8466 = vsub.f32 %v8257, %v8378
    %v8467 = vsub.f32 %v7154, %v8381
    %v8468 = vsub.f32 %v8261, %v8381
    %v8469 = vsub.f32 %v7158, %v8384
    %v8470 = vsub.f32 %v8265, %v8384
    %v8471 = vsub.f32 %v7162, %v8387
    %v8472 = vsub.f32 %v8269, %v8387
    %v8473 = vsub.f32 %v7166, %v8390
    %v8474 = vsub.f32 %v8273, %v8390
    %v8475 = vsub.f32 %v7170, %v8393
    %v8476 = vsub.f32 %v8277, %v8393
    %v8477 = vsub.f32 %v7174, %v8396
    %v8478 = vsub.f32 %v8281, %v8396
    %v8479 = vsub.f32 %v7178, %v8399
    %v8480 = vsub.f32 %v8285, %v8399
    %v8481 = vsub.f32 %v7182, %v8402
    %v8482 = vsub.f32 %v8289, %v8402
    %v8483 = vsub.f32 %v7186, %v8405
    %v8484 = vsub.f32 %v8293, %v8405
    %v8485 = vsub.f32 %v7190, %v8408
    %v8486 = vsub.f32 %v8297, %v8408
    %v8487 = vsub.f32 %v7194, %v8411
    %v8488 = vsub.f32 %v8301, %v8411
    %v8489 = vsub.f32 %v7198, %v8414
    %v8490 = vsub.f32 %v8305, %v8414
    %v8491 = vsub.f32 %v7202, %v8417
    %v8492 = vsub.f32 %v8309, %v8417
    %v8493 = vsub.f32 %v7206, %v8420
    %v8494 = vsub.f32 %v8313, %v8420
    %v8495 = vsub.f32 %v7210, %v8423
    %v8496 = vsub.f32 %v8317, %v8423
    %v8497 = vsub.f32 %v7214, %v8426
    %v8498 = vsub.f32 %v8321, %v8426
    %v8499 = vsub.f32 %v7218, %v8429
    %v8500 = vsub.f32 %v8325, %v8429
    %v8501 = vsub.f32 %v7222, %v8432
    %v8502 = vsub.f32 %v8329, %v8432
    %v8503 = vsub.f32 %v7226, %v8435
    %v8504 = vsub.f32 %v8333, %v8435
    %v8505 = vsub.f32 %v7230, %v8438
    %v8506 = vsub.f32 %v8337, %v8438
    %v8507 = vsub.f32 %v7234, %v8441
    %v8508 = vsub.f32 %v8341, %v8441
    %v8509 = vsub.f32 %v7238, %v8444
    %v8510 = vsub.f32 %v8345, %v8444
    %v8511 = vsub.f32 %v7242, %v8447
    %v8512 = vsub.f32 %v8349, %v8447
    %v8513 = vsub.f32 %v7246, %v8450
    %v8514 = vsub.f32 %v8353, %v8450
    %v8515 = vmul.f32 %v8451, 1.442695
    %v8516 = vpow.pop %v8515
    %v8517 = vmul.f32 %v8452, 1.442695
    %v8518 = vpow.pop %v8517
    %v8519 = vmul.f32 %v8453, 1.442695
    %v8520 = vpow.pop %v8519
    %v8521 = vmul.f32 %v8454, 1.442695
    %v8522 = vpow.pop %v8521
    %v8523 = vmul.f32 %v8455, 1.442695
    %v8524 = vpow.pop %v8523
    %v8525 = vmul.f32 %v8456, 1.442695
    %v8526 = vpow.pop %v8525
    %v8527 = vmul.f32 %v8457, 1.442695
    %v8528 = vpow.pop %v8527
    %v8529 = vmul.f32 %v8458, 1.442695
    %v8530 = vpow.pop %v8529
    %v8531 = vmul.f32 %v8459, 1.442695
    %v8532 = vpow.pop %v8531
    %v8533 = vmul.f32 %v8460, 1.442695
    %v8534 = vpow.pop %v8533
    %v8535 = vmul.f32 %v8461, 1.442695
    %v8536 = vpow.pop %v8535
    %v8537 = vmul.f32 %v8462, 1.442695
    %v8538 = vpow.pop %v8537
    %v8539 = vmul.f32 %v8463, 1.442695
    %v8540 = vpow.pop %v8539
    %v8541 = vmul.f32 %v8464, 1.442695
    %v8542 = vpow.pop %v8541
    %v8543 = vmul.f32 %v8465, 1.442695
    %v8544 = vpow.pop %v8543
    %v8545 = vmul.f32 %v8466, 1.442695
    %v8546 = vpow.pop %v8545
    %v8547 = vmul.f32 %v8467, 1.442695
    %v8548 = vpow.pop %v8547
    %v8549 = vmul.f32 %v8468, 1.442695
    %v8550 = vpow.pop %v8549
    %v8551 = vmul.f32 %v8469, 1.442695
    %v8552 = vpow.pop %v8551
    %v8553 = vmul.f32 %v8470, 1.442695
    %v8554 = vpow.pop %v8553
    %v8555 = vmul.f32 %v8471, 1.442695
    %v8556 = vpow.pop %v8555
    %v8557 = vmul.f32 %v8472, 1.442695
    %v8558 = vpow.pop %v8557
    %v8559 = vmul.f32 %v8473, 1.442695
    %v8560 = vpow.pop %v8559
    %v8561 = vmul.f32 %v8474, 1.442695
    %v8562 = vpow.pop %v8561
    %v8563 = vmul.f32 %v8475, 1.442695
    %v8564 = vpow.pop %v8563
    %v8565 = vmul.f32 %v8476, 1.442695
    %v8566 = vpow.pop %v8565
    %v8567 = vmul.f32 %v8477, 1.442695
    %v8568 = vpow.pop %v8567
    %v8569 = vmul.f32 %v8478, 1.442695
    %v8570 = vpow.pop %v8569
    %v8571 = vmul.f32 %v8479, 1.442695
    %v8572 = vpow.pop %v8571
    %v8573 = vmul.f32 %v8480, 1.442695
    %v8574 = vpow.pop %v8573
    %v8575 = vmul.f32 %v8481, 1.442695
    %v8576 = vpow.pop %v8575
    %v8577 = vmul.f32 %v8482, 1.442695
    %v8578 = vpow.pop %v8577
    %v8579 = vmul.f32 %v8483, 1.442695
    %v8580 = vpow.pop %v8579
    %v8581 = vmul.f32 %v8484, 1.442695
    %v8582 = vpow.pop %v8581
    %v8583 = vmul.f32 %v8485, 1.442695
    %v8584 = vpow.pop %v8583
    %v8585 = vmul.f32 %v8486, 1.442695
    %v8586 = vpow.pop %v8585
    %v8587 = vmul.f32 %v8487, 1.442695
    %v8588 = vpow.pop %v8587
    %v8589 = vmul.f32 %v8488, 1.442695
    %v8590 = vpow.pop %v8589
    %v8591 = vmul.f32 %v8489, 1.442695
    %v8592 = vpow.pop %v8591
    %v8593 = vmul.f32 %v8490, 1.442695
    %v8594 = vpow.pop %v8593
    %v8595 = vmul.f32 %v8491, 1.442695
    %v8596 = vpow.pop %v8595
    %v8597 = vmul.f32 %v8492, 1.442695
    %v8598 = vpow.pop %v8597
    %v8599 = vmul.f32 %v8493, 1.442695
    %v8600 = vpow.pop %v8599
    %v8601 = vmul.f32 %v8494, 1.442695
    %v8602 = vpow.pop %v8601
    %v8603 = vmul.f32 %v8495, 1.442695
    %v8604 = vpow.pop %v8603
    %v8605 = vmul.f32 %v8496, 1.442695
    %v8606 = vpow.pop %v8605
    %v8607 = vmul.f32 %v8497, 1.442695
    %v8608 = vpow.pop %v8607
    %v8609 = vmul.f32 %v8498, 1.442695
    %v8610 = vpow.pop %v8609
    %v8611 = vmul.f32 %v8499, 1.442695
    %v8612 = vpow.pop %v8611
    %v8613 = vmul.f32 %v8500, 1.442695
    %v8614 = vpow.pop %v8613
    %v8615 = vmul.f32 %v8501, 1.442695
    %v8616 = vpow.pop %v8615
    %v8617 = vmul.f32 %v8502, 1.442695
    %v8618 = vpow.pop %v8617
    %v8619 = vmul.f32 %v8503, 1.442695
    %v8620 = vpow.pop %v8619
    %v8621 = vmul.f32 %v8504, 1.442695
    %v8622 = vpow.pop %v8621
    %v8623 = vmul.f32 %v8505, 1.442695
    %v8624 = vpow.pop %v8623
    %v8625 = vmul.f32 %v8506, 1.442695
    %v8626 = vpow.pop %v8625
    %v8627 = vmul.f32 %v8507, 1.442695
    %v8628 = vpow.pop %v8627
    %v8629 = vmul.f32 %v8508, 1.442695
    %v8630 = vpow.pop %v8629
    %v8631 = vmul.f32 %v8509, 1.442695
    %v8632 = vpow.pop %v8631
    %v8633 = vmul.f32 %v8510, 1.442695
    %v8634 = vpow.pop %v8633
    %v8635 = vmul.f32 %v8511, 1.442695
    %v8636 = vpow.pop %v8635
    %v8637 = vmul.f32 %v8512, 1.442695
    %v8638 = vpow.pop %v8637
    %v8639 = vmul.f32 %v8513, 1.442695
    %v8640 = vpow.pop %v8639
    %v8641 = vmul.f32 %v8514, 1.442695
    %v8642 = vpow.pop %v8641
    %v8643 = vand.u32 %v8576, 4294901760
    %8644 = vmatpush.xpose.msra.mxu0 %v8643
    %v8645 = vand.u32 %v8572, 4294901760
    %8646 = vmatpush.xpose.msra.mxu0 %v8645
    %v8647 = vand.u32 %v8568, 4294901760
    %8648 = vmatpush.xpose.msra.mxu0 %v8647
    %v8649 = vand.u32 %v8564, 4294901760
    %8650 = vmatpush.xpose.msra.mxu0 %v8649
    %v8651 = vand.u32 %v8560, 4294901760
    %8652 = vmatpush.xpose.msra.mxu0 %v8651
    %v8653 = vand.u32 %v8556, 4294901760
    %8654 = vmatpush.xpose.msra.mxu0 %v8653
    %v8655 = vand.u32 %v8552, 4294901760
    %8656 = vmatpush.xpose.msra.mxu0 %v8655
    %v8657 = vand.u32 %v8548, 4294901760
    %8658 = vmatpush.xpose.msra.mxu0 %v8657
    %v8659 = vand.u32 %v8544, 4294901760
    %8660 = vmatpush.xpose.msra.mxu0 %v8659
    %v8661 = vand.u32 %v8540, 4294901760
    %8662 = vmatpush.xpose.msra.mxu0 %v8661
    %v8663 = vand.u32 %v8536, 4294901760
    %8664 = vmatpush.xpose.msra.mxu0 %v8663
    %v8665 = vand.u32 %v8532, 4294901760
    %8666 = vmatpush.xpose.msra.mxu0 %v8665
    %v8667 = vand.u32 %v8528, 4294901760
    %8668 = vmatpush.xpose.msra.mxu0 %v8667
    %v8669 = vand.u32 %v8524, 4294901760
    %8670 = vmatpush.xpose.msra.mxu0 %v8669
    %v8671 = vand.u32 %v8520, 4294901760
    %8672 = vmatpush.xpose.msra.mxu0 %v8671
    %v8673 = vand.u32 %v8516, 4294901760
    %8674 = vmatpush.xpose.msra.mxu0 %v8673
    %v8675 = vand.u32 %v5771, 4294901760
    %v8676 = vsub.f32 %v5771, %v8675
    %v8677 = vand.u32 %v8676, 4294901760
    %v8678 = vsub.f32 %v8676, %v8677
    %v8679 = vand.u32 %v8678, 4294901760
    %8680 = vmatmul.f32.gmra.mxu0 %v8679
    %v8681 = vpop.f32.mrf.mxu0
    %v8682 = vadd.f32 0.0, %v8681
    %8683 = vdwg.mxu0
    %v8684 = vand.u32 %v8576, 4294901760
    %v8685 = vsub.f32 %v8576, %v8684
    %v8686 = vand.u32 %v8685, 4294901760
    %v8687 = vsub.f32 %v8685, %v8686
    %v8688 = vand.u32 %v8687, 4294901760
    %8689 = vmatpush.xpose.msra.mxu0 %v8688
    %v8690 = vand.u32 %v8572, 4294901760
    %v8691 = vsub.f32 %v8572, %v8690
    %v8692 = vand.u32 %v8691, 4294901760
    %v8693 = vsub.f32 %v8691, %v8692
    %v8694 = vand.u32 %v8693, 4294901760
    %8695 = vmatpush.xpose.msra.mxu0 %v8694
    %v8696 = vand.u32 %v8568, 4294901760
    %v8697 = vsub.f32 %v8568, %v8696
    %v8698 = vand.u32 %v8697, 4294901760
    %v8699 = vsub.f32 %v8697, %v8698
    %v8700 = vand.u32 %v8699, 4294901760
    %8701 = vmatpush.xpose.msra.mxu0 %v8700
    %v8702 = vand.u32 %v8564, 4294901760
    %v8703 = vsub.f32 %v8564, %v8702
    %v8704 = vand.u32 %v8703, 4294901760
    %v8705 = vsub.f32 %v8703, %v8704
    %v8706 = vand.u32 %v8705, 4294901760
    %8707 = vmatpush.xpose.msra.mxu0 %v8706
    %v8708 = vand.u32 %v8560, 4294901760
    %v8709 = vsub.f32 %v8560, %v8708
    %v8710 = vand.u32 %v8709, 4294901760
    %v8711 = vsub.f32 %v8709, %v8710
    %v8712 = vand.u32 %v8711, 4294901760
    %8713 = vmatpush.xpose.msra.mxu0 %v8712
    %v8714 = vand.u32 %v8556, 4294901760
    %v8715 = vsub.f32 %v8556, %v8714
    %v8716 = vand.u32 %v8715, 4294901760
    %v8717 = vsub.f32 %v8715, %v8716
    %v8718 = vand.u32 %v8717, 4294901760
    %8719 = vmatpush.xpose.msra.mxu0 %v8718
    %v8720 = vand.u32 %v8552, 4294901760
    %v8721 = vsub.f32 %v8552, %v8720
    %v8722 = vand.u32 %v8721, 4294901760
    %v8723 = vsub.f32 %v8721, %v8722
    %v8724 = vand.u32 %v8723, 4294901760
    %8725 = vmatpush.xpose.msra.mxu0 %v8724
    %v8726 = vand.u32 %v8548, 4294901760
    %v8727 = vsub.f32 %v8548, %v8726
    %v8728 = vand.u32 %v8727, 4294901760
    %v8729 = vsub.f32 %v8727, %v8728
    %v8730 = vand.u32 %v8729, 4294901760
    %8731 = vmatpush.xpose.msra.mxu0 %v8730
    %v8732 = vand.u32 %v8544, 4294901760
    %v8733 = vsub.f32 %v8544, %v8732
    %v8734 = vand.u32 %v8733, 4294901760
    %v8735 = vsub.f32 %v8733, %v8734
    %v8736 = vand.u32 %v8735, 4294901760
    %8737 = vmatpush.xpose.msra.mxu0 %v8736
    %v8738 = vand.u32 %v8540, 4294901760
    %v8739 = vsub.f32 %v8540, %v8738
    %v8740 = vand.u32 %v8739, 4294901760
    %v8741 = vsub.f32 %v8739, %v8740
    %v8742 = vand.u32 %v8741, 4294901760
    %8743 = vmatpush.xpose.msra.mxu0 %v8742
    %v8744 = vand.u32 %v8536, 4294901760
    %v8745 = vsub.f32 %v8536, %v8744
    %v8746 = vand.u32 %v8745, 4294901760
    %v8747 = vsub.f32 %v8745, %v8746
    %v8748 = vand.u32 %v8747, 4294901760
    %8749 = vmatpush.xpose.msra.mxu0 %v8748
    %v8750 = vand.u32 %v8532, 4294901760
    %v8751 = vsub.f32 %v8532, %v8750
    %v8752 = vand.u32 %v8751, 4294901760
    %v8753 = vsub.f32 %v8751, %v8752
    %v8754 = vand.u32 %v8753, 4294901760
    %8755 = vmatpush.xpose.msra.mxu0 %v8754
    %v8756 = vand.u32 %v8528, 4294901760
    %v8757 = vsub.f32 %v8528, %v8756
    %v8758 = vand.u32 %v8757, 4294901760
    %v8759 = vsub.f32 %v8757, %v8758
    %v8760 = vand.u32 %v8759, 4294901760
    %8761 = vmatpush.xpose.msra.mxu0 %v8760
    %v8762 = vand.u32 %v8524, 4294901760
    %v8763 = vsub.f32 %v8524, %v8762
    %v8764 = vand.u32 %v8763, 4294901760
    %v8765 = vsub.f32 %v8763, %v8764
    %v8766 = vand.u32 %v8765, 4294901760
    %8767 = vmatpush.xpose.msra.mxu0 %v8766
    %v8768 = vand.u32 %v8520, 4294901760
    %v8769 = vsub.f32 %v8520, %v8768
    %v8770 = vand.u32 %v8769, 4294901760
    %v8771 = vsub.f32 %v8769, %v8770
    %v8772 = vand.u32 %v8771, 4294901760
    %8773 = vmatpush.xpose.msra.mxu0 %v8772
    %v8774 = vand.u32 %v8516, 4294901760
    %v8775 = vsub.f32 %v8516, %v8774
    %v8776 = vand.u32 %v8775, 4294901760
    %v8777 = vsub.f32 %v8775, %v8776
    %v8778 = vand.u32 %v8777, 4294901760
    %8779 = vmatpush.xpose.msra.mxu0 %v8778
    %v8780 = vand.u32 %v5771, 4294901760
    %8781 = vmatmul.f32.gmra.mxu0 %v8780
    %v8782 = vpop.f32.mrf.mxu0
    %v8783 = vadd.f32 %v8682, %v8782
    %8784 = vdwg.mxu0
    %v8785 = vand.u32 %v8576, 4294901760
    %v8786 = vsub.f32 %v8576, %v8785
    %8787 = vmatpush.xpose.msra.mxu0 %v8786
    %v8788 = vand.u32 %v8572, 4294901760
    %v8789 = vsub.f32 %v8572, %v8788
    %8790 = vmatpush.xpose.msra.mxu0 %v8789
    %v8791 = vand.u32 %v8568, 4294901760
    %v8792 = vsub.f32 %v8568, %v8791
    %8793 = vmatpush.xpose.msra.mxu0 %v8792
    %v8794 = vand.u32 %v8564, 4294901760
    %v8795 = vsub.f32 %v8564, %v8794
    %8796 = vmatpush.xpose.msra.mxu0 %v8795
    %v8797 = vand.u32 %v8560, 4294901760
    %v8798 = vsub.f32 %v8560, %v8797
    %8799 = vmatpush.xpose.msra.mxu0 %v8798
    %v8800 = vand.u32 %v8556, 4294901760
    %v8801 = vsub.f32 %v8556, %v8800
    %8802 = vmatpush.xpose.msra.mxu0 %v8801
    %v8803 = vand.u32 %v8552, 4294901760
    %v8804 = vsub.f32 %v8552, %v8803
    %8805 = vmatpush.xpose.msra.mxu0 %v8804
    %v8806 = vand.u32 %v8548, 4294901760
    %v8807 = vsub.f32 %v8548, %v8806
    %8808 = vmatpush.xpose.msra.mxu0 %v8807
    %v8809 = vand.u32 %v8544, 4294901760
    %v8810 = vsub.f32 %v8544, %v8809
    %8811 = vmatpush.xpose.msra.mxu0 %v8810
    %v8812 = vand.u32 %v8540, 4294901760
    %v8813 = vsub.f32 %v8540, %v8812
    %8814 = vmatpush.xpose.msra.mxu0 %v8813
    %v8815 = vand.u32 %v8536, 4294901760
    %v8816 = vsub.f32 %v8536, %v8815
    %8817 = vmatpush.xpose.msra.mxu0 %v8816
    %v8818 = vand.u32 %v8532, 4294901760
    %v8819 = vsub.f32 %v8532, %v8818
    %8820 = vmatpush.xpose.msra.mxu0 %v8819
    %v8821 = vand.u32 %v8528, 4294901760
    %v8822 = vsub.f32 %v8528, %v8821
    %8823 = vmatpush.xpose.msra.mxu0 %v8822
    %v8824 = vand.u32 %v8524, 4294901760
    %v8825 = vsub.f32 %v8524, %v8824
    %8826 = vmatpush.xpose.msra.mxu0 %v8825
    %v8827 = vand.u32 %v8520, 4294901760
    %v8828 = vsub.f32 %v8520, %v8827
    %8829 = vmatpush.xpose.msra.mxu0 %v8828
    %v8830 = vand.u32 %v8516, 4294901760
    %v8831 = vsub.f32 %v8516, %v8830
    %8832 = vmatpush.xpose.msra.mxu0 %v8831
    %v8833 = vand.u32 %v5771, 4294901760
    %v8834 = vsub.f32 %v5771, %v8833
    %8835 = vmatmul.f32.gmra.mxu0 %v8834
    %v8836 = vpop.f32.mrf.mxu0
    %v8837 = vadd.f32 %v8783, %v8836
    %8838 = vdwg.mxu0
    %v8839 = vand.u32 %v8576, 4294901760
    %8840 = vmatpush.xpose.msra.mxu0 %v8839
    %v8841 = vand.u32 %v8572, 4294901760
    %8842 = vmatpush.xpose.msra.mxu0 %v8841
    %v8843 = vand.u32 %v8568, 4294901760
    %8844 = vmatpush.xpose.msra.mxu0 %v8843
    %v8845 = vand.u32 %v8564, 4294901760
    %8846 = vmatpush.xpose.msra.mxu0 %v8845
    %v8847 = vand.u32 %v8560, 4294901760
    %8848 = vmatpush.xpose.msra.mxu0 %v8847
    %v8849 = vand.u32 %v8556, 4294901760
    %8850 = vmatpush.xpose.msra.mxu0 %v8849
    %v8851 = vand.u32 %v8552, 4294901760
    %8852 = vmatpush.xpose.msra.mxu0 %v8851
    %v8853 = vand.u32 %v8548, 4294901760
    %8854 = vmatpush.xpose.msra.mxu0 %v8853
    %v8855 = vand.u32 %v8544, 4294901760
    %8856 = vmatpush.xpose.msra.mxu0 %v8855
    %v8857 = vand.u32 %v8540, 4294901760
    %8858 = vmatpush.xpose.msra.mxu0 %v8857
    %v8859 = vand.u32 %v8536, 4294901760
    %8860 = vmatpush.xpose.msra.mxu0 %v8859
    %v8861 = vand.u32 %v8532, 4294901760
    %8862 = vmatpush.xpose.msra.mxu0 %v8861
    %v8863 = vand.u32 %v8528, 4294901760
    %8864 = vmatpush.xpose.msra.mxu0 %v8863
    %v8865 = vand.u32 %v8524, 4294901760
    %8866 = vmatpush.xpose.msra.mxu0 %v8865
    %v8867 = vand.u32 %v8520, 4294901760
    %8868 = vmatpush.xpose.msra.mxu0 %v8867
    %v8869 = vand.u32 %v8516, 4294901760
    %8870 = vmatpush.xpose.msra.mxu0 %v8869
    %v8871 = vand.u32 %v5771, 4294901760
    %v8872 = vsub.f32 %v5771, %v8871
    %v8873 = vand.u32 %v8872, 4294901760
    %8874 = vmatmul.f32.gmra.mxu0 %v8873
    %v8875 = vpop.f32.mrf.mxu0
    %v8876 = vadd.f32 %v8837, %v8875
    %8877 = vdwg.mxu0
    %v8878 = vand.u32 %v8576, 4294901760
    %v8879 = vsub.f32 %v8576, %v8878
    %v8880 = vand.u32 %v8879, 4294901760
    %8881 = vmatpush.xpose.msra.mxu0 %v8880
    %v8882 = vand.u32 %v8572, 4294901760
    %v8883 = vsub.f32 %v8572, %v8882
    %v8884 = vand.u32 %v8883, 4294901760
    %8885 = vmatpush.xpose.msra.mxu0 %v8884
    %v8886 = vand.u32 %v8568, 4294901760
    %v8887 = vsub.f32 %v8568, %v8886
    %v8888 = vand.u32 %v8887, 4294901760
    %8889 = vmatpush.xpose.msra.mxu0 %v8888
    %v8890 = vand.u32 %v8564, 4294901760
    %v8891 = vsub.f32 %v8564, %v8890
    %v8892 = vand.u32 %v8891, 4294901760
    %8893 = vmatpush.xpose.msra.mxu0 %v8892
    %v8894 = vand.u32 %v8560, 4294901760
    %v8895 = vsub.f32 %v8560, %v8894
    %v8896 = vand.u32 %v8895, 4294901760
    %8897 = vmatpush.xpose.msra.mxu0 %v8896
    %v8898 = vand.u32 %v8556, 4294901760
    %v8899 = vsub.f32 %v8556, %v8898
    %v8900 = vand.u32 %v8899, 4294901760
    %8901 = vmatpush.xpose.msra.mxu0 %v8900
    %v8902 = vand.u32 %v8552, 4294901760
    %v8903 = vsub.f32 %v8552, %v8902
    %v8904 = vand.u32 %v8903, 4294901760
    %8905 = vmatpush.xpose.msra.mxu0 %v8904
    %v8906 = vand.u32 %v8548, 4294901760
    %v8907 = vsub.f32 %v8548, %v8906
    %v8908 = vand.u32 %v8907, 4294901760
    %8909 = vmatpush.xpose.msra.mxu0 %v8908
    %v8910 = vand.u32 %v8544, 4294901760
    %v8911 = vsub.f32 %v8544, %v8910
    %v8912 = vand.u32 %v8911, 4294901760
    %8913 = vmatpush.xpose.msra.mxu0 %v8912
    %v8914 = vand.u32 %v8540, 4294901760
    %v8915 = vsub.f32 %v8540, %v8914
    %v8916 = vand.u32 %v8915, 4294901760
    %8917 = vmatpush.xpose.msra.mxu0 %v8916
    %v8918 = vand.u32 %v8536, 4294901760
    %v8919 = vsub.f32 %v8536, %v8918
    %v8920 = vand.u32 %v8919, 4294901760
    %8921 = vmatpush.xpose.msra.mxu0 %v8920
    %v8922 = vand.u32 %v8532, 4294901760
    %v8923 = vsub.f32 %v8532, %v8922
    %v8924 = vand.u32 %v8923, 4294901760
    %8925 = vmatpush.xpose.msra.mxu0 %v8924
    %v8926 = vand.u32 %v8528, 4294901760
    %v8927 = vsub.f32 %v8528, %v8926
    %v8928 = vand.u32 %v8927, 4294901760
    %8929 = vmatpush.xpose.msra.mxu0 %v8928
    %v8930 = vand.u32 %v8524, 4294901760
    %v8931 = vsub.f32 %v8524, %v8930
    %v8932 = vand.u32 %v8931, 4294901760
    %8933 = vmatpush.xpose.msra.mxu0 %v8932
    %v8934 = vand.u32 %v8520, 4294901760
    %v8935 = vsub.f32 %v8520, %v8934
    %v8936 = vand.u32 %v8935, 4294901760
    %8937 = vmatpush.xpose.msra.mxu0 %v8936
    %v8938 = vand.u32 %v8516, 4294901760
    %v8939 = vsub.f32 %v8516, %v8938
    %v8940 = vand.u32 %v8939, 4294901760
    %8941 = vmatpush.xpose.msra.mxu0 %v8940
    %v8942 = vand.u32 %v5771, 4294901760
    %8943 = vmatmul.f32.gmra.mxu0 %v8942
    %v8944 = vpop.f32.mrf.mxu0
    %v8945 = vadd.f32 %v8876, %v8944
    %8946 = vdwg.mxu0
    %v8947 = vand.u32 %v8576, 4294901760
    %8948 = vmatpush.xpose.msra.mxu0 %v8947
    %v8949 = vand.u32 %v8572, 4294901760
    %8950 = vmatpush.xpose.msra.mxu0 %v8949
    %v8951 = vand.u32 %v8568, 4294901760
    %8952 = vmatpush.xpose.msra.mxu0 %v8951
    %v8953 = vand.u32 %v8564, 4294901760
    %8954 = vmatpush.xpose.msra.mxu0 %v8953
    %v8955 = vand.u32 %v8560, 4294901760
    %8956 = vmatpush.xpose.msra.mxu0 %v8955
    %v8957 = vand.u32 %v8556, 4294901760
    %8958 = vmatpush.xpose.msra.mxu0 %v8957
    %v8959 = vand.u32 %v8552, 4294901760
    %8960 = vmatpush.xpose.msra.mxu0 %v8959
    %v8961 = vand.u32 %v8548, 4294901760
    %8962 = vmatpush.xpose.msra.mxu0 %v8961
    %v8963 = vand.u32 %v8544, 4294901760
    %8964 = vmatpush.xpose.msra.mxu0 %v8963
    %v8965 = vand.u32 %v8540, 4294901760
    %8966 = vmatpush.xpose.msra.mxu0 %v8965
    %v8967 = vand.u32 %v8536, 4294901760
    %8968 = vmatpush.xpose.msra.mxu0 %v8967
    %v8969 = vand.u32 %v8532, 4294901760
    %8970 = vmatpush.xpose.msra.mxu0 %v8969
    %v8971 = vand.u32 %v8528, 4294901760
    %8972 = vmatpush.xpose.msra.mxu0 %v8971
    %v8973 = vand.u32 %v8524, 4294901760
    %8974 = vmatpush.xpose.msra.mxu0 %v8973
    %v8975 = vand.u32 %v8520, 4294901760
    %8976 = vmatpush.xpose.msra.mxu0 %v8975
    %v8977 = vand.u32 %v8516, 4294901760
    %8978 = vmatpush.xpose.msra.mxu0 %v8977
    %v8979 = vand.u32 %v5771, 4294901760
    %8980 = vmatmul.f32.gmra.mxu0 %v8979
    %v8981 = vpop.f32.mrf.mxu0
    %v8982 = vadd.f32 %v8945, %v8981
    %8983 = vdwg.mxu0
    %v8984 = vand.u32 %v8578, 4294901760
    %8985 = vmatpush.xpose.msra.mxu0 %v8984
    %v8986 = vand.u32 %v8574, 4294901760
    %8987 = vmatpush.xpose.msra.mxu0 %v8986
    %v8988 = vand.u32 %v8570, 4294901760
    %8989 = vmatpush.xpose.msra.mxu0 %v8988
    %v8990 = vand.u32 %v8566, 4294901760
    %8991 = vmatpush.xpose.msra.mxu0 %v8990
    %v8992 = vand.u32 %v8562, 4294901760
    %8993 = vmatpush.xpose.msra.mxu0 %v8992
    %v8994 = vand.u32 %v8558, 4294901760
    %8995 = vmatpush.xpose.msra.mxu0 %v8994
    %v8996 = vand.u32 %v8554, 4294901760
    %8997 = vmatpush.xpose.msra.mxu0 %v8996
    %v8998 = vand.u32 %v8550, 4294901760
    %8999 = vmatpush.xpose.msra.mxu0 %v8998
    %v9000 = vand.u32 %v8546, 4294901760
    %9001 = vmatpush.xpose.msra.mxu0 %v9000
    %v9002 = vand.u32 %v8542, 4294901760
    %9003 = vmatpush.xpose.msra.mxu0 %v9002
    %v9004 = vand.u32 %v8538, 4294901760
    %9005 = vmatpush.xpose.msra.mxu0 %v9004
    %v9006 = vand.u32 %v8534, 4294901760
    %9007 = vmatpush.xpose.msra.mxu0 %v9006
    %v9008 = vand.u32 %v8530, 4294901760
    %9009 = vmatpush.xpose.msra.mxu0 %v9008
    %v9010 = vand.u32 %v8526, 4294901760
    %9011 = vmatpush.xpose.msra.mxu0 %v9010
    %v9012 = vand.u32 %v8522, 4294901760
    %9013 = vmatpush.xpose.msra.mxu0 %v9012
    %v9014 = vand.u32 %v8518, 4294901760
    %9015 = vmatpush.xpose.msra.mxu0 %v9014
    %v9016 = vand.u32 %v5979, 4294901760
    %v9017 = vsub.f32 %v5979, %v9016
    %v9018 = vand.u32 %v9017, 4294901760
    %v9019 = vsub.f32 %v9017, %v9018
    %v9020 = vand.u32 %v9019, 4294901760
    %9021 = vmatmul.f32.gmra.mxu0 %v9020
    %v9022 = vpop.f32.mrf.mxu0
    %v9023 = vadd.f32 %v8982, %v9022
    %9024 = vdwg.mxu0
    %v9025 = vand.u32 %v8578, 4294901760
    %v9026 = vsub.f32 %v8578, %v9025
    %v9027 = vand.u32 %v9026, 4294901760
    %v9028 = vsub.f32 %v9026, %v9027
    %v9029 = vand.u32 %v9028, 4294901760
    %9030 = vmatpush.xpose.msra.mxu0 %v9029
    %v9031 = vand.u32 %v8574, 4294901760
    %v9032 = vsub.f32 %v8574, %v9031
    %v9033 = vand.u32 %v9032, 4294901760
    %v9034 = vsub.f32 %v9032, %v9033
    %v9035 = vand.u32 %v9034, 4294901760
    %9036 = vmatpush.xpose.msra.mxu0 %v9035
    %v9037 = vand.u32 %v8570, 4294901760
    %v9038 = vsub.f32 %v8570, %v9037
    %v9039 = vand.u32 %v9038, 4294901760
    %v9040 = vsub.f32 %v9038, %v9039
    %v9041 = vand.u32 %v9040, 4294901760
    %9042 = vmatpush.xpose.msra.mxu0 %v9041
    %v9043 = vand.u32 %v8566, 4294901760
    %v9044 = vsub.f32 %v8566, %v9043
    %v9045 = vand.u32 %v9044, 4294901760
    %v9046 = vsub.f32 %v9044, %v9045
    %v9047 = vand.u32 %v9046, 4294901760
    %9048 = vmatpush.xpose.msra.mxu0 %v9047
    %v9049 = vand.u32 %v8562, 4294901760
    %v9050 = vsub.f32 %v8562, %v9049
    %v9051 = vand.u32 %v9050, 4294901760
    %v9052 = vsub.f32 %v9050, %v9051
    %v9053 = vand.u32 %v9052, 4294901760
    %9054 = vmatpush.xpose.msra.mxu0 %v9053
    %v9055 = vand.u32 %v8558, 4294901760
    %v9056 = vsub.f32 %v8558, %v9055
    %v9057 = vand.u32 %v9056, 4294901760
    %v9058 = vsub.f32 %v9056, %v9057
    %v9059 = vand.u32 %v9058, 4294901760
    %9060 = vmatpush.xpose.msra.mxu0 %v9059
    %v9061 = vand.u32 %v8554, 4294901760
    %v9062 = vsub.f32 %v8554, %v9061
    %v9063 = vand.u32 %v9062, 4294901760
    %v9064 = vsub.f32 %v9062, %v9063
    %v9065 = vand.u32 %v9064, 4294901760
    %9066 = vmatpush.xpose.msra.mxu0 %v9065
    %v9067 = vand.u32 %v8550, 4294901760
    %v9068 = vsub.f32 %v8550, %v9067
    %v9069 = vand.u32 %v9068, 4294901760
    %v9070 = vsub.f32 %v9068, %v9069
    %v9071 = vand.u32 %v9070, 4294901760
    %9072 = vmatpush.xpose.msra.mxu0 %v9071
    %v9073 = vand.u32 %v8546, 4294901760
    %v9074 = vsub.f32 %v8546, %v9073
    %v9075 = vand.u32 %v9074, 4294901760
    %v9076 = vsub.f32 %v9074, %v9075
    %v9077 = vand.u32 %v9076, 4294901760
    %9078 = vmatpush.xpose.msra.mxu0 %v9077
    %v9079 = vand.u32 %v8542, 4294901760
    %v9080 = vsub.f32 %v8542, %v9079
    %v9081 = vand.u32 %v9080, 4294901760
    %v9082 = vsub.f32 %v9080, %v9081
    %v9083 = vand.u32 %v9082, 4294901760
    %9084 = vmatpush.xpose.msra.mxu0 %v9083
    %v9085 = vand.u32 %v8538, 4294901760
    %v9086 = vsub.f32 %v8538, %v9085
    %v9087 = vand.u32 %v9086, 4294901760
    %v9088 = vsub.f32 %v9086, %v9087
    %v9089 = vand.u32 %v9088, 4294901760
    %9090 = vmatpush.xpose.msra.mxu0 %v9089
    %v9091 = vand.u32 %v8534, 4294901760
    %v9092 = vsub.f32 %v8534, %v9091
    %v9093 = vand.u32 %v9092, 4294901760
    %v9094 = vsub.f32 %v9092, %v9093
    %v9095 = vand.u32 %v9094, 4294901760
    %9096 = vmatpush.xpose.msra.mxu0 %v9095
    %v9097 = vand.u32 %v8530, 4294901760
    %v9098 = vsub.f32 %v8530, %v9097
    %v9099 = vand.u32 %v9098, 4294901760
    %v9100 = vsub.f32 %v9098, %v9099
    %v9101 = vand.u32 %v9100, 4294901760
    %9102 = vmatpush.xpose.msra.mxu0 %v9101
    %v9103 = vand.u32 %v8526, 4294901760
    %v9104 = vsub.f32 %v8526, %v9103
    %v9105 = vand.u32 %v9104, 4294901760
    %v9106 = vsub.f32 %v9104, %v9105
    %v9107 = vand.u32 %v9106, 4294901760
    %9108 = vmatpush.xpose.msra.mxu0 %v9107
    %v9109 = vand.u32 %v8522, 4294901760
    %v9110 = vsub.f32 %v8522, %v9109
    %v9111 = vand.u32 %v9110, 4294901760
    %v9112 = vsub.f32 %v9110, %v9111
    %v9113 = vand.u32 %v9112, 4294901760
    %9114 = vmatpush.xpose.msra.mxu0 %v9113
    %v9115 = vand.u32 %v8518, 4294901760
    %v9116 = vsub.f32 %v8518, %v9115
    %v9117 = vand.u32 %v9116, 4294901760
    %v9118 = vsub.f32 %v9116, %v9117
    %v9119 = vand.u32 %v9118, 4294901760
    %9120 = vmatpush.xpose.msra.mxu0 %v9119
    %v9121 = vand.u32 %v5979, 4294901760
    %9122 = vmatmul.f32.gmra.mxu0 %v9121
    %v9123 = vpop.f32.mrf.mxu0
    %v9124 = vadd.f32 %v9023, %v9123
    %9125 = vdwg.mxu0
    %v9126 = vand.u32 %v8578, 4294901760
    %v9127 = vsub.f32 %v8578, %v9126
    %9128 = vmatpush.xpose.msra.mxu0 %v9127
    %v9129 = vand.u32 %v8574, 4294901760
    %v9130 = vsub.f32 %v8574, %v9129
    %9131 = vmatpush.xpose.msra.mxu0 %v9130
    %v9132 = vand.u32 %v8570, 4294901760
    %v9133 = vsub.f32 %v8570, %v9132
    %9134 = vmatpush.xpose.msra.mxu0 %v9133
    %v9135 = vand.u32 %v8566, 4294901760
    %v9136 = vsub.f32 %v8566, %v9135
    %9137 = vmatpush.xpose.msra.mxu0 %v9136
    %v9138 = vand.u32 %v8562, 4294901760
    %v9139 = vsub.f32 %v8562, %v9138
    %9140 = vmatpush.xpose.msra.mxu0 %v9139
    %v9141 = vand.u32 %v8558, 4294901760
    %v9142 = vsub.f32 %v8558, %v9141
    %9143 = vmatpush.xpose.msra.mxu0 %v9142
    %v9144 = vand.u32 %v8554, 4294901760
    %v9145 = vsub.f32 %v8554, %v9144
    %9146 = vmatpush.xpose.msra.mxu0 %v9145
    %v9147 = vand.u32 %v8550, 4294901760
    %v9148 = vsub.f32 %v8550, %v9147
    %9149 = vmatpush.xpose.msra.mxu0 %v9148
    %v9150 = vand.u32 %v8546, 4294901760
    %v9151 = vsub.f32 %v8546, %v9150
    %9152 = vmatpush.xpose.msra.mxu0 %v9151
    %v9153 = vand.u32 %v8542, 4294901760
    %v9154 = vsub.f32 %v8542, %v9153
    %9155 = vmatpush.xpose.msra.mxu0 %v9154
    %v9156 = vand.u32 %v8538, 4294901760
    %v9157 = vsub.f32 %v8538, %v9156
    %9158 = vmatpush.xpose.msra.mxu0 %v9157
    %v9159 = vand.u32 %v8534, 4294901760
    %v9160 = vsub.f32 %v8534, %v9159
    %9161 = vmatpush.xpose.msra.mxu0 %v9160
    %v9162 = vand.u32 %v8530, 4294901760
    %v9163 = vsub.f32 %v8530, %v9162
    %9164 = vmatpush.xpose.msra.mxu0 %v9163
    %v9165 = vand.u32 %v8526, 4294901760
    %v9166 = vsub.f32 %v8526, %v9165
    %9167 = vmatpush.xpose.msra.mxu0 %v9166
    %v9168 = vand.u32 %v8522, 4294901760
    %v9169 = vsub.f32 %v8522, %v9168
    %9170 = vmatpush.xpose.msra.mxu0 %v9169
    %v9171 = vand.u32 %v8518, 4294901760
    %v9172 = vsub.f32 %v8518, %v9171
    %9173 = vmatpush.xpose.msra.mxu0 %v9172
    %v9174 = vand.u32 %v5979, 4294901760
    %v9175 = vsub.f32 %v5979, %v9174
    %9176 = vmatmul.f32.gmra.mxu0 %v9175
    %v9177 = vpop.f32.mrf.mxu0
    %v9178 = vadd.f32 %v9124, %v9177
    %9179 = vdwg.mxu0
    %v9180 = vand.u32 %v8578, 4294901760
    %9181 = vmatpush.xpose.msra.mxu0 %v9180
    %v9182 = vand.u32 %v8574, 4294901760
    %9183 = vmatpush.xpose.msra.mxu0 %v9182
    %v9184 = vand.u32 %v8570, 4294901760
    %9185 = vmatpush.xpose.msra.mxu0 %v9184
    %v9186 = vand.u32 %v8566, 4294901760
    %9187 = vmatpush.xpose.msra.mxu0 %v9186
    %v9188 = vand.u32 %v8562, 4294901760
    %9189 = vmatpush.xpose.msra.mxu0 %v9188
    %v9190 = vand.u32 %v8558, 4294901760
    %9191 = vmatpush.xpose.msra.mxu0 %v9190
    %v9192 = vand.u32 %v8554, 4294901760
    %9193 = vmatpush.xpose.msra.mxu0 %v9192
    %v9194 = vand.u32 %v8550, 4294901760
    %9195 = vmatpush.xpose.msra.mxu0 %v9194
    %v9196 = vand.u32 %v8546, 4294901760
    %9197 = vmatpush.xpose.msra.mxu0 %v9196
    %v9198 = vand.u32 %v8542, 4294901760
    %9199 = vmatpush.xpose.msra.mxu0 %v9198
    %v9200 = vand.u32 %v8538, 4294901760
    %9201 = vmatpush.xpose.msra.mxu0 %v9200
    %v9202 = vand.u32 %v8534, 4294901760
    %9203 = vmatpush.xpose.msra.mxu0 %v9202
    %v9204 = vand.u32 %v8530, 4294901760
    %9205 = vmatpush.xpose.msra.mxu0 %v9204
    %v9206 = vand.u32 %v8526, 4294901760
    %9207 = vmatpush.xpose.msra.mxu0 %v9206
    %v9208 = vand.u32 %v8522, 4294901760
    %9209 = vmatpush.xpose.msra.mxu0 %v9208
    %v9210 = vand.u32 %v8518, 4294901760
    %9211 = vmatpush.xpose.msra.mxu0 %v9210
    %v9212 = vand.u32 %v5979, 4294901760
    %v9213 = vsub.f32 %v5979, %v9212
    %v9214 = vand.u32 %v9213, 4294901760
    %9215 = vmatmul.f32.gmra.mxu0 %v9214
    %v9216 = vpop.f32.mrf.mxu0
    %v9217 = vadd.f32 %v9178, %v9216
    %9218 = vdwg.mxu0
    %v9219 = vand.u32 %v8578, 4294901760
    %v9220 = vsub.f32 %v8578, %v9219
    %v9221 = vand.u32 %v9220, 4294901760
    %9222 = vmatpush.xpose.msra.mxu0 %v9221
    %v9223 = vand.u32 %v8574, 4294901760
    %v9224 = vsub.f32 %v8574, %v9223
    %v9225 = vand.u32 %v9224, 4294901760
    %9226 = vmatpush.xpose.msra.mxu0 %v9225
    %v9227 = vand.u32 %v8570, 4294901760
    %v9228 = vsub.f32 %v8570, %v9227
    %v9229 = vand.u32 %v9228, 4294901760
    %9230 = vmatpush.xpose.msra.mxu0 %v9229
    %v9231 = vand.u32 %v8566, 4294901760
    %v9232 = vsub.f32 %v8566, %v9231
    %v9233 = vand.u32 %v9232, 4294901760
    %9234 = vmatpush.xpose.msra.mxu0 %v9233
    %v9235 = vand.u32 %v8562, 4294901760
    %v9236 = vsub.f32 %v8562, %v9235
    %v9237 = vand.u32 %v9236, 4294901760
    %9238 = vmatpush.xpose.msra.mxu0 %v9237
    %v9239 = vand.u32 %v8558, 4294901760
    %v9240 = vsub.f32 %v8558, %v9239
    %v9241 = vand.u32 %v9240, 4294901760
    %9242 = vmatpush.xpose.msra.mxu0 %v9241
    %v9243 = vand.u32 %v8554, 4294901760
    %v9244 = vsub.f32 %v8554, %v9243
    %v9245 = vand.u32 %v9244, 4294901760
    %9246 = vmatpush.xpose.msra.mxu0 %v9245
    %v9247 = vand.u32 %v8550, 4294901760
    %v9248 = vsub.f32 %v8550, %v9247
    %v9249 = vand.u32 %v9248, 4294901760
    %9250 = vmatpush.xpose.msra.mxu0 %v9249
    %v9251 = vand.u32 %v8546, 4294901760
    %v9252 = vsub.f32 %v8546, %v9251
    %v9253 = vand.u32 %v9252, 4294901760
    %9254 = vmatpush.xpose.msra.mxu0 %v9253
    %v9255 = vand.u32 %v8542, 4294901760
    %v9256 = vsub.f32 %v8542, %v9255
    %v9257 = vand.u32 %v9256, 4294901760
    %9258 = vmatpush.xpose.msra.mxu0 %v9257
    %v9259 = vand.u32 %v8538, 4294901760
    %v9260 = vsub.f32 %v8538, %v9259
    %v9261 = vand.u32 %v9260, 4294901760
    %9262 = vmatpush.xpose.msra.mxu0 %v9261
    %v9263 = vand.u32 %v8534, 4294901760
    %v9264 = vsub.f32 %v8534, %v9263
    %v9265 = vand.u32 %v9264, 4294901760
    %9266 = vmatpush.xpose.msra.mxu0 %v9265
    %v9267 = vand.u32 %v8530, 4294901760
    %v9268 = vsub.f32 %v8530, %v9267
    %v9269 = vand.u32 %v9268, 4294901760
    %9270 = vmatpush.xpose.msra.mxu0 %v9269
    %v9271 = vand.u32 %v8526, 4294901760
    %v9272 = vsub.f32 %v8526, %v9271
    %v9273 = vand.u32 %v9272, 4294901760
    %9274 = vmatpush.xpose.msra.mxu0 %v9273
    %v9275 = vand.u32 %v8522, 4294901760
    %v9276 = vsub.f32 %v8522, %v9275
    %v9277 = vand.u32 %v9276, 4294901760
    %9278 = vmatpush.xpose.msra.mxu0 %v9277
    %v9279 = vand.u32 %v8518, 4294901760
    %v9280 = vsub.f32 %v8518, %v9279
    %v9281 = vand.u32 %v9280, 4294901760
    %9282 = vmatpush.xpose.msra.mxu0 %v9281
    %v9283 = vand.u32 %v5979, 4294901760
    %9284 = vmatmul.f32.gmra.mxu0 %v9283
    %v9285 = vpop.f32.mrf.mxu0
    %v9286 = vadd.f32 %v9217, %v9285
    %9287 = vdwg.mxu0
    %v9288 = vand.u32 %v8578, 4294901760
    %9289 = vmatpush.xpose.msra.mxu0 %v9288
    %v9290 = vand.u32 %v8574, 4294901760
    %9291 = vmatpush.xpose.msra.mxu0 %v9290
    %v9292 = vand.u32 %v8570, 4294901760
    %9293 = vmatpush.xpose.msra.mxu0 %v9292
    %v9294 = vand.u32 %v8566, 4294901760
    %9295 = vmatpush.xpose.msra.mxu0 %v9294
    %v9296 = vand.u32 %v8562, 4294901760
    %9297 = vmatpush.xpose.msra.mxu0 %v9296
    %v9298 = vand.u32 %v8558, 4294901760
    %9299 = vmatpush.xpose.msra.mxu0 %v9298
    %v9300 = vand.u32 %v8554, 4294901760
    %9301 = vmatpush.xpose.msra.mxu0 %v9300
    %v9302 = vand.u32 %v8550, 4294901760
    %9303 = vmatpush.xpose.msra.mxu0 %v9302
    %v9304 = vand.u32 %v8546, 4294901760
    %9305 = vmatpush.xpose.msra.mxu0 %v9304
    %v9306 = vand.u32 %v8542, 4294901760
    %9307 = vmatpush.xpose.msra.mxu0 %v9306
    %v9308 = vand.u32 %v8538, 4294901760
    %9309 = vmatpush.xpose.msra.mxu0 %v9308
    %v9310 = vand.u32 %v8534, 4294901760
    %9311 = vmatpush.xpose.msra.mxu0 %v9310
    %v9312 = vand.u32 %v8530, 4294901760
    %9313 = vmatpush.xpose.msra.mxu0 %v9312
    %v9314 = vand.u32 %v8526, 4294901760
    %9315 = vmatpush.xpose.msra.mxu0 %v9314
    %v9316 = vand.u32 %v8522, 4294901760
    %9317 = vmatpush.xpose.msra.mxu0 %v9316
    %v9318 = vand.u32 %v8518, 4294901760
    %9319 = vmatpush.xpose.msra.mxu0 %v9318
    %v9320 = vand.u32 %v5979, 4294901760
    %9321 = vmatmul.f32.gmra.mxu0 %v9320
    %v9322 = vpop.f32.mrf.mxu0
    %v9323 = vadd.f32 %v9286, %v9322
    %9324 = vdwg.mxu0
    %v9325 = vand.u32 %v8640, 4294901760
    %9326 = vmatpush.xpose.msra.mxu0 %v9325
    %v9327 = vand.u32 %v8636, 4294901760
    %9328 = vmatpush.xpose.msra.mxu0 %v9327
    %v9329 = vand.u32 %v8632, 4294901760
    %9330 = vmatpush.xpose.msra.mxu0 %v9329
    %v9331 = vand.u32 %v8628, 4294901760
    %9332 = vmatpush.xpose.msra.mxu0 %v9331
    %v9333 = vand.u32 %v8624, 4294901760
    %9334 = vmatpush.xpose.msra.mxu0 %v9333
    %v9335 = vand.u32 %v8620, 4294901760
    %9336 = vmatpush.xpose.msra.mxu0 %v9335
    %v9337 = vand.u32 %v8616, 4294901760
    %9338 = vmatpush.xpose.msra.mxu0 %v9337
    %v9339 = vand.u32 %v8612, 4294901760
    %9340 = vmatpush.xpose.msra.mxu0 %v9339
    %v9341 = vand.u32 %v8608, 4294901760
    %9342 = vmatpush.xpose.msra.mxu0 %v9341
    %v9343 = vand.u32 %v8604, 4294901760
    %9344 = vmatpush.xpose.msra.mxu0 %v9343
    %v9345 = vand.u32 %v8600, 4294901760
    %9346 = vmatpush.xpose.msra.mxu0 %v9345
    %v9347 = vand.u32 %v8596, 4294901760
    %9348 = vmatpush.xpose.msra.mxu0 %v9347
    %v9349 = vand.u32 %v8592, 4294901760
    %9350 = vmatpush.xpose.msra.mxu0 %v9349
    %v9351 = vand.u32 %v8588, 4294901760
    %9352 = vmatpush.xpose.msra.mxu0 %v9351
    %v9353 = vand.u32 %v8584, 4294901760
    %9354 = vmatpush.xpose.msra.mxu0 %v9353
    %v9355 = vand.u32 %v8580, 4294901760
    %9356 = vmatpush.xpose.msra.mxu0 %v9355
    %v9357 = vand.u32 %v5771, 4294901760
    %v9358 = vsub.f32 %v5771, %v9357
    %v9359 = vand.u32 %v9358, 4294901760
    %v9360 = vsub.f32 %v9358, %v9359
    %v9361 = vand.u32 %v9360, 4294901760
    %9362 = vmatmul.f32.gmra.mxu0 %v9361
    %v9363 = vpop.f32.mrf.mxu0
    %v9364 = vadd.f32 0.0, %v9363
    %9365 = vdwg.mxu0
    %v9366 = vand.u32 %v8640, 4294901760
    %v9367 = vsub.f32 %v8640, %v9366
    %v9368 = vand.u32 %v9367, 4294901760
    %v9369 = vsub.f32 %v9367, %v9368
    %v9370 = vand.u32 %v9369, 4294901760
    %9371 = vmatpush.xpose.msra.mxu0 %v9370
    %v9372 = vand.u32 %v8636, 4294901760
    %v9373 = vsub.f32 %v8636, %v9372
    %v9374 = vand.u32 %v9373, 4294901760
    %v9375 = vsub.f32 %v9373, %v9374
    %v9376 = vand.u32 %v9375, 4294901760
    %9377 = vmatpush.xpose.msra.mxu0 %v9376
    %v9378 = vand.u32 %v8632, 4294901760
    %v9379 = vsub.f32 %v8632, %v9378
    %v9380 = vand.u32 %v9379, 4294901760
    %v9381 = vsub.f32 %v9379, %v9380
    %v9382 = vand.u32 %v9381, 4294901760
    %9383 = vmatpush.xpose.msra.mxu0 %v9382
    %v9384 = vand.u32 %v8628, 4294901760
    %v9385 = vsub.f32 %v8628, %v9384
    %v9386 = vand.u32 %v9385, 4294901760
    %v9387 = vsub.f32 %v9385, %v9386
    %v9388 = vand.u32 %v9387, 4294901760
    %9389 = vmatpush.xpose.msra.mxu0 %v9388
    %v9390 = vand.u32 %v8624, 4294901760
    %v9391 = vsub.f32 %v8624, %v9390
    %v9392 = vand.u32 %v9391, 4294901760
    %v9393 = vsub.f32 %v9391, %v9392
    %v9394 = vand.u32 %v9393, 4294901760
    %9395 = vmatpush.xpose.msra.mxu0 %v9394
    %v9396 = vand.u32 %v8620, 4294901760
    %v9397 = vsub.f32 %v8620, %v9396
    %v9398 = vand.u32 %v9397, 4294901760
    %v9399 = vsub.f32 %v9397, %v9398
    %v9400 = vand.u32 %v9399, 4294901760
    %9401 = vmatpush.xpose.msra.mxu0 %v9400
    %v9402 = vand.u32 %v8616, 4294901760
    %v9403 = vsub.f32 %v8616, %v9402
    %v9404 = vand.u32 %v9403, 4294901760
    %v9405 = vsub.f32 %v9403, %v9404
    %v9406 = vand.u32 %v9405, 4294901760
    %9407 = vmatpush.xpose.msra.mxu0 %v9406
    %v9408 = vand.u32 %v8612, 4294901760
    %v9409 = vsub.f32 %v8612, %v9408
    %v9410 = vand.u32 %v9409, 4294901760
    %v9411 = vsub.f32 %v9409, %v9410
    %v9412 = vand.u32 %v9411, 4294901760
    %9413 = vmatpush.xpose.msra.mxu0 %v9412
    %v9414 = vand.u32 %v8608, 4294901760
    %v9415 = vsub.f32 %v8608, %v9414
    %v9416 = vand.u32 %v9415, 4294901760
    %v9417 = vsub.f32 %v9415, %v9416
    %v9418 = vand.u32 %v9417, 4294901760
    %9419 = vmatpush.xpose.msra.mxu0 %v9418
    %v9420 = vand.u32 %v8604, 4294901760
    %v9421 = vsub.f32 %v8604, %v9420
    %v9422 = vand.u32 %v9421, 4294901760
    %v9423 = vsub.f32 %v9421, %v9422
    %v9424 = vand.u32 %v9423, 4294901760
    %9425 = vmatpush.xpose.msra.mxu0 %v9424
    %v9426 = vand.u32 %v8600, 4294901760
    %v9427 = vsub.f32 %v8600, %v9426
    %v9428 = vand.u32 %v9427, 4294901760
    %v9429 = vsub.f32 %v9427, %v9428
    %v9430 = vand.u32 %v9429, 4294901760
    %9431 = vmatpush.xpose.msra.mxu0 %v9430
    %v9432 = vand.u32 %v8596, 4294901760
    %v9433 = vsub.f32 %v8596, %v9432
    %v9434 = vand.u32 %v9433, 4294901760
    %v9435 = vsub.f32 %v9433, %v9434
    %v9436 = vand.u32 %v9435, 4294901760
    %9437 = vmatpush.xpose.msra.mxu0 %v9436
    %v9438 = vand.u32 %v8592, 4294901760
    %v9439 = vsub.f32 %v8592, %v9438
    %v9440 = vand.u32 %v9439, 4294901760
    %v9441 = vsub.f32 %v9439, %v9440
    %v9442 = vand.u32 %v9441, 4294901760
    %9443 = vmatpush.xpose.msra.mxu0 %v9442
    %v9444 = vand.u32 %v8588, 4294901760
    %v9445 = vsub.f32 %v8588, %v9444
    %v9446 = vand.u32 %v9445, 4294901760
    %v9447 = vsub.f32 %v9445, %v9446
    %v9448 = vand.u32 %v9447, 4294901760
    %9449 = vmatpush.xpose.msra.mxu0 %v9448
    %v9450 = vand.u32 %v8584, 4294901760
    %v9451 = vsub.f32 %v8584, %v9450
    %v9452 = vand.u32 %v9451, 4294901760
    %v9453 = vsub.f32 %v9451, %v9452
    %v9454 = vand.u32 %v9453, 4294901760
    %9455 = vmatpush.xpose.msra.mxu0 %v9454
    %v9456 = vand.u32 %v8580, 4294901760
    %v9457 = vsub.f32 %v8580, %v9456
    %v9458 = vand.u32 %v9457, 4294901760
    %v9459 = vsub.f32 %v9457, %v9458
    %v9460 = vand.u32 %v9459, 4294901760
    %9461 = vmatpush.xpose.msra.mxu0 %v9460
    %v9462 = vand.u32 %v5771, 4294901760
    %9463 = vmatmul.f32.gmra.mxu0 %v9462
    %v9464 = vpop.f32.mrf.mxu0
    %v9465 = vadd.f32 %v9364, %v9464
    %9466 = vdwg.mxu0
    %v9467 = vand.u32 %v8640, 4294901760
    %v9468 = vsub.f32 %v8640, %v9467
    %9469 = vmatpush.xpose.msra.mxu0 %v9468
    %v9470 = vand.u32 %v8636, 4294901760
    %v9471 = vsub.f32 %v8636, %v9470
    %9472 = vmatpush.xpose.msra.mxu0 %v9471
    %v9473 = vand.u32 %v8632, 4294901760
    %v9474 = vsub.f32 %v8632, %v9473
    %9475 = vmatpush.xpose.msra.mxu0 %v9474
    %v9476 = vand.u32 %v8628, 4294901760
    %v9477 = vsub.f32 %v8628, %v9476
    %9478 = vmatpush.xpose.msra.mxu0 %v9477
    %v9479 = vand.u32 %v8624, 4294901760
    %v9480 = vsub.f32 %v8624, %v9479
    %9481 = vmatpush.xpose.msra.mxu0 %v9480
    %v9482 = vand.u32 %v8620, 4294901760
    %v9483 = vsub.f32 %v8620, %v9482
    %9484 = vmatpush.xpose.msra.mxu0 %v9483
    %v9485 = vand.u32 %v8616, 4294901760
    %v9486 = vsub.f32 %v8616, %v9485
    %9487 = vmatpush.xpose.msra.mxu0 %v9486
    %v9488 = vand.u32 %v8612, 4294901760
    %v9489 = vsub.f32 %v8612, %v9488
    %9490 = vmatpush.xpose.msra.mxu0 %v9489
    %v9491 = vand.u32 %v8608, 4294901760
    %v9492 = vsub.f32 %v8608, %v9491
    %9493 = vmatpush.xpose.msra.mxu0 %v9492
    %v9494 = vand.u32 %v8604, 4294901760
    %v9495 = vsub.f32 %v8604, %v9494
    %9496 = vmatpush.xpose.msra.mxu0 %v9495
    %v9497 = vand.u32 %v8600, 4294901760
    %v9498 = vsub.f32 %v8600, %v9497
    %9499 = vmatpush.xpose.msra.mxu0 %v9498
    %v9500 = vand.u32 %v8596, 4294901760
    %v9501 = vsub.f32 %v8596, %v9500
    %9502 = vmatpush.xpose.msra.mxu0 %v9501
    %v9503 = vand.u32 %v8592, 4294901760
    %v9504 = vsub.f32 %v8592, %v9503
    %9505 = vmatpush.xpose.msra.mxu0 %v9504
    %v9506 = vand.u32 %v8588, 4294901760
    %v9507 = vsub.f32 %v8588, %v9506
    %9508 = vmatpush.xpose.msra.mxu0 %v9507
    %v9509 = vand.u32 %v8584, 4294901760
    %v9510 = vsub.f32 %v8584, %v9509
    %9511 = vmatpush.xpose.msra.mxu0 %v9510
    %v9512 = vand.u32 %v8580, 4294901760
    %v9513 = vsub.f32 %v8580, %v9512
    %9514 = vmatpush.xpose.msra.mxu0 %v9513
    %v9515 = vand.u32 %v5771, 4294901760
    %v9516 = vsub.f32 %v5771, %v9515
    %9517 = vmatmul.f32.gmra.mxu0 %v9516
    %v9518 = vpop.f32.mrf.mxu0
    %v9519 = vadd.f32 %v9465, %v9518
    %9520 = vdwg.mxu0
    %v9521 = vand.u32 %v8640, 4294901760
    %9522 = vmatpush.xpose.msra.mxu0 %v9521
    %v9523 = vand.u32 %v8636, 4294901760
    %9524 = vmatpush.xpose.msra.mxu0 %v9523
    %v9525 = vand.u32 %v8632, 4294901760
    %9526 = vmatpush.xpose.msra.mxu0 %v9525
    %v9527 = vand.u32 %v8628, 4294901760
    %9528 = vmatpush.xpose.msra.mxu0 %v9527
    %v9529 = vand.u32 %v8624, 4294901760
    %9530 = vmatpush.xpose.msra.mxu0 %v9529
    %v9531 = vand.u32 %v8620, 4294901760
    %9532 = vmatpush.xpose.msra.mxu0 %v9531
    %v9533 = vand.u32 %v8616, 4294901760
    %9534 = vmatpush.xpose.msra.mxu0 %v9533
    %v9535 = vand.u32 %v8612, 4294901760
    %9536 = vmatpush.xpose.msra.mxu0 %v9535
    %v9537 = vand.u32 %v8608, 4294901760
    %9538 = vmatpush.xpose.msra.mxu0 %v9537
    %v9539 = vand.u32 %v8604, 4294901760
    %9540 = vmatpush.xpose.msra.mxu0 %v9539
    %v9541 = vand.u32 %v8600, 4294901760
    %9542 = vmatpush.xpose.msra.mxu0 %v9541
    %v9543 = vand.u32 %v8596, 4294901760
    %9544 = vmatpush.xpose.msra.mxu0 %v9543
    %v9545 = vand.u32 %v8592, 4294901760
    %9546 = vmatpush.xpose.msra.mxu0 %v9545
    %v9547 = vand.u32 %v8588, 4294901760
    %9548 = vmatpush.xpose.msra.mxu0 %v9547
    %v9549 = vand.u32 %v8584, 4294901760
    %9550 = vmatpush.xpose.msra.mxu0 %v9549
    %v9551 = vand.u32 %v8580, 4294901760
    %9552 = vmatpush.xpose.msra.mxu0 %v9551
    %v9553 = vand.u32 %v5771, 4294901760
    %v9554 = vsub.f32 %v5771, %v9553
    %v9555 = vand.u32 %v9554, 4294901760
    %9556 = vmatmul.f32.gmra.mxu0 %v9555
    %v9557 = vpop.f32.mrf.mxu0
    %v9558 = vadd.f32 %v9519, %v9557
    %9559 = vdwg.mxu0
    %v9560 = vand.u32 %v8640, 4294901760
    %v9561 = vsub.f32 %v8640, %v9560
    %v9562 = vand.u32 %v9561, 4294901760
    %9563 = vmatpush.xpose.msra.mxu0 %v9562
    %v9564 = vand.u32 %v8636, 4294901760
    %v9565 = vsub.f32 %v8636, %v9564
    %v9566 = vand.u32 %v9565, 4294901760
    %9567 = vmatpush.xpose.msra.mxu0 %v9566
    %v9568 = vand.u32 %v8632, 4294901760
    %v9569 = vsub.f32 %v8632, %v9568
    %v9570 = vand.u32 %v9569, 4294901760
    %9571 = vmatpush.xpose.msra.mxu0 %v9570
    %v9572 = vand.u32 %v8628, 4294901760
    %v9573 = vsub.f32 %v8628, %v9572
    %v9574 = vand.u32 %v9573, 4294901760
    %9575 = vmatpush.xpose.msra.mxu0 %v9574
    %v9576 = vand.u32 %v8624, 4294901760
    %v9577 = vsub.f32 %v8624, %v9576
    %v9578 = vand.u32 %v9577, 4294901760
    %9579 = vmatpush.xpose.msra.mxu0 %v9578
    %v9580 = vand.u32 %v8620, 4294901760
    %v9581 = vsub.f32 %v8620, %v9580
    %v9582 = vand.u32 %v9581, 4294901760
    %9583 = vmatpush.xpose.msra.mxu0 %v9582
    %v9584 = vand.u32 %v8616, 4294901760
    %v9585 = vsub.f32 %v8616, %v9584
    %v9586 = vand.u32 %v9585, 4294901760
    %9587 = vmatpush.xpose.msra.mxu0 %v9586
    %v9588 = vand.u32 %v8612, 4294901760
    %v9589 = vsub.f32 %v8612, %v9588
    %v9590 = vand.u32 %v9589, 4294901760
    %9591 = vmatpush.xpose.msra.mxu0 %v9590
    %v9592 = vand.u32 %v8608, 4294901760
    %v9593 = vsub.f32 %v8608, %v9592
    %v9594 = vand.u32 %v9593, 4294901760
    %9595 = vmatpush.xpose.msra.mxu0 %v9594
    %v9596 = vand.u32 %v8604, 4294901760
    %v9597 = vsub.f32 %v8604, %v9596
    %v9598 = vand.u32 %v9597, 4294901760
    %9599 = vmatpush.xpose.msra.mxu0 %v9598
    %v9600 = vand.u32 %v8600, 4294901760
    %v9601 = vsub.f32 %v8600, %v9600
    %v9602 = vand.u32 %v9601, 4294901760
    %9603 = vmatpush.xpose.msra.mxu0 %v9602
    %v9604 = vand.u32 %v8596, 4294901760
    %v9605 = vsub.f32 %v8596, %v9604
    %v9606 = vand.u32 %v9605, 4294901760
    %9607 = vmatpush.xpose.msra.mxu0 %v9606
    %v9608 = vand.u32 %v8592, 4294901760
    %v9609 = vsub.f32 %v8592, %v9608
    %v9610 = vand.u32 %v9609, 4294901760
    %9611 = vmatpush.xpose.msra.mxu0 %v9610
    %v9612 = vand.u32 %v8588, 4294901760
    %v9613 = vsub.f32 %v8588, %v9612
    %v9614 = vand.u32 %v9613, 4294901760
    %9615 = vmatpush.xpose.msra.mxu0 %v9614
    %v9616 = vand.u32 %v8584, 4294901760
    %v9617 = vsub.f32 %v8584, %v9616
    %v9618 = vand.u32 %v9617, 4294901760
    %9619 = vmatpush.xpose.msra.mxu0 %v9618
    %v9620 = vand.u32 %v8580, 4294901760
    %v9621 = vsub.f32 %v8580, %v9620
    %v9622 = vand.u32 %v9621, 4294901760
    %9623 = vmatpush.xpose.msra.mxu0 %v9622
    %v9624 = vand.u32 %v5771, 4294901760
    %9625 = vmatmul.f32.gmra.mxu0 %v9624
    %v9626 = vpop.f32.mrf.mxu0
    %v9627 = vadd.f32 %v9558, %v9626
    %9628 = vdwg.mxu0
    %v9629 = vand.u32 %v8640, 4294901760
    %9630 = vmatpush.xpose.msra.mxu0 %v9629
    %v9631 = vand.u32 %v8636, 4294901760
    %9632 = vmatpush.xpose.msra.mxu0 %v9631
    %v9633 = vand.u32 %v8632, 4294901760
    %9634 = vmatpush.xpose.msra.mxu0 %v9633
    %v9635 = vand.u32 %v8628, 4294901760
    %9636 = vmatpush.xpose.msra.mxu0 %v9635
    %v9637 = vand.u32 %v8624, 4294901760
    %9638 = vmatpush.xpose.msra.mxu0 %v9637
    %v9639 = vand.u32 %v8620, 4294901760
    %9640 = vmatpush.xpose.msra.mxu0 %v9639
    %v9641 = vand.u32 %v8616, 4294901760
    %9642 = vmatpush.xpose.msra.mxu0 %v9641
    %v9643 = vand.u32 %v8612, 4294901760
    %9644 = vmatpush.xpose.msra.mxu0 %v9643
    %v9645 = vand.u32 %v8608, 4294901760
    %9646 = vmatpush.xpose.msra.mxu0 %v9645
    %v9647 = vand.u32 %v8604, 4294901760
    %9648 = vmatpush.xpose.msra.mxu0 %v9647
    %v9649 = vand.u32 %v8600, 4294901760
    %9650 = vmatpush.xpose.msra.mxu0 %v9649
    %v9651 = vand.u32 %v8596, 4294901760
    %9652 = vmatpush.xpose.msra.mxu0 %v9651
    %v9653 = vand.u32 %v8592, 4294901760
    %9654 = vmatpush.xpose.msra.mxu0 %v9653
    %v9655 = vand.u32 %v8588, 4294901760
    %9656 = vmatpush.xpose.msra.mxu0 %v9655
    %v9657 = vand.u32 %v8584, 4294901760
    %9658 = vmatpush.xpose.msra.mxu0 %v9657
    %v9659 = vand.u32 %v8580, 4294901760
    %9660 = vmatpush.xpose.msra.mxu0 %v9659
    %v9661 = vand.u32 %v5771, 4294901760
    %9662 = vmatmul.f32.gmra.mxu0 %v9661
    %v9663 = vpop.f32.mrf.mxu0
    %v9664 = vadd.f32 %v9627, %v9663
    %9665 = vdwg.mxu0
    %v9666 = vand.u32 %v8642, 4294901760
    %9667 = vmatpush.xpose.msra.mxu0 %v9666
    %v9668 = vand.u32 %v8638, 4294901760
    %9669 = vmatpush.xpose.msra.mxu0 %v9668
    %v9670 = vand.u32 %v8634, 4294901760
    %9671 = vmatpush.xpose.msra.mxu0 %v9670
    %v9672 = vand.u32 %v8630, 4294901760
    %9673 = vmatpush.xpose.msra.mxu0 %v9672
    %v9674 = vand.u32 %v8626, 4294901760
    %9675 = vmatpush.xpose.msra.mxu0 %v9674
    %v9676 = vand.u32 %v8622, 4294901760
    %9677 = vmatpush.xpose.msra.mxu0 %v9676
    %v9678 = vand.u32 %v8618, 4294901760
    %9679 = vmatpush.xpose.msra.mxu0 %v9678
    %v9680 = vand.u32 %v8614, 4294901760
    %9681 = vmatpush.xpose.msra.mxu0 %v9680
    %v9682 = vand.u32 %v8610, 4294901760
    %9683 = vmatpush.xpose.msra.mxu0 %v9682
    %v9684 = vand.u32 %v8606, 4294901760
    %9685 = vmatpush.xpose.msra.mxu0 %v9684
    %v9686 = vand.u32 %v8602, 4294901760
    %9687 = vmatpush.xpose.msra.mxu0 %v9686
    %v9688 = vand.u32 %v8598, 4294901760
    %9689 = vmatpush.xpose.msra.mxu0 %v9688
    %v9690 = vand.u32 %v8594, 4294901760
    %9691 = vmatpush.xpose.msra.mxu0 %v9690
    %v9692 = vand.u32 %v8590, 4294901760
    %9693 = vmatpush.xpose.msra.mxu0 %v9692
    %v9694 = vand.u32 %v8586, 4294901760
    %9695 = vmatpush.xpose.msra.mxu0 %v9694
    %v9696 = vand.u32 %v8582, 4294901760
    %9697 = vmatpush.xpose.msra.mxu0 %v9696
    %v9698 = vand.u32 %v5979, 4294901760
    %v9699 = vsub.f32 %v5979, %v9698
    %v9700 = vand.u32 %v9699, 4294901760
    %v9701 = vsub.f32 %v9699, %v9700
    %v9702 = vand.u32 %v9701, 4294901760
    %9703 = vmatmul.f32.gmra.mxu0 %v9702
    %v9704 = vpop.f32.mrf.mxu0
    %v9705 = vadd.f32 %v9664, %v9704
    %9706 = vdwg.mxu0
    %v9707 = vand.u32 %v8642, 4294901760
    %v9708 = vsub.f32 %v8642, %v9707
    %v9709 = vand.u32 %v9708, 4294901760
    %v9710 = vsub.f32 %v9708, %v9709
    %v9711 = vand.u32 %v9710, 4294901760
    %9712 = vmatpush.xpose.msra.mxu0 %v9711
    %v9713 = vand.u32 %v8638, 4294901760
    %v9714 = vsub.f32 %v8638, %v9713
    %v9715 = vand.u32 %v9714, 4294901760
    %v9716 = vsub.f32 %v9714, %v9715
    %v9717 = vand.u32 %v9716, 4294901760
    %9718 = vmatpush.xpose.msra.mxu0 %v9717
    %v9719 = vand.u32 %v8634, 4294901760
    %v9720 = vsub.f32 %v8634, %v9719
    %v9721 = vand.u32 %v9720, 4294901760
    %v9722 = vsub.f32 %v9720, %v9721
    %v9723 = vand.u32 %v9722, 4294901760
    %9724 = vmatpush.xpose.msra.mxu0 %v9723
    %v9725 = vand.u32 %v8630, 4294901760
    %v9726 = vsub.f32 %v8630, %v9725
    %v9727 = vand.u32 %v9726, 4294901760
    %v9728 = vsub.f32 %v9726, %v9727
    %v9729 = vand.u32 %v9728, 4294901760
    %9730 = vmatpush.xpose.msra.mxu0 %v9729
    %v9731 = vand.u32 %v8626, 4294901760
    %v9732 = vsub.f32 %v8626, %v9731
    %v9733 = vand.u32 %v9732, 4294901760
    %v9734 = vsub.f32 %v9732, %v9733
    %v9735 = vand.u32 %v9734, 4294901760
    %9736 = vmatpush.xpose.msra.mxu0 %v9735
    %v9737 = vand.u32 %v8622, 4294901760
    %v9738 = vsub.f32 %v8622, %v9737
    %v9739 = vand.u32 %v9738, 4294901760
    %v9740 = vsub.f32 %v9738, %v9739
    %v9741 = vand.u32 %v9740, 4294901760
    %9742 = vmatpush.xpose.msra.mxu0 %v9741
    %v9743 = vand.u32 %v8618, 4294901760
    %v9744 = vsub.f32 %v8618, %v9743
    %v9745 = vand.u32 %v9744, 4294901760
    %v9746 = vsub.f32 %v9744, %v9745
    %v9747 = vand.u32 %v9746, 4294901760
    %9748 = vmatpush.xpose.msra.mxu0 %v9747
    %v9749 = vand.u32 %v8614, 4294901760
    %v9750 = vsub.f32 %v8614, %v9749
    %v9751 = vand.u32 %v9750, 4294901760
    %v9752 = vsub.f32 %v9750, %v9751
    %v9753 = vand.u32 %v9752, 4294901760
    %9754 = vmatpush.xpose.msra.mxu0 %v9753
    %v9755 = vand.u32 %v8610, 4294901760
    %v9756 = vsub.f32 %v8610, %v9755
    %v9757 = vand.u32 %v9756, 4294901760
    %v9758 = vsub.f32 %v9756, %v9757
    %v9759 = vand.u32 %v9758, 4294901760
    %9760 = vmatpush.xpose.msra.mxu0 %v9759
    %v9761 = vand.u32 %v8606, 4294901760
    %v9762 = vsub.f32 %v8606, %v9761
    %v9763 = vand.u32 %v9762, 4294901760
    %v9764 = vsub.f32 %v9762, %v9763
    %v9765 = vand.u32 %v9764, 4294901760
    %9766 = vmatpush.xpose.msra.mxu0 %v9765
    %v9767 = vand.u32 %v8602, 4294901760
    %v9768 = vsub.f32 %v8602, %v9767
    %v9769 = vand.u32 %v9768, 4294901760
    %v9770 = vsub.f32 %v9768, %v9769
    %v9771 = vand.u32 %v9770, 4294901760
    %9772 = vmatpush.xpose.msra.mxu0 %v9771
    %v9773 = vand.u32 %v8598, 4294901760
    %v9774 = vsub.f32 %v8598, %v9773
    %v9775 = vand.u32 %v9774, 4294901760
    %v9776 = vsub.f32 %v9774, %v9775
    %v9777 = vand.u32 %v9776, 4294901760
    %9778 = vmatpush.xpose.msra.mxu0 %v9777
    %v9779 = vand.u32 %v8594, 4294901760
    %v9780 = vsub.f32 %v8594, %v9779
    %v9781 = vand.u32 %v9780, 4294901760
    %v9782 = vsub.f32 %v9780, %v9781
    %v9783 = vand.u32 %v9782, 4294901760
    %9784 = vmatpush.xpose.msra.mxu0 %v9783
    %v9785 = vand.u32 %v8590, 4294901760
    %v9786 = vsub.f32 %v8590, %v9785
    %v9787 = vand.u32 %v9786, 4294901760
    %v9788 = vsub.f32 %v9786, %v9787
    %v9789 = vand.u32 %v9788, 4294901760
    %9790 = vmatpush.xpose.msra.mxu0 %v9789
    %v9791 = vand.u32 %v8586, 4294901760
    %v9792 = vsub.f32 %v8586, %v9791
    %v9793 = vand.u32 %v9792, 4294901760
    %v9794 = vsub.f32 %v9792, %v9793
    %v9795 = vand.u32 %v9794, 4294901760
    %9796 = vmatpush.xpose.msra.mxu0 %v9795
    %v9797 = vand.u32 %v8582, 4294901760
    %v9798 = vsub.f32 %v8582, %v9797
    %v9799 = vand.u32 %v9798, 4294901760
    %v9800 = vsub.f32 %v9798, %v9799
    %v9801 = vand.u32 %v9800, 4294901760
    %9802 = vmatpush.xpose.msra.mxu0 %v9801
    %v9803 = vand.u32 %v5979, 4294901760
    %9804 = vmatmul.f32.gmra.mxu0 %v9803
    %v9805 = vpop.f32.mrf.mxu0
    %v9806 = vadd.f32 %v9705, %v9805
    %9807 = vdwg.mxu0
    %v9808 = vand.u32 %v8642, 4294901760
    %v9809 = vsub.f32 %v8642, %v9808
    %9810 = vmatpush.xpose.msra.mxu0 %v9809
    %v9811 = vand.u32 %v8638, 4294901760
    %v9812 = vsub.f32 %v8638, %v9811
    %9813 = vmatpush.xpose.msra.mxu0 %v9812
    %v9814 = vand.u32 %v8634, 4294901760
    %v9815 = vsub.f32 %v8634, %v9814
    %9816 = vmatpush.xpose.msra.mxu0 %v9815
    %v9817 = vand.u32 %v8630, 4294901760
    %v9818 = vsub.f32 %v8630, %v9817
    %9819 = vmatpush.xpose.msra.mxu0 %v9818
    %v9820 = vand.u32 %v8626, 4294901760
    %v9821 = vsub.f32 %v8626, %v9820
    %9822 = vmatpush.xpose.msra.mxu0 %v9821
    %v9823 = vand.u32 %v8622, 4294901760
    %v9824 = vsub.f32 %v8622, %v9823
    %9825 = vmatpush.xpose.msra.mxu0 %v9824
    %v9826 = vand.u32 %v8618, 4294901760
    %v9827 = vsub.f32 %v8618, %v9826
    %9828 = vmatpush.xpose.msra.mxu0 %v9827
    %v9829 = vand.u32 %v8614, 4294901760
    %v9830 = vsub.f32 %v8614, %v9829
    %9831 = vmatpush.xpose.msra.mxu0 %v9830
    %v9832 = vand.u32 %v8610, 4294901760
    %v9833 = vsub.f32 %v8610, %v9832
    %9834 = vmatpush.xpose.msra.mxu0 %v9833
    %v9835 = vand.u32 %v8606, 4294901760
    %v9836 = vsub.f32 %v8606, %v9835
    %9837 = vmatpush.xpose.msra.mxu0 %v9836
    %v9838 = vand.u32 %v8602, 4294901760
    %v9839 = vsub.f32 %v8602, %v9838
    %9840 = vmatpush.xpose.msra.mxu0 %v9839
    %v9841 = vand.u32 %v8598, 4294901760
    %v9842 = vsub.f32 %v8598, %v9841
    %9843 = vmatpush.xpose.msra.mxu0 %v9842
    %v9844 = vand.u32 %v8594, 4294901760
    %v9845 = vsub.f32 %v8594, %v9844
    %9846 = vmatpush.xpose.msra.mxu0 %v9845
    %v9847 = vand.u32 %v8590, 4294901760
    %v9848 = vsub.f32 %v8590, %v9847
    %9849 = vmatpush.xpose.msra.mxu0 %v9848
    %v9850 = vand.u32 %v8586, 4294901760
    %v9851 = vsub.f32 %v8586, %v9850
    %9852 = vmatpush.xpose.msra.mxu0 %v9851
    %v9853 = vand.u32 %v8582, 4294901760
    %v9854 = vsub.f32 %v8582, %v9853
    %9855 = vmatpush.xpose.msra.mxu0 %v9854
    %v9856 = vand.u32 %v5979, 4294901760
    %v9857 = vsub.f32 %v5979, %v9856
    %9858 = vmatmul.f32.gmra.mxu0 %v9857
    %v9859 = vpop.f32.mrf.mxu0
    %v9860 = vadd.f32 %v9806, %v9859
    %9861 = vdwg.mxu0
    %v9862 = vand.u32 %v8642, 4294901760
    %9863 = vmatpush.xpose.msra.mxu0 %v9862
    %v9864 = vand.u32 %v8638, 4294901760
    %9865 = vmatpush.xpose.msra.mxu0 %v9864
    %v9866 = vand.u32 %v8634, 4294901760
    %9867 = vmatpush.xpose.msra.mxu0 %v9866
    %v9868 = vand.u32 %v8630, 4294901760
    %9869 = vmatpush.xpose.msra.mxu0 %v9868
    %v9870 = vand.u32 %v8626, 4294901760
    %9871 = vmatpush.xpose.msra.mxu0 %v9870
    %v9872 = vand.u32 %v8622, 4294901760
    %9873 = vmatpush.xpose.msra.mxu0 %v9872
    %v9874 = vand.u32 %v8618, 4294901760
    %9875 = vmatpush.xpose.msra.mxu0 %v9874
    %v9876 = vand.u32 %v8614, 4294901760
    %9877 = vmatpush.xpose.msra.mxu0 %v9876
    %v9878 = vand.u32 %v8610, 4294901760
    %9879 = vmatpush.xpose.msra.mxu0 %v9878
    %v9880 = vand.u32 %v8606, 4294901760
    %9881 = vmatpush.xpose.msra.mxu0 %v9880
    %v9882 = vand.u32 %v8602, 4294901760
    %9883 = vmatpush.xpose.msra.mxu0 %v9882
    %v9884 = vand.u32 %v8598, 4294901760
    %9885 = vmatpush.xpose.msra.mxu0 %v9884
    %v9886 = vand.u32 %v8594, 4294901760
    %9887 = vmatpush.xpose.msra.mxu0 %v9886
    %v9888 = vand.u32 %v8590, 4294901760
    %9889 = vmatpush.xpose.msra.mxu0 %v9888
    %v9890 = vand.u32 %v8586, 4294901760
    %9891 = vmatpush.xpose.msra.mxu0 %v9890
    %v9892 = vand.u32 %v8582, 4294901760
    %9893 = vmatpush.xpose.msra.mxu0 %v9892
    %v9894 = vand.u32 %v5979, 4294901760
    %v9895 = vsub.f32 %v5979, %v9894
    %v9896 = vand.u32 %v9895, 4294901760
    %9897 = vmatmul.f32.gmra.mxu0 %v9896
    %v9898 = vpop.f32.mrf.mxu0
    %v9899 = vadd.f32 %v9860, %v9898
    %9900 = vdwg.mxu0
    %v9901 = vand.u32 %v8642, 4294901760
    %v9902 = vsub.f32 %v8642, %v9901
    %v9903 = vand.u32 %v9902, 4294901760
    %9904 = vmatpush.xpose.msra.mxu0 %v9903
    %v9905 = vand.u32 %v8638, 4294901760
    %v9906 = vsub.f32 %v8638, %v9905
    %v9907 = vand.u32 %v9906, 4294901760
    %9908 = vmatpush.xpose.msra.mxu0 %v9907
    %v9909 = vand.u32 %v8634, 4294901760
    %v9910 = vsub.f32 %v8634, %v9909
    %v9911 = vand.u32 %v9910, 4294901760
    %9912 = vmatpush.xpose.msra.mxu0 %v9911
    %v9913 = vand.u32 %v8630, 4294901760
    %v9914 = vsub.f32 %v8630, %v9913
    %v9915 = vand.u32 %v9914, 4294901760
    %9916 = vmatpush.xpose.msra.mxu0 %v9915
    %v9917 = vand.u32 %v8626, 4294901760
    %v9918 = vsub.f32 %v8626, %v9917
    %v9919 = vand.u32 %v9918, 4294901760
    %9920 = vmatpush.xpose.msra.mxu0 %v9919
    %v9921 = vand.u32 %v8622, 4294901760
    %v9922 = vsub.f32 %v8622, %v9921
    %v9923 = vand.u32 %v9922, 4294901760
    %9924 = vmatpush.xpose.msra.mxu0 %v9923
    %v9925 = vand.u32 %v8618, 4294901760
    %v9926 = vsub.f32 %v8618, %v9925
    %v9927 = vand.u32 %v9926, 4294901760
    %9928 = vmatpush.xpose.msra.mxu0 %v9927
    %v9929 = vand.u32 %v8614, 4294901760
    %v9930 = vsub.f32 %v8614, %v9929
    %v9931 = vand.u32 %v9930, 4294901760
    %9932 = vmatpush.xpose.msra.mxu0 %v9931
    %v9933 = vand.u32 %v8610, 4294901760
    %v9934 = vsub.f32 %v8610, %v9933
    %v9935 = vand.u32 %v9934, 4294901760
    %9936 = vmatpush.xpose.msra.mxu0 %v9935
    %v9937 = vand.u32 %v8606, 4294901760
    %v9938 = vsub.f32 %v8606, %v9937
    %v9939 = vand.u32 %v9938, 4294901760
    %9940 = vmatpush.xpose.msra.mxu0 %v9939
    %v9941 = vand.u32 %v8602, 4294901760
    %v9942 = vsub.f32 %v8602, %v9941
    %v9943 = vand.u32 %v9942, 4294901760
    %9944 = vmatpush.xpose.msra.mxu0 %v9943
    %v9945 = vand.u32 %v8598, 4294901760
    %v9946 = vsub.f32 %v8598, %v9945
    %v9947 = vand.u32 %v9946, 4294901760
    %9948 = vmatpush.xpose.msra.mxu0 %v9947
    %v9949 = vand.u32 %v8594, 4294901760
    %v9950 = vsub.f32 %v8594, %v9949
    %v9951 = vand.u32 %v9950, 4294901760
    %9952 = vmatpush.xpose.msra.mxu0 %v9951
    %v9953 = vand.u32 %v8590, 4294901760
    %v9954 = vsub.f32 %v8590, %v9953
    %v9955 = vand.u32 %v9954, 4294901760
    %9956 = vmatpush.xpose.msra.mxu0 %v9955
    %v9957 = vand.u32 %v8586, 4294901760
    %v9958 = vsub.f32 %v8586, %v9957
    %v9959 = vand.u32 %v9958, 4294901760
    %9960 = vmatpush.xpose.msra.mxu0 %v9959
    %v9961 = vand.u32 %v8582, 4294901760
    %v9962 = vsub.f32 %v8582, %v9961
    %v9963 = vand.u32 %v9962, 4294901760
    %9964 = vmatpush.xpose.msra.mxu0 %v9963
    %v9965 = vand.u32 %v5979, 4294901760
    %9966 = vmatmul.f32.gmra.mxu0 %v9965
    %v9967 = vpop.f32.mrf.mxu0
    %v9968 = vadd.f32 %v9899, %v9967
    %9969 = vdwg.mxu0
    %v9970 = vand.u32 %v8642, 4294901760
    %9971 = vmatpush.xpose.msra.mxu0 %v9970
    %v9972 = vand.u32 %v8638, 4294901760
    %9973 = vmatpush.xpose.msra.mxu0 %v9972
    %v9974 = vand.u32 %v8634, 4294901760
    %9975 = vmatpush.xpose.msra.mxu0 %v9974
    %v9976 = vand.u32 %v8630, 4294901760
    %9977 = vmatpush.xpose.msra.mxu0 %v9976
    %v9978 = vand.u32 %v8626, 4294901760
    %9979 = vmatpush.xpose.msra.mxu0 %v9978
    %v9980 = vand.u32 %v8622, 4294901760
    %9981 = vmatpush.xpose.msra.mxu0 %v9980
    %v9982 = vand.u32 %v8618, 4294901760
    %9983 = vmatpush.xpose.msra.mxu0 %v9982
    %v9984 = vand.u32 %v8614, 4294901760
    %9985 = vmatpush.xpose.msra.mxu0 %v9984
    %v9986 = vand.u32 %v8610, 4294901760
    %9987 = vmatpush.xpose.msra.mxu0 %v9986
    %v9988 = vand.u32 %v8606, 4294901760
    %9989 = vmatpush.xpose.msra.mxu0 %v9988
    %v9990 = vand.u32 %v8602, 4294901760
    %9991 = vmatpush.xpose.msra.mxu0 %v9990
    %v9992 = vand.u32 %v8598, 4294901760
    %9993 = vmatpush.xpose.msra.mxu0 %v9992
    %v9994 = vand.u32 %v8594, 4294901760
    %9995 = vmatpush.xpose.msra.mxu0 %v9994
    %v9996 = vand.u32 %v8590, 4294901760
    %9997 = vmatpush.xpose.msra.mxu0 %v9996
    %v9998 = vand.u32 %v8586, 4294901760
    %9999 = vmatpush.xpose.msra.mxu0 %v9998
    %v10000 = vand.u32 %v8582, 4294901760
    %10001 = vmatpush.xpose.msra.mxu0 %v10000
    %v10002 = vand.u32 %v5979, 4294901760
    %10003 = vmatmul.f32.gmra.mxu0 %v10002
    %v10004 = vpop.f32.mrf.mxu0
    %v10005 = vadd.f32 %v9968, %v10004
    %10006 = vdwg.mxu0
    %v10007 = vrcp.pop %v9323
    %v10008 = vmul.f32 %v9323, %v10007
    %v10009 = vsub.f32 1.0, %v10008
    %v10010 = vmul.f32 %v10007, %v10009
    %v10011 = vadd.f32 %v10007, %v10010
    %vm10012 = vweird.f32 %v9323
    %vm10013 = vweird.f32 %v10007
    %vm10014 = vmor %vm10012, %vm10013
    %v10015 = vsel %vm10014, %v10007, %v10011
    %v10016 = vand.u32 2147483647, %v9323
    %vm10017 = vcmp.eq.f32.partialorder %v10016, 8.507059e+37
    %v10018 = vand.u32 %v9323, 2147483648
    %v10019 = vor.u32 1.1754944e-38, %v10018
    %v10020 = vsel %vm10017, %v10019, %v10015
    %v10021 = vrcp.pop %v10005
    %v10022 = vmul.f32 %v10005, %v10021
    %v10023 = vsub.f32 1.0, %v10022
    %v10024 = vmul.f32 %v10021, %v10023
    %v10025 = vadd.f32 %v10021, %v10024
    %vm10026 = vweird.f32 %v10005
    %vm10027 = vweird.f32 %v10021
    %vm10028 = vmor %vm10026, %vm10027
    %v10029 = vsel %vm10028, %v10021, %v10025
    %v10030 = vand.u32 2147483647, %v10005
    %vm10031 = vcmp.eq.f32.partialorder %v10030, 8.507059e+37
    %v10032 = vand.u32 %v10005, 2147483648
    %v10033 = vor.u32 1.1754944e-38, %v10032
    %v10034 = vsel %vm10031, %v10033, %v10029
    %10035 = vmatpush.msra.mxu0 0.0
    %10036 = vmatpush.msra.mxu0 0.0
    %10037 = vmatpush.msra.mxu0 0.0
    %10038 = vmatpush.msra.mxu0 0.0
    %10039 = vmatpush.msra.mxu0 0.0
    %10040 = vmatpush.msra.mxu0 0.0
    %10041 = vmatpush.msra.mxu0 0.0
    %10042 = vmatpush.msra.mxu0 0.0
    %10043 = vmatpush.msra.mxu0 0.0
    %10044 = vmatpush.msra.mxu0 0.0
    %10045 = vmatpush.msra.mxu0 0.0
    %10046 = vmatpush.msra.mxu0 0.0
    %10047 = vmatpush.msra.mxu0 0.0
    %10048 = vmatpush.msra.mxu0 0.0
    %10049 = vmatpush.msra.mxu0 0.0
    %v10050 = vand.u32 %v9323, 4294901760
    %10051 = vmatpush.msra.mxu0 %v10050
    %v10052 = vand.u32 %v4887, 4294901760
    %v10053 = vsub.f32 %v4887, %v10052
    %v10054 = vand.u32 %v10053, 4294901760
    %v10055 = vsub.f32 %v10053, %v10054
    %v10056 = vand.u32 %v10055, 4294901760
    %10057 = vmatmul.f32.gmra.mxu0 %v10056
    %v10058 = vpop.f32.mrf.mxu0
    %v10059 = vadd.f32 0.0, %v10058
    %10060 = vdwg.mxu0
    %10061 = vmatpush.msra.mxu0 0.0
    %10062 = vmatpush.msra.mxu0 0.0
    %10063 = vmatpush.msra.mxu0 0.0
    %10064 = vmatpush.msra.mxu0 0.0
    %10065 = vmatpush.msra.mxu0 0.0
    %10066 = vmatpush.msra.mxu0 0.0
    %10067 = vmatpush.msra.mxu0 0.0
    %10068 = vmatpush.msra.mxu0 0.0
    %10069 = vmatpush.msra.mxu0 0.0
    %10070 = vmatpush.msra.mxu0 0.0
    %10071 = vmatpush.msra.mxu0 0.0
    %10072 = vmatpush.msra.mxu0 0.0
    %10073 = vmatpush.msra.mxu0 0.0
    %10074 = vmatpush.msra.mxu0 0.0
    %10075 = vmatpush.msra.mxu0 0.0
    %v10076 = vand.u32 %v9323, 4294901760
    %v10077 = vsub.f32 %v9323, %v10076
    %v10078 = vand.u32 %v10077, 4294901760
    %v10079 = vsub.f32 %v10077, %v10078
    %v10080 = vand.u32 %v10079, 4294901760
    %10081 = vmatpush.msra.mxu0 %v10080
    %v10082 = vand.u32 %v4887, 4294901760
    %10083 = vmatmul.f32.gmra.mxu0 %v10082
    %v10084 = vpop.f32.mrf.mxu0
    %v10085 = vadd.f32 %v10059, %v10084
    %10086 = vdwg.mxu0
    %10087 = vmatpush.msra.mxu0 0.0
    %10088 = vmatpush.msra.mxu0 0.0
    %10089 = vmatpush.msra.mxu0 0.0
    %10090 = vmatpush.msra.mxu0 0.0
    %10091 = vmatpush.msra.mxu0 0.0
    %10092 = vmatpush.msra.mxu0 0.0
    %10093 = vmatpush.msra.mxu0 0.0
    %10094 = vmatpush.msra.mxu0 0.0
    %10095 = vmatpush.msra.mxu0 0.0
    %10096 = vmatpush.msra.mxu0 0.0
    %10097 = vmatpush.msra.mxu0 0.0
    %10098 = vmatpush.msra.mxu0 0.0
    %10099 = vmatpush.msra.mxu0 0.0
    %10100 = vmatpush.msra.mxu0 0.0
    %10101 = vmatpush.msra.mxu0 0.0
    %v10102 = vand.u32 %v9323, 4294901760
    %v10103 = vsub.f32 %v9323, %v10102
    %10104 = vmatpush.msra.mxu0 %v10103
    %v10105 = vand.u32 %v4887, 4294901760
    %v10106 = vsub.f32 %v4887, %v10105
    %10107 = vmatmul.f32.gmra.mxu0 %v10106
    %v10108 = vpop.f32.mrf.mxu0
    %v10109 = vadd.f32 %v10085, %v10108
    %10110 = vdwg.mxu0
    %10111 = vmatpush.msra.mxu0 0.0
    %10112 = vmatpush.msra.mxu0 0.0
    %10113 = vmatpush.msra.mxu0 0.0
    %10114 = vmatpush.msra.mxu0 0.0
    %10115 = vmatpush.msra.mxu0 0.0
    %10116 = vmatpush.msra.mxu0 0.0
    %10117 = vmatpush.msra.mxu0 0.0
    %10118 = vmatpush.msra.mxu0 0.0
    %10119 = vmatpush.msra.mxu0 0.0
    %10120 = vmatpush.msra.mxu0 0.0
    %10121 = vmatpush.msra.mxu0 0.0
    %10122 = vmatpush.msra.mxu0 0.0
    %10123 = vmatpush.msra.mxu0 0.0
    %10124 = vmatpush.msra.mxu0 0.0
    %10125 = vmatpush.msra.mxu0 0.0
    %v10126 = vand.u32 %v9323, 4294901760
    %10127 = vmatpush.msra.mxu0 %v10126
    %v10128 = vand.u32 %v4887, 4294901760
    %v10129 = vsub.f32 %v4887, %v10128
    %v10130 = vand.u32 %v10129, 4294901760
    %10131 = vmatmul.f32.gmra.mxu0 %v10130
    %v10132 = vpop.f32.mrf.mxu0
    %v10133 = vadd.f32 %v10109, %v10132
    %10134 = vdwg.mxu0
    %10135 = vmatpush.msra.mxu0 0.0
    %10136 = vmatpush.msra.mxu0 0.0
    %10137 = vmatpush.msra.mxu0 0.0
    %10138 = vmatpush.msra.mxu0 0.0
    %10139 = vmatpush.msra.mxu0 0.0
    %10140 = vmatpush.msra.mxu0 0.0
    %10141 = vmatpush.msra.mxu0 0.0
    %10142 = vmatpush.msra.mxu0 0.0
    %10143 = vmatpush.msra.mxu0 0.0
    %10144 = vmatpush.msra.mxu0 0.0
    %10145 = vmatpush.msra.mxu0 0.0
    %10146 = vmatpush.msra.mxu0 0.0
    %10147 = vmatpush.msra.mxu0 0.0
    %10148 = vmatpush.msra.mxu0 0.0
    %10149 = vmatpush.msra.mxu0 0.0
    %v10150 = vand.u32 %v9323, 4294901760
    %v10151 = vsub.f32 %v9323, %v10150
    %v10152 = vand.u32 %v10151, 4294901760
    %10153 = vmatpush.msra.mxu0 %v10152
    %v10154 = vand.u32 %v4887, 4294901760
    %10155 = vmatmul.f32.gmra.mxu0 %v10154
    %v10156 = vpop.f32.mrf.mxu0
    %v10157 = vadd.f32 %v10133, %v10156
    %10158 = vdwg.mxu0
    %10159 = vmatpush.msra.mxu0 0.0
    %10160 = vmatpush.msra.mxu0 0.0
    %10161 = vmatpush.msra.mxu0 0.0
    %10162 = vmatpush.msra.mxu0 0.0
    %10163 = vmatpush.msra.mxu0 0.0
    %10164 = vmatpush.msra.mxu0 0.0
    %10165 = vmatpush.msra.mxu0 0.0
    %10166 = vmatpush.msra.mxu0 0.0
    %10167 = vmatpush.msra.mxu0 0.0
    %10168 = vmatpush.msra.mxu0 0.0
    %10169 = vmatpush.msra.mxu0 0.0
    %10170 = vmatpush.msra.mxu0 0.0
    %10171 = vmatpush.msra.mxu0 0.0
    %10172 = vmatpush.msra.mxu0 0.0
    %10173 = vmatpush.msra.mxu0 0.0
    %v10174 = vand.u32 %v9323, 4294901760
    %10175 = vmatpush.msra.mxu0 %v10174
    %v10176 = vand.u32 %v4887, 4294901760
    %10177 = vmatmul.f32.gmra.mxu0 %v10176
    %v10178 = vpop.f32.mrf.mxu0
    %v10179 = vadd.f32 %v10157, %v10178
    %10180 = vdwg.mxu0
    %10181 = vmatpush.msra.mxu0 0.0
    %10182 = vmatpush.msra.mxu0 0.0
    %10183 = vmatpush.msra.mxu0 0.0
    %10184 = vmatpush.msra.mxu0 0.0
    %10185 = vmatpush.msra.mxu0 0.0
    %10186 = vmatpush.msra.mxu0 0.0
    %10187 = vmatpush.msra.mxu0 0.0
    %10188 = vmatpush.msra.mxu0 0.0
    %10189 = vmatpush.msra.mxu0 0.0
    %10190 = vmatpush.msra.mxu0 0.0
    %10191 = vmatpush.msra.mxu0 0.0
    %10192 = vmatpush.msra.mxu0 0.0
    %10193 = vmatpush.msra.mxu0 0.0
    %10194 = vmatpush.msra.mxu0 0.0
    %10195 = vmatpush.msra.mxu0 0.0
    %v10196 = vand.u32 %v10005, 4294901760
    %10197 = vmatpush.msra.mxu0 %v10196
    %v10198 = vand.u32 %v4887, 4294901760
    %v10199 = vsub.f32 %v4887, %v10198
    %v10200 = vand.u32 %v10199, 4294901760
    %v10201 = vsub.f32 %v10199, %v10200
    %v10202 = vand.u32 %v10201, 4294901760
    %10203 = vmatmul.f32.gmra.mxu0 %v10202
    %v10204 = vpop.f32.mrf.mxu0
    %v10205 = vadd.f32 0.0, %v10204
    %10206 = vdwg.mxu0
    %10207 = vmatpush.msra.mxu0 0.0
    %10208 = vmatpush.msra.mxu0 0.0
    %10209 = vmatpush.msra.mxu0 0.0
    %10210 = vmatpush.msra.mxu0 0.0
    %10211 = vmatpush.msra.mxu0 0.0
    %10212 = vmatpush.msra.mxu0 0.0
    %10213 = vmatpush.msra.mxu0 0.0
    %10214 = vmatpush.msra.mxu0 0.0
    %10215 = vmatpush.msra.mxu0 0.0
    %10216 = vmatpush.msra.mxu0 0.0
    %10217 = vmatpush.msra.mxu0 0.0
    %10218 = vmatpush.msra.mxu0 0.0
    %10219 = vmatpush.msra.mxu0 0.0
    %10220 = vmatpush.msra.mxu0 0.0
    %10221 = vmatpush.msra.mxu0 0.0
    %v10222 = vand.u32 %v10005, 4294901760
    %v10223 = vsub.f32 %v10005, %v10222
    %v10224 = vand.u32 %v10223, 4294901760
    %v10225 = vsub.f32 %v10223, %v10224
    %v10226 = vand.u32 %v10225, 4294901760
    %10227 = vmatpush.msra.mxu0 %v10226
    %v10228 = vand.u32 %v4887, 4294901760
    %10229 = vmatmul.f32.gmra.mxu0 %v10228
    %v10230 = vpop.f32.mrf.mxu0
    %v10231 = vadd.f32 %v10205, %v10230
    %10232 = vdwg.mxu0
    %10233 = vmatpush.msra.mxu0 0.0
    %10234 = vmatpush.msra.mxu0 0.0
    %10235 = vmatpush.msra.mxu0 0.0
    %10236 = vmatpush.msra.mxu0 0.0
    %10237 = vmatpush.msra.mxu0 0.0
    %10238 = vmatpush.msra.mxu0 0.0
    %10239 = vmatpush.msra.mxu0 0.0
    %10240 = vmatpush.msra.mxu0 0.0
    %10241 = vmatpush.msra.mxu0 0.0
    %10242 = vmatpush.msra.mxu0 0.0
    %10243 = vmatpush.msra.mxu0 0.0
    %10244 = vmatpush.msra.mxu0 0.0
    %10245 = vmatpush.msra.mxu0 0.0
    %10246 = vmatpush.msra.mxu0 0.0
    %10247 = vmatpush.msra.mxu0 0.0
    %v10248 = vand.u32 %v10005, 4294901760
    %v10249 = vsub.f32 %v10005, %v10248
    %10250 = vmatpush.msra.mxu0 %v10249
    %v10251 = vand.u32 %v4887, 4294901760
    %v10252 = vsub.f32 %v4887, %v10251
    %10253 = vmatmul.f32.gmra.mxu0 %v10252
    %v10254 = vpop.f32.mrf.mxu0
    %v10255 = vadd.f32 %v10231, %v10254
    %10256 = vdwg.mxu0
    %10257 = vmatpush.msra.mxu0 0.0
    %10258 = vmatpush.msra.mxu0 0.0
    %10259 = vmatpush.msra.mxu0 0.0
    %10260 = vmatpush.msra.mxu0 0.0
    %10261 = vmatpush.msra.mxu0 0.0
    %10262 = vmatpush.msra.mxu0 0.0
    %10263 = vmatpush.msra.mxu0 0.0
    %10264 = vmatpush.msra.mxu0 0.0
    %10265 = vmatpush.msra.mxu0 0.0
    %10266 = vmatpush.msra.mxu0 0.0
    %10267 = vmatpush.msra.mxu0 0.0
    %10268 = vmatpush.msra.mxu0 0.0
    %10269 = vmatpush.msra.mxu0 0.0
    %10270 = vmatpush.msra.mxu0 0.0
    %10271 = vmatpush.msra.mxu0 0.0
    %v10272 = vand.u32 %v10005, 4294901760
    %10273 = vmatpush.msra.mxu0 %v10272
    %v10274 = vand.u32 %v4887, 4294901760
    %v10275 = vsub.f32 %v4887, %v10274
    %v10276 = vand.u32 %v10275, 4294901760
    %10277 = vmatmul.f32.gmra.mxu0 %v10276
    %v10278 = vpop.f32.mrf.mxu0
    %v10279 = vadd.f32 %v10255, %v10278
    %10280 = vdwg.mxu0
    %10281 = vmatpush.msra.mxu0 0.0
    %10282 = vmatpush.msra.mxu0 0.0
    %10283 = vmatpush.msra.mxu0 0.0
    %10284 = vmatpush.msra.mxu0 0.0
    %10285 = vmatpush.msra.mxu0 0.0
    %10286 = vmatpush.msra.mxu0 0.0
    %10287 = vmatpush.msra.mxu0 0.0
    %10288 = vmatpush.msra.mxu0 0.0
    %10289 = vmatpush.msra.mxu0 0.0
    %10290 = vmatpush.msra.mxu0 0.0
    %10291 = vmatpush.msra.mxu0 0.0
    %10292 = vmatpush.msra.mxu0 0.0
    %10293 = vmatpush.msra.mxu0 0.0
    %10294 = vmatpush.msra.mxu0 0.0
    %10295 = vmatpush.msra.mxu0 0.0
    %v10296 = vand.u32 %v10005, 4294901760
    %v10297 = vsub.f32 %v10005, %v10296
    %v10298 = vand.u32 %v10297, 4294901760
    %10299 = vmatpush.msra.mxu0 %v10298
    %v10300 = vand.u32 %v4887, 4294901760
    %10301 = vmatmul.f32.gmra.mxu0 %v10300
    %v10302 = vpop.f32.mrf.mxu0
    %v10303 = vadd.f32 %v10279, %v10302
    %10304 = vdwg.mxu0
    %10305 = vmatpush.msra.mxu0 0.0
    %10306 = vmatpush.msra.mxu0 0.0
    %10307 = vmatpush.msra.mxu0 0.0
    %10308 = vmatpush.msra.mxu0 0.0
    %10309 = vmatpush.msra.mxu0 0.0
    %10310 = vmatpush.msra.mxu0 0.0
    %10311 = vmatpush.msra.mxu0 0.0
    %10312 = vmatpush.msra.mxu0 0.0
    %10313 = vmatpush.msra.mxu0 0.0
    %10314 = vmatpush.msra.mxu0 0.0
    %10315 = vmatpush.msra.mxu0 0.0
    %10316 = vmatpush.msra.mxu0 0.0
    %10317 = vmatpush.msra.mxu0 0.0
    %10318 = vmatpush.msra.mxu0 0.0
    %10319 = vmatpush.msra.mxu0 0.0
    %v10320 = vand.u32 %v10005, 4294901760
    %10321 = vmatpush.msra.mxu0 %v10320
    %v10322 = vand.u32 %v4887, 4294901760
    %10323 = vmatmul.f32.gmra.mxu0 %v10322
    %v10324 = vpop.f32.mrf.mxu0
    %v10325 = vadd.f32 %v10303, %v10324
    %10326 = vdwg.mxu0
    %v10327 = vperm.slane %v10020, 4
    %v10328 = vperm.slane %v10034, 4
    %v10329 = vmul.f32 %v10179, %v10327
    %v10330 = vmul.f32 %v10325, %v10328
    %v10331 = vadd.f32 %v10329, %v5187
    %v10332 = vadd.f32 %v10330, %v5187
    %10333 = vst [vmem:[#allocation1] ss:$2 sm:$0xff] %v5205
    %v10334 = vld.sshfl [vmem:[#allocation1] sm:$0xff pattern:$0x75316420]
    %v10335 = vld.sshfl [vmem:[#allocation1 + $0x8] sm:$0xff pattern:$0x75316420]
    %v10338 = vadd.f32 %v10331, %v10334
    %v10339 = vadd.f32 %v10332, %v10335
    %v10342 = vrot.slane %v10339, 4
    %v10343 = vsel %vm32, %v10338, %v10342
    %s10345 = scalar_lea.vmem [#allocation2], 8
    %10346 = vst [vmem:[%s10345] sm:$0xff] %v10343
    // Predicated region
    $region18: #{tpu_custom_call.1} parent=1 // pred_check
      _
    $region19: #{tpu_custom_call.1} parent=1 // pred_check_branch
      %10348 = sbr.rel (0) target = $region21
    $region20: #{tpu_custom_call.1} parent=1 // pred_region
      %10350 = vsyncadd [#allocation3], 0
      %s10351 = sshll.u32 [#allocation2], 4
      %s10352 = int_to_ptr.vmem [resolvable:$true] %s10351
      %s10353 = sshll.u32 %s4, 4
      %s10354 = int_to_ptr.hbm [resolvable:$true] %s10353
      %10359 = dma.vmem_to_hbm [thread:$0]  %s10352, 256, %s10354, [#allocation3], 128, 128, 8
    $region21: #{tpu_custom_call.1} parent=1 // pred_fallthru
      _
    // Predicated region
    $region22: #{tpu_custom_call.1} parent=1 // pred_check
      _
    $region23: #{tpu_custom_call.1} parent=1 // pred_check_branch
      %10361 = sbr.rel (0) target = $region25
    $region24: #{tpu_custom_call.1} parent=1 // pred_region
      %10363 = dma.done [#allocation3], 256
    $region25: #{tpu_custom_call.1} parent=1 // pred_fallthru
      _
    %10364 = vsyncpa [#allocation3], 1

</llo_original>
